<compile_context>
chip_gen: v7x
topology: tpu7x:2x2x1
jax: 0.10.0
libtpu: 0.0.40
codegen_flags: <defaults>
</compile_context>

<pallas_src>
import jax
import jax.numpy as jnp
from jax.experimental import pallas as pl
from jax.experimental.pallas import tpu as pltpu


# ----------------------------- Pallas kernels ------------------------------

def _conv_stage_kernel(p_ref, w1_ref, b1_ref, w2_ref, b2_ref, o_ref):
    """conv1 + ReLU + pool + conv2 + ReLU + pool for one batch tile."""
    B = p_ref.shape[0]

    # ---- conv1: one large-M MXU matmul over all (sample, out_row, out_col) rows ----
    a1 = p_ref[...].reshape(B * 28 * 32, 80)                      # bf16, aligned reshape
    y1 = jnp.dot(a1, w1_ref[...], preferred_element_type=jnp.float32)
    y1 = jnp.maximum(y1 + b1_ref[...], 0.0)                       # (B*896, 32) f32
    y1 = y1.reshape(B, 28, 32, 32)                                # (b, ho', wo', c1)

    # ---- 2x2 maxpool; ho'/wo' are parity-major so pool pairs are contiguous halves ----
    yw = jnp.maximum(y1[:, :, :16, :], y1[:, :, 16:, :])          # W-pool (B,28,16,32)
    p1 = jnp.maximum(yw[:, :14, :, :], yw[:, 14:, :, :])          # H-pool (B,14,16,32)
    # valid region: rows 0..13, cols 0..13, channels 0..17 (rest is ignored)

    # ---- conv2 im2col built in VMEM: 25 slabs of the 32 (padded) conv1 channels ----
    slabs = []
    for kh in range(5):
        rows = p1[:, kh:kh + 10, :, :]                            # (B,10,16,32)
        for kw in range(5):
            if kw == 0:
                slabs.append(rows)
            else:                                                 # shift pooled col by kw
                slabs.append(jnp.concatenate(
                    [rows[:, :, kw:, :], rows[:, :, :kw, :]], axis=2))
    x2 = jnp.concatenate(slabs, axis=-1).astype(jnp.bfloat16)     # (B,10,16,800)

    # ---- conv2: one large-M MXU matmul (K = 25*32 = 800, not 3200) ----
    y2 = jnp.dot(x2.reshape(B * 160, 800), w2_ref[...],
                 preferred_element_type=jnp.float32)
    y2 = jnp.maximum(y2 + b2_ref[...], 0.0).reshape(B, 10, 16, 128)

    # ---- 2x2 maxpool on the 10x10 conv2 output (cols 0..9 of 16 are valid) ----
    y2 = y2.reshape(B, 5, 2, 16, 128)
    y2h = jnp.maximum(y2[:, :, 0], y2[:, :, 1])                   # H-pool (B,5,16,128)
    cols = [jnp.maximum(y2h[:, :, 2 * k:2 * k + 1, :],
                        y2h[:, :, 2 * k + 1:2 * k + 2, :]) for k in range(5)]
    o_ref[...] = jnp.concatenate(cols, axis=2)                    # one (B,5,5,128) store


def _fc_tail_kernel(a_ref, w1_ref, b1_ref, w2_ref, b2_ref, w3_ref, b3_ref,
                    tn_ref, o_ref):
    # Fused fc1+ReLU, fc2+ReLU, fc3+ReLU, TensorNorm (training-mode whole-tensor stats).
    a = a_ref[...].astype(jnp.bfloat16)                                    # (N, 3200)
    h = jnp.maximum(jnp.dot(a, w1_ref[...],
                            preferred_element_type=jnp.float32) + b1_ref[...], 0.0)
    h = jnp.maximum(jnp.dot(h.astype(jnp.bfloat16), w2_ref[...],
                            preferred_element_type=jnp.float32) + b2_ref[...], 0.0)
    h = jnp.maximum(jnp.dot(h.astype(jnp.bfloat16), w3_ref[...],
                            preferred_element_type=jnp.float32) + b3_ref[...], 0.0)
    y = h[:, :10]                                                          # true logits
    n = y.shape[0] * y.shape[1]
    mean = jnp.sum(y) / n
    c = y - mean
    var = jnp.sum(c * c) / (n - 1.0)                 # unbiased, like torch .var()
    o_ref[...] = c * jax.lax.rsqrt(var + 1e-4) * tn_ref[0] + tn_ref[1]


# ----------------------------- Pallas wrappers ------------------------------

def conv_stage(patches, w1, b1, w2, b2, b_tile):
    Np = patches.shape[0]
    return pl.pallas_call(
        _conv_stage_kernel,
        grid=(Np // b_tile,),
        in_specs=[pl.BlockSpec((b_tile, 28, 32, 80), lambda n: (n, 0, 0, 0)),
                  pl.BlockSpec((80, 32), lambda n: (0, 0)),
                  pl.BlockSpec((1, 32), lambda n: (0, 0)),
                  pl.BlockSpec((800, 128), lambda n: (0, 0)),
                  pl.BlockSpec((1, 128), lambda n: (0, 0))],
        out_specs=pl.BlockSpec((b_tile, 5, 5, 128), lambda n: (n, 0, 0, 0)),
        out_shape=jax.ShapeDtypeStruct((Np, 5, 5, 128), jnp.float32),
        compiler_params=pltpu.CompilerParams(
            dimension_semantics=("parallel",),
            vmem_limit_bytes=64 * 1024 * 1024),
    )(patches, w1, b1, w2, b2)


def fc_tail(a, p):
    N = a.shape[0]
    vmem = pl.BlockSpec(memory_space=pltpu.MemorySpace.VMEM)
    smem = pl.BlockSpec(memory_space=pltpu.MemorySpace.SMEM)
    # TODO(synk): on v7x this single call uses one TensorCore; gridding it over the
    # batch would need a cross-step TensorNorm reduction (whole-batch statistics).
    return pl.pallas_call(
        _fc_tail_kernel,
        in_specs=[vmem] * 7 + [smem],
        out_specs=vmem,
        out_shape=jax.ShapeDtypeStruct((N, 10), jnp.float32),
    )(a, p['fw1'], p['fb1'], p['fw2'], p['fb2'], p['fw3'], p['fb3'], p['tn'])


# ----------------------------- wrapper-side layout ------------------------------

def _conv1_im2col(x):
    """x: (Np, 32, 32, 3) f32 NHWC -> lane-dense conv1 im2col patches.

    Returns (Np, 28, 32, 80) bf16 where
      dim1 = conv1 output row, parity-major: [0,2,...,26, 1,3,...,27]
      dim2 = conv1 output col, parity-major + zero pad: [0,2,...,26,pp, 1,3,...,27,pp]
      dim3 = (kh, kw, cin) patch features, zero-padded 75 -> 80.
    Parity-major order makes the fused 2x2 maxpool a max of contiguous halves and
    every in-kernel reshape vreg-aligned.  The unfold touches only the 12 KB input.
    """
    slabs = [x[:, kh:kh + 28, kw:kw + 28, :]
             for kh in range(5) for kw in range(5)]
    p = jnp.concatenate(slabs, axis=-1)                           # (Np, 28, 28, 75)
    p = jnp.concatenate([p[:, 0::2], p[:, 1::2]], axis=1)         # rows parity-major
    zpad = jnp.zeros(p.shape[:2] + (2, 75), p.dtype)
    p = jnp.concatenate([p[:, :, 0::2], zpad, p[:, :, 1::2], zpad], axis=2)
    p = jnp.pad(p, ((0, 0), (0, 0), (0, 0), (0, 5)))              # K 75 -> 80
    return p.astype(jnp.bfloat16)


# ----------------------------- model definition ------------------------------

def init_params(key):
    ks = jax.random.split(key, 12)

    def u(k, shape, bound):
        return jax.random.uniform(k, shape, jnp.float32, -bound, bound)

    p = {}
    # Conv layers: 3 -> 18 (6*3), 18 -> 48 (16*3), kernel 5x5, with bias.
    cb1 = 1.0 / (3 * 25) ** 0.5
    cb2 = 1.0 / (18 * 25) ** 0.5
    p['conv1_w'] = u(ks[0], (5, 5, 3, 18), cb1)
    p['conv1_b'] = u(ks[1], (18,), cb1)
    p['conv2_w'] = u(ks[2], (5, 5, 18, 48), cb2)
    p['conv2_b'] = u(ks[3], (48,), cb2)
    # FC layers: 1200 (= 16*5*5*3 = 48*5*5) -> 360 -> 252 -> 10, weights uniform(-1, 1).
    # NOTE: fc1 rows here follow the NHWC (h, w, c) flatten order used by the kernels;
    # porting trained PyTorch weights (NCHW flatten) requires permuting the 1200 rows.
    p['fc1_w'] = u(ks[4], (1200, 360), 1.0)
    p['fc1_b'] = u(ks[5], (360,), 1.0 / 1200 ** 0.5)
    p['fc2_w'] = u(ks[6], (360, 252), 1.0)
    p['fc2_b'] = u(ks[7], (252,), 1.0 / 360 ** 0.5)
    p['fc3_w'] = u(ks[8], (252, 10), 1.0)
    p['fc3_b'] = u(ks[9], (10,), 1.0 / 252 ** 0.5)
    # TensorNorm affine params (torch.rand -> U[0, 1)).
    p['tn_w'] = jax.random.uniform(ks[10], (), jnp.float32)
    p['tn_b'] = jax.random.uniform(ks[11], (), jnp.float32)
    return p


def prepare_params(p):
    """Fold `2x-1` into conv1, pad to lane/VMEM-friendly shapes, cast matmul operands."""
    # conv1: relu(W @ (2x - 1) + b) == relu((2W) @ x + (b - sum W));
    # K padded 75 -> 80, Cout padded 18 -> 32 (zero weights AND zero bias).
    w1 = p['conv1_w']
    w1m = jnp.pad((2.0 * w1).reshape(75, 18), ((0, 5), (0, 14)))           # (80, 32)
    b1 = jnp.pad(p['conv1_b'] - jnp.sum(w1, axis=(0, 1, 2)), (0, 14))
    # conv2: rows = (kh, kw, cin padded 18->32), cols = Cout padded 48 -> 128.
    w2m = jnp.pad(p['conv2_w'], ((0, 0), (0, 0), (0, 14), (0, 80))).reshape(800, 128)
    b2 = jnp.pad(p['conv2_b'], (0, 80))
    # fc1: rows ordered (h, w, c_pad128) to match the conv-stage output flatten; 360->384.
    fw1 = jnp.pad(p['fc1_w'].reshape(5, 5, 48, 360),
                  ((0, 0), (0, 0), (0, 80), (0, 24))).reshape(3200, 384)
    fb1 = jnp.pad(p['fc1_b'], (0, 24))
    fw2 = jnp.pad(p['fc2_w'], ((0, 24), (0, 4)))                           # (384, 256)
    fb2 = jnp.pad(p['fc2_b'], (0, 4))
    fw3 = jnp.pad(p['fc3_w'], ((0, 4), (0, 118)))                          # (256, 128)
    fb3 = jnp.pad(p['fc3_b'], (0, 118))
    return {
        'w1': w1m.astype(jnp.bfloat16), 'b1': b1.reshape(1, 32).astype(jnp.float32),
        'w2': w2m.astype(jnp.bfloat16), 'b2': b2.reshape(1, 128).astype(jnp.float32),
        'fw1': fw1.astype(jnp.bfloat16), 'fb1': fb1.reshape(1, 384).astype(jnp.float32),
        'fw2': fw2.astype(jnp.bfloat16), 'fb2': fb2.reshape(1, 256).astype(jnp.float32),
        'fw3': fw3.astype(jnp.bfloat16), 'fb3': fb3.reshape(1, 128).astype(jnp.float32),
        'tn': jnp.stack([p['tn_w'], p['tn_b']]).astype(jnp.float32),
    }


def lenet5v5_forward(prep, x_nchw, b_tile=8):
    N = x_nchw.shape[0]
    bt = min(b_tile, N)
    Np = ((N + bt - 1) // bt) * bt
    x = jnp.transpose(x_nchw, (0, 2, 3, 1)).astype(jnp.float32)    # NHWC (N, 32, 32, 3)
    if Np != N:
        x = jnp.pad(x, ((0, Np - N), (0, 0), (0, 0), (0, 0)))
    # `2x - 1` is folded into conv1 weights -> no preamble kernel.
    patches = _conv1_im2col(x)                                     # (Np, 28, 32, 80) bf16
    c2 = conv_stage(patches, prep['w1'], prep['b1'],
                    prep['w2'], prep['b2'], bt)                    # (Np, 5, 5, 128) f32
    a = c2[:N].reshape(N, 5 * 5 * 128)                             # contiguous flatten
    return fc_tail(a, prep)                                        # (N, 10)


if __name__ == "__main__":
    key = jax.random.PRNGKey(0)
    pkey, xkey = jax.random.split(key)
    params = init_params(pkey)
    prep = prepare_params(params)
    # The FC sizes (16*5*5*3 = 1200) pin the input to 3x32x32 (CIFAR-10); batch = 2.
    x = jax.random.uniform(xkey, (2, 3, 32, 32), jnp.float32)
    out = jax.jit(lenet5v5_forward)(prep, x)
    out = jax.block_until_ready(out)
    assert out.shape == (2, 10)
    print("KERNEL_OK")
</pallas_src>

<mosaic_0001>
module attributes {stable_mosaic.version = 11 : i64} {
  func.func @_conv_stage_kernel(%arg0: i32, %arg1: memref<2x28x32x80xbf16, #tpu.memory_space<vmem>>, %arg2: memref<80x32xbf16, #tpu.memory_space<vmem>>, %arg3: memref<1x32xf32, #tpu.memory_space<vmem>>, %arg4: memref<800x128xbf16, #tpu.memory_space<vmem>>, %arg5: memref<1x128xf32, #tpu.memory_space<vmem>>, %arg6: memref<2x5x5x128xf32, #tpu.memory_space<vmem>>) attributes {dimension_semantics = [#tpu.dimension_semantics<parallel>], iteration_bounds = array<i64: 1>, scalar_prefetch = 0 : i64, scratch_operands = 0 : i64, tpu.core_type = #tpu.core_type<tc>, window_params = [{transform_indices = @transform_0, window_bounds = array<i64: 2, 28, 32, 80>}, {pipeline_mode = #tpu.pipeline_mode<synchronous>, transform_indices = @transform_1, window_bounds = array<i64: 80, 32>}, {pipeline_mode = #tpu.pipeline_mode<synchronous>, transform_indices = @transform_2, window_bounds = array<i64: 1, 32>}, {pipeline_mode = #tpu.pipeline_mode<synchronous>, transform_indices = @transform_3, window_bounds = array<i64: 800, 128>}, {pipeline_mode = #tpu.pipeline_mode<synchronous>, transform_indices = @transform_4, window_bounds = array<i64: 1, 128>}, {transform_indices = @transform_5, window_bounds = array<i64: 2, 5, 5, 128>}]} {
    %c0 = arith.constant 0 : index
    %c0_0 = arith.constant 0 : index
    %c0_1 = arith.constant 0 : index
    %c0_2 = arith.constant 0 : index
    %0 = vector.load %arg1[%c0, %c0_0, %c0_1, %c0_2] : memref<2x28x32x80xbf16, #tpu.memory_space<vmem>>, vector<2x28x32x80xbf16>
    %1 = vector.shape_cast %0 : vector<2x28x32x80xbf16> to vector<1792x80xbf16>
    %c0_3 = arith.constant 0 : index
    %c0_4 = arith.constant 0 : index
    %2 = vector.load %arg2[%c0_3, %c0_4] : memref<80x32xbf16, #tpu.memory_space<vmem>>, vector<80x32xbf16>
    %cst = arith.constant dense<0.000000e+00> : vector<1792x32xf32>
    %3 = tpu.matmul %1, %2, %cst {dimension_numbers = #tpu.dot_dimension_numbers<[1], [0], [0], [1], [0, 0, 1, 1], [], []>} : vector<1792x80xbf16>, vector<80x32xbf16>, vector<1792x32xf32> -> vector<1792x32xf32>
    %c0_5 = arith.constant 0 : index
    %c0_6 = arith.constant 0 : index
    %4 = vector.load %arg3[%c0_5, %c0_6] : memref<1x32xf32, #tpu.memory_space<vmem>>, vector<1x32xf32>
    %5 = vector.broadcast %4 : vector<1x32xf32> to vector<1792x32xf32>
    %6 = arith.addf %3, %5 : vector<1792x32xf32>
    %cst_7 = arith.constant 0.000000e+00 : f32
    %7 = vector.broadcast %cst_7 : f32 to vector<1792x32xf32>
    %8 = arith.maximumf %6, %7 : vector<1792x32xf32>
    %9 = vector.shape_cast %8 : vector<1792x32xf32> to vector<2x28x32x32xf32>
    %10 = vector.extract_strided_slice %9 {offsets = [0, 0, 0, 0], sizes = [2, 28, 16, 32], strides = [1, 1, 1, 1]} : vector<2x28x32x32xf32> to vector<2x28x16x32xf32>
    %11 = vector.extract_strided_slice %9 {offsets = [0, 0, 16, 0], sizes = [2, 28, 16, 32], strides = [1, 1, 1, 1]} : vector<2x28x32x32xf32> to vector<2x28x16x32xf32>
    %12 = arith.maximumf %10, %11 : vector<2x28x16x32xf32>
    %13 = vector.extract_strided_slice %12 {offsets = [0, 0, 0, 0], sizes = [2, 14, 16, 32], strides = [1, 1, 1, 1]} : vector<2x28x16x32xf32> to vector<2x14x16x32xf32>
    %14 = vector.extract_strided_slice %12 {offsets = [0, 14, 0, 0], sizes = [2, 14, 16, 32], strides = [1, 1, 1, 1]} : vector<2x28x16x32xf32> to vector<2x14x16x32xf32>
    %15 = arith.maximumf %13, %14 : vector<2x14x16x32xf32>
    %16 = vector.extract_strided_slice %15 {offsets = [0, 0, 0, 0], sizes = [2, 10, 16, 32], strides = [1, 1, 1, 1]} : vector<2x14x16x32xf32> to vector<2x10x16x32xf32>
    %17 = vector.extract_strided_slice %16 {offsets = [0, 0, 1, 0], sizes = [2, 10, 15, 32], strides = [1, 1, 1, 1]} : vector<2x10x16x32xf32> to vector<2x10x15x32xf32>
    %18 = vector.extract_strided_slice %16 {offsets = [0, 0, 0, 0], sizes = [2, 10, 1, 32], strides = [1, 1, 1, 1]} : vector<2x10x16x32xf32> to vector<2x10x1x32xf32>
    %19 = tpu.concatenate %17, %18 in 2 : vector<2x10x15x32xf32>, vector<2x10x1x32xf32> -> vector<2x10x16x32xf32>
    %20 = vector.extract_strided_slice %16 {offsets = [0, 0, 2, 0], sizes = [2, 10, 14, 32], strides = [1, 1, 1, 1]} : vector<2x10x16x32xf32> to vector<2x10x14x32xf32>
    %21 = vector.extract_strided_slice %16 {offsets = [0, 0, 0, 0], sizes = [2, 10, 2, 32], strides = [1, 1, 1, 1]} : vector<2x10x16x32xf32> to vector<2x10x2x32xf32>
    %22 = tpu.concatenate %20, %21 in 2 : vector<2x10x14x32xf32>, vector<2x10x2x32xf32> -> vector<2x10x16x32xf32>
    %23 = vector.extract_strided_slice %16 {offsets = [0, 0, 3, 0], sizes = [2, 10, 13, 32], strides = [1, 1, 1, 1]} : vector<2x10x16x32xf32> to vector<2x10x13x32xf32>
    %24 = vector.extract_strided_slice %16 {offsets = [0, 0, 0, 0], sizes = [2, 10, 3, 32], strides = [1, 1, 1, 1]} : vector<2x10x16x32xf32> to vector<2x10x3x32xf32>
    %25 = tpu.concatenate %23, %24 in 2 : vector<2x10x13x32xf32>, vector<2x10x3x32xf32> -> vector<2x10x16x32xf32>
    %26 = vector.extract_strided_slice %16 {offsets = [0, 0, 4, 0], sizes = [2, 10, 12, 32], strides = [1, 1, 1, 1]} : vector<2x10x16x32xf32> to vector<2x10x12x32xf32>
    %27 = vector.extract_strided_slice %16 {offsets = [0, 0, 0, 0], sizes = [2, 10, 4, 32], strides = [1, 1, 1, 1]} : vector<2x10x16x32xf32> to vector<2x10x4x32xf32>
    %28 = tpu.concatenate %26, %27 in 2 : vector<2x10x12x32xf32>, vector<2x10x4x32xf32> -> vector<2x10x16x32xf32>
    %29 = vector.extract_strided_slice %15 {offsets = [0, 1, 0, 0], sizes = [2, 10, 16, 32], strides = [1, 1, 1, 1]} : vector<2x14x16x32xf32> to vector<2x10x16x32xf32>
    %30 = vector.extract_strided_slice %29 {offsets = [0, 0, 1, 0], sizes = [2, 10, 15, 32], strides = [1, 1, 1, 1]} : vector<2x10x16x32xf32> to vector<2x10x15x32xf32>
    %31 = vector.extract_strided_slice %29 {offsets = [0, 0, 0, 0], sizes = [2, 10, 1, 32], strides = [1, 1, 1, 1]} : vector<2x10x16x32xf32> to vector<2x10x1x32xf32>
    %32 = tpu.concatenate %30, %31 in 2 : vector<2x10x15x32xf32>, vector<2x10x1x32xf32> -> vector<2x10x16x32xf32>
    %33 = vector.extract_strided_slice %29 {offsets = [0, 0, 2, 0], sizes = [2, 10, 14, 32], strides = [1, 1, 1, 1]} : vector<2x10x16x32xf32> to vector<2x10x14x32xf32>
    %34 = vector.extract_strided_slice %29 {offsets = [0, 0, 0, 0], sizes = [2, 10, 2, 32], strides = [1, 1, 1, 1]} : vector<2x10x16x32xf32> to vector<2x10x2x32xf32>
    %35 = tpu.concatenate %33, %34 in 2 : vector<2x10x14x32xf32>, vector<2x10x2x32xf32> -> vector<2x10x16x32xf32>
    %36 = vector.extract_strided_slice %29 {offsets = [0, 0, 3, 0], sizes = [2, 10, 13, 32], strides = [1, 1, 1, 1]} : vector<2x10x16x32xf32> to vector<2x10x13x32xf32>
    %37 = vector.extract_strided_slice %29 {offsets = [0, 0, 0, 0], sizes = [2, 10, 3, 32], strides = [1, 1, 1, 1]} : vector<2x10x16x32xf32> to vector<2x10x3x32xf32>
    %38 = tpu.concatenate %36, %37 in 2 : vector<2x10x13x32xf32>, vector<2x10x3x32xf32> -> vector<2x10x16x32xf32>
    %39 = vector.extract_strided_slice %29 {offsets = [0, 0, 4, 0], sizes = [2, 10, 12, 32], strides = [1, 1, 1, 1]} : vector<2x10x16x32xf32> to vector<2x10x12x32xf32>
    %40 = vector.extract_strided_slice %29 {offsets = [0, 0, 0, 0], sizes = [2, 10, 4, 32], strides = [1, 1, 1, 1]} : vector<2x10x16x32xf32> to vector<2x10x4x32xf32>
    %41 = tpu.concatenate %39, %40 in 2 : vector<2x10x12x32xf32>, vector<2x10x4x32xf32> -> vector<2x10x16x32xf32>
    %42 = vector.extract_strided_slice %15 {offsets = [0, 2, 0, 0], sizes = [2, 10, 16, 32], strides = [1, 1, 1, 1]} : vector<2x14x16x32xf32> to vector<2x10x16x32xf32>
    %43 = vector.extract_strided_slice %42 {offsets = [0, 0, 1, 0], sizes = [2, 10, 15, 32], strides = [1, 1, 1, 1]} : vector<2x10x16x32xf32> to vector<2x10x15x32xf32>
    %44 = vector.extract_strided_slice %42 {offsets = [0, 0, 0, 0], sizes = [2, 10, 1, 32], strides = [1, 1, 1, 1]} : vector<2x10x16x32xf32> to vector<2x10x1x32xf32>
    %45 = tpu.concatenate %43, %44 in 2 : vector<2x10x15x32xf32>, vector<2x10x1x32xf32> -> vector<2x10x16x32xf32>
    %46 = vector.extract_strided_slice %42 {offsets = [0, 0, 2, 0], sizes = [2, 10, 14, 32], strides = [1, 1, 1, 1]} : vector<2x10x16x32xf32> to vector<2x10x14x32xf32>
    %47 = vector.extract_strided_slice %42 {offsets = [0, 0, 0, 0], sizes = [2, 10, 2, 32], strides = [1, 1, 1, 1]} : vector<2x10x16x32xf32> to vector<2x10x2x32xf32>
    %48 = tpu.concatenate %46, %47 in 2 : vector<2x10x14x32xf32>, vector<2x10x2x32xf32> -> vector<2x10x16x32xf32>
    %49 = vector.extract_strided_slice %42 {offsets = [0, 0, 3, 0], sizes = [2, 10, 13, 32], strides = [1, 1, 1, 1]} : vector<2x10x16x32xf32> to vector<2x10x13x32xf32>
    %50 = vector.extract_strided_slice %42 {offsets = [0, 0, 0, 0], sizes = [2, 10, 3, 32], strides = [1, 1, 1, 1]} : vector<2x10x16x32xf32> to vector<2x10x3x32xf32>
    %51 = tpu.concatenate %49, %50 in 2 : vector<2x10x13x32xf32>, vector<2x10x3x32xf32> -> vector<2x10x16x32xf32>
    %52 = vector.extract_strided_slice %42 {offsets = [0, 0, 4, 0], sizes = [2, 10, 12, 32], strides = [1, 1, 1, 1]} : vector<2x10x16x32xf32> to vector<2x10x12x32xf32>
    %53 = vector.extract_strided_slice %42 {offsets = [0, 0, 0, 0], sizes = [2, 10, 4, 32], strides = [1, 1, 1, 1]} : vector<2x10x16x32xf32> to vector<2x10x4x32xf32>
    %54 = tpu.concatenate %52, %53 in 2 : vector<2x10x12x32xf32>, vector<2x10x4x32xf32> -> vector<2x10x16x32xf32>
    %55 = vector.extract_strided_slice %15 {offsets = [0, 3, 0, 0], sizes = [2, 10, 16, 32], strides = [1, 1, 1, 1]} : vector<2x14x16x32xf32> to vector<2x10x16x32xf32>
    %56 = vector.extract_strided_slice %55 {offsets = [0, 0, 1, 0], sizes = [2, 10, 15, 32], strides = [1, 1, 1, 1]} : vector<2x10x16x32xf32> to vector<2x10x15x32xf32>
    %57 = vector.extract_strided_slice %55 {offsets = [0, 0, 0, 0], sizes = [2, 10, 1, 32], strides = [1, 1, 1, 1]} : vector<2x10x16x32xf32> to vector<2x10x1x32xf32>
    %58 = tpu.concatenate %56, %57 in 2 : vector<2x10x15x32xf32>, vector<2x10x1x32xf32> -> vector<2x10x16x32xf32>
    %59 = vector.extract_strided_slice %55 {offsets = [0, 0, 2, 0], sizes = [2, 10, 14, 32], strides = [1, 1, 1, 1]} : vector<2x10x16x32xf32> to vector<2x10x14x32xf32>
    %60 = vector.extract_strided_slice %55 {offsets = [0, 0, 0, 0], sizes = [2, 10, 2, 32], strides = [1, 1, 1, 1]} : vector<2x10x16x32xf32> to vector<2x10x2x32xf32>
    %61 = tpu.concatenate %59, %60 in 2 : vector<2x10x14x32xf32>, vector<2x10x2x32xf32> -> vector<2x10x16x32xf32>
    %62 = vector.extract_strided_slice %55 {offsets = [0, 0, 3, 0], sizes = [2, 10, 13, 32], strides = [1, 1, 1, 1]} : vector<2x10x16x32xf32> to vector<2x10x13x32xf32>
    %63 = vector.extract_strided_slice %55 {offsets = [0, 0, 0, 0], sizes = [2, 10, 3, 32], strides = [1, 1, 1, 1]} : vector<2x10x16x32xf32> to vector<2x10x3x32xf32>
    %64 = tpu.concatenate %62, %63 in 2 : vector<2x10x13x32xf32>, vector<2x10x3x32xf32> -> vector<2x10x16x32xf32>
    %65 = vector.extract_strided_slice %55 {offsets = [0, 0, 4, 0], sizes = [2, 10, 12, 32], strides = [1, 1, 1, 1]} : vector<2x10x16x32xf32> to vector<2x10x12x32xf32>
    %66 = vector.extract_strided_slice %55 {offsets = [0, 0, 0, 0], sizes = [2, 10, 4, 32], strides = [1, 1, 1, 1]} : vector<2x10x16x32xf32> to vector<2x10x4x32xf32>
    %67 = tpu.concatenate %65, %66 in 2 : vector<2x10x12x32xf32>, vector<2x10x4x32xf32> -> vector<2x10x16x32xf32>
    %68 = vector.extract_strided_slice %15 {offsets = [0, 4, 0, 0], sizes = [2, 10, 16, 32], strides = [1, 1, 1, 1]} : vector<2x14x16x32xf32> to vector<2x10x16x32xf32>
    %69 = vector.extract_strided_slice %68 {offsets = [0, 0, 1, 0], sizes = [2, 10, 15, 32], strides = [1, 1, 1, 1]} : vector<2x10x16x32xf32> to vector<2x10x15x32xf32>
    %70 = vector.extract_strided_slice %68 {offsets = [0, 0, 0, 0], sizes = [2, 10, 1, 32], strides = [1, 1, 1, 1]} : vector<2x10x16x32xf32> to vector<2x10x1x32xf32>
    %71 = tpu.concatenate %69, %70 in 2 : vector<2x10x15x32xf32>, vector<2x10x1x32xf32> -> vector<2x10x16x32xf32>
    %72 = vector.extract_strided_slice %68 {offsets = [0, 0, 2, 0], sizes = [2, 10, 14, 32], strides = [1, 1, 1, 1]} : vector<2x10x16x32xf32> to vector<2x10x14x32xf32>
    %73 = vector.extract_strided_slice %68 {offsets = [0, 0, 0, 0], sizes = [2, 10, 2, 32], strides = [1, 1, 1, 1]} : vector<2x10x16x32xf32> to vector<2x10x2x32xf32>
    %74 = tpu.concatenate %72, %73 in 2 : vector<2x10x14x32xf32>, vector<2x10x2x32xf32> -> vector<2x10x16x32xf32>
    %75 = vector.extract_strided_slice %68 {offsets = [0, 0, 3, 0], sizes = [2, 10, 13, 32], strides = [1, 1, 1, 1]} : vector<2x10x16x32xf32> to vector<2x10x13x32xf32>
    %76 = vector.extract_strided_slice %68 {offsets = [0, 0, 0, 0], sizes = [2, 10, 3, 32], strides = [1, 1, 1, 1]} : vector<2x10x16x32xf32> to vector<2x10x3x32xf32>
    %77 = tpu.concatenate %75, %76 in 2 : vector<2x10x13x32xf32>, vector<2x10x3x32xf32> -> vector<2x10x16x32xf32>
    %78 = vector.extract_strided_slice %68 {offsets = [0, 0, 4, 0], sizes = [2, 10, 12, 32], strides = [1, 1, 1, 1]} : vector<2x10x16x32xf32> to vector<2x10x12x32xf32>
    %79 = vector.extract_strided_slice %68 {offsets = [0, 0, 0, 0], sizes = [2, 10, 4, 32], strides = [1, 1, 1, 1]} : vector<2x10x16x32xf32> to vector<2x10x4x32xf32>
    %80 = tpu.concatenate %78, %79 in 2 : vector<2x10x12x32xf32>, vector<2x10x4x32xf32> -> vector<2x10x16x32xf32>
    %81 = tpu.concatenate %16, %19, %22, %25, %28, %29, %32, %35, %38, %41, %42, %45, %48, %51, %54, %55 in 3 : vector<2x10x16x32xf32>, vector<2x10x16x32xf32>, vector<2x10x16x32xf32>, vector<2x10x16x32xf32>, vector<2x10x16x32xf32>, vector<2x10x16x32xf32>, vector<2x10x16x32xf32>, vector<2x10x16x32xf32>, vector<2x10x16x32xf32>, vector<2x10x16x32xf32>, vector<2x10x16x32xf32>, vector<2x10x16x32xf32>, vector<2x10x16x32xf32>, vector<2x10x16x32xf32>, vector<2x10x16x32xf32>, vector<2x10x16x32xf32> -> vector<2x10x16x512xf32>
    %82 = tpu.concatenate %58, %61, %64, %67, %68, %71, %74, %77, %80 in 3 : vector<2x10x16x32xf32>, vector<2x10x16x32xf32>, vector<2x10x16x32xf32>, vector<2x10x16x32xf32>, vector<2x10x16x32xf32>, vector<2x10x16x32xf32>, vector<2x10x16x32xf32>, vector<2x10x16x32xf32>, vector<2x10x16x32xf32> -> vector<2x10x16x288xf32>
    %83 = tpu.concatenate %81, %82 in 3 : vector<2x10x16x512xf32>, vector<2x10x16x288xf32> -> vector<2x10x16x800xf32>
    %84 = arith.truncf %83 : vector<2x10x16x800xf32> to vector<2x10x16x800xbf16>
    %85 = vector.shape_cast %84 : vector<2x10x16x800xbf16> to vector<320x800xbf16>
    %c0_8 = arith.constant 0 : index
    %c0_9 = arith.constant 0 : index
    %86 = vector.load %arg4[%c0_8, %c0_9] : memref<800x128xbf16, #tpu.memory_space<vmem>>, vector<800x128xbf16>
    %cst_10 = arith.constant dense<0.000000e+00> : vector<320x128xf32>
    %87 = tpu.matmul %85, %86, %cst_10 {dimension_numbers = #tpu.dot_dimension_numbers<[1], [0], [0], [1], [0, 0, 1, 1], [], []>} : vector<320x800xbf16>, vector<800x128xbf16>, vector<320x128xf32> -> vector<320x128xf32>
    %c0_11 = arith.constant 0 : index
    %c0_12 = arith.constant 0 : index
    %88 = vector.load %arg5[%c0_11, %c0_12] : memref<1x128xf32, #tpu.memory_space<vmem>>, vector<1x128xf32>
    %89 = vector.broadcast %88 : vector<1x128xf32> to vector<320x128xf32>
    %90 = arith.addf %87, %89 : vector<320x128xf32>
    %cst_13 = arith.constant 0.000000e+00 : f32
    %91 = vector.broadcast %cst_13 : f32 to vector<320x128xf32>
    %92 = arith.maximumf %90, %91 : vector<320x128xf32>
    %93 = vector.shape_cast %92 : vector<320x128xf32> to vector<2x10x16x128xf32>
    %94 = vector.shape_cast %93 : vector<2x10x16x128xf32> to vector<2x5x2x16x128xf32>
    %95 = vector.extract_strided_slice %94 {offsets = [0, 0, 0, 0, 0], sizes = [2, 5, 1, 16, 128], strides = [1, 1, 1, 1, 1]} : vector<2x5x2x16x128xf32> to vector<2x5x1x16x128xf32>
    %96 = vector.shape_cast %95 : vector<2x5x1x16x128xf32> to vector<2x5x16x128xf32>
    %97 = vector.extract_strided_slice %94 {offsets = [0, 0, 1, 0, 0], sizes = [2, 5, 1, 16, 128], strides = [1, 1, 1, 1, 1]} : vector<2x5x2x16x128xf32> to vector<2x5x1x16x128xf32>
    %98 = vector.shape_cast %97 : vector<2x5x1x16x128xf32> to vector<2x5x16x128xf32>
    %99 = arith.maximumf %96, %98 : vector<2x5x16x128xf32>
    %100 = vector.extract_strided_slice %99 {offsets = [0, 0, 0, 0], sizes = [2, 5, 1, 128], strides = [1, 1, 1, 1]} : vector<2x5x16x128xf32> to vector<2x5x1x128xf32>
    %101 = vector.extract_strided_slice %99 {offsets = [0, 0, 1, 0], sizes = [2, 5, 1, 128], strides = [1, 1, 1, 1]} : vector<2x5x16x128xf32> to vector<2x5x1x128xf32>
    %102 = arith.maximumf %100, %101 : vector<2x5x1x128xf32>
    %103 = vector.extract_strided_slice %99 {offsets = [0, 0, 2, 0], sizes = [2, 5, 1, 128], strides = [1, 1, 1, 1]} : vector<2x5x16x128xf32> to vector<2x5x1x128xf32>
    %104 = vector.extract_strided_slice %99 {offsets = [0, 0, 3, 0], sizes = [2, 5, 1, 128], strides = [1, 1, 1, 1]} : vector<2x5x16x128xf32> to vector<2x5x1x128xf32>
    %105 = arith.maximumf %103, %104 : vector<2x5x1x128xf32>
    %106 = vector.extract_strided_slice %99 {offsets = [0, 0, 4, 0], sizes = [2, 5, 1, 128], strides = [1, 1, 1, 1]} : vector<2x5x16x128xf32> to vector<2x5x1x128xf32>
    %107 = vector.extract_strided_slice %99 {offsets = [0, 0, 5, 0], sizes = [2, 5, 1, 128], strides = [1, 1, 1, 1]} : vector<2x5x16x128xf32> to vector<2x5x1x128xf32>
    %108 = arith.maximumf %106, %107 : vector<2x5x1x128xf32>
    %109 = vector.extract_strided_slice %99 {offsets = [0, 0, 6, 0], sizes = [2, 5, 1, 128], strides = [1, 1, 1, 1]} : vector<2x5x16x128xf32> to vector<2x5x1x128xf32>
    %110 = vector.extract_strided_slice %99 {offsets = [0, 0, 7, 0], sizes = [2, 5, 1, 128], strides = [1, 1, 1, 1]} : vector<2x5x16x128xf32> to vector<2x5x1x128xf32>
    %111 = arith.maximumf %109, %110 : vector<2x5x1x128xf32>
    %112 = vector.extract_strided_slice %99 {offsets = [0, 0, 8, 0], sizes = [2, 5, 1, 128], strides = [1, 1, 1, 1]} : vector<2x5x16x128xf32> to vector<2x5x1x128xf32>
    %113 = vector.extract_strided_slice %99 {offsets = [0, 0, 9, 0], sizes = [2, 5, 1, 128], strides = [1, 1, 1, 1]} : vector<2x5x16x128xf32> to vector<2x5x1x128xf32>
    %114 = arith.maximumf %112, %113 : vector<2x5x1x128xf32>
    %115 = tpu.concatenate %102, %105, %108, %111, %114 in 2 : vector<2x5x1x128xf32>, vector<2x5x1x128xf32>, vector<2x5x1x128xf32>, vector<2x5x1x128xf32>, vector<2x5x1x128xf32> -> vector<2x5x5x128xf32>
    %c0_14 = arith.constant 0 : index
    %c0_15 = arith.constant 0 : index
    %c0_16 = arith.constant 0 : index
    %c0_17 = arith.constant 0 : index
    %116 = vector.load %arg6[%c0_14, %c0_15, %c0_16, %c0_17] : memref<2x5x5x128xf32, #tpu.memory_space<vmem>>, vector<2x5x5x128xf32>
    tpu.vector_store %arg6[%c0_14, %c0_15, %c0_16, %c0_17], %115 {strides = array<i32>} : memref<2x5x5x128xf32, #tpu.memory_space<vmem>>, vector<2x5x5x128xf32>,
    return
  }
  func.func @transform_0(%arg0: i32) -> (i32, i32, i32, i32) {
    %c0_i32 = arith.constant 0 : i32
    %c0_i32_0 = arith.constant 0 : i32
    %c0_i32_1 = arith.constant 0 : i32
    %c0_i32_2 = arith.constant 0 : i32
    return %arg0, %c0_i32, %c0_i32_0, %c0_i32_1 : i32, i32, i32, i32
  }
  func.func @transform_1(%arg0: i32) -> (i32, i32) {
    %c0_i32 = arith.constant 0 : i32
    %c0_i32_0 = arith.constant 0 : i32
    %c0_i32_1 = arith.constant 0 : i32
    return %c0_i32, %c0_i32_0 : i32, i32
  }
  func.func @transform_2(%arg0: i32) -> (i32, i32) {
    %c0_i32 = arith.constant 0 : i32
    %c0_i32_0 = arith.constant 0 : i32
    %c0_i32_1 = arith.constant 0 : i32
    return %c0_i32, %c0_i32_0 : i32, i32
  }
  func.func @transform_3(%arg0: i32) -> (i32, i32) {
    %c0_i32 = arith.constant 0 : i32
    %c0_i32_0 = arith.constant 0 : i32
    %c0_i32_1 = arith.constant 0 : i32
    return %c0_i32, %c0_i32_0 : i32, i32
  }
  func.func @transform_4(%arg0: i32) -> (i32, i32) {
    %c0_i32 = arith.constant 0 : i32
    %c0_i32_0 = arith.constant 0 : i32
    %c0_i32_1 = arith.constant 0 : i32
    return %c0_i32, %c0_i32_0 : i32, i32
  }
  func.func @transform_5(%arg0: i32) -> (i32, i32, i32, i32) {
    %c0_i32 = arith.constant 0 : i32
    %c0_i32_0 = arith.constant 0 : i32
    %c0_i32_1 = arith.constant 0 : i32
    %c0_i32_2 = arith.constant 0 : i32
    return %arg0, %c0_i32, %c0_i32_0, %c0_i32_1 : i32, i32, i32, i32
  }
}

module attributes {stable_mosaic.version = 11 : i64} {
  func.func @_fc_tail_kernel(%arg0: memref<2x3200xf32, #tpu.memory_space<vmem>>, %arg1: memref<3200x384xbf16, #tpu.memory_space<vmem>>, %arg2: memref<1x384xf32, #tpu.memory_space<vmem>>, %arg3: memref<384x256xbf16, #tpu.memory_space<vmem>>, %arg4: memref<1x256xf32, #tpu.memory_space<vmem>>, %arg5: memref<256x128xbf16, #tpu.memory_space<vmem>>, %arg6: memref<1x128xf32, #tpu.memory_space<vmem>>, %arg7: memref<2xf32, #tpu.memory_space<smem>>, %arg8: memref<2x10xf32, #tpu.memory_space<vmem>>) attributes {dimension_semantics = [], scalar_prefetch = 0 : i64, scratch_operands = 0 : i64, tpu.core_type = #tpu.core_type<tc>} {
    %c0 = arith.constant 0 : index
    %c0_0 = arith.constant 0 : index
    %0 = vector.load %arg0[%c0, %c0_0] : memref<2x3200xf32, #tpu.memory_space<vmem>>, vector<2x3200xf32>
    %1 = arith.truncf %0 : vector<2x3200xf32> to vector<2x3200xbf16>
    %c0_1 = arith.constant 0 : index
    %c0_2 = arith.constant 0 : index
    %2 = vector.load %arg1[%c0_1, %c0_2] : memref<3200x384xbf16, #tpu.memory_space<vmem>>, vector<3200x384xbf16>
    %cst = arith.constant dense<0.000000e+00> : vector<2x384xf32>
    %3 = tpu.matmul %1, %2, %cst {dimension_numbers = #tpu.dot_dimension_numbers<[1], [0], [0], [1], [0, 0, 1, 1], [], []>} : vector<2x3200xbf16>, vector<3200x384xbf16>, vector<2x384xf32> -> vector<2x384xf32>
    %c0_3 = arith.constant 0 : index
    %c0_4 = arith.constant 0 : index
    %4 = vector.load %arg2[%c0_3, %c0_4] : memref<1x384xf32, #tpu.memory_space<vmem>>, vector<1x384xf32>
    %5 = vector.broadcast %4 : vector<1x384xf32> to vector<2x384xf32>
    %6 = arith.addf %3, %5 : vector<2x384xf32>
    %cst_5 = arith.constant 0.000000e+00 : f32
    %7 = vector.broadcast %cst_5 : f32 to vector<2x384xf32>
    %8 = arith.maximumf %6, %7 : vector<2x384xf32>
    %9 = arith.truncf %8 : vector<2x384xf32> to vector<2x384xbf16>
    %c0_6 = arith.constant 0 : index
    %c0_7 = arith.constant 0 : index
    %10 = vector.load %arg3[%c0_6, %c0_7] : memref<384x256xbf16, #tpu.memory_space<vmem>>, vector<384x256xbf16>
    %cst_8 = arith.constant dense<0.000000e+00> : vector<2x256xf32>
    %11 = tpu.matmul %9, %10, %cst_8 {dimension_numbers = #tpu.dot_dimension_numbers<[1], [0], [0], [1], [0, 0, 1, 1], [], []>} : vector<2x384xbf16>, vector<384x256xbf16>, vector<2x256xf32> -> vector<2x256xf32>
    %c0_9 = arith.constant 0 : index
    %c0_10 = arith.constant 0 : index
    %12 = vector.load %arg4[%c0_9, %c0_10] : memref<1x256xf32, #tpu.memory_space<vmem>>, vector<1x256xf32>
    %13 = vector.broadcast %12 : vector<1x256xf32> to vector<2x256xf32>
    %14 = arith.addf %11, %13 : vector<2x256xf32>
    %cst_11 = arith.constant 0.000000e+00 : f32
    %15 = vector.broadcast %cst_11 : f32 to vector<2x256xf32>
    %16 = arith.maximumf %14, %15 : vector<2x256xf32>
    %17 = arith.truncf %16 : vector<2x256xf32> to vector<2x256xbf16>
    %c0_12 = arith.constant 0 : index
    %c0_13 = arith.constant 0 : index
    %18 = vector.load %arg5[%c0_12, %c0_13] : memref<256x128xbf16, #tpu.memory_space<vmem>>, vector<256x128xbf16>
    %cst_14 = arith.constant dense<0.000000e+00> : vector<2x128xf32>
    %19 = tpu.matmul %17, %18, %cst_14 {dimension_numbers = #tpu.dot_dimension_numbers<[1], [0], [0], [1], [0, 0, 1, 1], [], []>} : vector<2x256xbf16>, vector<256x128xbf16>, vector<2x128xf32> -> vector<2x128xf32>
    %c0_15 = arith.constant 0 : index
    %c0_16 = arith.constant 0 : index
    %20 = vector.load %arg6[%c0_15, %c0_16] : memref<1x128xf32, #tpu.memory_space<vmem>>, vector<1x128xf32>
    %21 = vector.broadcast %20 : vector<1x128xf32> to vector<2x128xf32>
    %22 = arith.addf %19, %21 : vector<2x128xf32>
    %cst_17 = arith.constant 0.000000e+00 : f32
    %23 = vector.broadcast %cst_17 : f32 to vector<2x128xf32>
    %24 = arith.maximumf %22, %23 : vector<2x128xf32>
    %25 = vector.extract_strided_slice %24 {offsets = [0, 0], sizes = [2, 10], strides = [1, 1]} : vector<2x128xf32> to vector<2x10xf32>
    %26 = vector.shape_cast %25 : vector<2x10xf32> to vector<1x2x10xf32>
    %cst_18 = arith.constant dense<0.000000e+00> : vector<1xf32>
    %27 = vector.multi_reduction <add>, %26, %cst_18 [1, 2] : vector<1x2x10xf32> to vector<1xf32>
    %28 = vector.shape_cast %27 : vector<1xf32> to vector<1x1x1xf32>
    %29 = vector.extract %28[0, 0, 0] : f32 from vector<1x1x1xf32>
    %cst_19 = arith.constant 2.000000e+01 : f32
    %30 = arith.divf %29, %cst_19 : f32
    %31 = vector.broadcast %30 : f32 to vector<2x10xf32>
    %32 = arith.subf %25, %31 : vector<2x10xf32>
    %33 = arith.mulf %32, %32 : vector<2x10xf32>
    %34 = vector.shape_cast %33 : vector<2x10xf32> to vector<1x2x10xf32>
    %cst_20 = arith.constant dense<0.000000e+00> : vector<1xf32>
    %35 = vector.multi_reduction <add>, %34, %cst_20 [1, 2] : vector<1x2x10xf32> to vector<1xf32>
    %36 = vector.shape_cast %35 : vector<1xf32> to vector<1x1x1xf32>
    %37 = vector.extract %36[0, 0, 0] : f32 from vector<1x1x1xf32>
    %cst_21 = arith.constant 1.900000e+01 : f32
    %38 = arith.divf %37, %cst_21 : f32
    %cst_22 = arith.constant 9.99999974E-5 : f32
    %39 = arith.addf %38, %cst_22 : f32
    %40 = math.rsqrt %39 : f32
    %41 = vector.broadcast %40 : f32 to vector<2x10xf32>
    %42 = arith.mulf %32, %41 : vector<2x10xf32>
    %c0_23 = arith.constant 0 : index
    %43 = memref.load %arg7[%c0_23] : memref<2xf32, #tpu.memory_space<smem>>
    %44 = vector.broadcast %43 : f32 to vector<2x10xf32>
    %45 = arith.mulf %42, %44 : vector<2x10xf32>
    %c1 = arith.constant 1 : index
    %46 = memref.load %arg7[%c1] : memref<2xf32, #tpu.memory_space<smem>>
    %47 = vector.broadcast %46 : f32 to vector<2x10xf32>
    %48 = arith.addf %45, %47 : vector<2x10xf32>
    %c0_24 = arith.constant 0 : index
    %c0_25 = arith.constant 0 : index
    %49 = vector.load %arg8[%c0_24, %c0_25] : memref<2x10xf32, #tpu.memory_space<vmem>>, vector<2x10xf32>
    tpu.vector_store %arg8[%c0_24, %c0_25], %48 {strides = array<i32>} : memref<2x10xf32, #tpu.memory_space<vmem>>, vector<2x10xf32>,
    return
  }
}

</mosaic_0001>

<llo_original>
// kernel: lenet5v5_forward.3
$region0: #{lenet5v5_forward.3}
  #allocation0 [shape = 'u32[]', space=smem, size = 0x4, offset = 0x4, fixed_abs, tag = 'smem constant byte address 0x4 - core index']
  #allocation1 [shape = 'u32[144,128]{1,0:T(1,128)}', space=vmem, size = 0x12000, scoped, tag = 'internal scratch']
  %s0 = inlined_call_operand.vmem [shape: f32[2,3200], index: 0, kind: input, shape index: {}]
  %s1 = inlined_call_operand.hbm [shape: bf16[3200,384], index: 1, kind: input, shape index: {}]
  %s2 = inlined_call_operand.hbm [shape: f32[1,384], index: 2, kind: input, shape index: {}]
  %s3 = inlined_call_operand.hbm [shape: bf16[384,256], index: 3, kind: input, shape index: {}]
  %s4 = inlined_call_operand.hbm [shape: f32[1,256], index: 4, kind: input, shape index: {}]
  %s5 = inlined_call_operand.hbm [shape: bf16[256,128], index: 5, kind: input, shape index: {}]
  %s6 = inlined_call_operand.hbm [shape: f32[1,128], index: 6, kind: input, shape index: {}]
  %s7 = inlined_call_operand.hbm [shape: f32[2], index: 7, kind: input, shape index: {}]
  %s8 = inlined_call_operand.hbm [shape: f32[2,10], index: 8, kind: output, shape index: {}]
  %s9 = sld [smem:[#allocation0]]
  $region70: #{lenet5v5_forward.3} parent=0
    _
  %s11 = ssub.s32 1, %s9
  %s12 = scalar_select 0, %s11, %s9
  $region1: #{lenet5v5_forward.3} parent=0
    #allocation2 [shape = 'u8[2457600]{0}', space=vmem, size = 0x258000, scoped, tag = 'input window, operand 1, single buffered']
    #allocation3 [shape = 's32[1]{0}', space=sflag, size = 0x4, scoped, tag = 'scoped memory for lenet5v5_forward.3']
    #allocation4 [shape = 's32[1]{0}', space=sflag, size = 0x4, scoped, tag = 'scoped memory for lenet5v5_forward.3']
    #allocation5 [shape = 's32[1]{0}', space=sflag, size = 0x4, scoped, tag = 'scoped memory for lenet5v5_forward.3']
    #allocation6 [shape = 'u8[1536]{0}', space=vmem, size = 0x800, scoped, tag = 'input window, operand 2, single buffered']
    #allocation7 [shape = 's32[1]{0}', space=sflag, size = 0x4, scoped, tag = 'scoped memory for lenet5v5_forward.3']
    #allocation8 [shape = 'u8[196608]{0}', space=vmem, size = 0x30000, scoped, tag = 'input window, operand 3, single buffered']
    #allocation9 [shape = 'u8[1024]{0}', space=vmem, size = 0x400, scoped, tag = 'input window, operand 4, single buffered']
    #allocation10 [shape = 's32[1]{0}', space=sflag, size = 0x4, scoped, tag = 'scoped memory for lenet5v5_forward.3']
    #allocation11 [shape = 'u8[65536]{0}', space=vmem, size = 0x10000, scoped, tag = 'input window, operand 5, single buffered']
    #allocation12 [shape = 'u8[512]{0}', space=vmem, size = 0x400, scoped, tag = 'input window, operand 6, single buffered']
    #allocation13 [shape = 's32[1]{0}', space=sflag, size = 0x4, scoped, tag = 'scoped memory for lenet5v5_forward.3']
    #allocation14 [shape = 'u8[512]{0}', space=smem, size = 0x200, scoped, tag = 'input window, operand 7, single buffered']
    #allocation15 [shape = 'u8[1024]{0}', space=vmem, size = 0x400, scoped, tag = 'output window, operand 0, single buffered']
    %13 = vsyncpa [#allocation3], 0
    %14 = vsyncpa [#allocation7], 0
    %15 = vsyncpa [#allocation10], 0
    %16 = vsyncpa [#allocation13], 0
    %17 = vsyncpa [#allocation5], 0
    %18 = vsyncpa [#allocation4], 0
    // Predicated region
    $region2: #{lenet5v5_forward.3} parent=1 // pred_check
      _
    $region3: #{lenet5v5_forward.3} parent=1 // pred_check_branch
      %20 = sbr.rel (0) target = $region5
    $region4: #{lenet5v5_forward.3} parent=1 // pred_region
      _
    $region5: #{lenet5v5_forward.3} parent=1 // pred_fallthru
      _
    // Predicated region
    $region6: #{lenet5v5_forward.3} parent=1 // pred_check
      _
    $region7: #{lenet5v5_forward.3} parent=1 // pred_check_branch
      %22 = sbr.rel (0) target = $region9
    $region8: #{lenet5v5_forward.3} parent=1 // pred_region
      %s24 = ssub.s32 76800, 76800
      %25 = vsyncadd [#allocation3], %s24
      %s26 = sshll.u32 [#allocation2], 4
      %s27 = int_to_ptr.vmem [resolvable:$true] %s26
      %32 = dma.hbm_to_vmem [thread:$0]  %s1, 76800, %s27, [#allocation3], 192, 192, 12
    $region9: #{lenet5v5_forward.3} parent=1 // pred_fallthru
      _
    // Predicated region
    $region10: #{lenet5v5_forward.3} parent=1 // pred_check
      _
    $region11: #{lenet5v5_forward.3} parent=1 // pred_check_branch
      %34 = sbr.rel (0) target = $region13
    $region12: #{lenet5v5_forward.3} parent=1 // pred_region
      %s36 = ssub.s32 48, 48
      %37 = vsyncadd [#allocation7], %s36
      %s39 = sshll.u32 [#allocation6], 4
      %s40 = int_to_ptr.vmem [resolvable:$true] %s39
      %42 = dma.hbm_to_vmem [thread:$0]  %s2, 48, %s40, [#allocation7]
    $region13: #{lenet5v5_forward.3} parent=1 // pred_fallthru
      _
    // Predicated region
    $region14: #{lenet5v5_forward.3} parent=1 // pred_check
      _
    $region15: #{lenet5v5_forward.3} parent=1 // pred_check_branch
      %44 = sbr.rel (0) target = $region17
    $region16: #{lenet5v5_forward.3} parent=1 // pred_region
      %s46 = ssub.s32 6144, 6144
      %47 = vsyncadd [#allocation7], %s46
      %s48 = sshll.u32 [#allocation8], 4
      %s49 = int_to_ptr.vmem [resolvable:$true] %s48
      %54 = dma.hbm_to_vmem [thread:$0]  %s3, 6144, %s49, [#allocation7], 128, 128, 8
    $region17: #{lenet5v5_forward.3} parent=1 // pred_fallthru
      _
    // Predicated region
    $region18: #{lenet5v5_forward.3} parent=1 // pred_check
      _
    $region19: #{lenet5v5_forward.3} parent=1 // pred_check_branch
      %56 = sbr.rel (0) target = $region21
    $region20: #{lenet5v5_forward.3} parent=1 // pred_region
      %s58 = ssub.s32 32, 32
      %59 = vsyncadd [#allocation10], %s58
      %s61 = sshll.u32 [#allocation9], 4
      %s62 = int_to_ptr.vmem [resolvable:$true] %s61
      %64 = dma.hbm_to_vmem [thread:$0]  %s4, 32, %s62, [#allocation10]
    $region21: #{lenet5v5_forward.3} parent=1 // pred_fallthru
      _
    // Predicated region
    $region22: #{lenet5v5_forward.3} parent=1 // pred_check
      _
    $region23: #{lenet5v5_forward.3} parent=1 // pred_check_branch
      %66 = sbr.rel (0) target = $region25
    $region24: #{lenet5v5_forward.3} parent=1 // pred_region
      %s68 = ssub.s32 2048, 2048
      %69 = vsyncadd [#allocation10], %s68
      %s70 = sshll.u32 [#allocation11], 4
      %s71 = int_to_ptr.vmem [resolvable:$true] %s70
      %76 = dma.hbm_to_vmem [thread:$0]  %s5, 2048, %s71, [#allocation10], 64, 64, 4
    $region25: #{lenet5v5_forward.3} parent=1 // pred_fallthru
      _
    // Predicated region
    $region26: #{lenet5v5_forward.3} parent=1 // pred_check
      _
    $region27: #{lenet5v5_forward.3} parent=1 // pred_check_branch
      %78 = sbr.rel (0) target = $region29
    $region28: #{lenet5v5_forward.3} parent=1 // pred_region
      %s80 = ssub.s32 16, 16
      %81 = vsyncadd [#allocation13], %s80
      %s83 = sshll.u32 [#allocation12], 4
      %s84 = int_to_ptr.vmem [resolvable:$true] %s83
      %86 = dma.hbm_to_vmem [thread:$0]  %s6, 16, %s84, [#allocation13]
    $region29: #{lenet5v5_forward.3} parent=1 // pred_fallthru
      _
    // Predicated region
    $region30: #{lenet5v5_forward.3} parent=1 // pred_check
      _
    $region31: #{lenet5v5_forward.3} parent=1 // pred_check_branch
      %88 = sbr.rel (0) target = $region33
    $region32: #{lenet5v5_forward.3} parent=1 // pred_region
      %s90 = ssub.s32 16, 16
      %91 = vsyncadd [#allocation5], %s90
      %94 = dma.hbm_to_smem %s7, 16, [#allocation14], [#allocation5]
    $region33: #{lenet5v5_forward.3} parent=1 // pred_fallthru
      _
    // Predicated region
    $region34: #{lenet5v5_forward.3} parent=1 // pred_check
      _
    $region35: #{lenet5v5_forward.3} parent=1 // pred_check_branch
      %96 = sbr.rel (0) target = $region37
    $region36: #{lenet5v5_forward.3} parent=1 // pred_region
      %97 = dma.done [#allocation3], 76800
    $region37: #{lenet5v5_forward.3} parent=1 // pred_fallthru
      _
    // Predicated region
    $region38: #{lenet5v5_forward.3} parent=1 // pred_check
      _
    $region39: #{lenet5v5_forward.3} parent=1 // pred_check_branch
      %99 = sbr.rel (0) target = $region41
    $region40: #{lenet5v5_forward.3} parent=1 // pred_region
      %100 = dma.done [#allocation7], 48
    $region41: #{lenet5v5_forward.3} parent=1 // pred_fallthru
      _
    // Predicated region
    $region42: #{lenet5v5_forward.3} parent=1 // pred_check
      _
    $region43: #{lenet5v5_forward.3} parent=1 // pred_check_branch
      %102 = sbr.rel (0) target = $region45
    $region44: #{lenet5v5_forward.3} parent=1 // pred_region
      %103 = dma.done [#allocation7], 6144
    $region45: #{lenet5v5_forward.3} parent=1 // pred_fallthru
      _
    // Predicated region
    $region46: #{lenet5v5_forward.3} parent=1 // pred_check
      _
    $region47: #{lenet5v5_forward.3} parent=1 // pred_check_branch
      %105 = sbr.rel (0) target = $region49
    $region48: #{lenet5v5_forward.3} parent=1 // pred_region
      %106 = dma.done [#allocation10], 32
    $region49: #{lenet5v5_forward.3} parent=1 // pred_fallthru
      _
    // Predicated region
    $region50: #{lenet5v5_forward.3} parent=1 // pred_check
      _
    $region51: #{lenet5v5_forward.3} parent=1 // pred_check_branch
      %108 = sbr.rel (0) target = $region53
    $region52: #{lenet5v5_forward.3} parent=1 // pred_region
      %109 = dma.done [#allocation10], 2048
    $region53: #{lenet5v5_forward.3} parent=1 // pred_fallthru
      _
    // Predicated region
    $region54: #{lenet5v5_forward.3} parent=1 // pred_check
      _
    $region55: #{lenet5v5_forward.3} parent=1 // pred_check_branch
      %111 = sbr.rel (0) target = $region57
    $region56: #{lenet5v5_forward.3} parent=1 // pred_region
      %112 = dma.done [#allocation13], 16
    $region57: #{lenet5v5_forward.3} parent=1 // pred_fallthru
      _
    // Predicated region
    $region58: #{lenet5v5_forward.3} parent=1 // pred_check
      _
    $region59: #{lenet5v5_forward.3} parent=1 // pred_check_branch
      %114 = sbr.rel (0) target = $region61
    $region60: #{lenet5v5_forward.3} parent=1 // pred_region
      %115 = dma.done [#allocation5], 16
    $region61: #{lenet5v5_forward.3} parent=1 // pred_fallthru
      _
    %116 = sfence
    %v118 = vld [vmem:[%s0] sm:$0xff]
    %v119 = vld [vmem:[%s0 + $0x8] sm:$0xff]
    %v120 = vld [vmem:[%s0 + $0x10] sm:$0xff]
    %v121 = vld [vmem:[%s0 + $0x18] sm:$0xff]
    %v122 = vld [vmem:[%s0 + $0x20] sm:$0xff]
    %v123 = vld [vmem:[%s0 + $0x28] sm:$0xff]
    %v124 = vld [vmem:[%s0 + $0x30] sm:$0x3]
    %v132 = vcombine.high %v118, %v118
    %v134 = vunpack.c.l.s4 1983009808
    %v135 = vunpack.c.0.s8 %v134
    %v136 = vlaneseq
    %v137 = vshrl.u32 %v136, 7
    %v138 = vsub.s32 %v135, %v137
    %v139 = vrot.slane %v118, %v138
    %v141 = vunpack.c.l.s4 1983009808
    %v142 = vunpack.c.0.s8 %v141
    %v143 = vlaneseq
    %v144 = vshrl.u32 %v143, 7
    %v145 = vsub.s32 %v142, %v144
    %v146 = vrot.slane %v132, %v145
    %v147 = vcombine.high %v139, %v139
    %v148 = vcombine.high %v146, %v146
    %v149 = vcombine.high %v119, %v119
    %v151 = vunpack.c.l.s4 1983009808
    %v152 = vunpack.c.0.s8 %v151
    %v153 = vlaneseq
    %v154 = vshrl.u32 %v153, 7
    %v155 = vsub.s32 %v152, %v154
    %v156 = vrot.slane %v119, %v155
    %v158 = vunpack.c.l.s4 1983009808
    %v159 = vunpack.c.0.s8 %v158
    %v160 = vlaneseq
    %v161 = vshrl.u32 %v160, 7
    %v162 = vsub.s32 %v159, %v161
    %v163 = vrot.slane %v149, %v162
    %v164 = vcombine.high %v156, %v156
    %v165 = vcombine.high %v163, %v163
    %v166 = vcombine.high %v120, %v120
    %v168 = vunpack.c.l.s4 1983009808
    %v169 = vunpack.c.0.s8 %v168
    %v170 = vlaneseq
    %v171 = vshrl.u32 %v170, 7
    %v172 = vsub.s32 %v169, %v171
    %v173 = vrot.slane %v120, %v172
    %v175 = vunpack.c.l.s4 1983009808
    %v176 = vunpack.c.0.s8 %v175
    %v177 = vlaneseq
    %v178 = vshrl.u32 %v177, 7
    %v179 = vsub.s32 %v176, %v178
    %v180 = vrot.slane %v166, %v179
    %v181 = vcombine.high %v173, %v173
    %v182 = vcombine.high %v180, %v180
    %v183 = vcombine.high %v121, %v121
    %v185 = vunpack.c.l.s4 1983009808
    %v186 = vunpack.c.0.s8 %v185
    %v187 = vlaneseq
    %v188 = vshrl.u32 %v187, 7
    %v189 = vsub.s32 %v186, %v188
    %v190 = vrot.slane %v121, %v189
    %v192 = vunpack.c.l.s4 1983009808
    %v193 = vunpack.c.0.s8 %v192
    %v194 = vlaneseq
    %v195 = vshrl.u32 %v194, 7
    %v196 = vsub.s32 %v193, %v195
    %v197 = vrot.slane %v183, %v196
    %v198 = vcombine.high %v190, %v190
    %v199 = vcombine.high %v197, %v197
    %v200 = vcombine.high %v122, %v122
    %v202 = vunpack.c.l.s4 1983009808
    %v203 = vunpack.c.0.s8 %v202
    %v204 = vlaneseq
    %v205 = vshrl.u32 %v204, 7
    %v206 = vsub.s32 %v203, %v205
    %v207 = vrot.slane %v122, %v206
    %v209 = vunpack.c.l.s4 1983009808
    %v210 = vunpack.c.0.s8 %v209
    %v211 = vlaneseq
    %v212 = vshrl.u32 %v211, 7
    %v213 = vsub.s32 %v210, %v212
    %v214 = vrot.slane %v200, %v213
    %v215 = vcombine.high %v207, %v207
    %v216 = vcombine.high %v214, %v214
    %v217 = vcombine.high %v123, %v123
    %v219 = vunpack.c.l.s4 1983009808
    %v220 = vunpack.c.0.s8 %v219
    %v221 = vlaneseq
    %v222 = vshrl.u32 %v221, 7
    %v223 = vsub.s32 %v220, %v222
    %v224 = vrot.slane %v123, %v223
    %v226 = vunpack.c.l.s4 1983009808
    %v227 = vunpack.c.0.s8 %v226
    %v228 = vlaneseq
    %v229 = vshrl.u32 %v228, 7
    %v230 = vsub.s32 %v227, %v229
    %v231 = vrot.slane %v217, %v230
    %v232 = vcombine.high %v224, %v224
    %v233 = vcombine.high %v231, %v231
    %v235 = vunpack.c.l.s4 1983009808
    %v236 = vunpack.c.0.s8 %v235
    %v237 = vlaneseq
    %v238 = vshrl.u32 %v237, 7
    %v239 = vsub.s32 %v236, %v238
    %v240 = vrot.slane %v124, %v239
    %v266 = vpack.c.bf16 %v139, %v139
    %v267 = vpack.c.bf16 %v147, %v147
    %v268 = vpack.c.bf16 %v146, %v146
    %v269 = vpack.c.bf16 %v148, %v148
    %v270 = vpack.c.bf16 %v156, %v156
    %v271 = vpack.c.bf16 %v164, %v164
    %v272 = vpack.c.bf16 %v163, %v163
    %v273 = vpack.c.bf16 %v165, %v165
    %v274 = vpack.c.bf16 %v173, %v173
    %v275 = vpack.c.bf16 %v181, %v181
    %v276 = vpack.c.bf16 %v180, %v180
    %v277 = vpack.c.bf16 %v182, %v182
    %v278 = vpack.c.bf16 %v190, %v190
    %v279 = vpack.c.bf16 %v198, %v198
    %v280 = vpack.c.bf16 %v197, %v197
    %v281 = vpack.c.bf16 %v199, %v199
    %v282 = vpack.c.bf16 %v207, %v207
    %v283 = vpack.c.bf16 %v215, %v215
    %v284 = vpack.c.bf16 %v214, %v214
    %v285 = vpack.c.bf16 %v216, %v216
    %v286 = vpack.c.bf16 %v224, %v224
    %v287 = vpack.c.bf16 %v232, %v232
    %v288 = vpack.c.bf16 %v231, %v231
    %v289 = vpack.c.bf16 %v233, %v233
    %v290 = vpack.c.bf16 %v240, %v240
    %v291 = vld [vmem:[#allocation2] sm:$0xff]
    %v292 = vld [vmem:[#allocation2 + $0x8] sm:$0xf]
    %v293 = vld [vmem:[#allocation2 + $0xc] sm:$0xff]
    %v294 = vld [vmem:[#allocation2 + $0x14] sm:$0xf]
    %v295 = vld [vmem:[#allocation2 + $0x18] sm:$0xff]
    %v296 = vld [vmem:[#allocation2 + $0x20] sm:$0xf]
    %v297 = vld [vmem:[#allocation2 + $0x24] sm:$0xff]
    %v298 = vld [vmem:[#allocation2 + $0x2c] sm:$0xf]
    %v299 = vld [vmem:[#allocation2 + $0x30] sm:$0xff]
    %v300 = vld [vmem:[#allocation2 + $0x38] sm:$0xf]
    %v301 = vld [vmem:[#allocation2 + $0x3c] sm:$0xff]
    %v302 = vld [vmem:[#allocation2 + $0x44] sm:$0xf]
    %v303 = vld [vmem:[#allocation2 + $0x48] sm:$0xff]
    %v304 = vld [vmem:[#allocation2 + $0x50] sm:$0xf]
    %v305 = vld [vmem:[#allocation2 + $0x54] sm:$0xff]
    %v306 = vld [vmem:[#allocation2 + $0x5c] sm:$0xf]
    %v307 = vld [vmem:[#allocation2 + $0x60] sm:$0xff]
    %v308 = vld [vmem:[#allocation2 + $0x68] sm:$0xf]
    %v309 = vld [vmem:[#allocation2 + $0x6c] sm:$0xff]
    %v310 = vld [vmem:[#allocation2 + $0x74] sm:$0xf]
    %v311 = vld [vmem:[#allocation2 + $0x78] sm:$0xff]
    %v312 = vld [vmem:[#allocation2 + $0x80] sm:$0xf]
    %v313 = vld [vmem:[#allocation2 + $0x84] sm:$0xff]
    %v314 = vld [vmem:[#allocation2 + $0x8c] sm:$0xf]
    %v315 = vld [vmem:[#allocation2 + $0x90] sm:$0xff]
    %v316 = vld [vmem:[#allocation2 + $0x98] sm:$0xf]
    %v317 = vld [vmem:[#allocation2 + $0x9c] sm:$0xff]
    %v318 = vld [vmem:[#allocation2 + $0xa4] sm:$0xf]
    %v319 = vld [vmem:[#allocation2 + $0xa8] sm:$0xff]
    %v320 = vld [vmem:[#allocation2 + $0xb0] sm:$0xf]
    %v321 = vld [vmem:[#allocation2 + $0xb4] sm:$0xff]
    %v322 = vld [vmem:[#allocation2 + $0xbc] sm:$0xf]
    %v323 = vld [vmem:[#allocation2 + $0xc0] sm:$0xff]
    %v324 = vld [vmem:[#allocation2 + $0xc8] sm:$0xf]
    %v325 = vld [vmem:[#allocation2 + $0xcc] sm:$0xff]
    %v326 = vld [vmem:[#allocation2 + $0xd4] sm:$0xf]
    %v327 = vld [vmem:[#allocation2 + $0xd8] sm:$0xff]
    %v328 = vld [vmem:[#allocation2 + $0xe0] sm:$0xf]
    %v329 = vld [vmem:[#allocation2 + $0xe4] sm:$0xff]
    %v330 = vld [vmem:[#allocation2 + $0xec] sm:$0xf]
    %v331 = vld [vmem:[#allocation2 + $0xf0] sm:$0xff]
    %v332 = vld [vmem:[#allocation2 + $0xf8] sm:$0xf]
    %v333 = vld [vmem:[#allocation2 + $0xfc] sm:$0xff]
    %v334 = vld [vmem:[#allocation2 + $0x104] sm:$0xf]
    %v335 = vld [vmem:[#allocation2 + $0x108] sm:$0xff]
    %v336 = vld [vmem:[#allocation2 + $0x110] sm:$0xf]
    %v337 = vld [vmem:[#allocation2 + $0x114] sm:$0xff]
    %v338 = vld [vmem:[#allocation2 + $0x11c] sm:$0xf]
    %v339 = vld [vmem:[#allocation2 + $0x120] sm:$0xff]
    %v340 = vld [vmem:[#allocation2 + $0x128] sm:$0xf]
    %v341 = vld [vmem:[#allocation2 + $0x12c] sm:$0xff]
    %v342 = vld [vmem:[#allocation2 + $0x134] sm:$0xf]
    %v343 = vld [vmem:[#allocation2 + $0x138] sm:$0xff]
    %v344 = vld [vmem:[#allocation2 + $0x140] sm:$0xf]
    %v345 = vld [vmem:[#allocation2 + $0x144] sm:$0xff]
    %v346 = vld [vmem:[#allocation2 + $0x14c] sm:$0xf]
    %v347 = vld [vmem:[#allocation2 + $0x150] sm:$0xff]
    %v348 = vld [vmem:[#allocation2 + $0x158] sm:$0xf]
    %v349 = vld [vmem:[#allocation2 + $0x15c] sm:$0xff]
    %v350 = vld [vmem:[#allocation2 + $0x164] sm:$0xf]
    %v351 = vld [vmem:[#allocation2 + $0x168] sm:$0xff]
    %v352 = vld [vmem:[#allocation2 + $0x170] sm:$0xf]
    %v353 = vld [vmem:[#allocation2 + $0x174] sm:$0xff]
    %v354 = vld [vmem:[#allocation2 + $0x17c] sm:$0xf]
    %v355 = vld [vmem:[#allocation2 + $0x180] sm:$0xff]
    %v356 = vld [vmem:[#allocation2 + $0x188] sm:$0xf]
    %v357 = vld [vmem:[#allocation2 + $0x18c] sm:$0xff]
    %v358 = vld [vmem:[#allocation2 + $0x194] sm:$0xf]
    %v359 = vld [vmem:[#allocation2 + $0x198] sm:$0xff]
    %v360 = vld [vmem:[#allocation2 + $0x1a0] sm:$0xf]
    %v361 = vld [vmem:[#allocation2 + $0x1a4] sm:$0xff]
    %v362 = vld [vmem:[#allocation2 + $0x1ac] sm:$0xf]
    %v363 = vld [vmem:[#allocation2 + $0x1b0] sm:$0xff]
    %v364 = vld [vmem:[#allocation2 + $0x1b8] sm:$0xf]
    %v365 = vld [vmem:[#allocation2 + $0x1bc] sm:$0xff]
    %v366 = vld [vmem:[#allocation2 + $0x1c4] sm:$0xf]
    %v367 = vld [vmem:[#allocation2 + $0x1c8] sm:$0xff]
    %v368 = vld [vmem:[#allocation2 + $0x1d0] sm:$0xf]
    %v369 = vld [vmem:[#allocation2 + $0x1d4] sm:$0xff]
    %v370 = vld [vmem:[#allocation2 + $0x1dc] sm:$0xf]
    %v371 = vld [vmem:[#allocation2 + $0x1e0] sm:$0xff]
    %v372 = vld [vmem:[#allocation2 + $0x1e8] sm:$0xf]
    %v373 = vld [vmem:[#allocation2 + $0x1ec] sm:$0xff]
    %v374 = vld [vmem:[#allocation2 + $0x1f4] sm:$0xf]
    %v375 = vld [vmem:[#allocation2 + $0x1f8] sm:$0xff]
    %v376 = vld [vmem:[#allocation2 + $0x200] sm:$0xf]
    %v377 = vld [vmem:[#allocation2 + $0x204] sm:$0xff]
    %v378 = vld [vmem:[#allocation2 + $0x20c] sm:$0xf]
    %v379 = vld [vmem:[#allocation2 + $0x210] sm:$0xff]
    %v380 = vld [vmem:[#allocation2 + $0x218] sm:$0xf]
    %v381 = vld [vmem:[#allocation2 + $0x21c] sm:$0xff]
    %v382 = vld [vmem:[#allocation2 + $0x224] sm:$0xf]
    %v383 = vld [vmem:[#allocation2 + $0x228] sm:$0xff]
    %v384 = vld [vmem:[#allocation2 + $0x230] sm:$0xf]
    %v385 = vld [vmem:[#allocation2 + $0x234] sm:$0xff]
    %v386 = vld [vmem:[#allocation2 + $0x23c] sm:$0xf]
    %v387 = vld [vmem:[#allocation2 + $0x240] sm:$0xff]
    %v388 = vld [vmem:[#allocation2 + $0x248] sm:$0xf]
    %v389 = vld [vmem:[#allocation2 + $0x24c] sm:$0xff]
    %v390 = vld [vmem:[#allocation2 + $0x254] sm:$0xf]
    %v391 = vld [vmem:[#allocation2 + $0x258] sm:$0xff]
    %v392 = vld [vmem:[#allocation2 + $0x260] sm:$0xf]
    %v393 = vld [vmem:[#allocation2 + $0x264] sm:$0xff]
    %v394 = vld [vmem:[#allocation2 + $0x26c] sm:$0xf]
    %v395 = vld [vmem:[#allocation2 + $0x270] sm:$0xff]
    %v396 = vld [vmem:[#allocation2 + $0x278] sm:$0xf]
    %v397 = vld [vmem:[#allocation2 + $0x27c] sm:$0xff]
    %v398 = vld [vmem:[#allocation2 + $0x284] sm:$0xf]
    %v399 = vld [vmem:[#allocation2 + $0x288] sm:$0xff]
    %v400 = vld [vmem:[#allocation2 + $0x290] sm:$0xf]
    %v401 = vld [vmem:[#allocation2 + $0x294] sm:$0xff]
    %v402 = vld [vmem:[#allocation2 + $0x29c] sm:$0xf]
    %v403 = vld [vmem:[#allocation2 + $0x2a0] sm:$0xff]
    %v404 = vld [vmem:[#allocation2 + $0x2a8] sm:$0xf]
    %v405 = vld [vmem:[#allocation2 + $0x2ac] sm:$0xff]
    %v406 = vld [vmem:[#allocation2 + $0x2b4] sm:$0xf]
    %v407 = vld [vmem:[#allocation2 + $0x2b8] sm:$0xff]
    %v408 = vld [vmem:[#allocation2 + $0x2c0] sm:$0xf]
    %v409 = vld [vmem:[#allocation2 + $0x2c4] sm:$0xff]
    %v410 = vld [vmem:[#allocation2 + $0x2cc] sm:$0xf]
    %v411 = vld [vmem:[#allocation2 + $0x2d0] sm:$0xff]
    %v412 = vld [vmem:[#allocation2 + $0x2d8] sm:$0xf]
    %v413 = vld [vmem:[#allocation2 + $0x2dc] sm:$0xff]
    %v414 = vld [vmem:[#allocation2 + $0x2e4] sm:$0xf]
    %v415 = vld [vmem:[#allocation2 + $0x2e8] sm:$0xff]
    %v416 = vld [vmem:[#allocation2 + $0x2f0] sm:$0xf]
    %v417 = vld [vmem:[#allocation2 + $0x2f4] sm:$0xff]
    %v418 = vld [vmem:[#allocation2 + $0x2fc] sm:$0xf]
    %v419 = vld [vmem:[#allocation2 + $0x300] sm:$0xff]
    %v420 = vld [vmem:[#allocation2 + $0x308] sm:$0xf]
    %v421 = vld [vmem:[#allocation2 + $0x30c] sm:$0xff]
    %v422 = vld [vmem:[#allocation2 + $0x314] sm:$0xf]
    %v423 = vld [vmem:[#allocation2 + $0x318] sm:$0xff]
    %v424 = vld [vmem:[#allocation2 + $0x320] sm:$0xf]
    %v425 = vld [vmem:[#allocation2 + $0x324] sm:$0xff]
    %v426 = vld [vmem:[#allocation2 + $0x32c] sm:$0xf]
    %v427 = vld [vmem:[#allocation2 + $0x330] sm:$0xff]
    %v428 = vld [vmem:[#allocation2 + $0x338] sm:$0xf]
    %v429 = vld [vmem:[#allocation2 + $0x33c] sm:$0xff]
    %v430 = vld [vmem:[#allocation2 + $0x344] sm:$0xf]
    %v431 = vld [vmem:[#allocation2 + $0x348] sm:$0xff]
    %v432 = vld [vmem:[#allocation2 + $0x350] sm:$0xf]
    %v433 = vld [vmem:[#allocation2 + $0x354] sm:$0xff]
    %v434 = vld [vmem:[#allocation2 + $0x35c] sm:$0xf]
    %v435 = vld [vmem:[#allocation2 + $0x360] sm:$0xff]
    %v436 = vld [vmem:[#allocation2 + $0x368] sm:$0xf]
    %v437 = vld [vmem:[#allocation2 + $0x36c] sm:$0xff]
    %v438 = vld [vmem:[#allocation2 + $0x374] sm:$0xf]
    %v439 = vld [vmem:[#allocation2 + $0x378] sm:$0xff]
    %v440 = vld [vmem:[#allocation2 + $0x380] sm:$0xf]
    %v441 = vld [vmem:[#allocation2 + $0x384] sm:$0xff]
    %v442 = vld [vmem:[#allocation2 + $0x38c] sm:$0xf]
    %v443 = vld [vmem:[#allocation2 + $0x390] sm:$0xff]
    %v444 = vld [vmem:[#allocation2 + $0x398] sm:$0xf]
    %v445 = vld [vmem:[#allocation2 + $0x39c] sm:$0xff]
    %v446 = vld [vmem:[#allocation2 + $0x3a4] sm:$0xf]
    %v447 = vld [vmem:[#allocation2 + $0x3a8] sm:$0xff]
    %v448 = vld [vmem:[#allocation2 + $0x3b0] sm:$0xf]
    %v449 = vld [vmem:[#allocation2 + $0x3b4] sm:$0xff]
    %v450 = vld [vmem:[#allocation2 + $0x3bc] sm:$0xf]
    %v451 = vld [vmem:[#allocation2 + $0x3c0] sm:$0xff]
    %v452 = vld [vmem:[#allocation2 + $0x3c8] sm:$0xf]
    %v453 = vld [vmem:[#allocation2 + $0x3cc] sm:$0xff]
    %v454 = vld [vmem:[#allocation2 + $0x3d4] sm:$0xf]
    %v455 = vld [vmem:[#allocation2 + $0x3d8] sm:$0xff]
    %v456 = vld [vmem:[#allocation2 + $0x3e0] sm:$0xf]
    %v457 = vld [vmem:[#allocation2 + $0x3e4] sm:$0xff]
    %v458 = vld [vmem:[#allocation2 + $0x3ec] sm:$0xf]
    %v459 = vld [vmem:[#allocation2 + $0x3f0] sm:$0xff]
    %v460 = vld [vmem:[#allocation2 + $0x3f8] sm:$0xf]
    %v461 = vld [vmem:[#allocation2 + $0x3fc] sm:$0xff]
    %v462 = vld [vmem:[#allocation2 + $0x404] sm:$0xf]
    %v463 = vld [vmem:[#allocation2 + $0x408] sm:$0xff]
    %v464 = vld [vmem:[#allocation2 + $0x410] sm:$0xf]
    %v465 = vld [vmem:[#allocation2 + $0x414] sm:$0xff]
    %v466 = vld [vmem:[#allocation2 + $0x41c] sm:$0xf]
    %v467 = vld [vmem:[#allocation2 + $0x420] sm:$0xff]
    %v468 = vld [vmem:[#allocation2 + $0x428] sm:$0xf]
    %v469 = vld [vmem:[#allocation2 + $0x42c] sm:$0xff]
    %v470 = vld [vmem:[#allocation2 + $0x434] sm:$0xf]
    %v471 = vld [vmem:[#allocation2 + $0x438] sm:$0xff]
    %v472 = vld [vmem:[#allocation2 + $0x440] sm:$0xf]
    %v473 = vld [vmem:[#allocation2 + $0x444] sm:$0xff]
    %v474 = vld [vmem:[#allocation2 + $0x44c] sm:$0xf]
    %v475 = vld [vmem:[#allocation2 + $0x450] sm:$0xff]
    %v476 = vld [vmem:[#allocation2 + $0x458] sm:$0xf]
    %v477 = vld [vmem:[#allocation2 + $0x45c] sm:$0xff]
    %v478 = vld [vmem:[#allocation2 + $0x464] sm:$0xf]
    %v479 = vld [vmem:[#allocation2 + $0x468] sm:$0xff]
    %v480 = vld [vmem:[#allocation2 + $0x470] sm:$0xf]
    %v481 = vld [vmem:[#allocation2 + $0x474] sm:$0xff]
    %v482 = vld [vmem:[#allocation2 + $0x47c] sm:$0xf]
    %v483 = vld [vmem:[#allocation2 + $0x480] sm:$0xff]
    %v484 = vld [vmem:[#allocation2 + $0x488] sm:$0xf]
    %v485 = vld [vmem:[#allocation2 + $0x48c] sm:$0xff]
    %v486 = vld [vmem:[#allocation2 + $0x494] sm:$0xf]
    %v487 = vld [vmem:[#allocation2 + $0x498] sm:$0xff]
    %v488 = vld [vmem:[#allocation2 + $0x4a0] sm:$0xf]
    %v489 = vld [vmem:[#allocation2 + $0x4a4] sm:$0xff]
    %v490 = vld [vmem:[#allocation2 + $0x4ac] sm:$0xf]
    %v491 = vld [vmem:[#allocation2 + $0x4b0] sm:$0xff]
    %v492 = vld [vmem:[#allocation2 + $0x4b8] sm:$0xf]
    %v493 = vld [vmem:[#allocation2 + $0x4bc] sm:$0xff]
    %v494 = vld [vmem:[#allocation2 + $0x4c4] sm:$0xf]
    %v495 = vld [vmem:[#allocation2 + $0x4c8] sm:$0xff]
    %v496 = vld [vmem:[#allocation2 + $0x4d0] sm:$0xf]
    %v497 = vld [vmem:[#allocation2 + $0x4d4] sm:$0xff]
    %v498 = vld [vmem:[#allocation2 + $0x4dc] sm:$0xf]
    %v499 = vld [vmem:[#allocation2 + $0x4e0] sm:$0xff]
    %v500 = vld [vmem:[#allocation2 + $0x4e8] sm:$0xf]
    %v501 = vld [vmem:[#allocation2 + $0x4ec] sm:$0xff]
    %v502 = vld [vmem:[#allocation2 + $0x4f4] sm:$0xf]
    %v503 = vld [vmem:[#allocation2 + $0x4f8] sm:$0xff]
    %v504 = vld [vmem:[#allocation2 + $0x500] sm:$0xf]
    %v505 = vld [vmem:[#allocation2 + $0x504] sm:$0xff]
    %v506 = vld [vmem:[#allocation2 + $0x50c] sm:$0xf]
    %v507 = vld [vmem:[#allocation2 + $0x510] sm:$0xff]
    %v508 = vld [vmem:[#allocation2 + $0x518] sm:$0xf]
    %v509 = vld [vmem:[#allocation2 + $0x51c] sm:$0xff]
    %v510 = vld [vmem:[#allocation2 + $0x524] sm:$0xf]
    %v511 = vld [vmem:[#allocation2 + $0x528] sm:$0xff]
    %v512 = vld [vmem:[#allocation2 + $0x530] sm:$0xf]
    %v513 = vld [vmem:[#allocation2 + $0x534] sm:$0xff]
    %v514 = vld [vmem:[#allocation2 + $0x53c] sm:$0xf]
    %v515 = vld [vmem:[#allocation2 + $0x540] sm:$0xff]
    %v516 = vld [vmem:[#allocation2 + $0x548] sm:$0xf]
    %v517 = vld [vmem:[#allocation2 + $0x54c] sm:$0xff]
    %v518 = vld [vmem:[#allocation2 + $0x554] sm:$0xf]
    %v519 = vld [vmem:[#allocation2 + $0x558] sm:$0xff]
    %v520 = vld [vmem:[#allocation2 + $0x560] sm:$0xf]
    %v521 = vld [vmem:[#allocation2 + $0x564] sm:$0xff]
    %v522 = vld [vmem:[#allocation2 + $0x56c] sm:$0xf]
    %v523 = vld [vmem:[#allocation2 + $0x570] sm:$0xff]
    %v524 = vld [vmem:[#allocation2 + $0x578] sm:$0xf]
    %v525 = vld [vmem:[#allocation2 + $0x57c] sm:$0xff]
    %v526 = vld [vmem:[#allocation2 + $0x584] sm:$0xf]
    %v527 = vld [vmem:[#allocation2 + $0x588] sm:$0xff]
    %v528 = vld [vmem:[#allocation2 + $0x590] sm:$0xf]
    %v529 = vld [vmem:[#allocation2 + $0x594] sm:$0xff]
    %v530 = vld [vmem:[#allocation2 + $0x59c] sm:$0xf]
    %v531 = vld [vmem:[#allocation2 + $0x5a0] sm:$0xff]
    %v532 = vld [vmem:[#allocation2 + $0x5a8] sm:$0xf]
    %v533 = vld [vmem:[#allocation2 + $0x5ac] sm:$0xff]
    %v534 = vld [vmem:[#allocation2 + $0x5b4] sm:$0xf]
    %v535 = vld [vmem:[#allocation2 + $0x5b8] sm:$0xff]
    %v536 = vld [vmem:[#allocation2 + $0x5c0] sm:$0xf]
    %v537 = vld [vmem:[#allocation2 + $0x5c4] sm:$0xff]
    %v538 = vld [vmem:[#allocation2 + $0x5cc] sm:$0xf]
    %v539 = vld [vmem:[#allocation2 + $0x5d0] sm:$0xff]
    %v540 = vld [vmem:[#allocation2 + $0x5d8] sm:$0xf]
    %v541 = vld [vmem:[#allocation2 + $0x5dc] sm:$0xff]
    %v542 = vld [vmem:[#allocation2 + $0x5e4] sm:$0xf]
    %v543 = vld [vmem:[#allocation2 + $0x5e8] sm:$0xff]
    %v544 = vld [vmem:[#allocation2 + $0x5f0] sm:$0xf]
    %v545 = vld [vmem:[#allocation2 + $0x5f4] sm:$0xff]
    %v546 = vld [vmem:[#allocation2 + $0x5fc] sm:$0xf]
    %v547 = vld [vmem:[#allocation2 + $0x600] sm:$0xff]
    %v548 = vld [vmem:[#allocation2 + $0x608] sm:$0xf]
    %v549 = vld [vmem:[#allocation2 + $0x60c] sm:$0xff]
    %v550 = vld [vmem:[#allocation2 + $0x614] sm:$0xf]
    %v551 = vld [vmem:[#allocation2 + $0x618] sm:$0xff]
    %v552 = vld [vmem:[#allocation2 + $0x620] sm:$0xf]
    %v553 = vld [vmem:[#allocation2 + $0x624] sm:$0xff]
    %v554 = vld [vmem:[#allocation2 + $0x62c] sm:$0xf]
    %v555 = vld [vmem:[#allocation2 + $0x630] sm:$0xff]
    %v556 = vld [vmem:[#allocation2 + $0x638] sm:$0xf]
    %v557 = vld [vmem:[#allocation2 + $0x63c] sm:$0xff]
    %v558 = vld [vmem:[#allocation2 + $0x644] sm:$0xf]
    %v559 = vld [vmem:[#allocation2 + $0x648] sm:$0xff]
    %v560 = vld [vmem:[#allocation2 + $0x650] sm:$0xf]
    %v561 = vld [vmem:[#allocation2 + $0x654] sm:$0xff]
    %v562 = vld [vmem:[#allocation2 + $0x65c] sm:$0xf]
    %v563 = vld [vmem:[#allocation2 + $0x660] sm:$0xff]
    %v564 = vld [vmem:[#allocation2 + $0x668] sm:$0xf]
    %v565 = vld [vmem:[#allocation2 + $0x66c] sm:$0xff]
    %v566 = vld [vmem:[#allocation2 + $0x674] sm:$0xf]
    %v567 = vld [vmem:[#allocation2 + $0x678] sm:$0xff]
    %v568 = vld [vmem:[#allocation2 + $0x680] sm:$0xf]
    %v569 = vld [vmem:[#allocation2 + $0x684] sm:$0xff]
    %v570 = vld [vmem:[#allocation2 + $0x68c] sm:$0xf]
    %v571 = vld [vmem:[#allocation2 + $0x690] sm:$0xff]
    %v572 = vld [vmem:[#allocation2 + $0x698] sm:$0xf]
    %v573 = vld [vmem:[#allocation2 + $0x69c] sm:$0xff]
    %v574 = vld [vmem:[#allocation2 + $0x6a4] sm:$0xf]
    %v575 = vld [vmem:[#allocation2 + $0x6a8] sm:$0xff]
    %v576 = vld [vmem:[#allocation2 + $0x6b0] sm:$0xf]
    %v577 = vld [vmem:[#allocation2 + $0x6b4] sm:$0xff]
    %v578 = vld [vmem:[#allocation2 + $0x6bc] sm:$0xf]
    %v579 = vld [vmem:[#allocation2 + $0x6c0] sm:$0xff]
    %v580 = vld [vmem:[#allocation2 + $0x6c8] sm:$0xf]
    %v581 = vld [vmem:[#allocation2 + $0x6cc] sm:$0xff]
    %v582 = vld [vmem:[#allocation2 + $0x6d4] sm:$0xf]
    %v583 = vld [vmem:[#allocation2 + $0x6d8] sm:$0xff]
    %v584 = vld [vmem:[#allocation2 + $0x6e0] sm:$0xf]
    %v585 = vld [vmem:[#allocation2 + $0x6e4] sm:$0xff]
    %v586 = vld [vmem:[#allocation2 + $0x6ec] sm:$0xf]
    %v587 = vld [vmem:[#allocation2 + $0x6f0] sm:$0xff]
    %v588 = vld [vmem:[#allocation2 + $0x6f8] sm:$0xf]
    %v589 = vld [vmem:[#allocation2 + $0x6fc] sm:$0xff]
    %v590 = vld [vmem:[#allocation2 + $0x704] sm:$0xf]
    %v591 = vld [vmem:[#allocation2 + $0x708] sm:$0xff]
    %v592 = vld [vmem:[#allocation2 + $0x710] sm:$0xf]
    %v593 = vld [vmem:[#allocation2 + $0x714] sm:$0xff]
    %v594 = vld [vmem:[#allocation2 + $0x71c] sm:$0xf]
    %v595 = vld [vmem:[#allocation2 + $0x720] sm:$0xff]
    %v596 = vld [vmem:[#allocation2 + $0x728] sm:$0xf]
    %v597 = vld [vmem:[#allocation2 + $0x72c] sm:$0xff]
    %v598 = vld [vmem:[#allocation2 + $0x734] sm:$0xf]
    %v599 = vld [vmem:[#allocation2 + $0x738] sm:$0xff]
    %v600 = vld [vmem:[#allocation2 + $0x740] sm:$0xf]
    %v601 = vld [vmem:[#allocation2 + $0x744] sm:$0xff]
    %v602 = vld [vmem:[#allocation2 + $0x74c] sm:$0xf]
    %v603 = vld [vmem:[#allocation2 + $0x750] sm:$0xff]
    %v604 = vld [vmem:[#allocation2 + $0x758] sm:$0xf]
    %v605 = vld [vmem:[#allocation2 + $0x75c] sm:$0xff]
    %v606 = vld [vmem:[#allocation2 + $0x764] sm:$0xf]
    %v607 = vld [vmem:[#allocation2 + $0x768] sm:$0xff]
    %v608 = vld [vmem:[#allocation2 + $0x770] sm:$0xf]
    %v609 = vld [vmem:[#allocation2 + $0x774] sm:$0xff]
    %v610 = vld [vmem:[#allocation2 + $0x77c] sm:$0xf]
    %v611 = vld [vmem:[#allocation2 + $0x780] sm:$0xff]
    %v612 = vld [vmem:[#allocation2 + $0x788] sm:$0xf]
    %v613 = vld [vmem:[#allocation2 + $0x78c] sm:$0xff]
    %v614 = vld [vmem:[#allocation2 + $0x794] sm:$0xf]
    %v615 = vld [vmem:[#allocation2 + $0x798] sm:$0xff]
    %v616 = vld [vmem:[#allocation2 + $0x7a0] sm:$0xf]
    %v617 = vld [vmem:[#allocation2 + $0x7a4] sm:$0xff]
    %v618 = vld [vmem:[#allocation2 + $0x7ac] sm:$0xf]
    %v619 = vld [vmem:[#allocation2 + $0x7b0] sm:$0xff]
    %v620 = vld [vmem:[#allocation2 + $0x7b8] sm:$0xf]
    %v621 = vld [vmem:[#allocation2 + $0x7bc] sm:$0xff]
    %v622 = vld [vmem:[#allocation2 + $0x7c4] sm:$0xf]
    %v623 = vld [vmem:[#allocation2 + $0x7c8] sm:$0xff]
    %v624 = vld [vmem:[#allocation2 + $0x7d0] sm:$0xf]
    %v625 = vld [vmem:[#allocation2 + $0x7d4] sm:$0xff]
    %v626 = vld [vmem:[#allocation2 + $0x7dc] sm:$0xf]
    %v627 = vld [vmem:[#allocation2 + $0x7e0] sm:$0xff]
    %v628 = vld [vmem:[#allocation2 + $0x7e8] sm:$0xf]
    %v629 = vld [vmem:[#allocation2 + $0x7ec] sm:$0xff]
    %v630 = vld [vmem:[#allocation2 + $0x7f4] sm:$0xf]
    %v631 = vld [vmem:[#allocation2 + $0x7f8] sm:$0xff]
    %v632 = vld [vmem:[#allocation2 + $0x800] sm:$0xf]
    %v633 = vld [vmem:[#allocation2 + $0x804] sm:$0xff]
    %v634 = vld [vmem:[#allocation2 + $0x80c] sm:$0xf]
    %v635 = vld [vmem:[#allocation2 + $0x810] sm:$0xff]
    %v636 = vld [vmem:[#allocation2 + $0x818] sm:$0xf]
    %v637 = vld [vmem:[#allocation2 + $0x81c] sm:$0xff]
    %v638 = vld [vmem:[#allocation2 + $0x824] sm:$0xf]
    %v639 = vld [vmem:[#allocation2 + $0x828] sm:$0xff]
    %v640 = vld [vmem:[#allocation2 + $0x830] sm:$0xf]
    %v641 = vld [vmem:[#allocation2 + $0x834] sm:$0xff]
    %v642 = vld [vmem:[#allocation2 + $0x83c] sm:$0xf]
    %v643 = vld [vmem:[#allocation2 + $0x840] sm:$0xff]
    %v644 = vld [vmem:[#allocation2 + $0x848] sm:$0xf]
    %v645 = vld [vmem:[#allocation2 + $0x84c] sm:$0xff]
    %v646 = vld [vmem:[#allocation2 + $0x854] sm:$0xf]
    %v647 = vld [vmem:[#allocation2 + $0x858] sm:$0xff]
    %v648 = vld [vmem:[#allocation2 + $0x860] sm:$0xf]
    %v649 = vld [vmem:[#allocation2 + $0x864] sm:$0xff]
    %v650 = vld [vmem:[#allocation2 + $0x86c] sm:$0xf]
    %v651 = vld [vmem:[#allocation2 + $0x870] sm:$0xff]
    %v652 = vld [vmem:[#allocation2 + $0x878] sm:$0xf]
    %v653 = vld [vmem:[#allocation2 + $0x87c] sm:$0xff]
    %v654 = vld [vmem:[#allocation2 + $0x884] sm:$0xf]
    %v655 = vld [vmem:[#allocation2 + $0x888] sm:$0xff]
    %v656 = vld [vmem:[#allocation2 + $0x890] sm:$0xf]
    %v657 = vld [vmem:[#allocation2 + $0x894] sm:$0xff]
    %v658 = vld [vmem:[#allocation2 + $0x89c] sm:$0xf]
    %v659 = vld [vmem:[#allocation2 + $0x8a0] sm:$0xff]
    %v660 = vld [vmem:[#allocation2 + $0x8a8] sm:$0xf]
    %v661 = vld [vmem:[#allocation2 + $0x8ac] sm:$0xff]
    %v662 = vld [vmem:[#allocation2 + $0x8b4] sm:$0xf]
    %v663 = vld [vmem:[#allocation2 + $0x8b8] sm:$0xff]
    %v664 = vld [vmem:[#allocation2 + $0x8c0] sm:$0xf]
    %v665 = vld [vmem:[#allocation2 + $0x8c4] sm:$0xff]
    %v666 = vld [vmem:[#allocation2 + $0x8cc] sm:$0xf]
    %v667 = vld [vmem:[#allocation2 + $0x8d0] sm:$0xff]
    %v668 = vld [vmem:[#allocation2 + $0x8d8] sm:$0xf]
    %v669 = vld [vmem:[#allocation2 + $0x8dc] sm:$0xff]
    %v670 = vld [vmem:[#allocation2 + $0x8e4] sm:$0xf]
    %v671 = vld [vmem:[#allocation2 + $0x8e8] sm:$0xff]
    %v672 = vld [vmem:[#allocation2 + $0x8f0] sm:$0xf]
    %v673 = vld [vmem:[#allocation2 + $0x8f4] sm:$0xff]
    %v674 = vld [vmem:[#allocation2 + $0x8fc] sm:$0xf]
    %v675 = vld [vmem:[#allocation2 + $0x900] sm:$0xff]
    %v676 = vld [vmem:[#allocation2 + $0x908] sm:$0xf]
    %v677 = vld [vmem:[#allocation2 + $0x90c] sm:$0xff]
    %v678 = vld [vmem:[#allocation2 + $0x914] sm:$0xf]
    %v679 = vld [vmem:[#allocation2 + $0x918] sm:$0xff]
    %v680 = vld [vmem:[#allocation2 + $0x920] sm:$0xf]
    %v681 = vld [vmem:[#allocation2 + $0x924] sm:$0xff]
    %v682 = vld [vmem:[#allocation2 + $0x92c] sm:$0xf]
    %v683 = vld [vmem:[#allocation2 + $0x930] sm:$0xff]
    %v684 = vld [vmem:[#allocation2 + $0x938] sm:$0xf]
    %v685 = vld [vmem:[#allocation2 + $0x93c] sm:$0xff]
    %v686 = vld [vmem:[#allocation2 + $0x944] sm:$0xf]
    %v687 = vld [vmem:[#allocation2 + $0x948] sm:$0xff]
    %v688 = vld [vmem:[#allocation2 + $0x950] sm:$0xf]
    %v689 = vld [vmem:[#allocation2 + $0x954] sm:$0xff]
    %v690 = vld [vmem:[#allocation2 + $0x95c] sm:$0xf]
    %v691 = vld [vmem:[#allocation2 + $0x960] sm:$0xff]
    %v692 = vld [vmem:[#allocation2 + $0x968] sm:$0xf]
    %v693 = vld [vmem:[#allocation2 + $0x96c] sm:$0xff]
    %v694 = vld [vmem:[#allocation2 + $0x974] sm:$0xf]
    %v695 = vld [vmem:[#allocation2 + $0x978] sm:$0xff]
    %v696 = vld [vmem:[#allocation2 + $0x980] sm:$0xf]
    %v697 = vld [vmem:[#allocation2 + $0x984] sm:$0xff]
    %v698 = vld [vmem:[#allocation2 + $0x98c] sm:$0xf]
    %v699 = vld [vmem:[#allocation2 + $0x990] sm:$0xff]
    %v700 = vld [vmem:[#allocation2 + $0x998] sm:$0xf]
    %v701 = vld [vmem:[#allocation2 + $0x99c] sm:$0xff]
    %v702 = vld [vmem:[#allocation2 + $0x9a4] sm:$0xf]
    %v703 = vld [vmem:[#allocation2 + $0x9a8] sm:$0xff]
    %v704 = vld [vmem:[#allocation2 + $0x9b0] sm:$0xf]
    %v705 = vld [vmem:[#allocation2 + $0x9b4] sm:$0xff]
    %v706 = vld [vmem:[#allocation2 + $0x9bc] sm:$0xf]
    %v707 = vld [vmem:[#allocation2 + $0x9c0] sm:$0xff]
    %v708 = vld [vmem:[#allocation2 + $0x9c8] sm:$0xf]
    %v709 = vld [vmem:[#allocation2 + $0x9cc] sm:$0xff]
    %v710 = vld [vmem:[#allocation2 + $0x9d4] sm:$0xf]
    %v711 = vld [vmem:[#allocation2 + $0x9d8] sm:$0xff]
    %v712 = vld [vmem:[#allocation2 + $0x9e0] sm:$0xf]
    %v713 = vld [vmem:[#allocation2 + $0x9e4] sm:$0xff]
    %v714 = vld [vmem:[#allocation2 + $0x9ec] sm:$0xf]
    %v715 = vld [vmem:[#allocation2 + $0x9f0] sm:$0xff]
    %v716 = vld [vmem:[#allocation2 + $0x9f8] sm:$0xf]
    %v717 = vld [vmem:[#allocation2 + $0x9fc] sm:$0xff]
    %v718 = vld [vmem:[#allocation2 + $0xa04] sm:$0xf]
    %v719 = vld [vmem:[#allocation2 + $0xa08] sm:$0xff]
    %v720 = vld [vmem:[#allocation2 + $0xa10] sm:$0xf]
    %v721 = vld [vmem:[#allocation2 + $0xa14] sm:$0xff]
    %v722 = vld [vmem:[#allocation2 + $0xa1c] sm:$0xf]
    %v723 = vld [vmem:[#allocation2 + $0xa20] sm:$0xff]
    %v724 = vld [vmem:[#allocation2 + $0xa28] sm:$0xf]
    %v725 = vld [vmem:[#allocation2 + $0xa2c] sm:$0xff]
    %v726 = vld [vmem:[#allocation2 + $0xa34] sm:$0xf]
    %v727 = vld [vmem:[#allocation2 + $0xa38] sm:$0xff]
    %v728 = vld [vmem:[#allocation2 + $0xa40] sm:$0xf]
    %v729 = vld [vmem:[#allocation2 + $0xa44] sm:$0xff]
    %v730 = vld [vmem:[#allocation2 + $0xa4c] sm:$0xf]
    %v731 = vld [vmem:[#allocation2 + $0xa50] sm:$0xff]
    %v732 = vld [vmem:[#allocation2 + $0xa58] sm:$0xf]
    %v733 = vld [vmem:[#allocation2 + $0xa5c] sm:$0xff]
    %v734 = vld [vmem:[#allocation2 + $0xa64] sm:$0xf]
    %v735 = vld [vmem:[#allocation2 + $0xa68] sm:$0xff]
    %v736 = vld [vmem:[#allocation2 + $0xa70] sm:$0xf]
    %v737 = vld [vmem:[#allocation2 + $0xa74] sm:$0xff]
    %v738 = vld [vmem:[#allocation2 + $0xa7c] sm:$0xf]
    %v739 = vld [vmem:[#allocation2 + $0xa80] sm:$0xff]
    %v740 = vld [vmem:[#allocation2 + $0xa88] sm:$0xf]
    %v741 = vld [vmem:[#allocation2 + $0xa8c] sm:$0xff]
    %v742 = vld [vmem:[#allocation2 + $0xa94] sm:$0xf]
    %v743 = vld [vmem:[#allocation2 + $0xa98] sm:$0xff]
    %v744 = vld [vmem:[#allocation2 + $0xaa0] sm:$0xf]
    %v745 = vld [vmem:[#allocation2 + $0xaa4] sm:$0xff]
    %v746 = vld [vmem:[#allocation2 + $0xaac] sm:$0xf]
    %v747 = vld [vmem:[#allocation2 + $0xab0] sm:$0xff]
    %v748 = vld [vmem:[#allocation2 + $0xab8] sm:$0xf]
    %v749 = vld [vmem:[#allocation2 + $0xabc] sm:$0xff]
    %v750 = vld [vmem:[#allocation2 + $0xac4] sm:$0xf]
    %v751 = vld [vmem:[#allocation2 + $0xac8] sm:$0xff]
    %v752 = vld [vmem:[#allocation2 + $0xad0] sm:$0xf]
    %v753 = vld [vmem:[#allocation2 + $0xad4] sm:$0xff]
    %v754 = vld [vmem:[#allocation2 + $0xadc] sm:$0xf]
    %v755 = vld [vmem:[#allocation2 + $0xae0] sm:$0xff]
    %v756 = vld [vmem:[#allocation2 + $0xae8] sm:$0xf]
    %v757 = vld [vmem:[#allocation2 + $0xaec] sm:$0xff]
    %v758 = vld [vmem:[#allocation2 + $0xaf4] sm:$0xf]
    %v759 = vld [vmem:[#allocation2 + $0xaf8] sm:$0xff]
    %v760 = vld [vmem:[#allocation2 + $0xb00] sm:$0xf]
    %v761 = vld [vmem:[#allocation2 + $0xb04] sm:$0xff]
    %v762 = vld [vmem:[#allocation2 + $0xb0c] sm:$0xf]
    %v763 = vld [vmem:[#allocation2 + $0xb10] sm:$0xff]
    %v764 = vld [vmem:[#allocation2 + $0xb18] sm:$0xf]
    %v765 = vld [vmem:[#allocation2 + $0xb1c] sm:$0xff]
    %v766 = vld [vmem:[#allocation2 + $0xb24] sm:$0xf]
    %v767 = vld [vmem:[#allocation2 + $0xb28] sm:$0xff]
    %v768 = vld [vmem:[#allocation2 + $0xb30] sm:$0xf]
    %v769 = vld [vmem:[#allocation2 + $0xb34] sm:$0xff]
    %v770 = vld [vmem:[#allocation2 + $0xb3c] sm:$0xf]
    %v771 = vld [vmem:[#allocation2 + $0xb40] sm:$0xff]
    %v772 = vld [vmem:[#allocation2 + $0xb48] sm:$0xf]
    %v773 = vld [vmem:[#allocation2 + $0xb4c] sm:$0xff]
    %v774 = vld [vmem:[#allocation2 + $0xb54] sm:$0xf]
    %v775 = vld [vmem:[#allocation2 + $0xb58] sm:$0xff]
    %v776 = vld [vmem:[#allocation2 + $0xb60] sm:$0xf]
    %v777 = vld [vmem:[#allocation2 + $0xb64] sm:$0xff]
    %v778 = vld [vmem:[#allocation2 + $0xb6c] sm:$0xf]
    %v779 = vld [vmem:[#allocation2 + $0xb70] sm:$0xff]
    %v780 = vld [vmem:[#allocation2 + $0xb78] sm:$0xf]
    %v781 = vld [vmem:[#allocation2 + $0xb7c] sm:$0xff]
    %v782 = vld [vmem:[#allocation2 + $0xb84] sm:$0xf]
    %v783 = vld [vmem:[#allocation2 + $0xb88] sm:$0xff]
    %v784 = vld [vmem:[#allocation2 + $0xb90] sm:$0xf]
    %v785 = vld [vmem:[#allocation2 + $0xb94] sm:$0xff]
    %v786 = vld [vmem:[#allocation2 + $0xb9c] sm:$0xf]
    %v787 = vld [vmem:[#allocation2 + $0xba0] sm:$0xff]
    %v788 = vld [vmem:[#allocation2 + $0xba8] sm:$0xf]
    %v789 = vld [vmem:[#allocation2 + $0xbac] sm:$0xff]
    %v790 = vld [vmem:[#allocation2 + $0xbb4] sm:$0xf]
    %v791 = vld [vmem:[#allocation2 + $0xbb8] sm:$0xff]
    %v792 = vld [vmem:[#allocation2 + $0xbc0] sm:$0xf]
    %v793 = vld [vmem:[#allocation2 + $0xbc4] sm:$0xff]
    %v794 = vld [vmem:[#allocation2 + $0xbcc] sm:$0xf]
    %v795 = vld [vmem:[#allocation2 + $0xbd0] sm:$0xff]
    %v796 = vld [vmem:[#allocation2 + $0xbd8] sm:$0xf]
    %v797 = vld [vmem:[#allocation2 + $0xbdc] sm:$0xff]
    %v798 = vld [vmem:[#allocation2 + $0xbe4] sm:$0xf]
    %v799 = vld [vmem:[#allocation2 + $0xbe8] sm:$0xff]
    %v800 = vld [vmem:[#allocation2 + $0xbf0] sm:$0xf]
    %v801 = vld [vmem:[#allocation2 + $0xbf4] sm:$0xff]
    %v802 = vld [vmem:[#allocation2 + $0xbfc] sm:$0xf]
    %v803 = vld [vmem:[#allocation2 + $0xc00] sm:$0xff]
    %v804 = vld [vmem:[#allocation2 + $0xc08] sm:$0xf]
    %v805 = vld [vmem:[#allocation2 + $0xc0c] sm:$0xff]
    %v806 = vld [vmem:[#allocation2 + $0xc14] sm:$0xf]
    %v807 = vld [vmem:[#allocation2 + $0xc18] sm:$0xff]
    %v808 = vld [vmem:[#allocation2 + $0xc20] sm:$0xf]
    %v809 = vld [vmem:[#allocation2 + $0xc24] sm:$0xff]
    %v810 = vld [vmem:[#allocation2 + $0xc2c] sm:$0xf]
    %v811 = vld [vmem:[#allocation2 + $0xc30] sm:$0xff]
    %v812 = vld [vmem:[#allocation2 + $0xc38] sm:$0xf]
    %v813 = vld [vmem:[#allocation2 + $0xc3c] sm:$0xff]
    %v814 = vld [vmem:[#allocation2 + $0xc44] sm:$0xf]
    %v815 = vld [vmem:[#allocation2 + $0xc48] sm:$0xff]
    %v816 = vld [vmem:[#allocation2 + $0xc50] sm:$0xf]
    %v817 = vld [vmem:[#allocation2 + $0xc54] sm:$0xff]
    %v818 = vld [vmem:[#allocation2 + $0xc5c] sm:$0xf]
    %v819 = vld [vmem:[#allocation2 + $0xc60] sm:$0xff]
    %v820 = vld [vmem:[#allocation2 + $0xc68] sm:$0xf]
    %v821 = vld [vmem:[#allocation2 + $0xc6c] sm:$0xff]
    %v822 = vld [vmem:[#allocation2 + $0xc74] sm:$0xf]
    %v823 = vld [vmem:[#allocation2 + $0xc78] sm:$0xff]
    %v824 = vld [vmem:[#allocation2 + $0xc80] sm:$0xf]
    %v825 = vld [vmem:[#allocation2 + $0xc84] sm:$0xff]
    %v826 = vld [vmem:[#allocation2 + $0xc8c] sm:$0xf]
    %v827 = vld [vmem:[#allocation2 + $0xc90] sm:$0xff]
    %v828 = vld [vmem:[#allocation2 + $0xc98] sm:$0xf]
    %v829 = vld [vmem:[#allocation2 + $0xc9c] sm:$0xff]
    %v830 = vld [vmem:[#allocation2 + $0xca4] sm:$0xf]
    %v831 = vld [vmem:[#allocation2 + $0xca8] sm:$0xff]
    %v832 = vld [vmem:[#allocation2 + $0xcb0] sm:$0xf]
    %v833 = vld [vmem:[#allocation2 + $0xcb4] sm:$0xff]
    %v834 = vld [vmem:[#allocation2 + $0xcbc] sm:$0xf]
    %v835 = vld [vmem:[#allocation2 + $0xcc0] sm:$0xff]
    %v836 = vld [vmem:[#allocation2 + $0xcc8] sm:$0xf]
    %v837 = vld [vmem:[#allocation2 + $0xccc] sm:$0xff]
    %v838 = vld [vmem:[#allocation2 + $0xcd4] sm:$0xf]
    %v839 = vld [vmem:[#allocation2 + $0xcd8] sm:$0xff]
    %v840 = vld [vmem:[#allocation2 + $0xce0] sm:$0xf]
    %v841 = vld [vmem:[#allocation2 + $0xce4] sm:$0xff]
    %v842 = vld [vmem:[#allocation2 + $0xcec] sm:$0xf]
    %v843 = vld [vmem:[#allocation2 + $0xcf0] sm:$0xff]
    %v844 = vld [vmem:[#allocation2 + $0xcf8] sm:$0xf]
    %v845 = vld [vmem:[#allocation2 + $0xcfc] sm:$0xff]
    %v846 = vld [vmem:[#allocation2 + $0xd04] sm:$0xf]
    %v847 = vld [vmem:[#allocation2 + $0xd08] sm:$0xff]
    %v848 = vld [vmem:[#allocation2 + $0xd10] sm:$0xf]
    %v849 = vld [vmem:[#allocation2 + $0xd14] sm:$0xff]
    %v850 = vld [vmem:[#allocation2 + $0xd1c] sm:$0xf]
    %v851 = vld [vmem:[#allocation2 + $0xd20] sm:$0xff]
    %v852 = vld [vmem:[#allocation2 + $0xd28] sm:$0xf]
    %v853 = vld [vmem:[#allocation2 + $0xd2c] sm:$0xff]
    %v854 = vld [vmem:[#allocation2 + $0xd34] sm:$0xf]
    %v855 = vld [vmem:[#allocation2 + $0xd38] sm:$0xff]
    %v856 = vld [vmem:[#allocation2 + $0xd40] sm:$0xf]
    %v857 = vld [vmem:[#allocation2 + $0xd44] sm:$0xff]
    %v858 = vld [vmem:[#allocation2 + $0xd4c] sm:$0xf]
    %v859 = vld [vmem:[#allocation2 + $0xd50] sm:$0xff]
    %v860 = vld [vmem:[#allocation2 + $0xd58] sm:$0xf]
    %v861 = vld [vmem:[#allocation2 + $0xd5c] sm:$0xff]
    %v862 = vld [vmem:[#allocation2 + $0xd64] sm:$0xf]
    %v863 = vld [vmem:[#allocation2 + $0xd68] sm:$0xff]
    %v864 = vld [vmem:[#allocation2 + $0xd70] sm:$0xf]
    %v865 = vld [vmem:[#allocation2 + $0xd74] sm:$0xff]
    %v866 = vld [vmem:[#allocation2 + $0xd7c] sm:$0xf]
    %v867 = vld [vmem:[#allocation2 + $0xd80] sm:$0xff]
    %v868 = vld [vmem:[#allocation2 + $0xd88] sm:$0xf]
    %v869 = vld [vmem:[#allocation2 + $0xd8c] sm:$0xff]
    %v870 = vld [vmem:[#allocation2 + $0xd94] sm:$0xf]
    %v871 = vld [vmem:[#allocation2 + $0xd98] sm:$0xff]
    %v872 = vld [vmem:[#allocation2 + $0xda0] sm:$0xf]
    %v873 = vld [vmem:[#allocation2 + $0xda4] sm:$0xff]
    %v874 = vld [vmem:[#allocation2 + $0xdac] sm:$0xf]
    %v875 = vld [vmem:[#allocation2 + $0xdb0] sm:$0xff]
    %v876 = vld [vmem:[#allocation2 + $0xdb8] sm:$0xf]
    %v877 = vld [vmem:[#allocation2 + $0xdbc] sm:$0xff]
    %v878 = vld [vmem:[#allocation2 + $0xdc4] sm:$0xf]
    %v879 = vld [vmem:[#allocation2 + $0xdc8] sm:$0xff]
    %v880 = vld [vmem:[#allocation2 + $0xdd0] sm:$0xf]
    %v881 = vld [vmem:[#allocation2 + $0xdd4] sm:$0xff]
    %v882 = vld [vmem:[#allocation2 + $0xddc] sm:$0xf]
    %v883 = vld [vmem:[#allocation2 + $0xde0] sm:$0xff]
    %v884 = vld [vmem:[#allocation2 + $0xde8] sm:$0xf]
    %v885 = vld [vmem:[#allocation2 + $0xdec] sm:$0xff]
    %v886 = vld [vmem:[#allocation2 + $0xdf4] sm:$0xf]
    %v887 = vld [vmem:[#allocation2 + $0xdf8] sm:$0xff]
    %v888 = vld [vmem:[#allocation2 + $0xe00] sm:$0xf]
    %v889 = vld [vmem:[#allocation2 + $0xe04] sm:$0xff]
    %v890 = vld [vmem:[#allocation2 + $0xe0c] sm:$0xf]
    %v891 = vld [vmem:[#allocation2 + $0xe10] sm:$0xff]
    %v892 = vld [vmem:[#allocation2 + $0xe18] sm:$0xf]
    %v893 = vld [vmem:[#allocation2 + $0xe1c] sm:$0xff]
    %v894 = vld [vmem:[#allocation2 + $0xe24] sm:$0xf]
    %v895 = vld [vmem:[#allocation2 + $0xe28] sm:$0xff]
    %v896 = vld [vmem:[#allocation2 + $0xe30] sm:$0xf]
    %v897 = vld [vmem:[#allocation2 + $0xe34] sm:$0xff]
    %v898 = vld [vmem:[#allocation2 + $0xe3c] sm:$0xf]
    %v899 = vld [vmem:[#allocation2 + $0xe40] sm:$0xff]
    %v900 = vld [vmem:[#allocation2 + $0xe48] sm:$0xf]
    %v901 = vld [vmem:[#allocation2 + $0xe4c] sm:$0xff]
    %v902 = vld [vmem:[#allocation2 + $0xe54] sm:$0xf]
    %v903 = vld [vmem:[#allocation2 + $0xe58] sm:$0xff]
    %v904 = vld [vmem:[#allocation2 + $0xe60] sm:$0xf]
    %v905 = vld [vmem:[#allocation2 + $0xe64] sm:$0xff]
    %v906 = vld [vmem:[#allocation2 + $0xe6c] sm:$0xf]
    %v907 = vld [vmem:[#allocation2 + $0xe70] sm:$0xff]
    %v908 = vld [vmem:[#allocation2 + $0xe78] sm:$0xf]
    %v909 = vld [vmem:[#allocation2 + $0xe7c] sm:$0xff]
    %v910 = vld [vmem:[#allocation2 + $0xe84] sm:$0xf]
    %v911 = vld [vmem:[#allocation2 + $0xe88] sm:$0xff]
    %v912 = vld [vmem:[#allocation2 + $0xe90] sm:$0xf]
    %v913 = vld [vmem:[#allocation2 + $0xe94] sm:$0xff]
    %v914 = vld [vmem:[#allocation2 + $0xe9c] sm:$0xf]
    %v915 = vld [vmem:[#allocation2 + $0xea0] sm:$0xff]
    %v916 = vld [vmem:[#allocation2 + $0xea8] sm:$0xf]
    %v917 = vld [vmem:[#allocation2 + $0xeac] sm:$0xff]
    %v918 = vld [vmem:[#allocation2 + $0xeb4] sm:$0xf]
    %v919 = vld [vmem:[#allocation2 + $0xeb8] sm:$0xff]
    %v920 = vld [vmem:[#allocation2 + $0xec0] sm:$0xf]
    %v921 = vld [vmem:[#allocation2 + $0xec4] sm:$0xff]
    %v922 = vld [vmem:[#allocation2 + $0xecc] sm:$0xf]
    %v923 = vld [vmem:[#allocation2 + $0xed0] sm:$0xff]
    %v924 = vld [vmem:[#allocation2 + $0xed8] sm:$0xf]
    %v925 = vld [vmem:[#allocation2 + $0xedc] sm:$0xff]
    %v926 = vld [vmem:[#allocation2 + $0xee4] sm:$0xf]
    %v927 = vld [vmem:[#allocation2 + $0xee8] sm:$0xff]
    %v928 = vld [vmem:[#allocation2 + $0xef0] sm:$0xf]
    %v929 = vld [vmem:[#allocation2 + $0xef4] sm:$0xff]
    %v930 = vld [vmem:[#allocation2 + $0xefc] sm:$0xf]
    %v931 = vld [vmem:[#allocation2 + $0xf00] sm:$0xff]
    %v932 = vld [vmem:[#allocation2 + $0xf08] sm:$0xf]
    %v933 = vld [vmem:[#allocation2 + $0xf0c] sm:$0xff]
    %v934 = vld [vmem:[#allocation2 + $0xf14] sm:$0xf]
    %v935 = vld [vmem:[#allocation2 + $0xf18] sm:$0xff]
    %v936 = vld [vmem:[#allocation2 + $0xf20] sm:$0xf]
    %v937 = vld [vmem:[#allocation2 + $0xf24] sm:$0xff]
    %v938 = vld [vmem:[#allocation2 + $0xf2c] sm:$0xf]
    %v939 = vld [vmem:[#allocation2 + $0xf30] sm:$0xff]
    %v940 = vld [vmem:[#allocation2 + $0xf38] sm:$0xf]
    %v941 = vld [vmem:[#allocation2 + $0xf3c] sm:$0xff]
    %v942 = vld [vmem:[#allocation2 + $0xf44] sm:$0xf]
    %v943 = vld [vmem:[#allocation2 + $0xf48] sm:$0xff]
    %v944 = vld [vmem:[#allocation2 + $0xf50] sm:$0xf]
    %v945 = vld [vmem:[#allocation2 + $0xf54] sm:$0xff]
    %v946 = vld [vmem:[#allocation2 + $0xf5c] sm:$0xf]
    %v947 = vld [vmem:[#allocation2 + $0xf60] sm:$0xff]
    %v948 = vld [vmem:[#allocation2 + $0xf68] sm:$0xf]
    %v949 = vld [vmem:[#allocation2 + $0xf6c] sm:$0xff]
    %v950 = vld [vmem:[#allocation2 + $0xf74] sm:$0xf]
    %v951 = vld [vmem:[#allocation2 + $0xf78] sm:$0xff]
    %v952 = vld [vmem:[#allocation2 + $0xf80] sm:$0xf]
    %v953 = vld [vmem:[#allocation2 + $0xf84] sm:$0xff]
    %v954 = vld [vmem:[#allocation2 + $0xf8c] sm:$0xf]
    %v955 = vld [vmem:[#allocation2 + $0xf90] sm:$0xff]
    %v956 = vld [vmem:[#allocation2 + $0xf98] sm:$0xf]
    %v957 = vld [vmem:[#allocation2 + $0xf9c] sm:$0xff]
    %v958 = vld [vmem:[#allocation2 + $0xfa4] sm:$0xf]
    %v959 = vld [vmem:[#allocation2 + $0xfa8] sm:$0xff]
    %v960 = vld [vmem:[#allocation2 + $0xfb0] sm:$0xf]
    %v961 = vld [vmem:[#allocation2 + $0xfb4] sm:$0xff]
    %v962 = vld [vmem:[#allocation2 + $0xfbc] sm:$0xf]
    %v963 = vld [vmem:[#allocation2 + $0xfc0] sm:$0xff]
    %v964 = vld [vmem:[#allocation2 + $0xfc8] sm:$0xf]
    %v965 = vld [vmem:[#allocation2 + $0xfcc] sm:$0xff]
    %v966 = vld [vmem:[#allocation2 + $0xfd4] sm:$0xf]
    %v967 = vld [vmem:[#allocation2 + $0xfd8] sm:$0xff]
    %v968 = vld [vmem:[#allocation2 + $0xfe0] sm:$0xf]
    %v969 = vld [vmem:[#allocation2 + $0xfe4] sm:$0xff]
    %v970 = vld [vmem:[#allocation2 + $0xfec] sm:$0xf]
    %v971 = vld [vmem:[#allocation2 + $0xff0] sm:$0xff]
    %v972 = vld [vmem:[#allocation2 + $0xff8] sm:$0xf]
    %v973 = vld [vmem:[#allocation2 + $0xffc] sm:$0xff]
    %v974 = vld [vmem:[#allocation2 + $0x1004] sm:$0xf]
    %v975 = vld [vmem:[#allocation2 + $0x1008] sm:$0xff]
    %v976 = vld [vmem:[#allocation2 + $0x1010] sm:$0xf]
    %v977 = vld [vmem:[#allocation2 + $0x1014] sm:$0xff]
    %v978 = vld [vmem:[#allocation2 + $0x101c] sm:$0xf]
    %v979 = vld [vmem:[#allocation2 + $0x1020] sm:$0xff]
    %v980 = vld [vmem:[#allocation2 + $0x1028] sm:$0xf]
    %v981 = vld [vmem:[#allocation2 + $0x102c] sm:$0xff]
    %v982 = vld [vmem:[#allocation2 + $0x1034] sm:$0xf]
    %v983 = vld [vmem:[#allocation2 + $0x1038] sm:$0xff]
    %v984 = vld [vmem:[#allocation2 + $0x1040] sm:$0xf]
    %v985 = vld [vmem:[#allocation2 + $0x1044] sm:$0xff]
    %v986 = vld [vmem:[#allocation2 + $0x104c] sm:$0xf]
    %v987 = vld [vmem:[#allocation2 + $0x1050] sm:$0xff]
    %v988 = vld [vmem:[#allocation2 + $0x1058] sm:$0xf]
    %v989 = vld [vmem:[#allocation2 + $0x105c] sm:$0xff]
    %v990 = vld [vmem:[#allocation2 + $0x1064] sm:$0xf]
    %v991 = vld [vmem:[#allocation2 + $0x1068] sm:$0xff]
    %v992 = vld [vmem:[#allocation2 + $0x1070] sm:$0xf]
    %v993 = vld [vmem:[#allocation2 + $0x1074] sm:$0xff]
    %v994 = vld [vmem:[#allocation2 + $0x107c] sm:$0xf]
    %v995 = vld [vmem:[#allocation2 + $0x1080] sm:$0xff]
    %v996 = vld [vmem:[#allocation2 + $0x1088] sm:$0xf]
    %v997 = vld [vmem:[#allocation2 + $0x108c] sm:$0xff]
    %v998 = vld [vmem:[#allocation2 + $0x1094] sm:$0xf]
    %v999 = vld [vmem:[#allocation2 + $0x1098] sm:$0xff]
    %v1000 = vld [vmem:[#allocation2 + $0x10a0] sm:$0xf]
    %v1001 = vld [vmem:[#allocation2 + $0x10a4] sm:$0xff]
    %v1002 = vld [vmem:[#allocation2 + $0x10ac] sm:$0xf]
    %v1003 = vld [vmem:[#allocation2 + $0x10b0] sm:$0xff]
    %v1004 = vld [vmem:[#allocation2 + $0x10b8] sm:$0xf]
    %v1005 = vld [vmem:[#allocation2 + $0x10bc] sm:$0xff]
    %v1006 = vld [vmem:[#allocation2 + $0x10c4] sm:$0xf]
    %v1007 = vld [vmem:[#allocation2 + $0x10c8] sm:$0xff]
    %v1008 = vld [vmem:[#allocation2 + $0x10d0] sm:$0xf]
    %v1009 = vld [vmem:[#allocation2 + $0x10d4] sm:$0xff]
    %v1010 = vld [vmem:[#allocation2 + $0x10dc] sm:$0xf]
    %v1011 = vld [vmem:[#allocation2 + $0x10e0] sm:$0xff]
    %v1012 = vld [vmem:[#allocation2 + $0x10e8] sm:$0xf]
    %v1013 = vld [vmem:[#allocation2 + $0x10ec] sm:$0xff]
    %v1014 = vld [vmem:[#allocation2 + $0x10f4] sm:$0xf]
    %v1015 = vld [vmem:[#allocation2 + $0x10f8] sm:$0xff]
    %v1016 = vld [vmem:[#allocation2 + $0x1100] sm:$0xf]
    %v1017 = vld [vmem:[#allocation2 + $0x1104] sm:$0xff]
    %v1018 = vld [vmem:[#allocation2 + $0x110c] sm:$0xf]
    %v1019 = vld [vmem:[#allocation2 + $0x1110] sm:$0xff]
    %v1020 = vld [vmem:[#allocation2 + $0x1118] sm:$0xf]
    %v1021 = vld [vmem:[#allocation2 + $0x111c] sm:$0xff]
    %v1022 = vld [vmem:[#allocation2 + $0x1124] sm:$0xf]
    %v1023 = vld [vmem:[#allocation2 + $0x1128] sm:$0xff]
    %v1024 = vld [vmem:[#allocation2 + $0x1130] sm:$0xf]
    %v1025 = vld [vmem:[#allocation2 + $0x1134] sm:$0xff]
    %v1026 = vld [vmem:[#allocation2 + $0x113c] sm:$0xf]
    %v1027 = vld [vmem:[#allocation2 + $0x1140] sm:$0xff]
    %v1028 = vld [vmem:[#allocation2 + $0x1148] sm:$0xf]
    %v1029 = vld [vmem:[#allocation2 + $0x114c] sm:$0xff]
    %v1030 = vld [vmem:[#allocation2 + $0x1154] sm:$0xf]
    %v1031 = vld [vmem:[#allocation2 + $0x1158] sm:$0xff]
    %v1032 = vld [vmem:[#allocation2 + $0x1160] sm:$0xf]
    %v1033 = vld [vmem:[#allocation2 + $0x1164] sm:$0xff]
    %v1034 = vld [vmem:[#allocation2 + $0x116c] sm:$0xf]
    %v1035 = vld [vmem:[#allocation2 + $0x1170] sm:$0xff]
    %v1036 = vld [vmem:[#allocation2 + $0x1178] sm:$0xf]
    %v1037 = vld [vmem:[#allocation2 + $0x117c] sm:$0xff]
    %v1038 = vld [vmem:[#allocation2 + $0x1184] sm:$0xf]
    %v1039 = vld [vmem:[#allocation2 + $0x1188] sm:$0xff]
    %v1040 = vld [vmem:[#allocation2 + $0x1190] sm:$0xf]
    %v1041 = vld [vmem:[#allocation2 + $0x1194] sm:$0xff]
    %v1042 = vld [vmem:[#allocation2 + $0x119c] sm:$0xf]
    %v1043 = vld [vmem:[#allocation2 + $0x11a0] sm:$0xff]
    %v1044 = vld [vmem:[#allocation2 + $0x11a8] sm:$0xf]
    %v1045 = vld [vmem:[#allocation2 + $0x11ac] sm:$0xff]
    %v1046 = vld [vmem:[#allocation2 + $0x11b4] sm:$0xf]
    %v1047 = vld [vmem:[#allocation2 + $0x11b8] sm:$0xff]
    %v1048 = vld [vmem:[#allocation2 + $0x11c0] sm:$0xf]
    %v1049 = vld [vmem:[#allocation2 + $0x11c4] sm:$0xff]
    %v1050 = vld [vmem:[#allocation2 + $0x11cc] sm:$0xf]
    %v1051 = vld [vmem:[#allocation2 + $0x11d0] sm:$0xff]
    %v1052 = vld [vmem:[#allocation2 + $0x11d8] sm:$0xf]
    %v1053 = vld [vmem:[#allocation2 + $0x11dc] sm:$0xff]
    %v1054 = vld [vmem:[#allocation2 + $0x11e4] sm:$0xf]
    %v1055 = vld [vmem:[#allocation2 + $0x11e8] sm:$0xff]
    %v1056 = vld [vmem:[#allocation2 + $0x11f0] sm:$0xf]
    %v1057 = vld [vmem:[#allocation2 + $0x11f4] sm:$0xff]
    %v1058 = vld [vmem:[#allocation2 + $0x11fc] sm:$0xf]
    %v1059 = vld [vmem:[#allocation2 + $0x1200] sm:$0xff]
    %v1060 = vld [vmem:[#allocation2 + $0x1208] sm:$0xf]
    %v1061 = vld [vmem:[#allocation2 + $0x120c] sm:$0xff]
    %v1062 = vld [vmem:[#allocation2 + $0x1214] sm:$0xf]
    %v1063 = vld [vmem:[#allocation2 + $0x1218] sm:$0xff]
    %v1064 = vld [vmem:[#allocation2 + $0x1220] sm:$0xf]
    %v1065 = vld [vmem:[#allocation2 + $0x1224] sm:$0xff]
    %v1066 = vld [vmem:[#allocation2 + $0x122c] sm:$0xf]
    %v1067 = vld [vmem:[#allocation2 + $0x1230] sm:$0xff]
    %v1068 = vld [vmem:[#allocation2 + $0x1238] sm:$0xf]
    %v1069 = vld [vmem:[#allocation2 + $0x123c] sm:$0xff]
    %v1070 = vld [vmem:[#allocation2 + $0x1244] sm:$0xf]
    %v1071 = vld [vmem:[#allocation2 + $0x1248] sm:$0xff]
    %v1072 = vld [vmem:[#allocation2 + $0x1250] sm:$0xf]
    %v1073 = vld [vmem:[#allocation2 + $0x1254] sm:$0xff]
    %v1074 = vld [vmem:[#allocation2 + $0x125c] sm:$0xf]
    %v1075 = vld [vmem:[#allocation2 + $0x1260] sm:$0xff]
    %v1076 = vld [vmem:[#allocation2 + $0x1268] sm:$0xf]
    %v1077 = vld [vmem:[#allocation2 + $0x126c] sm:$0xff]
    %v1078 = vld [vmem:[#allocation2 + $0x1274] sm:$0xf]
    %v1079 = vld [vmem:[#allocation2 + $0x1278] sm:$0xff]
    %v1080 = vld [vmem:[#allocation2 + $0x1280] sm:$0xf]
    %v1081 = vld [vmem:[#allocation2 + $0x1284] sm:$0xff]
    %v1082 = vld [vmem:[#allocation2 + $0x128c] sm:$0xf]
    %v1083 = vld [vmem:[#allocation2 + $0x1290] sm:$0xff]
    %v1084 = vld [vmem:[#allocation2 + $0x1298] sm:$0xf]
    %v1085 = vld [vmem:[#allocation2 + $0x129c] sm:$0xff]
    %v1086 = vld [vmem:[#allocation2 + $0x12a4] sm:$0xf]
    %v1087 = vld [vmem:[#allocation2 + $0x12a8] sm:$0xff]
    %v1088 = vld [vmem:[#allocation2 + $0x12b0] sm:$0xf]
    %v1089 = vld [vmem:[#allocation2 + $0x12b4] sm:$0xff]
    %v1090 = vld [vmem:[#allocation2 + $0x12bc] sm:$0xf]
    %v1091 = vld [vmem:[#allocation6] sm:$0x7]
    %v1093 = vlaneseq
    %v1094 = vshrl.u32 %v1093, 7
    %v1095 = vsub.s32 0, %v1094
    %v1096 = vrot.slane %v1091, %v1095
    %v1097 = vlaneseq
    %v1098 = vshrl.u32 %v1097, 7
    %v1099 = vsub.s32 1, %v1098
    %v1100 = vrot.slane %v1091, %v1099
    %v1101 = vlaneseq
    %v1102 = vshrl.u32 %v1101, 7
    %v1103 = vsub.s32 2, %v1102
    %v1104 = vrot.slane %v1091, %v1103
    %v1908 = vunpack.c.l.b16 %v291
    %v1909 = vunpack.c.h.b16 %v291
    %v1910 = vunpack.c.l.b16 %v292
    %v1911 = vunpack.c.l.b16 %v293
    %v1912 = vunpack.c.h.b16 %v293
    %v1913 = vunpack.c.l.b16 %v294
    %v1914 = vunpack.c.l.b16 %v295
    %v1915 = vunpack.c.h.b16 %v295
    %v1916 = vunpack.c.l.b16 %v296
    %v1917 = vunpack.c.l.b16 %v297
    %v1918 = vunpack.c.h.b16 %v297
    %v1919 = vunpack.c.l.b16 %v298
    %v1920 = vunpack.c.l.b16 %v299
    %v1921 = vunpack.c.h.b16 %v299
    %v1922 = vunpack.c.l.b16 %v300
    %v1923 = vunpack.c.l.b16 %v301
    %v1924 = vunpack.c.h.b16 %v301
    %v1925 = vunpack.c.l.b16 %v302
    %v1926 = vunpack.c.l.b16 %v303
    %v1927 = vunpack.c.h.b16 %v303
    %v1928 = vunpack.c.l.b16 %v304
    %v1929 = vunpack.c.l.b16 %v305
    %v1930 = vunpack.c.h.b16 %v305
    %v1931 = vunpack.c.l.b16 %v306
    %v1932 = vunpack.c.l.b16 %v307
    %v1933 = vunpack.c.h.b16 %v307
    %v1934 = vunpack.c.l.b16 %v308
    %v1935 = vunpack.c.l.b16 %v309
    %v1936 = vunpack.c.h.b16 %v309
    %v1937 = vunpack.c.l.b16 %v310
    %v1938 = vunpack.c.l.b16 %v311
    %v1939 = vunpack.c.h.b16 %v311
    %v1940 = vunpack.c.l.b16 %v312
    %v1941 = vunpack.c.l.b16 %v313
    %v1942 = vunpack.c.h.b16 %v313
    %v1943 = vunpack.c.l.b16 %v314
    %v1944 = vunpack.c.l.b16 %v315
    %v1945 = vunpack.c.h.b16 %v315
    %v1946 = vunpack.c.l.b16 %v316
    %v1947 = vunpack.c.l.b16 %v317
    %v1948 = vunpack.c.h.b16 %v317
    %v1949 = vunpack.c.l.b16 %v318
    %v1950 = vunpack.c.l.b16 %v319
    %v1951 = vunpack.c.h.b16 %v319
    %v1952 = vunpack.c.l.b16 %v320
    %v1953 = vunpack.c.l.b16 %v321
    %v1954 = vunpack.c.h.b16 %v321
    %v1955 = vunpack.c.l.b16 %v322
    %v1956 = vunpack.c.l.b16 %v323
    %v1957 = vunpack.c.h.b16 %v323
    %v1958 = vunpack.c.l.b16 %v324
    %v1959 = vunpack.c.l.b16 %v325
    %v1960 = vunpack.c.h.b16 %v325
    %v1961 = vunpack.c.l.b16 %v326
    %v1962 = vunpack.c.l.b16 %v327
    %v1963 = vunpack.c.h.b16 %v327
    %v1964 = vunpack.c.l.b16 %v328
    %v1965 = vunpack.c.l.b16 %v329
    %v1966 = vunpack.c.h.b16 %v329
    %v1967 = vunpack.c.l.b16 %v330
    %v1968 = vunpack.c.l.b16 %v331
    %v1969 = vunpack.c.h.b16 %v331
    %v1970 = vunpack.c.l.b16 %v332
    %v1971 = vunpack.c.l.b16 %v333
    %v1972 = vunpack.c.h.b16 %v333
    %v1973 = vunpack.c.l.b16 %v334
    %v1974 = vunpack.c.l.b16 %v335
    %v1975 = vunpack.c.h.b16 %v335
    %v1976 = vunpack.c.l.b16 %v336
    %v1977 = vunpack.c.l.b16 %v337
    %v1978 = vunpack.c.h.b16 %v337
    %v1979 = vunpack.c.l.b16 %v338
    %v1980 = vunpack.c.l.b16 %v339
    %v1981 = vunpack.c.h.b16 %v339
    %v1982 = vunpack.c.l.b16 %v340
    %v1983 = vunpack.c.l.b16 %v341
    %v1984 = vunpack.c.h.b16 %v341
    %v1985 = vunpack.c.l.b16 %v342
    %v1986 = vunpack.c.l.b16 %v343
    %v1987 = vunpack.c.h.b16 %v343
    %v1988 = vunpack.c.l.b16 %v344
    %v1989 = vunpack.c.l.b16 %v345
    %v1990 = vunpack.c.h.b16 %v345
    %v1991 = vunpack.c.l.b16 %v346
    %v1992 = vunpack.c.l.b16 %v347
    %v1993 = vunpack.c.h.b16 %v347
    %v1994 = vunpack.c.l.b16 %v348
    %v1995 = vunpack.c.l.b16 %v349
    %v1996 = vunpack.c.h.b16 %v349
    %v1997 = vunpack.c.l.b16 %v350
    %v1998 = vunpack.c.l.b16 %v351
    %v1999 = vunpack.c.h.b16 %v351
    %v2000 = vunpack.c.l.b16 %v352
    %v2001 = vunpack.c.l.b16 %v353
    %v2002 = vunpack.c.h.b16 %v353
    %v2003 = vunpack.c.l.b16 %v354
    %v2004 = vunpack.c.l.b16 %v355
    %v2005 = vunpack.c.h.b16 %v355
    %v2006 = vunpack.c.l.b16 %v356
    %v2007 = vunpack.c.l.b16 %v357
    %v2008 = vunpack.c.h.b16 %v357
    %v2009 = vunpack.c.l.b16 %v358
    %v2010 = vunpack.c.l.b16 %v359
    %v2011 = vunpack.c.h.b16 %v359
    %v2012 = vunpack.c.l.b16 %v360
    %v2013 = vunpack.c.l.b16 %v361
    %v2014 = vunpack.c.h.b16 %v361
    %v2015 = vunpack.c.l.b16 %v362
    %v2016 = vunpack.c.l.b16 %v363
    %v2017 = vunpack.c.h.b16 %v363
    %v2018 = vunpack.c.l.b16 %v364
    %v2019 = vunpack.c.l.b16 %v365
    %v2020 = vunpack.c.h.b16 %v365
    %v2021 = vunpack.c.l.b16 %v366
    %v2022 = vunpack.c.l.b16 %v367
    %v2023 = vunpack.c.h.b16 %v367
    %v2024 = vunpack.c.l.b16 %v368
    %v2025 = vunpack.c.l.b16 %v369
    %v2026 = vunpack.c.h.b16 %v369
    %v2027 = vunpack.c.l.b16 %v370
    %v2028 = vunpack.c.l.b16 %v371
    %v2029 = vunpack.c.h.b16 %v371
    %v2030 = vunpack.c.l.b16 %v372
    %v2031 = vunpack.c.l.b16 %v373
    %v2032 = vunpack.c.h.b16 %v373
    %v2033 = vunpack.c.l.b16 %v374
    %v2034 = vunpack.c.l.b16 %v375
    %v2035 = vunpack.c.h.b16 %v375
    %v2036 = vunpack.c.l.b16 %v376
    %v2037 = vunpack.c.l.b16 %v377
    %v2038 = vunpack.c.h.b16 %v377
    %v2039 = vunpack.c.l.b16 %v378
    %v2040 = vunpack.c.l.b16 %v379
    %v2041 = vunpack.c.h.b16 %v379
    %v2042 = vunpack.c.l.b16 %v380
    %v2043 = vunpack.c.l.b16 %v381
    %v2044 = vunpack.c.h.b16 %v381
    %v2045 = vunpack.c.l.b16 %v382
    %v2046 = vunpack.c.l.b16 %v383
    %v2047 = vunpack.c.h.b16 %v383
    %v2048 = vunpack.c.l.b16 %v384
    %v2049 = vunpack.c.l.b16 %v385
    %v2050 = vunpack.c.h.b16 %v385
    %v2051 = vunpack.c.l.b16 %v386
    %v2052 = vunpack.c.l.b16 %v387
    %v2053 = vunpack.c.h.b16 %v387
    %v2054 = vunpack.c.l.b16 %v388
    %v2055 = vunpack.c.l.b16 %v389
    %v2056 = vunpack.c.h.b16 %v389
    %v2057 = vunpack.c.l.b16 %v390
    %v2058 = vunpack.c.l.b16 %v391
    %v2059 = vunpack.c.h.b16 %v391
    %v2060 = vunpack.c.l.b16 %v392
    %v2061 = vunpack.c.l.b16 %v393
    %v2062 = vunpack.c.h.b16 %v393
    %v2063 = vunpack.c.l.b16 %v394
    %v2064 = vunpack.c.l.b16 %v395
    %v2065 = vunpack.c.h.b16 %v395
    %v2066 = vunpack.c.l.b16 %v396
    %v2067 = vunpack.c.l.b16 %v397
    %v2068 = vunpack.c.h.b16 %v397
    %v2069 = vunpack.c.l.b16 %v398
    %v2070 = vunpack.c.l.b16 %v399
    %v2071 = vunpack.c.h.b16 %v399
    %v2072 = vunpack.c.l.b16 %v400
    %v2073 = vunpack.c.l.b16 %v401
    %v2074 = vunpack.c.h.b16 %v401
    %v2075 = vunpack.c.l.b16 %v402
    %v2076 = vunpack.c.l.b16 %v403
    %v2077 = vunpack.c.h.b16 %v403
    %v2078 = vunpack.c.l.b16 %v404
    %v2079 = vunpack.c.l.b16 %v405
    %v2080 = vunpack.c.h.b16 %v405
    %v2081 = vunpack.c.l.b16 %v406
    %v2082 = vunpack.c.l.b16 %v407
    %v2083 = vunpack.c.h.b16 %v407
    %v2084 = vunpack.c.l.b16 %v408
    %v2085 = vunpack.c.l.b16 %v409
    %v2086 = vunpack.c.h.b16 %v409
    %v2087 = vunpack.c.l.b16 %v410
    %v2088 = vunpack.c.l.b16 %v411
    %v2089 = vunpack.c.h.b16 %v411
    %v2090 = vunpack.c.l.b16 %v412
    %v2091 = vunpack.c.l.b16 %v413
    %v2092 = vunpack.c.h.b16 %v413
    %v2093 = vunpack.c.l.b16 %v414
    %v2094 = vunpack.c.l.b16 %v415
    %v2095 = vunpack.c.h.b16 %v415
    %v2096 = vunpack.c.l.b16 %v416
    %v2097 = vunpack.c.l.b16 %v417
    %v2098 = vunpack.c.h.b16 %v417
    %v2099 = vunpack.c.l.b16 %v418
    %v2100 = vunpack.c.l.b16 %v419
    %v2101 = vunpack.c.h.b16 %v419
    %v2102 = vunpack.c.l.b16 %v420
    %v2103 = vunpack.c.l.b16 %v421
    %v2104 = vunpack.c.h.b16 %v421
    %v2105 = vunpack.c.l.b16 %v422
    %v2106 = vunpack.c.l.b16 %v423
    %v2107 = vunpack.c.h.b16 %v423
    %v2108 = vunpack.c.l.b16 %v424
    %v2109 = vunpack.c.l.b16 %v425
    %v2110 = vunpack.c.h.b16 %v425
    %v2111 = vunpack.c.l.b16 %v426
    %v2112 = vunpack.c.l.b16 %v427
    %v2113 = vunpack.c.h.b16 %v427
    %v2114 = vunpack.c.l.b16 %v428
    %v2115 = vunpack.c.l.b16 %v429
    %v2116 = vunpack.c.h.b16 %v429
    %v2117 = vunpack.c.l.b16 %v430
    %v2118 = vunpack.c.l.b16 %v431
    %v2119 = vunpack.c.h.b16 %v431
    %v2120 = vunpack.c.l.b16 %v432
    %v2121 = vunpack.c.l.b16 %v433
    %v2122 = vunpack.c.h.b16 %v433
    %v2123 = vunpack.c.l.b16 %v434
    %v2124 = vunpack.c.l.b16 %v435
    %v2125 = vunpack.c.h.b16 %v435
    %v2126 = vunpack.c.l.b16 %v436
    %v2127 = vunpack.c.l.b16 %v437
    %v2128 = vunpack.c.h.b16 %v437
    %v2129 = vunpack.c.l.b16 %v438
    %v2130 = vunpack.c.l.b16 %v439
    %v2131 = vunpack.c.h.b16 %v439
    %v2132 = vunpack.c.l.b16 %v440
    %v2133 = vunpack.c.l.b16 %v441
    %v2134 = vunpack.c.h.b16 %v441
    %v2135 = vunpack.c.l.b16 %v442
    %v2136 = vunpack.c.l.b16 %v443
    %v2137 = vunpack.c.h.b16 %v443
    %v2138 = vunpack.c.l.b16 %v444
    %v2139 = vunpack.c.l.b16 %v445
    %v2140 = vunpack.c.h.b16 %v445
    %v2141 = vunpack.c.l.b16 %v446
    %v2142 = vunpack.c.l.b16 %v447
    %v2143 = vunpack.c.h.b16 %v447
    %v2144 = vunpack.c.l.b16 %v448
    %v2145 = vunpack.c.l.b16 %v449
    %v2146 = vunpack.c.h.b16 %v449
    %v2147 = vunpack.c.l.b16 %v450
    %v2148 = vunpack.c.l.b16 %v451
    %v2149 = vunpack.c.h.b16 %v451
    %v2150 = vunpack.c.l.b16 %v452
    %v2151 = vunpack.c.l.b16 %v453
    %v2152 = vunpack.c.h.b16 %v453
    %v2153 = vunpack.c.l.b16 %v454
    %v2154 = vunpack.c.l.b16 %v455
    %v2155 = vunpack.c.h.b16 %v455
    %v2156 = vunpack.c.l.b16 %v456
    %v2157 = vunpack.c.l.b16 %v457
    %v2158 = vunpack.c.h.b16 %v457
    %v2159 = vunpack.c.l.b16 %v458
    %v2160 = vunpack.c.l.b16 %v459
    %v2161 = vunpack.c.h.b16 %v459
    %v2162 = vunpack.c.l.b16 %v460
    %v2163 = vunpack.c.l.b16 %v461
    %v2164 = vunpack.c.h.b16 %v461
    %v2165 = vunpack.c.l.b16 %v462
    %v2166 = vunpack.c.l.b16 %v463
    %v2167 = vunpack.c.h.b16 %v463
    %v2168 = vunpack.c.l.b16 %v464
    %v2169 = vunpack.c.l.b16 %v465
    %v2170 = vunpack.c.h.b16 %v465
    %v2171 = vunpack.c.l.b16 %v466
    %v2172 = vunpack.c.l.b16 %v467
    %v2173 = vunpack.c.h.b16 %v467
    %v2174 = vunpack.c.l.b16 %v468
    %v2175 = vunpack.c.l.b16 %v469
    %v2176 = vunpack.c.h.b16 %v469
    %v2177 = vunpack.c.l.b16 %v470
    %v2178 = vunpack.c.l.b16 %v471
    %v2179 = vunpack.c.h.b16 %v471
    %v2180 = vunpack.c.l.b16 %v472
    %v2181 = vunpack.c.l.b16 %v473
    %v2182 = vunpack.c.h.b16 %v473
    %v2183 = vunpack.c.l.b16 %v474
    %v2184 = vunpack.c.l.b16 %v475
    %v2185 = vunpack.c.h.b16 %v475
    %v2186 = vunpack.c.l.b16 %v476
    %v2187 = vunpack.c.l.b16 %v477
    %v2188 = vunpack.c.h.b16 %v477
    %v2189 = vunpack.c.l.b16 %v478
    %v2190 = vunpack.c.l.b16 %v479
    %v2191 = vunpack.c.h.b16 %v479
    %v2192 = vunpack.c.l.b16 %v480
    %v2193 = vunpack.c.l.b16 %v481
    %v2194 = vunpack.c.h.b16 %v481
    %v2195 = vunpack.c.l.b16 %v482
    %v2196 = vunpack.c.l.b16 %v483
    %v2197 = vunpack.c.h.b16 %v483
    %v2198 = vunpack.c.l.b16 %v484
    %v2199 = vunpack.c.l.b16 %v485
    %v2200 = vunpack.c.h.b16 %v485
    %v2201 = vunpack.c.l.b16 %v486
    %v2202 = vunpack.c.l.b16 %v487
    %v2203 = vunpack.c.h.b16 %v487
    %v2204 = vunpack.c.l.b16 %v488
    %v2205 = vunpack.c.l.b16 %v489
    %v2206 = vunpack.c.h.b16 %v489
    %v2207 = vunpack.c.l.b16 %v490
    %v2208 = vunpack.c.l.b16 %v491
    %v2209 = vunpack.c.h.b16 %v491
    %v2210 = vunpack.c.l.b16 %v492
    %v2211 = vunpack.c.l.b16 %v493
    %v2212 = vunpack.c.h.b16 %v493
    %v2213 = vunpack.c.l.b16 %v494
    %v2214 = vunpack.c.l.b16 %v495
    %v2215 = vunpack.c.h.b16 %v495
    %v2216 = vunpack.c.l.b16 %v496
    %v2217 = vunpack.c.l.b16 %v497
    %v2218 = vunpack.c.h.b16 %v497
    %v2219 = vunpack.c.l.b16 %v498
    %v2220 = vunpack.c.l.b16 %v499
    %v2221 = vunpack.c.h.b16 %v499
    %v2222 = vunpack.c.l.b16 %v500
    %v2223 = vunpack.c.l.b16 %v501
    %v2224 = vunpack.c.h.b16 %v501
    %v2225 = vunpack.c.l.b16 %v502
    %v2226 = vunpack.c.l.b16 %v503
    %v2227 = vunpack.c.h.b16 %v503
    %v2228 = vunpack.c.l.b16 %v504
    %v2229 = vunpack.c.l.b16 %v505
    %v2230 = vunpack.c.h.b16 %v505
    %v2231 = vunpack.c.l.b16 %v506
    %v2232 = vunpack.c.l.b16 %v507
    %v2233 = vunpack.c.h.b16 %v507
    %v2234 = vunpack.c.l.b16 %v508
    %v2235 = vunpack.c.l.b16 %v509
    %v2236 = vunpack.c.h.b16 %v509
    %v2237 = vunpack.c.l.b16 %v510
    %v2238 = vunpack.c.l.b16 %v511
    %v2239 = vunpack.c.h.b16 %v511
    %v2240 = vunpack.c.l.b16 %v512
    %v2241 = vunpack.c.l.b16 %v513
    %v2242 = vunpack.c.h.b16 %v513
    %v2243 = vunpack.c.l.b16 %v514
    %v2244 = vunpack.c.l.b16 %v515
    %v2245 = vunpack.c.h.b16 %v515
    %v2246 = vunpack.c.l.b16 %v516
    %v2247 = vunpack.c.l.b16 %v517
    %v2248 = vunpack.c.h.b16 %v517
    %v2249 = vunpack.c.l.b16 %v518
    %v2250 = vunpack.c.l.b16 %v519
    %v2251 = vunpack.c.h.b16 %v519
    %v2252 = vunpack.c.l.b16 %v520
    %v2253 = vunpack.c.l.b16 %v521
    %v2254 = vunpack.c.h.b16 %v521
    %v2255 = vunpack.c.l.b16 %v522
    %v2256 = vunpack.c.l.b16 %v523
    %v2257 = vunpack.c.h.b16 %v523
    %v2258 = vunpack.c.l.b16 %v524
    %v2259 = vunpack.c.l.b16 %v525
    %v2260 = vunpack.c.h.b16 %v525
    %v2261 = vunpack.c.l.b16 %v526
    %v2262 = vunpack.c.l.b16 %v527
    %v2263 = vunpack.c.h.b16 %v527
    %v2264 = vunpack.c.l.b16 %v528
    %v2265 = vunpack.c.l.b16 %v529
    %v2266 = vunpack.c.h.b16 %v529
    %v2267 = vunpack.c.l.b16 %v530
    %v2268 = vunpack.c.l.b16 %v531
    %v2269 = vunpack.c.h.b16 %v531
    %v2270 = vunpack.c.l.b16 %v532
    %v2271 = vunpack.c.l.b16 %v533
    %v2272 = vunpack.c.h.b16 %v533
    %v2273 = vunpack.c.l.b16 %v534
    %v2274 = vunpack.c.l.b16 %v535
    %v2275 = vunpack.c.h.b16 %v535
    %v2276 = vunpack.c.l.b16 %v536
    %v2277 = vunpack.c.l.b16 %v537
    %v2278 = vunpack.c.h.b16 %v537
    %v2279 = vunpack.c.l.b16 %v538
    %v2280 = vunpack.c.l.b16 %v539
    %v2281 = vunpack.c.h.b16 %v539
    %v2282 = vunpack.c.l.b16 %v540
    %v2283 = vunpack.c.l.b16 %v541
    %v2284 = vunpack.c.h.b16 %v541
    %v2285 = vunpack.c.l.b16 %v542
    %v2286 = vunpack.c.l.b16 %v543
    %v2287 = vunpack.c.h.b16 %v543
    %v2288 = vunpack.c.l.b16 %v544
    %v2289 = vunpack.c.l.b16 %v545
    %v2290 = vunpack.c.h.b16 %v545
    %v2291 = vunpack.c.l.b16 %v546
    %v2292 = vunpack.c.l.b16 %v547
    %v2293 = vunpack.c.h.b16 %v547
    %v2294 = vunpack.c.l.b16 %v548
    %v2295 = vunpack.c.l.b16 %v549
    %v2296 = vunpack.c.h.b16 %v549
    %v2297 = vunpack.c.l.b16 %v550
    %v2298 = vunpack.c.l.b16 %v551
    %v2299 = vunpack.c.h.b16 %v551
    %v2300 = vunpack.c.l.b16 %v552
    %v2301 = vunpack.c.l.b16 %v553
    %v2302 = vunpack.c.h.b16 %v553
    %v2303 = vunpack.c.l.b16 %v554
    %v2304 = vunpack.c.l.b16 %v555
    %v2305 = vunpack.c.h.b16 %v555
    %v2306 = vunpack.c.l.b16 %v556
    %v2307 = vunpack.c.l.b16 %v557
    %v2308 = vunpack.c.h.b16 %v557
    %v2309 = vunpack.c.l.b16 %v558
    %v2310 = vunpack.c.l.b16 %v559
    %v2311 = vunpack.c.h.b16 %v559
    %v2312 = vunpack.c.l.b16 %v560
    %v2313 = vunpack.c.l.b16 %v561
    %v2314 = vunpack.c.h.b16 %v561
    %v2315 = vunpack.c.l.b16 %v562
    %v2316 = vunpack.c.l.b16 %v563
    %v2317 = vunpack.c.h.b16 %v563
    %v2318 = vunpack.c.l.b16 %v564
    %v2319 = vunpack.c.l.b16 %v565
    %v2320 = vunpack.c.h.b16 %v565
    %v2321 = vunpack.c.l.b16 %v566
    %v2322 = vunpack.c.l.b16 %v567
    %v2323 = vunpack.c.h.b16 %v567
    %v2324 = vunpack.c.l.b16 %v568
    %v2325 = vunpack.c.l.b16 %v569
    %v2326 = vunpack.c.h.b16 %v569
    %v2327 = vunpack.c.l.b16 %v570
    %v2328 = vunpack.c.l.b16 %v571
    %v2329 = vunpack.c.h.b16 %v571
    %v2330 = vunpack.c.l.b16 %v572
    %v2331 = vunpack.c.l.b16 %v573
    %v2332 = vunpack.c.h.b16 %v573
    %v2333 = vunpack.c.l.b16 %v574
    %v2334 = vunpack.c.l.b16 %v575
    %v2335 = vunpack.c.h.b16 %v575
    %v2336 = vunpack.c.l.b16 %v576
    %v2337 = vunpack.c.l.b16 %v577
    %v2338 = vunpack.c.h.b16 %v577
    %v2339 = vunpack.c.l.b16 %v578
    %v2340 = vunpack.c.l.b16 %v579
    %v2341 = vunpack.c.h.b16 %v579
    %v2342 = vunpack.c.l.b16 %v580
    %v2343 = vunpack.c.l.b16 %v581
    %v2344 = vunpack.c.h.b16 %v581
    %v2345 = vunpack.c.l.b16 %v582
    %v2346 = vunpack.c.l.b16 %v583
    %v2347 = vunpack.c.h.b16 %v583
    %v2348 = vunpack.c.l.b16 %v584
    %v2349 = vunpack.c.l.b16 %v585
    %v2350 = vunpack.c.h.b16 %v585
    %v2351 = vunpack.c.l.b16 %v586
    %v2352 = vunpack.c.l.b16 %v587
    %v2353 = vunpack.c.h.b16 %v587
    %v2354 = vunpack.c.l.b16 %v588
    %v2355 = vunpack.c.l.b16 %v589
    %v2356 = vunpack.c.h.b16 %v589
    %v2357 = vunpack.c.l.b16 %v590
    %v2358 = vunpack.c.l.b16 %v591
    %v2359 = vunpack.c.h.b16 %v591
    %v2360 = vunpack.c.l.b16 %v592
    %v2361 = vunpack.c.l.b16 %v593
    %v2362 = vunpack.c.h.b16 %v593
    %v2363 = vunpack.c.l.b16 %v594
    %v2364 = vunpack.c.l.b16 %v595
    %v2365 = vunpack.c.h.b16 %v595
    %v2366 = vunpack.c.l.b16 %v596
    %v2367 = vunpack.c.l.b16 %v597
    %v2368 = vunpack.c.h.b16 %v597
    %v2369 = vunpack.c.l.b16 %v598
    %v2370 = vunpack.c.l.b16 %v599
    %v2371 = vunpack.c.h.b16 %v599
    %v2372 = vunpack.c.l.b16 %v600
    %v2373 = vunpack.c.l.b16 %v601
    %v2374 = vunpack.c.h.b16 %v601
    %v2375 = vunpack.c.l.b16 %v602
    %v2376 = vunpack.c.l.b16 %v603
    %v2377 = vunpack.c.h.b16 %v603
    %v2378 = vunpack.c.l.b16 %v604
    %v2379 = vunpack.c.l.b16 %v605
    %v2380 = vunpack.c.h.b16 %v605
    %v2381 = vunpack.c.l.b16 %v606
    %v2382 = vunpack.c.l.b16 %v607
    %v2383 = vunpack.c.h.b16 %v607
    %v2384 = vunpack.c.l.b16 %v608
    %v2385 = vunpack.c.l.b16 %v609
    %v2386 = vunpack.c.h.b16 %v609
    %v2387 = vunpack.c.l.b16 %v610
    %v2388 = vunpack.c.l.b16 %v611
    %v2389 = vunpack.c.h.b16 %v611
    %v2390 = vunpack.c.l.b16 %v612
    %v2391 = vunpack.c.l.b16 %v613
    %v2392 = vunpack.c.h.b16 %v613
    %v2393 = vunpack.c.l.b16 %v614
    %v2394 = vunpack.c.l.b16 %v615
    %v2395 = vunpack.c.h.b16 %v615
    %v2396 = vunpack.c.l.b16 %v616
    %v2397 = vunpack.c.l.b16 %v617
    %v2398 = vunpack.c.h.b16 %v617
    %v2399 = vunpack.c.l.b16 %v618
    %v2400 = vunpack.c.l.b16 %v619
    %v2401 = vunpack.c.h.b16 %v619
    %v2402 = vunpack.c.l.b16 %v620
    %v2403 = vunpack.c.l.b16 %v621
    %v2404 = vunpack.c.h.b16 %v621
    %v2405 = vunpack.c.l.b16 %v622
    %v2406 = vunpack.c.l.b16 %v623
    %v2407 = vunpack.c.h.b16 %v623
    %v2408 = vunpack.c.l.b16 %v624
    %v2409 = vunpack.c.l.b16 %v625
    %v2410 = vunpack.c.h.b16 %v625
    %v2411 = vunpack.c.l.b16 %v626
    %v2412 = vunpack.c.l.b16 %v627
    %v2413 = vunpack.c.h.b16 %v627
    %v2414 = vunpack.c.l.b16 %v628
    %v2415 = vunpack.c.l.b16 %v629
    %v2416 = vunpack.c.h.b16 %v629
    %v2417 = vunpack.c.l.b16 %v630
    %v2418 = vunpack.c.l.b16 %v631
    %v2419 = vunpack.c.h.b16 %v631
    %v2420 = vunpack.c.l.b16 %v632
    %v2421 = vunpack.c.l.b16 %v633
    %v2422 = vunpack.c.h.b16 %v633
    %v2423 = vunpack.c.l.b16 %v634
    %v2424 = vunpack.c.l.b16 %v635
    %v2425 = vunpack.c.h.b16 %v635
    %v2426 = vunpack.c.l.b16 %v636
    %v2427 = vunpack.c.l.b16 %v637
    %v2428 = vunpack.c.h.b16 %v637
    %v2429 = vunpack.c.l.b16 %v638
    %v2430 = vunpack.c.l.b16 %v639
    %v2431 = vunpack.c.h.b16 %v639
    %v2432 = vunpack.c.l.b16 %v640
    %v2433 = vunpack.c.l.b16 %v641
    %v2434 = vunpack.c.h.b16 %v641
    %v2435 = vunpack.c.l.b16 %v642
    %v2436 = vunpack.c.l.b16 %v643
    %v2437 = vunpack.c.h.b16 %v643
    %v2438 = vunpack.c.l.b16 %v644
    %v2439 = vunpack.c.l.b16 %v645
    %v2440 = vunpack.c.h.b16 %v645
    %v2441 = vunpack.c.l.b16 %v646
    %v2442 = vunpack.c.l.b16 %v647
    %v2443 = vunpack.c.h.b16 %v647
    %v2444 = vunpack.c.l.b16 %v648
    %v2445 = vunpack.c.l.b16 %v649
    %v2446 = vunpack.c.h.b16 %v649
    %v2447 = vunpack.c.l.b16 %v650
    %v2448 = vunpack.c.l.b16 %v651
    %v2449 = vunpack.c.h.b16 %v651
    %v2450 = vunpack.c.l.b16 %v652
    %v2451 = vunpack.c.l.b16 %v653
    %v2452 = vunpack.c.h.b16 %v653
    %v2453 = vunpack.c.l.b16 %v654
    %v2454 = vunpack.c.l.b16 %v655
    %v2455 = vunpack.c.h.b16 %v655
    %v2456 = vunpack.c.l.b16 %v656
    %v2457 = vunpack.c.l.b16 %v657
    %v2458 = vunpack.c.h.b16 %v657
    %v2459 = vunpack.c.l.b16 %v658
    %v2460 = vunpack.c.l.b16 %v659
    %v2461 = vunpack.c.h.b16 %v659
    %v2462 = vunpack.c.l.b16 %v660
    %v2463 = vunpack.c.l.b16 %v661
    %v2464 = vunpack.c.h.b16 %v661
    %v2465 = vunpack.c.l.b16 %v662
    %v2466 = vunpack.c.l.b16 %v663
    %v2467 = vunpack.c.h.b16 %v663
    %v2468 = vunpack.c.l.b16 %v664
    %v2469 = vunpack.c.l.b16 %v665
    %v2470 = vunpack.c.h.b16 %v665
    %v2471 = vunpack.c.l.b16 %v666
    %v2472 = vunpack.c.l.b16 %v667
    %v2473 = vunpack.c.h.b16 %v667
    %v2474 = vunpack.c.l.b16 %v668
    %v2475 = vunpack.c.l.b16 %v669
    %v2476 = vunpack.c.h.b16 %v669
    %v2477 = vunpack.c.l.b16 %v670
    %v2478 = vunpack.c.l.b16 %v671
    %v2479 = vunpack.c.h.b16 %v671
    %v2480 = vunpack.c.l.b16 %v672
    %v2481 = vunpack.c.l.b16 %v673
    %v2482 = vunpack.c.h.b16 %v673
    %v2483 = vunpack.c.l.b16 %v674
    %v2484 = vunpack.c.l.b16 %v675
    %v2485 = vunpack.c.h.b16 %v675
    %v2486 = vunpack.c.l.b16 %v676
    %v2487 = vunpack.c.l.b16 %v677
    %v2488 = vunpack.c.h.b16 %v677
    %v2489 = vunpack.c.l.b16 %v678
    %v2490 = vunpack.c.l.b16 %v679
    %v2491 = vunpack.c.h.b16 %v679
    %v2492 = vunpack.c.l.b16 %v680
    %v2493 = vunpack.c.l.b16 %v681
    %v2494 = vunpack.c.h.b16 %v681
    %v2495 = vunpack.c.l.b16 %v682
    %v2496 = vunpack.c.l.b16 %v683
    %v2497 = vunpack.c.h.b16 %v683
    %v2498 = vunpack.c.l.b16 %v684
    %v2499 = vunpack.c.l.b16 %v685
    %v2500 = vunpack.c.h.b16 %v685
    %v2501 = vunpack.c.l.b16 %v686
    %v2502 = vunpack.c.l.b16 %v687
    %v2503 = vunpack.c.h.b16 %v687
    %v2504 = vunpack.c.l.b16 %v688
    %v2505 = vunpack.c.l.b16 %v689
    %v2506 = vunpack.c.h.b16 %v689
    %v2507 = vunpack.c.l.b16 %v690
    %v2508 = vunpack.c.l.b16 %v691
    %v2509 = vunpack.c.h.b16 %v691
    %v2510 = vunpack.c.l.b16 %v692
    %v2511 = vunpack.c.l.b16 %v693
    %v2512 = vunpack.c.h.b16 %v693
    %v2513 = vunpack.c.l.b16 %v694
    %v2514 = vunpack.c.l.b16 %v695
    %v2515 = vunpack.c.h.b16 %v695
    %v2516 = vunpack.c.l.b16 %v696
    %v2517 = vunpack.c.l.b16 %v697
    %v2518 = vunpack.c.h.b16 %v697
    %v2519 = vunpack.c.l.b16 %v698
    %v2520 = vunpack.c.l.b16 %v699
    %v2521 = vunpack.c.h.b16 %v699
    %v2522 = vunpack.c.l.b16 %v700
    %v2523 = vunpack.c.l.b16 %v701
    %v2524 = vunpack.c.h.b16 %v701
    %v2525 = vunpack.c.l.b16 %v702
    %v2526 = vunpack.c.l.b16 %v703
    %v2527 = vunpack.c.h.b16 %v703
    %v2528 = vunpack.c.l.b16 %v704
    %v2529 = vunpack.c.l.b16 %v705
    %v2530 = vunpack.c.h.b16 %v705
    %v2531 = vunpack.c.l.b16 %v706
    %v2532 = vunpack.c.l.b16 %v707
    %v2533 = vunpack.c.h.b16 %v707
    %v2534 = vunpack.c.l.b16 %v708
    %v2535 = vunpack.c.l.b16 %v709
    %v2536 = vunpack.c.h.b16 %v709
    %v2537 = vunpack.c.l.b16 %v710
    %v2538 = vunpack.c.l.b16 %v711
    %v2539 = vunpack.c.h.b16 %v711
    %v2540 = vunpack.c.l.b16 %v712
    %v2541 = vunpack.c.l.b16 %v713
    %v2542 = vunpack.c.h.b16 %v713
    %v2543 = vunpack.c.l.b16 %v714
    %v2544 = vunpack.c.l.b16 %v715
    %v2545 = vunpack.c.h.b16 %v715
    %v2546 = vunpack.c.l.b16 %v716
    %v2547 = vunpack.c.l.b16 %v717
    %v2548 = vunpack.c.h.b16 %v717
    %v2549 = vunpack.c.l.b16 %v718
    %v2550 = vunpack.c.l.b16 %v719
    %v2551 = vunpack.c.h.b16 %v719
    %v2552 = vunpack.c.l.b16 %v720
    %v2553 = vunpack.c.l.b16 %v721
    %v2554 = vunpack.c.h.b16 %v721
    %v2555 = vunpack.c.l.b16 %v722
    %v2556 = vunpack.c.l.b16 %v723
    %v2557 = vunpack.c.h.b16 %v723
    %v2558 = vunpack.c.l.b16 %v724
    %v2559 = vunpack.c.l.b16 %v725
    %v2560 = vunpack.c.h.b16 %v725
    %v2561 = vunpack.c.l.b16 %v726
    %v2562 = vunpack.c.l.b16 %v727
    %v2563 = vunpack.c.h.b16 %v727
    %v2564 = vunpack.c.l.b16 %v728
    %v2565 = vunpack.c.l.b16 %v729
    %v2566 = vunpack.c.h.b16 %v729
    %v2567 = vunpack.c.l.b16 %v730
    %v2568 = vunpack.c.l.b16 %v731
    %v2569 = vunpack.c.h.b16 %v731
    %v2570 = vunpack.c.l.b16 %v732
    %v2571 = vunpack.c.l.b16 %v733
    %v2572 = vunpack.c.h.b16 %v733
    %v2573 = vunpack.c.l.b16 %v734
    %v2574 = vunpack.c.l.b16 %v735
    %v2575 = vunpack.c.h.b16 %v735
    %v2576 = vunpack.c.l.b16 %v736
    %v2577 = vunpack.c.l.b16 %v737
    %v2578 = vunpack.c.h.b16 %v737
    %v2579 = vunpack.c.l.b16 %v738
    %v2580 = vunpack.c.l.b16 %v739
    %v2581 = vunpack.c.h.b16 %v739
    %v2582 = vunpack.c.l.b16 %v740
    %v2583 = vunpack.c.l.b16 %v741
    %v2584 = vunpack.c.h.b16 %v741
    %v2585 = vunpack.c.l.b16 %v742
    %v2586 = vunpack.c.l.b16 %v743
    %v2587 = vunpack.c.h.b16 %v743
    %v2588 = vunpack.c.l.b16 %v744
    %v2589 = vunpack.c.l.b16 %v745
    %v2590 = vunpack.c.h.b16 %v745
    %v2591 = vunpack.c.l.b16 %v746
    %v2592 = vunpack.c.l.b16 %v747
    %v2593 = vunpack.c.h.b16 %v747
    %v2594 = vunpack.c.l.b16 %v748
    %v2595 = vunpack.c.l.b16 %v749
    %v2596 = vunpack.c.h.b16 %v749
    %v2597 = vunpack.c.l.b16 %v750
    %v2598 = vunpack.c.l.b16 %v751
    %v2599 = vunpack.c.h.b16 %v751
    %v2600 = vunpack.c.l.b16 %v752
    %v2601 = vunpack.c.l.b16 %v753
    %v2602 = vunpack.c.h.b16 %v753
    %v2603 = vunpack.c.l.b16 %v754
    %v2604 = vunpack.c.l.b16 %v755
    %v2605 = vunpack.c.h.b16 %v755
    %v2606 = vunpack.c.l.b16 %v756
    %v2607 = vunpack.c.l.b16 %v757
    %v2608 = vunpack.c.h.b16 %v757
    %v2609 = vunpack.c.l.b16 %v758
    %v2610 = vunpack.c.l.b16 %v759
    %v2611 = vunpack.c.h.b16 %v759
    %v2612 = vunpack.c.l.b16 %v760
    %v2613 = vunpack.c.l.b16 %v761
    %v2614 = vunpack.c.h.b16 %v761
    %v2615 = vunpack.c.l.b16 %v762
    %v2616 = vunpack.c.l.b16 %v763
    %v2617 = vunpack.c.h.b16 %v763
    %v2618 = vunpack.c.l.b16 %v764
    %v2619 = vunpack.c.l.b16 %v765
    %v2620 = vunpack.c.h.b16 %v765
    %v2621 = vunpack.c.l.b16 %v766
    %v2622 = vunpack.c.l.b16 %v767
    %v2623 = vunpack.c.h.b16 %v767
    %v2624 = vunpack.c.l.b16 %v768
    %v2625 = vunpack.c.l.b16 %v769
    %v2626 = vunpack.c.h.b16 %v769
    %v2627 = vunpack.c.l.b16 %v770
    %v2628 = vunpack.c.l.b16 %v771
    %v2629 = vunpack.c.h.b16 %v771
    %v2630 = vunpack.c.l.b16 %v772
    %v2631 = vunpack.c.l.b16 %v773
    %v2632 = vunpack.c.h.b16 %v773
    %v2633 = vunpack.c.l.b16 %v774
    %v2634 = vunpack.c.l.b16 %v775
    %v2635 = vunpack.c.h.b16 %v775
    %v2636 = vunpack.c.l.b16 %v776
    %v2637 = vunpack.c.l.b16 %v777
    %v2638 = vunpack.c.h.b16 %v777
    %v2639 = vunpack.c.l.b16 %v778
    %v2640 = vunpack.c.l.b16 %v779
    %v2641 = vunpack.c.h.b16 %v779
    %v2642 = vunpack.c.l.b16 %v780
    %v2643 = vunpack.c.l.b16 %v781
    %v2644 = vunpack.c.h.b16 %v781
    %v2645 = vunpack.c.l.b16 %v782
    %v2646 = vunpack.c.l.b16 %v783
    %v2647 = vunpack.c.h.b16 %v783
    %v2648 = vunpack.c.l.b16 %v784
    %v2649 = vunpack.c.l.b16 %v785
    %v2650 = vunpack.c.h.b16 %v785
    %v2651 = vunpack.c.l.b16 %v786
    %v2652 = vunpack.c.l.b16 %v787
    %v2653 = vunpack.c.h.b16 %v787
    %v2654 = vunpack.c.l.b16 %v788
    %v2655 = vunpack.c.l.b16 %v789
    %v2656 = vunpack.c.h.b16 %v789
    %v2657 = vunpack.c.l.b16 %v790
    %v2658 = vunpack.c.l.b16 %v791
    %v2659 = vunpack.c.h.b16 %v791
    %v2660 = vunpack.c.l.b16 %v792
    %v2661 = vunpack.c.l.b16 %v793
    %v2662 = vunpack.c.h.b16 %v793
    %v2663 = vunpack.c.l.b16 %v794
    %v2664 = vunpack.c.l.b16 %v795
    %v2665 = vunpack.c.h.b16 %v795
    %v2666 = vunpack.c.l.b16 %v796
    %v2667 = vunpack.c.l.b16 %v797
    %v2668 = vunpack.c.h.b16 %v797
    %v2669 = vunpack.c.l.b16 %v798
    %v2670 = vunpack.c.l.b16 %v799
    %v2671 = vunpack.c.h.b16 %v799
    %v2672 = vunpack.c.l.b16 %v800
    %v2673 = vunpack.c.l.b16 %v801
    %v2674 = vunpack.c.h.b16 %v801
    %v2675 = vunpack.c.l.b16 %v802
    %v2676 = vunpack.c.l.b16 %v803
    %v2677 = vunpack.c.h.b16 %v803
    %v2678 = vunpack.c.l.b16 %v804
    %v2679 = vunpack.c.l.b16 %v805
    %v2680 = vunpack.c.h.b16 %v805
    %v2681 = vunpack.c.l.b16 %v806
    %v2682 = vunpack.c.l.b16 %v807
    %v2683 = vunpack.c.h.b16 %v807
    %v2684 = vunpack.c.l.b16 %v808
    %v2685 = vunpack.c.l.b16 %v809
    %v2686 = vunpack.c.h.b16 %v809
    %v2687 = vunpack.c.l.b16 %v810
    %v2688 = vunpack.c.l.b16 %v811
    %v2689 = vunpack.c.h.b16 %v811
    %v2690 = vunpack.c.l.b16 %v812
    %v2691 = vunpack.c.l.b16 %v813
    %v2692 = vunpack.c.h.b16 %v813
    %v2693 = vunpack.c.l.b16 %v814
    %v2694 = vunpack.c.l.b16 %v815
    %v2695 = vunpack.c.h.b16 %v815
    %v2696 = vunpack.c.l.b16 %v816
    %v2697 = vunpack.c.l.b16 %v817
    %v2698 = vunpack.c.h.b16 %v817
    %v2699 = vunpack.c.l.b16 %v818
    %v2700 = vunpack.c.l.b16 %v819
    %v2701 = vunpack.c.h.b16 %v819
    %v2702 = vunpack.c.l.b16 %v820
    %v2703 = vunpack.c.l.b16 %v821
    %v2704 = vunpack.c.h.b16 %v821
    %v2705 = vunpack.c.l.b16 %v822
    %v2706 = vunpack.c.l.b16 %v823
    %v2707 = vunpack.c.h.b16 %v823
    %v2708 = vunpack.c.l.b16 %v824
    %v2709 = vunpack.c.l.b16 %v825
    %v2710 = vunpack.c.h.b16 %v825
    %v2711 = vunpack.c.l.b16 %v826
    %v2712 = vunpack.c.l.b16 %v827
    %v2713 = vunpack.c.h.b16 %v827
    %v2714 = vunpack.c.l.b16 %v828
    %v2715 = vunpack.c.l.b16 %v829
    %v2716 = vunpack.c.h.b16 %v829
    %v2717 = vunpack.c.l.b16 %v830
    %v2718 = vunpack.c.l.b16 %v831
    %v2719 = vunpack.c.h.b16 %v831
    %v2720 = vunpack.c.l.b16 %v832
    %v2721 = vunpack.c.l.b16 %v833
    %v2722 = vunpack.c.h.b16 %v833
    %v2723 = vunpack.c.l.b16 %v834
    %v2724 = vunpack.c.l.b16 %v835
    %v2725 = vunpack.c.h.b16 %v835
    %v2726 = vunpack.c.l.b16 %v836
    %v2727 = vunpack.c.l.b16 %v837
    %v2728 = vunpack.c.h.b16 %v837
    %v2729 = vunpack.c.l.b16 %v838
    %v2730 = vunpack.c.l.b16 %v839
    %v2731 = vunpack.c.h.b16 %v839
    %v2732 = vunpack.c.l.b16 %v840
    %v2733 = vunpack.c.l.b16 %v841
    %v2734 = vunpack.c.h.b16 %v841
    %v2735 = vunpack.c.l.b16 %v842
    %v2736 = vunpack.c.l.b16 %v843
    %v2737 = vunpack.c.h.b16 %v843
    %v2738 = vunpack.c.l.b16 %v844
    %v2739 = vunpack.c.l.b16 %v845
    %v2740 = vunpack.c.h.b16 %v845
    %v2741 = vunpack.c.l.b16 %v846
    %v2742 = vunpack.c.l.b16 %v847
    %v2743 = vunpack.c.h.b16 %v847
    %v2744 = vunpack.c.l.b16 %v848
    %v2745 = vunpack.c.l.b16 %v849
    %v2746 = vunpack.c.h.b16 %v849
    %v2747 = vunpack.c.l.b16 %v850
    %v2748 = vunpack.c.l.b16 %v851
    %v2749 = vunpack.c.h.b16 %v851
    %v2750 = vunpack.c.l.b16 %v852
    %v2751 = vunpack.c.l.b16 %v853
    %v2752 = vunpack.c.h.b16 %v853
    %v2753 = vunpack.c.l.b16 %v854
    %v2754 = vunpack.c.l.b16 %v855
    %v2755 = vunpack.c.h.b16 %v855
    %v2756 = vunpack.c.l.b16 %v856
    %v2757 = vunpack.c.l.b16 %v857
    %v2758 = vunpack.c.h.b16 %v857
    %v2759 = vunpack.c.l.b16 %v858
    %v2760 = vunpack.c.l.b16 %v859
    %v2761 = vunpack.c.h.b16 %v859
    %v2762 = vunpack.c.l.b16 %v860
    %v2763 = vunpack.c.l.b16 %v861
    %v2764 = vunpack.c.h.b16 %v861
    %v2765 = vunpack.c.l.b16 %v862
    %v2766 = vunpack.c.l.b16 %v863
    %v2767 = vunpack.c.h.b16 %v863
    %v2768 = vunpack.c.l.b16 %v864
    %v2769 = vunpack.c.l.b16 %v865
    %v2770 = vunpack.c.h.b16 %v865
    %v2771 = vunpack.c.l.b16 %v866
    %v2772 = vunpack.c.l.b16 %v867
    %v2773 = vunpack.c.h.b16 %v867
    %v2774 = vunpack.c.l.b16 %v868
    %v2775 = vunpack.c.l.b16 %v869
    %v2776 = vunpack.c.h.b16 %v869
    %v2777 = vunpack.c.l.b16 %v870
    %v2778 = vunpack.c.l.b16 %v871
    %v2779 = vunpack.c.h.b16 %v871
    %v2780 = vunpack.c.l.b16 %v872
    %v2781 = vunpack.c.l.b16 %v873
    %v2782 = vunpack.c.h.b16 %v873
    %v2783 = vunpack.c.l.b16 %v874
    %v2784 = vunpack.c.l.b16 %v875
    %v2785 = vunpack.c.h.b16 %v875
    %v2786 = vunpack.c.l.b16 %v876
    %v2787 = vunpack.c.l.b16 %v877
    %v2788 = vunpack.c.h.b16 %v877
    %v2789 = vunpack.c.l.b16 %v878
    %v2790 = vunpack.c.l.b16 %v879
    %v2791 = vunpack.c.h.b16 %v879
    %v2792 = vunpack.c.l.b16 %v880
    %v2793 = vunpack.c.l.b16 %v881
    %v2794 = vunpack.c.h.b16 %v881
    %v2795 = vunpack.c.l.b16 %v882
    %v2796 = vunpack.c.l.b16 %v883
    %v2797 = vunpack.c.h.b16 %v883
    %v2798 = vunpack.c.l.b16 %v884
    %v2799 = vunpack.c.l.b16 %v885
    %v2800 = vunpack.c.h.b16 %v885
    %v2801 = vunpack.c.l.b16 %v886
    %v2802 = vunpack.c.l.b16 %v887
    %v2803 = vunpack.c.h.b16 %v887
    %v2804 = vunpack.c.l.b16 %v888
    %v2805 = vunpack.c.l.b16 %v889
    %v2806 = vunpack.c.h.b16 %v889
    %v2807 = vunpack.c.l.b16 %v890
    %v2808 = vunpack.c.l.b16 %v891
    %v2809 = vunpack.c.h.b16 %v891
    %v2810 = vunpack.c.l.b16 %v892
    %v2811 = vunpack.c.l.b16 %v893
    %v2812 = vunpack.c.h.b16 %v893
    %v2813 = vunpack.c.l.b16 %v894
    %v2814 = vunpack.c.l.b16 %v895
    %v2815 = vunpack.c.h.b16 %v895
    %v2816 = vunpack.c.l.b16 %v896
    %v2817 = vunpack.c.l.b16 %v897
    %v2818 = vunpack.c.h.b16 %v897
    %v2819 = vunpack.c.l.b16 %v898
    %v2820 = vunpack.c.l.b16 %v899
    %v2821 = vunpack.c.h.b16 %v899
    %v2822 = vunpack.c.l.b16 %v900
    %v2823 = vunpack.c.l.b16 %v901
    %v2824 = vunpack.c.h.b16 %v901
    %v2825 = vunpack.c.l.b16 %v902
    %v2826 = vunpack.c.l.b16 %v903
    %v2827 = vunpack.c.h.b16 %v903
    %v2828 = vunpack.c.l.b16 %v904
    %v2829 = vunpack.c.l.b16 %v905
    %v2830 = vunpack.c.h.b16 %v905
    %v2831 = vunpack.c.l.b16 %v906
    %v2832 = vunpack.c.l.b16 %v907
    %v2833 = vunpack.c.h.b16 %v907
    %v2834 = vunpack.c.l.b16 %v908
    %v2835 = vunpack.c.l.b16 %v909
    %v2836 = vunpack.c.h.b16 %v909
    %v2837 = vunpack.c.l.b16 %v910
    %v2838 = vunpack.c.l.b16 %v911
    %v2839 = vunpack.c.h.b16 %v911
    %v2840 = vunpack.c.l.b16 %v912
    %v2841 = vunpack.c.l.b16 %v913
    %v2842 = vunpack.c.h.b16 %v913
    %v2843 = vunpack.c.l.b16 %v914
    %v2844 = vunpack.c.l.b16 %v915
    %v2845 = vunpack.c.h.b16 %v915
    %v2846 = vunpack.c.l.b16 %v916
    %v2847 = vunpack.c.l.b16 %v917
    %v2848 = vunpack.c.h.b16 %v917
    %v2849 = vunpack.c.l.b16 %v918
    %v2850 = vunpack.c.l.b16 %v919
    %v2851 = vunpack.c.h.b16 %v919
    %v2852 = vunpack.c.l.b16 %v920
    %v2853 = vunpack.c.l.b16 %v921
    %v2854 = vunpack.c.h.b16 %v921
    %v2855 = vunpack.c.l.b16 %v922
    %v2856 = vunpack.c.l.b16 %v923
    %v2857 = vunpack.c.h.b16 %v923
    %v2858 = vunpack.c.l.b16 %v924
    %v2859 = vunpack.c.l.b16 %v925
    %v2860 = vunpack.c.h.b16 %v925
    %v2861 = vunpack.c.l.b16 %v926
    %v2862 = vunpack.c.l.b16 %v927
    %v2863 = vunpack.c.h.b16 %v927
    %v2864 = vunpack.c.l.b16 %v928
    %v2865 = vunpack.c.l.b16 %v929
    %v2866 = vunpack.c.h.b16 %v929
    %v2867 = vunpack.c.l.b16 %v930
    %v2868 = vunpack.c.l.b16 %v931
    %v2869 = vunpack.c.h.b16 %v931
    %v2870 = vunpack.c.l.b16 %v932
    %v2871 = vunpack.c.l.b16 %v933
    %v2872 = vunpack.c.h.b16 %v933
    %v2873 = vunpack.c.l.b16 %v934
    %v2874 = vunpack.c.l.b16 %v935
    %v2875 = vunpack.c.h.b16 %v935
    %v2876 = vunpack.c.l.b16 %v936
    %v2877 = vunpack.c.l.b16 %v937
    %v2878 = vunpack.c.h.b16 %v937
    %v2879 = vunpack.c.l.b16 %v938
    %v2880 = vunpack.c.l.b16 %v939
    %v2881 = vunpack.c.h.b16 %v939
    %v2882 = vunpack.c.l.b16 %v940
    %v2883 = vunpack.c.l.b16 %v941
    %v2884 = vunpack.c.h.b16 %v941
    %v2885 = vunpack.c.l.b16 %v942
    %v2886 = vunpack.c.l.b16 %v943
    %v2887 = vunpack.c.h.b16 %v943
    %v2888 = vunpack.c.l.b16 %v944
    %v2889 = vunpack.c.l.b16 %v945
    %v2890 = vunpack.c.h.b16 %v945
    %v2891 = vunpack.c.l.b16 %v946
    %v2892 = vunpack.c.l.b16 %v947
    %v2893 = vunpack.c.h.b16 %v947
    %v2894 = vunpack.c.l.b16 %v948
    %v2895 = vunpack.c.l.b16 %v949
    %v2896 = vunpack.c.h.b16 %v949
    %v2897 = vunpack.c.l.b16 %v950
    %v2898 = vunpack.c.l.b16 %v951
    %v2899 = vunpack.c.h.b16 %v951
    %v2900 = vunpack.c.l.b16 %v952
    %v2901 = vunpack.c.l.b16 %v953
    %v2902 = vunpack.c.h.b16 %v953
    %v2903 = vunpack.c.l.b16 %v954
    %v2904 = vunpack.c.l.b16 %v955
    %v2905 = vunpack.c.h.b16 %v955
    %v2906 = vunpack.c.l.b16 %v956
    %v2907 = vunpack.c.l.b16 %v957
    %v2908 = vunpack.c.h.b16 %v957
    %v2909 = vunpack.c.l.b16 %v958
    %v2910 = vunpack.c.l.b16 %v959
    %v2911 = vunpack.c.h.b16 %v959
    %v2912 = vunpack.c.l.b16 %v960
    %v2913 = vunpack.c.l.b16 %v961
    %v2914 = vunpack.c.h.b16 %v961
    %v2915 = vunpack.c.l.b16 %v962
    %v2916 = vunpack.c.l.b16 %v963
    %v2917 = vunpack.c.h.b16 %v963
    %v2918 = vunpack.c.l.b16 %v964
    %v2919 = vunpack.c.l.b16 %v965
    %v2920 = vunpack.c.h.b16 %v965
    %v2921 = vunpack.c.l.b16 %v966
    %v2922 = vunpack.c.l.b16 %v967
    %v2923 = vunpack.c.h.b16 %v967
    %v2924 = vunpack.c.l.b16 %v968
    %v2925 = vunpack.c.l.b16 %v969
    %v2926 = vunpack.c.h.b16 %v969
    %v2927 = vunpack.c.l.b16 %v970
    %v2928 = vunpack.c.l.b16 %v971
    %v2929 = vunpack.c.h.b16 %v971
    %v2930 = vunpack.c.l.b16 %v972
    %v2931 = vunpack.c.l.b16 %v973
    %v2932 = vunpack.c.h.b16 %v973
    %v2933 = vunpack.c.l.b16 %v974
    %v2934 = vunpack.c.l.b16 %v975
    %v2935 = vunpack.c.h.b16 %v975
    %v2936 = vunpack.c.l.b16 %v976
    %v2937 = vunpack.c.l.b16 %v977
    %v2938 = vunpack.c.h.b16 %v977
    %v2939 = vunpack.c.l.b16 %v978
    %v2940 = vunpack.c.l.b16 %v979
    %v2941 = vunpack.c.h.b16 %v979
    %v2942 = vunpack.c.l.b16 %v980
    %v2943 = vunpack.c.l.b16 %v981
    %v2944 = vunpack.c.h.b16 %v981
    %v2945 = vunpack.c.l.b16 %v982
    %v2946 = vunpack.c.l.b16 %v983
    %v2947 = vunpack.c.h.b16 %v983
    %v2948 = vunpack.c.l.b16 %v984
    %v2949 = vunpack.c.l.b16 %v985
    %v2950 = vunpack.c.h.b16 %v985
    %v2951 = vunpack.c.l.b16 %v986
    %v2952 = vunpack.c.l.b16 %v987
    %v2953 = vunpack.c.h.b16 %v987
    %v2954 = vunpack.c.l.b16 %v988
    %v2955 = vunpack.c.l.b16 %v989
    %v2956 = vunpack.c.h.b16 %v989
    %v2957 = vunpack.c.l.b16 %v990
    %v2958 = vunpack.c.l.b16 %v991
    %v2959 = vunpack.c.h.b16 %v991
    %v2960 = vunpack.c.l.b16 %v992
    %v2961 = vunpack.c.l.b16 %v993
    %v2962 = vunpack.c.h.b16 %v993
    %v2963 = vunpack.c.l.b16 %v994
    %v2964 = vunpack.c.l.b16 %v995
    %v2965 = vunpack.c.h.b16 %v995
    %v2966 = vunpack.c.l.b16 %v996
    %v2967 = vunpack.c.l.b16 %v997
    %v2968 = vunpack.c.h.b16 %v997
    %v2969 = vunpack.c.l.b16 %v998
    %v2970 = vunpack.c.l.b16 %v999
    %v2971 = vunpack.c.h.b16 %v999
    %v2972 = vunpack.c.l.b16 %v1000
    %v2973 = vunpack.c.l.b16 %v1001
    %v2974 = vunpack.c.h.b16 %v1001
    %v2975 = vunpack.c.l.b16 %v1002
    %v2976 = vunpack.c.l.b16 %v1003
    %v2977 = vunpack.c.h.b16 %v1003
    %v2978 = vunpack.c.l.b16 %v1004
    %v2979 = vunpack.c.l.b16 %v1005
    %v2980 = vunpack.c.h.b16 %v1005
    %v2981 = vunpack.c.l.b16 %v1006
    %v2982 = vunpack.c.l.b16 %v1007
    %v2983 = vunpack.c.h.b16 %v1007
    %v2984 = vunpack.c.l.b16 %v1008
    %v2985 = vunpack.c.l.b16 %v1009
    %v2986 = vunpack.c.h.b16 %v1009
    %v2987 = vunpack.c.l.b16 %v1010
    %v2988 = vunpack.c.l.b16 %v1011
    %v2989 = vunpack.c.h.b16 %v1011
    %v2990 = vunpack.c.l.b16 %v1012
    %v2991 = vunpack.c.l.b16 %v1013
    %v2992 = vunpack.c.h.b16 %v1013
    %v2993 = vunpack.c.l.b16 %v1014
    %v2994 = vunpack.c.l.b16 %v1015
    %v2995 = vunpack.c.h.b16 %v1015
    %v2996 = vunpack.c.l.b16 %v1016
    %v2997 = vunpack.c.l.b16 %v1017
    %v2998 = vunpack.c.h.b16 %v1017
    %v2999 = vunpack.c.l.b16 %v1018
    %v3000 = vunpack.c.l.b16 %v1019
    %v3001 = vunpack.c.h.b16 %v1019
    %v3002 = vunpack.c.l.b16 %v1020
    %v3003 = vunpack.c.l.b16 %v1021
    %v3004 = vunpack.c.h.b16 %v1021
    %v3005 = vunpack.c.l.b16 %v1022
    %v3006 = vunpack.c.l.b16 %v1023
    %v3007 = vunpack.c.h.b16 %v1023
    %v3008 = vunpack.c.l.b16 %v1024
    %v3009 = vunpack.c.l.b16 %v1025
    %v3010 = vunpack.c.h.b16 %v1025
    %v3011 = vunpack.c.l.b16 %v1026
    %v3012 = vunpack.c.l.b16 %v1027
    %v3013 = vunpack.c.h.b16 %v1027
    %v3014 = vunpack.c.l.b16 %v1028
    %v3015 = vunpack.c.l.b16 %v1029
    %v3016 = vunpack.c.h.b16 %v1029
    %v3017 = vunpack.c.l.b16 %v1030
    %v3018 = vunpack.c.l.b16 %v1031
    %v3019 = vunpack.c.h.b16 %v1031
    %v3020 = vunpack.c.l.b16 %v1032
    %v3021 = vunpack.c.l.b16 %v1033
    %v3022 = vunpack.c.h.b16 %v1033
    %v3023 = vunpack.c.l.b16 %v1034
    %v3024 = vunpack.c.l.b16 %v1035
    %v3025 = vunpack.c.h.b16 %v1035
    %v3026 = vunpack.c.l.b16 %v1036
    %v3027 = vunpack.c.l.b16 %v1037
    %v3028 = vunpack.c.h.b16 %v1037
    %v3029 = vunpack.c.l.b16 %v1038
    %v3030 = vunpack.c.l.b16 %v1039
    %v3031 = vunpack.c.h.b16 %v1039
    %v3032 = vunpack.c.l.b16 %v1040
    %v3033 = vunpack.c.l.b16 %v1041
    %v3034 = vunpack.c.h.b16 %v1041
    %v3035 = vunpack.c.l.b16 %v1042
    %v3036 = vunpack.c.l.b16 %v1043
    %v3037 = vunpack.c.h.b16 %v1043
    %v3038 = vunpack.c.l.b16 %v1044
    %v3039 = vunpack.c.l.b16 %v1045
    %v3040 = vunpack.c.h.b16 %v1045
    %v3041 = vunpack.c.l.b16 %v1046
    %v3042 = vunpack.c.l.b16 %v1047
    %v3043 = vunpack.c.h.b16 %v1047
    %v3044 = vunpack.c.l.b16 %v1048
    %v3045 = vunpack.c.l.b16 %v1049
    %v3046 = vunpack.c.h.b16 %v1049
    %v3047 = vunpack.c.l.b16 %v1050
    %v3048 = vunpack.c.l.b16 %v1051
    %v3049 = vunpack.c.h.b16 %v1051
    %v3050 = vunpack.c.l.b16 %v1052
    %v3051 = vunpack.c.l.b16 %v1053
    %v3052 = vunpack.c.h.b16 %v1053
    %v3053 = vunpack.c.l.b16 %v1054
    %v3054 = vunpack.c.l.b16 %v1055
    %v3055 = vunpack.c.h.b16 %v1055
    %v3056 = vunpack.c.l.b16 %v1056
    %v3057 = vunpack.c.l.b16 %v1057
    %v3058 = vunpack.c.h.b16 %v1057
    %v3059 = vunpack.c.l.b16 %v1058
    %v3060 = vunpack.c.l.b16 %v1059
    %v3061 = vunpack.c.h.b16 %v1059
    %v3062 = vunpack.c.l.b16 %v1060
    %v3063 = vunpack.c.l.b16 %v1061
    %v3064 = vunpack.c.h.b16 %v1061
    %v3065 = vunpack.c.l.b16 %v1062
    %v3066 = vunpack.c.l.b16 %v1063
    %v3067 = vunpack.c.h.b16 %v1063
    %v3068 = vunpack.c.l.b16 %v1064
    %v3069 = vunpack.c.l.b16 %v1065
    %v3070 = vunpack.c.h.b16 %v1065
    %v3071 = vunpack.c.l.b16 %v1066
    %v3072 = vunpack.c.l.b16 %v1067
    %v3073 = vunpack.c.h.b16 %v1067
    %v3074 = vunpack.c.l.b16 %v1068
    %v3075 = vunpack.c.l.b16 %v1069
    %v3076 = vunpack.c.h.b16 %v1069
    %v3077 = vunpack.c.l.b16 %v1070
    %v3078 = vunpack.c.l.b16 %v1071
    %v3079 = vunpack.c.h.b16 %v1071
    %v3080 = vunpack.c.l.b16 %v1072
    %v3081 = vunpack.c.l.b16 %v1073
    %v3082 = vunpack.c.h.b16 %v1073
    %v3083 = vunpack.c.l.b16 %v1074
    %v3084 = vunpack.c.l.b16 %v1075
    %v3085 = vunpack.c.h.b16 %v1075
    %v3086 = vunpack.c.l.b16 %v1076
    %v3087 = vunpack.c.l.b16 %v1077
    %v3088 = vunpack.c.h.b16 %v1077
    %v3089 = vunpack.c.l.b16 %v1078
    %v3090 = vunpack.c.l.b16 %v1079
    %v3091 = vunpack.c.h.b16 %v1079
    %v3092 = vunpack.c.l.b16 %v1080
    %v3093 = vunpack.c.l.b16 %v1081
    %v3094 = vunpack.c.h.b16 %v1081
    %v3095 = vunpack.c.l.b16 %v1082
    %v3096 = vunpack.c.l.b16 %v1083
    %v3097 = vunpack.c.h.b16 %v1083
    %v3098 = vunpack.c.l.b16 %v1084
    %v3099 = vunpack.c.l.b16 %v1085
    %v3100 = vunpack.c.h.b16 %v1085
    %v3101 = vunpack.c.l.b16 %v1086
    %v3102 = vunpack.c.l.b16 %v1087
    %v3103 = vunpack.c.h.b16 %v1087
    %v3104 = vunpack.c.l.b16 %v1088
    %v3105 = vunpack.c.l.b16 %v1089
    %v3106 = vunpack.c.h.b16 %v1089
    %v3107 = vunpack.c.l.b16 %v1090
    %v3108 = vpack.c.b16 %v1911, %v1908
    %v3109 = vpack.c.b16 %v1912, %v1909
    %v3110 = vpack.c.b16 %v1913, %v1910
    %v3111 = vpack.c.b16 %v1917, %v1914
    %v3112 = vpack.c.b16 %v1918, %v1915
    %v3113 = vpack.c.b16 %v1919, %v1916
    %v3114 = vpack.c.b16 %v1923, %v1920
    %v3115 = vpack.c.b16 %v1924, %v1921
    %v3116 = vpack.c.b16 %v1925, %v1922
    %v3117 = vpack.c.b16 %v1929, %v1926
    %v3118 = vpack.c.b16 %v1930, %v1927
    %v3119 = vpack.c.b16 %v1931, %v1928
    %v3120 = vpack.c.b16 %v1935, %v1932
    %v3121 = vpack.c.b16 %v1936, %v1933
    %v3122 = vpack.c.b16 %v1937, %v1934
    %v3123 = vpack.c.b16 %v1941, %v1938
    %v3124 = vpack.c.b16 %v1942, %v1939
    %v3125 = vpack.c.b16 %v1943, %v1940
    %v3126 = vpack.c.b16 %v1947, %v1944
    %v3127 = vpack.c.b16 %v1948, %v1945
    %v3128 = vpack.c.b16 %v1949, %v1946
    %v3129 = vpack.c.b16 %v1953, %v1950
    %v3130 = vpack.c.b16 %v1954, %v1951
    %v3131 = vpack.c.b16 %v1955, %v1952
    %v3132 = vpack.c.b16 %v1959, %v1956
    %v3133 = vpack.c.b16 %v1960, %v1957
    %v3134 = vpack.c.b16 %v1961, %v1958
    %v3135 = vpack.c.b16 %v1965, %v1962
    %v3136 = vpack.c.b16 %v1966, %v1963
    %v3137 = vpack.c.b16 %v1967, %v1964
    %v3138 = vpack.c.b16 %v1971, %v1968
    %v3139 = vpack.c.b16 %v1972, %v1969
    %v3140 = vpack.c.b16 %v1973, %v1970
    %v3141 = vpack.c.b16 %v1977, %v1974
    %v3142 = vpack.c.b16 %v1978, %v1975
    %v3143 = vpack.c.b16 %v1979, %v1976
    %v3144 = vpack.c.b16 %v1983, %v1980
    %v3145 = vpack.c.b16 %v1984, %v1981
    %v3146 = vpack.c.b16 %v1985, %v1982
    %v3147 = vpack.c.b16 %v1989, %v1986
    %v3148 = vpack.c.b16 %v1990, %v1987
    %v3149 = vpack.c.b16 %v1991, %v1988
    %v3150 = vpack.c.b16 %v1995, %v1992
    %v3151 = vpack.c.b16 %v1996, %v1993
    %v3152 = vpack.c.b16 %v1997, %v1994
    %v3153 = vpack.c.b16 %v2001, %v1998
    %v3154 = vpack.c.b16 %v2002, %v1999
    %v3155 = vpack.c.b16 %v2003, %v2000
    %v3156 = vpack.c.b16 %v2007, %v2004
    %v3157 = vpack.c.b16 %v2008, %v2005
    %v3158 = vpack.c.b16 %v2009, %v2006
    %v3159 = vpack.c.b16 %v2013, %v2010
    %v3160 = vpack.c.b16 %v2014, %v2011
    %v3161 = vpack.c.b16 %v2015, %v2012
    %v3162 = vpack.c.b16 %v2019, %v2016
    %v3163 = vpack.c.b16 %v2020, %v2017
    %v3164 = vpack.c.b16 %v2021, %v2018
    %v3165 = vpack.c.b16 %v2025, %v2022
    %v3166 = vpack.c.b16 %v2026, %v2023
    %v3167 = vpack.c.b16 %v2027, %v2024
    %v3168 = vpack.c.b16 %v2031, %v2028
    %v3169 = vpack.c.b16 %v2032, %v2029
    %v3170 = vpack.c.b16 %v2033, %v2030
    %v3171 = vpack.c.b16 %v2037, %v2034
    %v3172 = vpack.c.b16 %v2038, %v2035
    %v3173 = vpack.c.b16 %v2039, %v2036
    %v3174 = vpack.c.b16 %v2043, %v2040
    %v3175 = vpack.c.b16 %v2044, %v2041
    %v3176 = vpack.c.b16 %v2045, %v2042
    %v3177 = vpack.c.b16 %v2049, %v2046
    %v3178 = vpack.c.b16 %v2050, %v2047
    %v3179 = vpack.c.b16 %v2051, %v2048
    %v3180 = vpack.c.b16 %v2055, %v2052
    %v3181 = vpack.c.b16 %v2056, %v2053
    %v3182 = vpack.c.b16 %v2057, %v2054
    %v3183 = vpack.c.b16 %v2061, %v2058
    %v3184 = vpack.c.b16 %v2062, %v2059
    %v3185 = vpack.c.b16 %v2063, %v2060
    %v3186 = vpack.c.b16 %v2067, %v2064
    %v3187 = vpack.c.b16 %v2068, %v2065
    %v3188 = vpack.c.b16 %v2069, %v2066
    %v3189 = vpack.c.b16 %v2073, %v2070
    %v3190 = vpack.c.b16 %v2074, %v2071
    %v3191 = vpack.c.b16 %v2075, %v2072
    %v3192 = vpack.c.b16 %v2079, %v2076
    %v3193 = vpack.c.b16 %v2080, %v2077
    %v3194 = vpack.c.b16 %v2081, %v2078
    %v3195 = vpack.c.b16 %v2085, %v2082
    %v3196 = vpack.c.b16 %v2086, %v2083
    %v3197 = vpack.c.b16 %v2087, %v2084
    %v3198 = vpack.c.b16 %v2091, %v2088
    %v3199 = vpack.c.b16 %v2092, %v2089
    %v3200 = vpack.c.b16 %v2093, %v2090
    %v3201 = vpack.c.b16 %v2097, %v2094
    %v3202 = vpack.c.b16 %v2098, %v2095
    %v3203 = vpack.c.b16 %v2099, %v2096
    %v3204 = vpack.c.b16 %v2103, %v2100
    %v3205 = vpack.c.b16 %v2104, %v2101
    %v3206 = vpack.c.b16 %v2105, %v2102
    %v3207 = vpack.c.b16 %v2109, %v2106
    %v3208 = vpack.c.b16 %v2110, %v2107
    %v3209 = vpack.c.b16 %v2111, %v2108
    %v3210 = vpack.c.b16 %v2115, %v2112
    %v3211 = vpack.c.b16 %v2116, %v2113
    %v3212 = vpack.c.b16 %v2117, %v2114
    %v3213 = vpack.c.b16 %v2121, %v2118
    %v3214 = vpack.c.b16 %v2122, %v2119
    %v3215 = vpack.c.b16 %v2123, %v2120
    %v3216 = vpack.c.b16 %v2127, %v2124
    %v3217 = vpack.c.b16 %v2128, %v2125
    %v3218 = vpack.c.b16 %v2129, %v2126
    %v3219 = vpack.c.b16 %v2133, %v2130
    %v3220 = vpack.c.b16 %v2134, %v2131
    %v3221 = vpack.c.b16 %v2135, %v2132
    %v3222 = vpack.c.b16 %v2139, %v2136
    %v3223 = vpack.c.b16 %v2140, %v2137
    %v3224 = vpack.c.b16 %v2141, %v2138
    %v3225 = vpack.c.b16 %v2145, %v2142
    %v3226 = vpack.c.b16 %v2146, %v2143
    %v3227 = vpack.c.b16 %v2147, %v2144
    %v3228 = vpack.c.b16 %v2151, %v2148
    %v3229 = vpack.c.b16 %v2152, %v2149
    %v3230 = vpack.c.b16 %v2153, %v2150
    %v3231 = vpack.c.b16 %v2157, %v2154
    %v3232 = vpack.c.b16 %v2158, %v2155
    %v3233 = vpack.c.b16 %v2159, %v2156
    %v3234 = vpack.c.b16 %v2163, %v2160
    %v3235 = vpack.c.b16 %v2164, %v2161
    %v3236 = vpack.c.b16 %v2165, %v2162
    %v3237 = vpack.c.b16 %v2169, %v2166
    %v3238 = vpack.c.b16 %v2170, %v2167
    %v3239 = vpack.c.b16 %v2171, %v2168
    %v3240 = vpack.c.b16 %v2175, %v2172
    %v3241 = vpack.c.b16 %v2176, %v2173
    %v3242 = vpack.c.b16 %v2177, %v2174
    %v3243 = vpack.c.b16 %v2181, %v2178
    %v3244 = vpack.c.b16 %v2182, %v2179
    %v3245 = vpack.c.b16 %v2183, %v2180
    %v3246 = vpack.c.b16 %v2187, %v2184
    %v3247 = vpack.c.b16 %v2188, %v2185
    %v3248 = vpack.c.b16 %v2189, %v2186
    %v3249 = vpack.c.b16 %v2193, %v2190
    %v3250 = vpack.c.b16 %v2194, %v2191
    %v3251 = vpack.c.b16 %v2195, %v2192
    %v3252 = vpack.c.b16 %v2199, %v2196
    %v3253 = vpack.c.b16 %v2200, %v2197
    %v3254 = vpack.c.b16 %v2201, %v2198
    %v3255 = vpack.c.b16 %v2205, %v2202
    %v3256 = vpack.c.b16 %v2206, %v2203
    %v3257 = vpack.c.b16 %v2207, %v2204
    %v3258 = vpack.c.b16 %v2211, %v2208
    %v3259 = vpack.c.b16 %v2212, %v2209
    %v3260 = vpack.c.b16 %v2213, %v2210
    %v3261 = vpack.c.b16 %v2217, %v2214
    %v3262 = vpack.c.b16 %v2218, %v2215
    %v3263 = vpack.c.b16 %v2219, %v2216
    %v3264 = vpack.c.b16 %v2223, %v2220
    %v3265 = vpack.c.b16 %v2224, %v2221
    %v3266 = vpack.c.b16 %v2225, %v2222
    %v3267 = vpack.c.b16 %v2229, %v2226
    %v3268 = vpack.c.b16 %v2230, %v2227
    %v3269 = vpack.c.b16 %v2231, %v2228
    %v3270 = vpack.c.b16 %v2235, %v2232
    %v3271 = vpack.c.b16 %v2236, %v2233
    %v3272 = vpack.c.b16 %v2237, %v2234
    %v3273 = vpack.c.b16 %v2241, %v2238
    %v3274 = vpack.c.b16 %v2242, %v2239
    %v3275 = vpack.c.b16 %v2243, %v2240
    %v3276 = vpack.c.b16 %v2247, %v2244
    %v3277 = vpack.c.b16 %v2248, %v2245
    %v3278 = vpack.c.b16 %v2249, %v2246
    %v3279 = vpack.c.b16 %v2253, %v2250
    %v3280 = vpack.c.b16 %v2254, %v2251
    %v3281 = vpack.c.b16 %v2255, %v2252
    %v3282 = vpack.c.b16 %v2259, %v2256
    %v3283 = vpack.c.b16 %v2260, %v2257
    %v3284 = vpack.c.b16 %v2261, %v2258
    %v3285 = vpack.c.b16 %v2265, %v2262
    %v3286 = vpack.c.b16 %v2266, %v2263
    %v3287 = vpack.c.b16 %v2267, %v2264
    %v3288 = vpack.c.b16 %v2271, %v2268
    %v3289 = vpack.c.b16 %v2272, %v2269
    %v3290 = vpack.c.b16 %v2273, %v2270
    %v3291 = vpack.c.b16 %v2277, %v2274
    %v3292 = vpack.c.b16 %v2278, %v2275
    %v3293 = vpack.c.b16 %v2279, %v2276
    %v3294 = vpack.c.b16 %v2283, %v2280
    %v3295 = vpack.c.b16 %v2284, %v2281
    %v3296 = vpack.c.b16 %v2285, %v2282
    %v3297 = vpack.c.b16 %v2289, %v2286
    %v3298 = vpack.c.b16 %v2290, %v2287
    %v3299 = vpack.c.b16 %v2291, %v2288
    %v3300 = vpack.c.b16 %v2295, %v2292
    %v3301 = vpack.c.b16 %v2296, %v2293
    %v3302 = vpack.c.b16 %v2297, %v2294
    %v3303 = vpack.c.b16 %v2301, %v2298
    %v3304 = vpack.c.b16 %v2302, %v2299
    %v3305 = vpack.c.b16 %v2303, %v2300
    %v3306 = vpack.c.b16 %v2307, %v2304
    %v3307 = vpack.c.b16 %v2308, %v2305
    %v3308 = vpack.c.b16 %v2309, %v2306
    %v3309 = vpack.c.b16 %v2313, %v2310
    %v3310 = vpack.c.b16 %v2314, %v2311
    %v3311 = vpack.c.b16 %v2315, %v2312
    %v3312 = vpack.c.b16 %v2319, %v2316
    %v3313 = vpack.c.b16 %v2320, %v2317
    %v3314 = vpack.c.b16 %v2321, %v2318
    %v3315 = vpack.c.b16 %v2325, %v2322
    %v3316 = vpack.c.b16 %v2326, %v2323
    %v3317 = vpack.c.b16 %v2327, %v2324
    %v3318 = vpack.c.b16 %v2331, %v2328
    %v3319 = vpack.c.b16 %v2332, %v2329
    %v3320 = vpack.c.b16 %v2333, %v2330
    %v3321 = vpack.c.b16 %v2337, %v2334
    %v3322 = vpack.c.b16 %v2338, %v2335
    %v3323 = vpack.c.b16 %v2339, %v2336
    %v3324 = vpack.c.b16 %v2343, %v2340
    %v3325 = vpack.c.b16 %v2344, %v2341
    %v3326 = vpack.c.b16 %v2345, %v2342
    %v3327 = vpack.c.b16 %v2349, %v2346
    %v3328 = vpack.c.b16 %v2350, %v2347
    %v3329 = vpack.c.b16 %v2351, %v2348
    %v3330 = vpack.c.b16 %v2355, %v2352
    %v3331 = vpack.c.b16 %v2356, %v2353
    %v3332 = vpack.c.b16 %v2357, %v2354
    %v3333 = vpack.c.b16 %v2361, %v2358
    %v3334 = vpack.c.b16 %v2362, %v2359
    %v3335 = vpack.c.b16 %v2363, %v2360
    %v3336 = vpack.c.b16 %v2367, %v2364
    %v3337 = vpack.c.b16 %v2368, %v2365
    %v3338 = vpack.c.b16 %v2369, %v2366
    %v3339 = vpack.c.b16 %v2373, %v2370
    %v3340 = vpack.c.b16 %v2374, %v2371
    %v3341 = vpack.c.b16 %v2375, %v2372
    %v3342 = vpack.c.b16 %v2379, %v2376
    %v3343 = vpack.c.b16 %v2380, %v2377
    %v3344 = vpack.c.b16 %v2381, %v2378
    %v3345 = vpack.c.b16 %v2385, %v2382
    %v3346 = vpack.c.b16 %v2386, %v2383
    %v3347 = vpack.c.b16 %v2387, %v2384
    %v3348 = vpack.c.b16 %v2391, %v2388
    %v3349 = vpack.c.b16 %v2392, %v2389
    %v3350 = vpack.c.b16 %v2393, %v2390
    %v3351 = vpack.c.b16 %v2397, %v2394
    %v3352 = vpack.c.b16 %v2398, %v2395
    %v3353 = vpack.c.b16 %v2399, %v2396
    %v3354 = vpack.c.b16 %v2403, %v2400
    %v3355 = vpack.c.b16 %v2404, %v2401
    %v3356 = vpack.c.b16 %v2405, %v2402
    %v3357 = vpack.c.b16 %v2409, %v2406
    %v3358 = vpack.c.b16 %v2410, %v2407
    %v3359 = vpack.c.b16 %v2411, %v2408
    %v3360 = vpack.c.b16 %v2415, %v2412
    %v3361 = vpack.c.b16 %v2416, %v2413
    %v3362 = vpack.c.b16 %v2417, %v2414
    %v3363 = vpack.c.b16 %v2421, %v2418
    %v3364 = vpack.c.b16 %v2422, %v2419
    %v3365 = vpack.c.b16 %v2423, %v2420
    %v3366 = vpack.c.b16 %v2427, %v2424
    %v3367 = vpack.c.b16 %v2428, %v2425
    %v3368 = vpack.c.b16 %v2429, %v2426
    %v3369 = vpack.c.b16 %v2433, %v2430
    %v3370 = vpack.c.b16 %v2434, %v2431
    %v3371 = vpack.c.b16 %v2435, %v2432
    %v3372 = vpack.c.b16 %v2439, %v2436
    %v3373 = vpack.c.b16 %v2440, %v2437
    %v3374 = vpack.c.b16 %v2441, %v2438
    %v3375 = vpack.c.b16 %v2445, %v2442
    %v3376 = vpack.c.b16 %v2446, %v2443
    %v3377 = vpack.c.b16 %v2447, %v2444
    %v3378 = vpack.c.b16 %v2451, %v2448
    %v3379 = vpack.c.b16 %v2452, %v2449
    %v3380 = vpack.c.b16 %v2453, %v2450
    %v3381 = vpack.c.b16 %v2457, %v2454
    %v3382 = vpack.c.b16 %v2458, %v2455
    %v3383 = vpack.c.b16 %v2459, %v2456
    %v3384 = vpack.c.b16 %v2463, %v2460
    %v3385 = vpack.c.b16 %v2464, %v2461
    %v3386 = vpack.c.b16 %v2465, %v2462
    %v3387 = vpack.c.b16 %v2469, %v2466
    %v3388 = vpack.c.b16 %v2470, %v2467
    %v3389 = vpack.c.b16 %v2471, %v2468
    %v3390 = vpack.c.b16 %v2475, %v2472
    %v3391 = vpack.c.b16 %v2476, %v2473
    %v3392 = vpack.c.b16 %v2477, %v2474
    %v3393 = vpack.c.b16 %v2481, %v2478
    %v3394 = vpack.c.b16 %v2482, %v2479
    %v3395 = vpack.c.b16 %v2483, %v2480
    %v3396 = vpack.c.b16 %v2487, %v2484
    %v3397 = vpack.c.b16 %v2488, %v2485
    %v3398 = vpack.c.b16 %v2489, %v2486
    %v3399 = vpack.c.b16 %v2493, %v2490
    %v3400 = vpack.c.b16 %v2494, %v2491
    %v3401 = vpack.c.b16 %v2495, %v2492
    %v3402 = vpack.c.b16 %v2499, %v2496
    %v3403 = vpack.c.b16 %v2500, %v2497
    %v3404 = vpack.c.b16 %v2501, %v2498
    %v3405 = vpack.c.b16 %v2505, %v2502
    %v3406 = vpack.c.b16 %v2506, %v2503
    %v3407 = vpack.c.b16 %v2507, %v2504
    %v3408 = vpack.c.b16 %v2511, %v2508
    %v3409 = vpack.c.b16 %v2512, %v2509
    %v3410 = vpack.c.b16 %v2513, %v2510
    %v3411 = vpack.c.b16 %v2517, %v2514
    %v3412 = vpack.c.b16 %v2518, %v2515
    %v3413 = vpack.c.b16 %v2519, %v2516
    %v3414 = vpack.c.b16 %v2523, %v2520
    %v3415 = vpack.c.b16 %v2524, %v2521
    %v3416 = vpack.c.b16 %v2525, %v2522
    %v3417 = vpack.c.b16 %v2529, %v2526
    %v3418 = vpack.c.b16 %v2530, %v2527
    %v3419 = vpack.c.b16 %v2531, %v2528
    %v3420 = vpack.c.b16 %v2535, %v2532
    %v3421 = vpack.c.b16 %v2536, %v2533
    %v3422 = vpack.c.b16 %v2537, %v2534
    %v3423 = vpack.c.b16 %v2541, %v2538
    %v3424 = vpack.c.b16 %v2542, %v2539
    %v3425 = vpack.c.b16 %v2543, %v2540
    %v3426 = vpack.c.b16 %v2547, %v2544
    %v3427 = vpack.c.b16 %v2548, %v2545
    %v3428 = vpack.c.b16 %v2549, %v2546
    %v3429 = vpack.c.b16 %v2553, %v2550
    %v3430 = vpack.c.b16 %v2554, %v2551
    %v3431 = vpack.c.b16 %v2555, %v2552
    %v3432 = vpack.c.b16 %v2559, %v2556
    %v3433 = vpack.c.b16 %v2560, %v2557
    %v3434 = vpack.c.b16 %v2561, %v2558
    %v3435 = vpack.c.b16 %v2565, %v2562
    %v3436 = vpack.c.b16 %v2566, %v2563
    %v3437 = vpack.c.b16 %v2567, %v2564
    %v3438 = vpack.c.b16 %v2571, %v2568
    %v3439 = vpack.c.b16 %v2572, %v2569
    %v3440 = vpack.c.b16 %v2573, %v2570
    %v3441 = vpack.c.b16 %v2577, %v2574
    %v3442 = vpack.c.b16 %v2578, %v2575
    %v3443 = vpack.c.b16 %v2579, %v2576
    %v3444 = vpack.c.b16 %v2583, %v2580
    %v3445 = vpack.c.b16 %v2584, %v2581
    %v3446 = vpack.c.b16 %v2585, %v2582
    %v3447 = vpack.c.b16 %v2589, %v2586
    %v3448 = vpack.c.b16 %v2590, %v2587
    %v3449 = vpack.c.b16 %v2591, %v2588
    %v3450 = vpack.c.b16 %v2595, %v2592
    %v3451 = vpack.c.b16 %v2596, %v2593
    %v3452 = vpack.c.b16 %v2597, %v2594
    %v3453 = vpack.c.b16 %v2601, %v2598
    %v3454 = vpack.c.b16 %v2602, %v2599
    %v3455 = vpack.c.b16 %v2603, %v2600
    %v3456 = vpack.c.b16 %v2607, %v2604
    %v3457 = vpack.c.b16 %v2608, %v2605
    %v3458 = vpack.c.b16 %v2609, %v2606
    %v3459 = vpack.c.b16 %v2613, %v2610
    %v3460 = vpack.c.b16 %v2614, %v2611
    %v3461 = vpack.c.b16 %v2615, %v2612
    %v3462 = vpack.c.b16 %v2619, %v2616
    %v3463 = vpack.c.b16 %v2620, %v2617
    %v3464 = vpack.c.b16 %v2621, %v2618
    %v3465 = vpack.c.b16 %v2625, %v2622
    %v3466 = vpack.c.b16 %v2626, %v2623
    %v3467 = vpack.c.b16 %v2627, %v2624
    %v3468 = vpack.c.b16 %v2631, %v2628
    %v3469 = vpack.c.b16 %v2632, %v2629
    %v3470 = vpack.c.b16 %v2633, %v2630
    %v3471 = vpack.c.b16 %v2637, %v2634
    %v3472 = vpack.c.b16 %v2638, %v2635
    %v3473 = vpack.c.b16 %v2639, %v2636
    %v3474 = vpack.c.b16 %v2643, %v2640
    %v3475 = vpack.c.b16 %v2644, %v2641
    %v3476 = vpack.c.b16 %v2645, %v2642
    %v3477 = vpack.c.b16 %v2649, %v2646
    %v3478 = vpack.c.b16 %v2650, %v2647
    %v3479 = vpack.c.b16 %v2651, %v2648
    %v3480 = vpack.c.b16 %v2655, %v2652
    %v3481 = vpack.c.b16 %v2656, %v2653
    %v3482 = vpack.c.b16 %v2657, %v2654
    %v3483 = vpack.c.b16 %v2661, %v2658
    %v3484 = vpack.c.b16 %v2662, %v2659
    %v3485 = vpack.c.b16 %v2663, %v2660
    %v3486 = vpack.c.b16 %v2667, %v2664
    %v3487 = vpack.c.b16 %v2668, %v2665
    %v3488 = vpack.c.b16 %v2669, %v2666
    %v3489 = vpack.c.b16 %v2673, %v2670
    %v3490 = vpack.c.b16 %v2674, %v2671
    %v3491 = vpack.c.b16 %v2675, %v2672
    %v3492 = vpack.c.b16 %v2679, %v2676
    %v3493 = vpack.c.b16 %v2680, %v2677
    %v3494 = vpack.c.b16 %v2681, %v2678
    %v3495 = vpack.c.b16 %v2685, %v2682
    %v3496 = vpack.c.b16 %v2686, %v2683
    %v3497 = vpack.c.b16 %v2687, %v2684
    %v3498 = vpack.c.b16 %v2691, %v2688
    %v3499 = vpack.c.b16 %v2692, %v2689
    %v3500 = vpack.c.b16 %v2693, %v2690
    %v3501 = vpack.c.b16 %v2697, %v2694
    %v3502 = vpack.c.b16 %v2698, %v2695
    %v3503 = vpack.c.b16 %v2699, %v2696
    %v3504 = vpack.c.b16 %v2703, %v2700
    %v3505 = vpack.c.b16 %v2704, %v2701
    %v3506 = vpack.c.b16 %v2705, %v2702
    %v3507 = vpack.c.b16 %v2709, %v2706
    %v3508 = vpack.c.b16 %v2710, %v2707
    %v3509 = vpack.c.b16 %v2711, %v2708
    %v3510 = vpack.c.b16 %v2715, %v2712
    %v3511 = vpack.c.b16 %v2716, %v2713
    %v3512 = vpack.c.b16 %v2717, %v2714
    %v3513 = vpack.c.b16 %v2721, %v2718
    %v3514 = vpack.c.b16 %v2722, %v2719
    %v3515 = vpack.c.b16 %v2723, %v2720
    %v3516 = vpack.c.b16 %v2727, %v2724
    %v3517 = vpack.c.b16 %v2728, %v2725
    %v3518 = vpack.c.b16 %v2729, %v2726
    %v3519 = vpack.c.b16 %v2733, %v2730
    %v3520 = vpack.c.b16 %v2734, %v2731
    %v3521 = vpack.c.b16 %v2735, %v2732
    %v3522 = vpack.c.b16 %v2739, %v2736
    %v3523 = vpack.c.b16 %v2740, %v2737
    %v3524 = vpack.c.b16 %v2741, %v2738
    %v3525 = vpack.c.b16 %v2745, %v2742
    %v3526 = vpack.c.b16 %v2746, %v2743
    %v3527 = vpack.c.b16 %v2747, %v2744
    %v3528 = vpack.c.b16 %v2751, %v2748
    %v3529 = vpack.c.b16 %v2752, %v2749
    %v3530 = vpack.c.b16 %v2753, %v2750
    %v3531 = vpack.c.b16 %v2757, %v2754
    %v3532 = vpack.c.b16 %v2758, %v2755
    %v3533 = vpack.c.b16 %v2759, %v2756
    %v3534 = vpack.c.b16 %v2763, %v2760
    %v3535 = vpack.c.b16 %v2764, %v2761
    %v3536 = vpack.c.b16 %v2765, %v2762
    %v3537 = vpack.c.b16 %v2769, %v2766
    %v3538 = vpack.c.b16 %v2770, %v2767
    %v3539 = vpack.c.b16 %v2771, %v2768
    %v3540 = vpack.c.b16 %v2775, %v2772
    %v3541 = vpack.c.b16 %v2776, %v2773
    %v3542 = vpack.c.b16 %v2777, %v2774
    %v3543 = vpack.c.b16 %v2781, %v2778
    %v3544 = vpack.c.b16 %v2782, %v2779
    %v3545 = vpack.c.b16 %v2783, %v2780
    %v3546 = vpack.c.b16 %v2787, %v2784
    %v3547 = vpack.c.b16 %v2788, %v2785
    %v3548 = vpack.c.b16 %v2789, %v2786
    %v3549 = vpack.c.b16 %v2793, %v2790
    %v3550 = vpack.c.b16 %v2794, %v2791
    %v3551 = vpack.c.b16 %v2795, %v2792
    %v3552 = vpack.c.b16 %v2799, %v2796
    %v3553 = vpack.c.b16 %v2800, %v2797
    %v3554 = vpack.c.b16 %v2801, %v2798
    %v3555 = vpack.c.b16 %v2805, %v2802
    %v3556 = vpack.c.b16 %v2806, %v2803
    %v3557 = vpack.c.b16 %v2807, %v2804
    %v3558 = vpack.c.b16 %v2811, %v2808
    %v3559 = vpack.c.b16 %v2812, %v2809
    %v3560 = vpack.c.b16 %v2813, %v2810
    %v3561 = vpack.c.b16 %v2817, %v2814
    %v3562 = vpack.c.b16 %v2818, %v2815
    %v3563 = vpack.c.b16 %v2819, %v2816
    %v3564 = vpack.c.b16 %v2823, %v2820
    %v3565 = vpack.c.b16 %v2824, %v2821
    %v3566 = vpack.c.b16 %v2825, %v2822
    %v3567 = vpack.c.b16 %v2829, %v2826
    %v3568 = vpack.c.b16 %v2830, %v2827
    %v3569 = vpack.c.b16 %v2831, %v2828
    %v3570 = vpack.c.b16 %v2835, %v2832
    %v3571 = vpack.c.b16 %v2836, %v2833
    %v3572 = vpack.c.b16 %v2837, %v2834
    %v3573 = vpack.c.b16 %v2841, %v2838
    %v3574 = vpack.c.b16 %v2842, %v2839
    %v3575 = vpack.c.b16 %v2843, %v2840
    %v3576 = vpack.c.b16 %v2847, %v2844
    %v3577 = vpack.c.b16 %v2848, %v2845
    %v3578 = vpack.c.b16 %v2849, %v2846
    %v3579 = vpack.c.b16 %v2853, %v2850
    %v3580 = vpack.c.b16 %v2854, %v2851
    %v3581 = vpack.c.b16 %v2855, %v2852
    %v3582 = vpack.c.b16 %v2859, %v2856
    %v3583 = vpack.c.b16 %v2860, %v2857
    %v3584 = vpack.c.b16 %v2861, %v2858
    %v3585 = vpack.c.b16 %v2865, %v2862
    %v3586 = vpack.c.b16 %v2866, %v2863
    %v3587 = vpack.c.b16 %v2867, %v2864
    %v3588 = vpack.c.b16 %v2871, %v2868
    %v3589 = vpack.c.b16 %v2872, %v2869
    %v3590 = vpack.c.b16 %v2873, %v2870
    %v3591 = vpack.c.b16 %v2877, %v2874
    %v3592 = vpack.c.b16 %v2878, %v2875
    %v3593 = vpack.c.b16 %v2879, %v2876
    %v3594 = vpack.c.b16 %v2883, %v2880
    %v3595 = vpack.c.b16 %v2884, %v2881
    %v3596 = vpack.c.b16 %v2885, %v2882
    %v3597 = vpack.c.b16 %v2889, %v2886
    %v3598 = vpack.c.b16 %v2890, %v2887
    %v3599 = vpack.c.b16 %v2891, %v2888
    %v3600 = vpack.c.b16 %v2895, %v2892
    %v3601 = vpack.c.b16 %v2896, %v2893
    %v3602 = vpack.c.b16 %v2897, %v2894
    %v3603 = vpack.c.b16 %v2901, %v2898
    %v3604 = vpack.c.b16 %v2902, %v2899
    %v3605 = vpack.c.b16 %v2903, %v2900
    %v3606 = vpack.c.b16 %v2907, %v2904
    %v3607 = vpack.c.b16 %v2908, %v2905
    %v3608 = vpack.c.b16 %v2909, %v2906
    %v3609 = vpack.c.b16 %v2913, %v2910
    %v3610 = vpack.c.b16 %v2914, %v2911
    %v3611 = vpack.c.b16 %v2915, %v2912
    %v3612 = vpack.c.b16 %v2919, %v2916
    %v3613 = vpack.c.b16 %v2920, %v2917
    %v3614 = vpack.c.b16 %v2921, %v2918
    %v3615 = vpack.c.b16 %v2925, %v2922
    %v3616 = vpack.c.b16 %v2926, %v2923
    %v3617 = vpack.c.b16 %v2927, %v2924
    %v3618 = vpack.c.b16 %v2931, %v2928
    %v3619 = vpack.c.b16 %v2932, %v2929
    %v3620 = vpack.c.b16 %v2933, %v2930
    %v3621 = vpack.c.b16 %v2937, %v2934
    %v3622 = vpack.c.b16 %v2938, %v2935
    %v3623 = vpack.c.b16 %v2939, %v2936
    %v3624 = vpack.c.b16 %v2943, %v2940
    %v3625 = vpack.c.b16 %v2944, %v2941
    %v3626 = vpack.c.b16 %v2945, %v2942
    %v3627 = vpack.c.b16 %v2949, %v2946
    %v3628 = vpack.c.b16 %v2950, %v2947
    %v3629 = vpack.c.b16 %v2951, %v2948
    %v3630 = vpack.c.b16 %v2955, %v2952
    %v3631 = vpack.c.b16 %v2956, %v2953
    %v3632 = vpack.c.b16 %v2957, %v2954
    %v3633 = vpack.c.b16 %v2961, %v2958
    %v3634 = vpack.c.b16 %v2962, %v2959
    %v3635 = vpack.c.b16 %v2963, %v2960
    %v3636 = vpack.c.b16 %v2967, %v2964
    %v3637 = vpack.c.b16 %v2968, %v2965
    %v3638 = vpack.c.b16 %v2969, %v2966
    %v3639 = vpack.c.b16 %v2973, %v2970
    %v3640 = vpack.c.b16 %v2974, %v2971
    %v3641 = vpack.c.b16 %v2975, %v2972
    %v3642 = vpack.c.b16 %v2979, %v2976
    %v3643 = vpack.c.b16 %v2980, %v2977
    %v3644 = vpack.c.b16 %v2981, %v2978
    %v3645 = vpack.c.b16 %v2985, %v2982
    %v3646 = vpack.c.b16 %v2986, %v2983
    %v3647 = vpack.c.b16 %v2987, %v2984
    %v3648 = vpack.c.b16 %v2991, %v2988
    %v3649 = vpack.c.b16 %v2992, %v2989
    %v3650 = vpack.c.b16 %v2993, %v2990
    %v3651 = vpack.c.b16 %v2997, %v2994
    %v3652 = vpack.c.b16 %v2998, %v2995
    %v3653 = vpack.c.b16 %v2999, %v2996
    %v3654 = vpack.c.b16 %v3003, %v3000
    %v3655 = vpack.c.b16 %v3004, %v3001
    %v3656 = vpack.c.b16 %v3005, %v3002
    %v3657 = vpack.c.b16 %v3009, %v3006
    %v3658 = vpack.c.b16 %v3010, %v3007
    %v3659 = vpack.c.b16 %v3011, %v3008
    %v3660 = vpack.c.b16 %v3015, %v3012
    %v3661 = vpack.c.b16 %v3016, %v3013
    %v3662 = vpack.c.b16 %v3017, %v3014
    %v3663 = vpack.c.b16 %v3021, %v3018
    %v3664 = vpack.c.b16 %v3022, %v3019
    %v3665 = vpack.c.b16 %v3023, %v3020
    %v3666 = vpack.c.b16 %v3027, %v3024
    %v3667 = vpack.c.b16 %v3028, %v3025
    %v3668 = vpack.c.b16 %v3029, %v3026
    %v3669 = vpack.c.b16 %v3033, %v3030
    %v3670 = vpack.c.b16 %v3034, %v3031
    %v3671 = vpack.c.b16 %v3035, %v3032
    %v3672 = vpack.c.b16 %v3039, %v3036
    %v3673 = vpack.c.b16 %v3040, %v3037
    %v3674 = vpack.c.b16 %v3041, %v3038
    %v3675 = vpack.c.b16 %v3045, %v3042
    %v3676 = vpack.c.b16 %v3046, %v3043
    %v3677 = vpack.c.b16 %v3047, %v3044
    %v3678 = vpack.c.b16 %v3051, %v3048
    %v3679 = vpack.c.b16 %v3052, %v3049
    %v3680 = vpack.c.b16 %v3053, %v3050
    %v3681 = vpack.c.b16 %v3057, %v3054
    %v3682 = vpack.c.b16 %v3058, %v3055
    %v3683 = vpack.c.b16 %v3059, %v3056
    %v3684 = vpack.c.b16 %v3063, %v3060
    %v3685 = vpack.c.b16 %v3064, %v3061
    %v3686 = vpack.c.b16 %v3065, %v3062
    %v3687 = vpack.c.b16 %v3069, %v3066
    %v3688 = vpack.c.b16 %v3070, %v3067
    %v3689 = vpack.c.b16 %v3071, %v3068
    %v3690 = vpack.c.b16 %v3075, %v3072
    %v3691 = vpack.c.b16 %v3076, %v3073
    %v3692 = vpack.c.b16 %v3077, %v3074
    %v3693 = vpack.c.b16 %v3081, %v3078
    %v3694 = vpack.c.b16 %v3082, %v3079
    %v3695 = vpack.c.b16 %v3083, %v3080
    %v3696 = vpack.c.b16 %v3087, %v3084
    %v3697 = vpack.c.b16 %v3088, %v3085
    %v3698 = vpack.c.b16 %v3089, %v3086
    %v3699 = vpack.c.b16 %v3093, %v3090
    %v3700 = vpack.c.b16 %v3094, %v3091
    %v3701 = vpack.c.b16 %v3095, %v3092
    %v3702 = vpack.c.b16 %v3099, %v3096
    %v3703 = vpack.c.b16 %v3100, %v3097
    %v3704 = vpack.c.b16 %v3101, %v3098
    %v3705 = vpack.c.b16 %v3105, %v3102
    %v3706 = vpack.c.b16 %v3106, %v3103
    %v3707 = vpack.c.b16 %v3107, %v3104
    %4308 = vmatprep.subr.bf16.mxu0 %v3109
    %4309 = vmatpush1.bf16.msra.mxu0 %v3108
    %4310 = vmatprep.subr.bf16.mxu0 %v3112
    %4311 = vmatpush1.bf16.msra.mxu0 %v3111
    %4312 = vmatprep.subr.bf16.mxu0 %v3115
    %4313 = vmatpush1.bf16.msra.mxu0 %v3114
    %4314 = vmatprep.subr.bf16.mxu0 %v3118
    %4315 = vmatpush1.bf16.msra.mxu0 %v3117
    %4316 = vmatprep.subr.bf16.mxu0 %v3121
    %4317 = vmatpush1.bf16.msra.mxu0 %v3120
    %4318 = vmatprep.subr.bf16.mxu0 %v3124
    %4319 = vmatpush1.bf16.msra.mxu0 %v3123
    %4320 = vmatprep.subr.bf16.mxu0 %v3127
    %4321 = vmatpush1.bf16.msra.mxu0 %v3126
    %4322 = vmatprep.subr.bf16.mxu0 %v3130
    %4323 = vmatpush1.bf16.msra.mxu0 %v3129
    %4324 = vmatprep.subr.bf16.mxu0 %v3133
    %4325 = vmatpush1.bf16.msra.mxu0 %v3132
    %4326 = vmatprep.subr.bf16.mxu0 %v3136
    %4327 = vmatpush1.bf16.msra.mxu0 %v3135
    %4328 = vmatprep.subr.bf16.mxu0 %v3139
    %4329 = vmatpush1.bf16.msra.mxu0 %v3138
    %4330 = vmatprep.subr.bf16.mxu0 %v3142
    %4331 = vmatpush1.bf16.msra.mxu0 %v3141
    %4332 = vmatprep.subr.bf16.mxu0 %v3145
    %4333 = vmatpush1.bf16.msra.mxu0 %v3144
    %4334 = vmatprep.subr.bf16.mxu0 %v3148
    %4335 = vmatpush1.bf16.msra.mxu0 %v3147
    %4336 = vmatprep.subr.bf16.mxu0 %v3151
    %4337 = vmatpush1.bf16.msra.mxu0 %v3150
    %4338 = vmatprep.subr.bf16.mxu0 %v3154
    %4339 = vmatpush1.bf16.msra.mxu0 %v3153
    %4340 = vmatprep.mubr.bf16.mxu0 %v267
    %4341 = vmatmul.mubr.bf16.gmra.mrb[0].mxu0 %v266
    %v4342 = vpop.f32.mrb[0].mxu0
    %v4343 = vadd.f32 %v1096, %v4342
    %v4344 = vpop.f32.mrb[0].mxu0
    %v4345 = vadd.f32 %v1100, %v4344
    %v4346 = vpop.f32.mrb[0].mxu0
    %v4347 = vpop.f32.mrb[0].mxu0
    %4348 = vdwg.mxu0
    %4349 = vmatprep.subr.bf16.mxu0 %v3157
    %4350 = vmatpush1.bf16.msra.mxu0 %v3156
    %4351 = vmatprep.subr.bf16.mxu0 %v3160
    %4352 = vmatpush1.bf16.msra.mxu0 %v3159
    %4353 = vmatprep.subr.bf16.mxu0 %v3163
    %4354 = vmatpush1.bf16.msra.mxu0 %v3162
    %4355 = vmatprep.subr.bf16.mxu0 %v3166
    %4356 = vmatpush1.bf16.msra.mxu0 %v3165
    %4357 = vmatprep.subr.bf16.mxu0 %v3169
    %4358 = vmatpush1.bf16.msra.mxu0 %v3168
    %4359 = vmatprep.subr.bf16.mxu0 %v3172
    %4360 = vmatpush1.bf16.msra.mxu0 %v3171
    %4361 = vmatprep.subr.bf16.mxu0 %v3175
    %4362 = vmatpush1.bf16.msra.mxu0 %v3174
    %4363 = vmatprep.subr.bf16.mxu0 %v3178
    %4364 = vmatpush1.bf16.msra.mxu0 %v3177
    %4365 = vmatprep.subr.bf16.mxu0 %v3181
    %4366 = vmatpush1.bf16.msra.mxu0 %v3180
    %4367 = vmatprep.subr.bf16.mxu0 %v3184
    %4368 = vmatpush1.bf16.msra.mxu0 %v3183
    %4369 = vmatprep.subr.bf16.mxu0 %v3187
    %4370 = vmatpush1.bf16.msra.mxu0 %v3186
    %4371 = vmatprep.subr.bf16.mxu0 %v3190
    %4372 = vmatpush1.bf16.msra.mxu0 %v3189
    %4373 = vmatprep.subr.bf16.mxu0 %v3193
    %4374 = vmatpush1.bf16.msra.mxu0 %v3192
    %4375 = vmatprep.subr.bf16.mxu0 %v3196
    %4376 = vmatpush1.bf16.msra.mxu0 %v3195
    %4377 = vmatprep.subr.bf16.mxu0 %v3199
    %4378 = vmatpush1.bf16.msra.mxu0 %v3198
    %4379 = vmatprep.subr.bf16.mxu0 %v3202
    %4380 = vmatpush1.bf16.msra.mxu0 %v3201
    %4381 = vmatprep.mubr.bf16.mxu0 %v269
    %4382 = vmatmul.mubr.bf16.gmra.mrb[0].mxu0 %v268
    %v4383 = vpop.f32.mrb[0].mxu0
    %v4384 = vadd.f32 %v4343, %v4383
    %v4385 = vpop.f32.mrb[0].mxu0
    %v4386 = vadd.f32 %v4345, %v4385
    %v4387 = vpop.f32.mrb[0].mxu0
    %v4388 = vpop.f32.mrb[0].mxu0
    %4389 = vdwg.mxu0
    %4390 = vmatprep.subr.bf16.mxu0 %v3205
    %4391 = vmatpush1.bf16.msra.mxu0 %v3204
    %4392 = vmatprep.subr.bf16.mxu0 %v3208
    %4393 = vmatpush1.bf16.msra.mxu0 %v3207
    %4394 = vmatprep.subr.bf16.mxu0 %v3211
    %4395 = vmatpush1.bf16.msra.mxu0 %v3210
    %4396 = vmatprep.subr.bf16.mxu0 %v3214
    %4397 = vmatpush1.bf16.msra.mxu0 %v3213
    %4398 = vmatprep.subr.bf16.mxu0 %v3217
    %4399 = vmatpush1.bf16.msra.mxu0 %v3216
    %4400 = vmatprep.subr.bf16.mxu0 %v3220
    %4401 = vmatpush1.bf16.msra.mxu0 %v3219
    %4402 = vmatprep.subr.bf16.mxu0 %v3223
    %4403 = vmatpush1.bf16.msra.mxu0 %v3222
    %4404 = vmatprep.subr.bf16.mxu0 %v3226
    %4405 = vmatpush1.bf16.msra.mxu0 %v3225
    %4406 = vmatprep.subr.bf16.mxu0 %v3229
    %4407 = vmatpush1.bf16.msra.mxu0 %v3228
    %4408 = vmatprep.subr.bf16.mxu0 %v3232
    %4409 = vmatpush1.bf16.msra.mxu0 %v3231
    %4410 = vmatprep.subr.bf16.mxu0 %v3235
    %4411 = vmatpush1.bf16.msra.mxu0 %v3234
    %4412 = vmatprep.subr.bf16.mxu0 %v3238
    %4413 = vmatpush1.bf16.msra.mxu0 %v3237
    %4414 = vmatprep.subr.bf16.mxu0 %v3241
    %4415 = vmatpush1.bf16.msra.mxu0 %v3240
    %4416 = vmatprep.subr.bf16.mxu0 %v3244
    %4417 = vmatpush1.bf16.msra.mxu0 %v3243
    %4418 = vmatprep.subr.bf16.mxu0 %v3247
    %4419 = vmatpush1.bf16.msra.mxu0 %v3246
    %4420 = vmatprep.subr.bf16.mxu0 %v3250
    %4421 = vmatpush1.bf16.msra.mxu0 %v3249
    %4422 = vmatprep.mubr.bf16.mxu0 %v271
    %4423 = vmatmul.mubr.bf16.gmra.mrb[0].mxu0 %v270
    %v4424 = vpop.f32.mrb[0].mxu0
    %v4425 = vadd.f32 %v4384, %v4424
    %v4426 = vpop.f32.mrb[0].mxu0
    %v4427 = vadd.f32 %v4386, %v4426
    %v4428 = vpop.f32.mrb[0].mxu0
    %v4429 = vpop.f32.mrb[0].mxu0
    %4430 = vdwg.mxu0
    %4431 = vmatprep.subr.bf16.mxu0 %v3253
    %4432 = vmatpush1.bf16.msra.mxu0 %v3252
    %4433 = vmatprep.subr.bf16.mxu0 %v3256
    %4434 = vmatpush1.bf16.msra.mxu0 %v3255
    %4435 = vmatprep.subr.bf16.mxu0 %v3259
    %4436 = vmatpush1.bf16.msra.mxu0 %v3258
    %4437 = vmatprep.subr.bf16.mxu0 %v3262
    %4438 = vmatpush1.bf16.msra.mxu0 %v3261
    %4439 = vmatprep.subr.bf16.mxu0 %v3265
    %4440 = vmatpush1.bf16.msra.mxu0 %v3264
    %4441 = vmatprep.subr.bf16.mxu0 %v3268
    %4442 = vmatpush1.bf16.msra.mxu0 %v3267
    %4443 = vmatprep.subr.bf16.mxu0 %v3271
    %4444 = vmatpush1.bf16.msra.mxu0 %v3270
    %4445 = vmatprep.subr.bf16.mxu0 %v3274
    %4446 = vmatpush1.bf16.msra.mxu0 %v3273
    %4447 = vmatprep.subr.bf16.mxu0 %v3277
    %4448 = vmatpush1.bf16.msra.mxu0 %v3276
    %4449 = vmatprep.subr.bf16.mxu0 %v3280
    %4450 = vmatpush1.bf16.msra.mxu0 %v3279
    %4451 = vmatprep.subr.bf16.mxu0 %v3283
    %4452 = vmatpush1.bf16.msra.mxu0 %v3282
    %4453 = vmatprep.subr.bf16.mxu0 %v3286
    %4454 = vmatpush1.bf16.msra.mxu0 %v3285
    %4455 = vmatprep.subr.bf16.mxu0 %v3289
    %4456 = vmatpush1.bf16.msra.mxu0 %v3288
    %4457 = vmatprep.subr.bf16.mxu0 %v3292
    %4458 = vmatpush1.bf16.msra.mxu0 %v3291
    %4459 = vmatprep.subr.bf16.mxu0 %v3295
    %4460 = vmatpush1.bf16.msra.mxu0 %v3294
    %4461 = vmatprep.subr.bf16.mxu0 %v3298
    %4462 = vmatpush1.bf16.msra.mxu0 %v3297
    %4463 = vmatprep.mubr.bf16.mxu0 %v273
    %4464 = vmatmul.mubr.bf16.gmra.mrb[0].mxu0 %v272
    %v4465 = vpop.f32.mrb[0].mxu0
    %v4466 = vadd.f32 %v4425, %v4465
    %v4467 = vpop.f32.mrb[0].mxu0
    %v4468 = vadd.f32 %v4427, %v4467
    %v4469 = vpop.f32.mrb[0].mxu0
    %v4470 = vpop.f32.mrb[0].mxu0
    %4471 = vdwg.mxu0
    %4472 = vmatprep.subr.bf16.mxu0 %v3301
    %4473 = vmatpush1.bf16.msra.mxu0 %v3300
    %4474 = vmatprep.subr.bf16.mxu0 %v3304
    %4475 = vmatpush1.bf16.msra.mxu0 %v3303
    %4476 = vmatprep.subr.bf16.mxu0 %v3307
    %4477 = vmatpush1.bf16.msra.mxu0 %v3306
    %4478 = vmatprep.subr.bf16.mxu0 %v3310
    %4479 = vmatpush1.bf16.msra.mxu0 %v3309
    %4480 = vmatprep.subr.bf16.mxu0 %v3313
    %4481 = vmatpush1.bf16.msra.mxu0 %v3312
    %4482 = vmatprep.subr.bf16.mxu0 %v3316
    %4483 = vmatpush1.bf16.msra.mxu0 %v3315
    %4484 = vmatprep.subr.bf16.mxu0 %v3319
    %4485 = vmatpush1.bf16.msra.mxu0 %v3318
    %4486 = vmatprep.subr.bf16.mxu0 %v3322
    %4487 = vmatpush1.bf16.msra.mxu0 %v3321
    %4488 = vmatprep.subr.bf16.mxu0 %v3325
    %4489 = vmatpush1.bf16.msra.mxu0 %v3324
    %4490 = vmatprep.subr.bf16.mxu0 %v3328
    %4491 = vmatpush1.bf16.msra.mxu0 %v3327
    %4492 = vmatprep.subr.bf16.mxu0 %v3331
    %4493 = vmatpush1.bf16.msra.mxu0 %v3330
    %4494 = vmatprep.subr.bf16.mxu0 %v3334
    %4495 = vmatpush1.bf16.msra.mxu0 %v3333
    %4496 = vmatprep.subr.bf16.mxu0 %v3337
    %4497 = vmatpush1.bf16.msra.mxu0 %v3336
    %4498 = vmatprep.subr.bf16.mxu0 %v3340
    %4499 = vmatpush1.bf16.msra.mxu0 %v3339
    %4500 = vmatprep.subr.bf16.mxu0 %v3343
    %4501 = vmatpush1.bf16.msra.mxu0 %v3342
    %4502 = vmatprep.subr.bf16.mxu0 %v3346
    %4503 = vmatpush1.bf16.msra.mxu0 %v3345
    %4504 = vmatprep.mubr.bf16.mxu0 %v275
    %4505 = vmatmul.mubr.bf16.gmra.mrb[0].mxu0 %v274
    %v4506 = vpop.f32.mrb[0].mxu0
    %v4507 = vadd.f32 %v4466, %v4506
    %v4508 = vpop.f32.mrb[0].mxu0
    %v4509 = vadd.f32 %v4468, %v4508
    %v4510 = vpop.f32.mrb[0].mxu0
    %v4511 = vpop.f32.mrb[0].mxu0
    %4512 = vdwg.mxu0
    %4513 = vmatprep.subr.bf16.mxu0 %v3349
    %4514 = vmatpush1.bf16.msra.mxu0 %v3348
    %4515 = vmatprep.subr.bf16.mxu0 %v3352
    %4516 = vmatpush1.bf16.msra.mxu0 %v3351
    %4517 = vmatprep.subr.bf16.mxu0 %v3355
    %4518 = vmatpush1.bf16.msra.mxu0 %v3354
    %4519 = vmatprep.subr.bf16.mxu0 %v3358
    %4520 = vmatpush1.bf16.msra.mxu0 %v3357
    %4521 = vmatprep.subr.bf16.mxu0 %v3361
    %4522 = vmatpush1.bf16.msra.mxu0 %v3360
    %4523 = vmatprep.subr.bf16.mxu0 %v3364
    %4524 = vmatpush1.bf16.msra.mxu0 %v3363
    %4525 = vmatprep.subr.bf16.mxu0 %v3367
    %4526 = vmatpush1.bf16.msra.mxu0 %v3366
    %4527 = vmatprep.subr.bf16.mxu0 %v3370
    %4528 = vmatpush1.bf16.msra.mxu0 %v3369
    %4529 = vmatprep.subr.bf16.mxu0 %v3373
    %4530 = vmatpush1.bf16.msra.mxu0 %v3372
    %4531 = vmatprep.subr.bf16.mxu0 %v3376
    %4532 = vmatpush1.bf16.msra.mxu0 %v3375
    %4533 = vmatprep.subr.bf16.mxu0 %v3379
    %4534 = vmatpush1.bf16.msra.mxu0 %v3378
    %4535 = vmatprep.subr.bf16.mxu0 %v3382
    %4536 = vmatpush1.bf16.msra.mxu0 %v3381
    %4537 = vmatprep.subr.bf16.mxu0 %v3385
    %4538 = vmatpush1.bf16.msra.mxu0 %v3384
    %4539 = vmatprep.subr.bf16.mxu0 %v3388
    %4540 = vmatpush1.bf16.msra.mxu0 %v3387
    %4541 = vmatprep.subr.bf16.mxu0 %v3391
    %4542 = vmatpush1.bf16.msra.mxu0 %v3390
    %4543 = vmatprep.subr.bf16.mxu0 %v3394
    %4544 = vmatpush1.bf16.msra.mxu0 %v3393
    %4545 = vmatprep.mubr.bf16.mxu0 %v277
    %4546 = vmatmul.mubr.bf16.gmra.mrb[0].mxu0 %v276
    %v4547 = vpop.f32.mrb[0].mxu0
    %v4548 = vadd.f32 %v4507, %v4547
    %v4549 = vpop.f32.mrb[0].mxu0
    %v4550 = vadd.f32 %v4509, %v4549
    %v4551 = vpop.f32.mrb[0].mxu0
    %v4552 = vpop.f32.mrb[0].mxu0
    %4553 = vdwg.mxu0
    %4554 = vmatprep.subr.bf16.mxu0 %v3397
    %4555 = vmatpush1.bf16.msra.mxu0 %v3396
    %4556 = vmatprep.subr.bf16.mxu0 %v3400
    %4557 = vmatpush1.bf16.msra.mxu0 %v3399
    %4558 = vmatprep.subr.bf16.mxu0 %v3403
    %4559 = vmatpush1.bf16.msra.mxu0 %v3402
    %4560 = vmatprep.subr.bf16.mxu0 %v3406
    %4561 = vmatpush1.bf16.msra.mxu0 %v3405
    %4562 = vmatprep.subr.bf16.mxu0 %v3409
    %4563 = vmatpush1.bf16.msra.mxu0 %v3408
    %4564 = vmatprep.subr.bf16.mxu0 %v3412
    %4565 = vmatpush1.bf16.msra.mxu0 %v3411
    %4566 = vmatprep.subr.bf16.mxu0 %v3415
    %4567 = vmatpush1.bf16.msra.mxu0 %v3414
    %4568 = vmatprep.subr.bf16.mxu0 %v3418
    %4569 = vmatpush1.bf16.msra.mxu0 %v3417
    %4570 = vmatprep.subr.bf16.mxu0 %v3421
    %4571 = vmatpush1.bf16.msra.mxu0 %v3420
    %4572 = vmatprep.subr.bf16.mxu0 %v3424
    %4573 = vmatpush1.bf16.msra.mxu0 %v3423
    %4574 = vmatprep.subr.bf16.mxu0 %v3427
    %4575 = vmatpush1.bf16.msra.mxu0 %v3426
    %4576 = vmatprep.subr.bf16.mxu0 %v3430
    %4577 = vmatpush1.bf16.msra.mxu0 %v3429
    %4578 = vmatprep.subr.bf16.mxu0 %v3433
    %4579 = vmatpush1.bf16.msra.mxu0 %v3432
    %4580 = vmatprep.subr.bf16.mxu0 %v3436
    %4581 = vmatpush1.bf16.msra.mxu0 %v3435
    %4582 = vmatprep.subr.bf16.mxu0 %v3439
    %4583 = vmatpush1.bf16.msra.mxu0 %v3438
    %4584 = vmatprep.subr.bf16.mxu0 %v3442
    %4585 = vmatpush1.bf16.msra.mxu0 %v3441
    %4586 = vmatprep.mubr.bf16.mxu0 %v279
    %4587 = vmatmul.mubr.bf16.gmra.mrb[0].mxu0 %v278
    %v4588 = vpop.f32.mrb[0].mxu0
    %v4589 = vadd.f32 %v4548, %v4588
    %v4590 = vpop.f32.mrb[0].mxu0
    %v4591 = vadd.f32 %v4550, %v4590
    %v4592 = vpop.f32.mrb[0].mxu0
    %v4593 = vpop.f32.mrb[0].mxu0
    %4594 = vdwg.mxu0
    %4595 = vmatprep.subr.bf16.mxu0 %v3445
    %4596 = vmatpush1.bf16.msra.mxu0 %v3444
    %4597 = vmatprep.subr.bf16.mxu0 %v3448
    %4598 = vmatpush1.bf16.msra.mxu0 %v3447
    %4599 = vmatprep.subr.bf16.mxu0 %v3451
    %4600 = vmatpush1.bf16.msra.mxu0 %v3450
    %4601 = vmatprep.subr.bf16.mxu0 %v3454
    %4602 = vmatpush1.bf16.msra.mxu0 %v3453
    %4603 = vmatprep.subr.bf16.mxu0 %v3457
    %4604 = vmatpush1.bf16.msra.mxu0 %v3456
    %4605 = vmatprep.subr.bf16.mxu0 %v3460
    %4606 = vmatpush1.bf16.msra.mxu0 %v3459
    %4607 = vmatprep.subr.bf16.mxu0 %v3463
    %4608 = vmatpush1.bf16.msra.mxu0 %v3462
    %4609 = vmatprep.subr.bf16.mxu0 %v3466
    %4610 = vmatpush1.bf16.msra.mxu0 %v3465
    %4611 = vmatprep.subr.bf16.mxu0 %v3469
    %4612 = vmatpush1.bf16.msra.mxu0 %v3468
    %4613 = vmatprep.subr.bf16.mxu0 %v3472
    %4614 = vmatpush1.bf16.msra.mxu0 %v3471
    %4615 = vmatprep.subr.bf16.mxu0 %v3475
    %4616 = vmatpush1.bf16.msra.mxu0 %v3474
    %4617 = vmatprep.subr.bf16.mxu0 %v3478
    %4618 = vmatpush1.bf16.msra.mxu0 %v3477
    %4619 = vmatprep.subr.bf16.mxu0 %v3481
    %4620 = vmatpush1.bf16.msra.mxu0 %v3480
    %4621 = vmatprep.subr.bf16.mxu0 %v3484
    %4622 = vmatpush1.bf16.msra.mxu0 %v3483
    %4623 = vmatprep.subr.bf16.mxu0 %v3487
    %4624 = vmatpush1.bf16.msra.mxu0 %v3486
    %4625 = vmatprep.subr.bf16.mxu0 %v3490
    %4626 = vmatpush1.bf16.msra.mxu0 %v3489
    %4627 = vmatprep.mubr.bf16.mxu0 %v281
    %4628 = vmatmul.mubr.bf16.gmra.mrb[0].mxu0 %v280
    %v4629 = vpop.f32.mrb[0].mxu0
    %v4630 = vadd.f32 %v4589, %v4629
    %v4631 = vpop.f32.mrb[0].mxu0
    %v4632 = vadd.f32 %v4591, %v4631
    %v4633 = vpop.f32.mrb[0].mxu0
    %v4634 = vpop.f32.mrb[0].mxu0
    %4635 = vdwg.mxu0
    %4636 = vmatprep.subr.bf16.mxu0 %v3493
    %4637 = vmatpush1.bf16.msra.mxu0 %v3492
    %4638 = vmatprep.subr.bf16.mxu0 %v3496
    %4639 = vmatpush1.bf16.msra.mxu0 %v3495
    %4640 = vmatprep.subr.bf16.mxu0 %v3499
    %4641 = vmatpush1.bf16.msra.mxu0 %v3498
    %4642 = vmatprep.subr.bf16.mxu0 %v3502
    %4643 = vmatpush1.bf16.msra.mxu0 %v3501
    %4644 = vmatprep.subr.bf16.mxu0 %v3505
    %4645 = vmatpush1.bf16.msra.mxu0 %v3504
    %4646 = vmatprep.subr.bf16.mxu0 %v3508
    %4647 = vmatpush1.bf16.msra.mxu0 %v3507
    %4648 = vmatprep.subr.bf16.mxu0 %v3511
    %4649 = vmatpush1.bf16.msra.mxu0 %v3510
    %4650 = vmatprep.subr.bf16.mxu0 %v3514
    %4651 = vmatpush1.bf16.msra.mxu0 %v3513
    %4652 = vmatprep.subr.bf16.mxu0 %v3517
    %4653 = vmatpush1.bf16.msra.mxu0 %v3516
    %4654 = vmatprep.subr.bf16.mxu0 %v3520
    %4655 = vmatpush1.bf16.msra.mxu0 %v3519
    %4656 = vmatprep.subr.bf16.mxu0 %v3523
    %4657 = vmatpush1.bf16.msra.mxu0 %v3522
    %4658 = vmatprep.subr.bf16.mxu0 %v3526
    %4659 = vmatpush1.bf16.msra.mxu0 %v3525
    %4660 = vmatprep.subr.bf16.mxu0 %v3529
    %4661 = vmatpush1.bf16.msra.mxu0 %v3528
    %4662 = vmatprep.subr.bf16.mxu0 %v3532
    %4663 = vmatpush1.bf16.msra.mxu0 %v3531
    %4664 = vmatprep.subr.bf16.mxu0 %v3535
    %4665 = vmatpush1.bf16.msra.mxu0 %v3534
    %4666 = vmatprep.subr.bf16.mxu0 %v3538
    %4667 = vmatpush1.bf16.msra.mxu0 %v3537
    %4668 = vmatprep.mubr.bf16.mxu0 %v283
    %4669 = vmatmul.mubr.bf16.gmra.mrb[0].mxu0 %v282
    %v4670 = vpop.f32.mrb[0].mxu0
    %v4671 = vadd.f32 %v4630, %v4670
    %v4672 = vpop.f32.mrb[0].mxu0
    %v4673 = vadd.f32 %v4632, %v4672
    %v4674 = vpop.f32.mrb[0].mxu0
    %v4675 = vpop.f32.mrb[0].mxu0
    %4676 = vdwg.mxu0
    %4677 = vmatprep.subr.bf16.mxu0 %v3541
    %4678 = vmatpush1.bf16.msra.mxu0 %v3540
    %4679 = vmatprep.subr.bf16.mxu0 %v3544
    %4680 = vmatpush1.bf16.msra.mxu0 %v3543
    %4681 = vmatprep.subr.bf16.mxu0 %v3547
    %4682 = vmatpush1.bf16.msra.mxu0 %v3546
    %4683 = vmatprep.subr.bf16.mxu0 %v3550
    %4684 = vmatpush1.bf16.msra.mxu0 %v3549
    %4685 = vmatprep.subr.bf16.mxu0 %v3553
    %4686 = vmatpush1.bf16.msra.mxu0 %v3552
    %4687 = vmatprep.subr.bf16.mxu0 %v3556
    %4688 = vmatpush1.bf16.msra.mxu0 %v3555
    %4689 = vmatprep.subr.bf16.mxu0 %v3559
    %4690 = vmatpush1.bf16.msra.mxu0 %v3558
    %4691 = vmatprep.subr.bf16.mxu0 %v3562
    %4692 = vmatpush1.bf16.msra.mxu0 %v3561
    %4693 = vmatprep.subr.bf16.mxu0 %v3565
    %4694 = vmatpush1.bf16.msra.mxu0 %v3564
    %4695 = vmatprep.subr.bf16.mxu0 %v3568
    %4696 = vmatpush1.bf16.msra.mxu0 %v3567
    %4697 = vmatprep.subr.bf16.mxu0 %v3571
    %4698 = vmatpush1.bf16.msra.mxu0 %v3570
    %4699 = vmatprep.subr.bf16.mxu0 %v3574
    %4700 = vmatpush1.bf16.msra.mxu0 %v3573
    %4701 = vmatprep.subr.bf16.mxu0 %v3577
    %4702 = vmatpush1.bf16.msra.mxu0 %v3576
    %4703 = vmatprep.subr.bf16.mxu0 %v3580
    %4704 = vmatpush1.bf16.msra.mxu0 %v3579
    %4705 = vmatprep.subr.bf16.mxu0 %v3583
    %4706 = vmatpush1.bf16.msra.mxu0 %v3582
    %4707 = vmatprep.subr.bf16.mxu0 %v3586
    %4708 = vmatpush1.bf16.msra.mxu0 %v3585
    %4709 = vmatprep.mubr.bf16.mxu0 %v285
    %4710 = vmatmul.mubr.bf16.gmra.mrb[0].mxu0 %v284
    %v4711 = vpop.f32.mrb[0].mxu0
    %v4712 = vadd.f32 %v4671, %v4711
    %v4713 = vpop.f32.mrb[0].mxu0
    %v4714 = vadd.f32 %v4673, %v4713
    %v4715 = vpop.f32.mrb[0].mxu0
    %v4716 = vpop.f32.mrb[0].mxu0
    %4717 = vdwg.mxu0
    %4718 = vmatprep.subr.bf16.mxu0 %v3589
    %4719 = vmatpush1.bf16.msra.mxu0 %v3588
    %4720 = vmatprep.subr.bf16.mxu0 %v3592
    %4721 = vmatpush1.bf16.msra.mxu0 %v3591
    %4722 = vmatprep.subr.bf16.mxu0 %v3595
    %4723 = vmatpush1.bf16.msra.mxu0 %v3594
    %4724 = vmatprep.subr.bf16.mxu0 %v3598
    %4725 = vmatpush1.bf16.msra.mxu0 %v3597
    %4726 = vmatprep.subr.bf16.mxu0 %v3601
    %4727 = vmatpush1.bf16.msra.mxu0 %v3600
    %4728 = vmatprep.subr.bf16.mxu0 %v3604
    %4729 = vmatpush1.bf16.msra.mxu0 %v3603
    %4730 = vmatprep.subr.bf16.mxu0 %v3607
    %4731 = vmatpush1.bf16.msra.mxu0 %v3606
    %4732 = vmatprep.subr.bf16.mxu0 %v3610
    %4733 = vmatpush1.bf16.msra.mxu0 %v3609
    %4734 = vmatprep.subr.bf16.mxu0 %v3613
    %4735 = vmatpush1.bf16.msra.mxu0 %v3612
    %4736 = vmatprep.subr.bf16.mxu0 %v3616
    %4737 = vmatpush1.bf16.msra.mxu0 %v3615
    %4738 = vmatprep.subr.bf16.mxu0 %v3619
    %4739 = vmatpush1.bf16.msra.mxu0 %v3618
    %4740 = vmatprep.subr.bf16.mxu0 %v3622
    %4741 = vmatpush1.bf16.msra.mxu0 %v3621
    %4742 = vmatprep.subr.bf16.mxu0 %v3625
    %4743 = vmatpush1.bf16.msra.mxu0 %v3624
    %4744 = vmatprep.subr.bf16.mxu0 %v3628
    %4745 = vmatpush1.bf16.msra.mxu0 %v3627
    %4746 = vmatprep.subr.bf16.mxu0 %v3631
    %4747 = vmatpush1.bf16.msra.mxu0 %v3630
    %4748 = vmatprep.subr.bf16.mxu0 %v3634
    %4749 = vmatpush1.bf16.msra.mxu0 %v3633
    %4750 = vmatprep.mubr.bf16.mxu0 %v287
    %4751 = vmatmul.mubr.bf16.gmra.mrb[0].mxu0 %v286
    %v4752 = vpop.f32.mrb[0].mxu0
    %v4753 = vadd.f32 %v4712, %v4752
    %v4754 = vpop.f32.mrb[0].mxu0
    %v4755 = vadd.f32 %v4714, %v4754
    %v4756 = vpop.f32.mrb[0].mxu0
    %v4757 = vpop.f32.mrb[0].mxu0
    %4758 = vdwg.mxu0
    %4759 = vmatprep.subr.bf16.mxu0 %v3637
    %4760 = vmatpush1.bf16.msra.mxu0 %v3636
    %4761 = vmatprep.subr.bf16.mxu0 %v3640
    %4762 = vmatpush1.bf16.msra.mxu0 %v3639
    %4763 = vmatprep.subr.bf16.mxu0 %v3643
    %4764 = vmatpush1.bf16.msra.mxu0 %v3642
    %4765 = vmatprep.subr.bf16.mxu0 %v3646
    %4766 = vmatpush1.bf16.msra.mxu0 %v3645
    %4767 = vmatprep.subr.bf16.mxu0 %v3649
    %4768 = vmatpush1.bf16.msra.mxu0 %v3648
    %4769 = vmatprep.subr.bf16.mxu0 %v3652
    %4770 = vmatpush1.bf16.msra.mxu0 %v3651
    %4771 = vmatprep.subr.bf16.mxu0 %v3655
    %4772 = vmatpush1.bf16.msra.mxu0 %v3654
    %4773 = vmatprep.subr.bf16.mxu0 %v3658
    %4774 = vmatpush1.bf16.msra.mxu0 %v3657
    %4775 = vmatprep.subr.bf16.mxu0 %v3661
    %4776 = vmatpush1.bf16.msra.mxu0 %v3660
    %4777 = vmatprep.subr.bf16.mxu0 %v3664
    %4778 = vmatpush1.bf16.msra.mxu0 %v3663
    %4779 = vmatprep.subr.bf16.mxu0 %v3667
    %4780 = vmatpush1.bf16.msra.mxu0 %v3666
    %4781 = vmatprep.subr.bf16.mxu0 %v3670
    %4782 = vmatpush1.bf16.msra.mxu0 %v3669
    %4783 = vmatprep.subr.bf16.mxu0 %v3673
    %4784 = vmatpush1.bf16.msra.mxu0 %v3672
    %4785 = vmatprep.subr.bf16.mxu0 %v3676
    %4786 = vmatpush1.bf16.msra.mxu0 %v3675
    %4787 = vmatprep.subr.bf16.mxu0 %v3679
    %4788 = vmatpush1.bf16.msra.mxu0 %v3678
    %4789 = vmatprep.subr.bf16.mxu0 %v3682
    %4790 = vmatpush1.bf16.msra.mxu0 %v3681
    %4791 = vmatprep.mubr.bf16.mxu0 %v289
    %4792 = vmatmul.mubr.bf16.gmra.mrb[0].mxu0 %v288
    %v4793 = vpop.f32.mrb[0].mxu0
    %v4794 = vadd.f32 %v4753, %v4793
    %v4795 = vpop.f32.mrb[0].mxu0
    %v4796 = vadd.f32 %v4755, %v4795
    %v4797 = vpop.f32.mrb[0].mxu0
    %v4798 = vpop.f32.mrb[0].mxu0
    %4799 = vdwg.mxu0
    %4800 = vmatprep.subr.bf16.mxu0 %v3685
    %4801 = vmatpush1.bf16.msra.mxu0 %v3684
    %4802 = vmatprep.subr.bf16.mxu0 %v3688
    %4803 = vmatpush1.bf16.msra.mxu0 %v3687
    %4804 = vmatprep.subr.bf16.mxu0 %v3691
    %4805 = vmatpush1.bf16.msra.mxu0 %v3690
    %4806 = vmatprep.subr.bf16.mxu0 %v3694
    %4807 = vmatpush1.bf16.msra.mxu0 %v3693
    %4808 = vmatprep.subr.bf16.mxu0 %v3697
    %4809 = vmatpush1.bf16.msra.mxu0 %v3696
    %4810 = vmatprep.subr.bf16.mxu0 %v3700
    %4811 = vmatpush1.bf16.msra.mxu0 %v3699
    %4812 = vmatprep.subr.bf16.mxu0 %v3703
    %4813 = vmatpush1.bf16.msra.mxu0 %v3702
    %4814 = vmatprep.subr.bf16.mxu0 %v3706
    %4815 = vmatpush1.bf16.msra.mxu0 %v3705
    %4816 = vmatprep.subr.bf16.mxu0 0
    %4817 = vmatpush1.bf16.msra.mxu0 0
    %4818 = vmatprep.subr.bf16.mxu0 0
    %4819 = vmatpush1.bf16.msra.mxu0 0
    %4820 = vmatprep.subr.bf16.mxu0 0
    %4821 = vmatpush1.bf16.msra.mxu0 0
    %4822 = vmatprep.subr.bf16.mxu0 0
    %4823 = vmatpush1.bf16.msra.mxu0 0
    %4824 = vmatprep.subr.bf16.mxu0 0
    %4825 = vmatpush1.bf16.msra.mxu0 0
    %4826 = vmatprep.subr.bf16.mxu0 0
    %4827 = vmatpush1.bf16.msra.mxu0 0
    %4828 = vmatprep.subr.bf16.mxu0 0
    %4829 = vmatpush1.bf16.msra.mxu0 0
    %4830 = vmatprep.subr.bf16.mxu0 0
    %4831 = vmatpush1.bf16.msra.mxu0 0
    %4832 = vmatprep.mubr.bf16.mxu0 0
    %4833 = vmatmul.mubr.bf16.gmra.mrb[0].mxu0 %v290
    %v4834 = vpop.f32.mrb[0].mxu0
    %v4835 = vadd.f32 %v4794, %v4834
    %v4836 = vpop.f32.mrb[0].mxu0
    %v4837 = vadd.f32 %v4796, %v4836
    %v4838 = vpop.f32.mrb[0].mxu0
    %v4839 = vpop.f32.mrb[0].mxu0
    %4840 = vdwg.mxu0
    %4841 = vmatprep.subr.bf16.mxu0 0
    %4842 = vmatpush1.bf16.msra.mxu0 %v3110
    %4843 = vmatprep.subr.bf16.mxu0 0
    %4844 = vmatpush1.bf16.msra.mxu0 %v3113
    %4845 = vmatprep.subr.bf16.mxu0 0
    %4846 = vmatpush1.bf16.msra.mxu0 %v3116
    %4847 = vmatprep.subr.bf16.mxu0 0
    %4848 = vmatpush1.bf16.msra.mxu0 %v3119
    %4849 = vmatprep.subr.bf16.mxu0 0
    %4850 = vmatpush1.bf16.msra.mxu0 %v3122
    %4851 = vmatprep.subr.bf16.mxu0 0
    %4852 = vmatpush1.bf16.msra.mxu0 %v3125
    %4853 = vmatprep.subr.bf16.mxu0 0
    %4854 = vmatpush1.bf16.msra.mxu0 %v3128
    %4855 = vmatprep.subr.bf16.mxu0 0
    %4856 = vmatpush1.bf16.msra.mxu0 %v3131
    %4857 = vmatprep.subr.bf16.mxu0 0
    %4858 = vmatpush1.bf16.msra.mxu0 %v3134
    %4859 = vmatprep.subr.bf16.mxu0 0
    %4860 = vmatpush1.bf16.msra.mxu0 %v3137
    %4861 = vmatprep.subr.bf16.mxu0 0
    %4862 = vmatpush1.bf16.msra.mxu0 %v3140
    %4863 = vmatprep.subr.bf16.mxu0 0
    %4864 = vmatpush1.bf16.msra.mxu0 %v3143
    %4865 = vmatprep.subr.bf16.mxu0 0
    %4866 = vmatpush1.bf16.msra.mxu0 %v3146
    %4867 = vmatprep.subr.bf16.mxu0 0
    %4868 = vmatpush1.bf16.msra.mxu0 %v3149
    %4869 = vmatprep.subr.bf16.mxu0 0
    %4870 = vmatpush1.bf16.msra.mxu0 %v3152
    %4871 = vmatprep.subr.bf16.mxu0 0
    %4872 = vmatpush1.bf16.msra.mxu0 %v3155
    %4873 = vmatprep.mubr.bf16.mxu0 %v267
    %4874 = vmatmul.mubr.bf16.gmra.mrb[0].mxu0 %v266
    %v4875 = vpop.f32.mrb[0].mxu0
    %v4876 = vadd.f32 %v1104, %v4875
    %v4877 = vpop.f32.mrb[0].mxu0
    %v4878 = vpop.f32.mrb[0].mxu0
    %v4879 = vpop.f32.mrb[0].mxu0
    %4880 = vdwg.mxu0
    %4881 = vmatprep.subr.bf16.mxu0 0
    %4882 = vmatpush1.bf16.msra.mxu0 %v3158
    %4883 = vmatprep.subr.bf16.mxu0 0
    %4884 = vmatpush1.bf16.msra.mxu0 %v3161
    %4885 = vmatprep.subr.bf16.mxu0 0
    %4886 = vmatpush1.bf16.msra.mxu0 %v3164
    %4887 = vmatprep.subr.bf16.mxu0 0
    %4888 = vmatpush1.bf16.msra.mxu0 %v3167
    %4889 = vmatprep.subr.bf16.mxu0 0
    %4890 = vmatpush1.bf16.msra.mxu0 %v3170
    %4891 = vmatprep.subr.bf16.mxu0 0
    %4892 = vmatpush1.bf16.msra.mxu0 %v3173
    %4893 = vmatprep.subr.bf16.mxu0 0
    %4894 = vmatpush1.bf16.msra.mxu0 %v3176
    %4895 = vmatprep.subr.bf16.mxu0 0
    %4896 = vmatpush1.bf16.msra.mxu0 %v3179
    %4897 = vmatprep.subr.bf16.mxu0 0
    %4898 = vmatpush1.bf16.msra.mxu0 %v3182
    %4899 = vmatprep.subr.bf16.mxu0 0
    %4900 = vmatpush1.bf16.msra.mxu0 %v3185
    %4901 = vmatprep.subr.bf16.mxu0 0
    %4902 = vmatpush1.bf16.msra.mxu0 %v3188
    %4903 = vmatprep.subr.bf16.mxu0 0
    %4904 = vmatpush1.bf16.msra.mxu0 %v3191
    %4905 = vmatprep.subr.bf16.mxu0 0
    %4906 = vmatpush1.bf16.msra.mxu0 %v3194
    %4907 = vmatprep.subr.bf16.mxu0 0
    %4908 = vmatpush1.bf16.msra.mxu0 %v3197
    %4909 = vmatprep.subr.bf16.mxu0 0
    %4910 = vmatpush1.bf16.msra.mxu0 %v3200
    %4911 = vmatprep.subr.bf16.mxu0 0
    %4912 = vmatpush1.bf16.msra.mxu0 %v3203
    %4913 = vmatprep.mubr.bf16.mxu0 %v269
    %4914 = vmatmul.mubr.bf16.gmra.mrb[0].mxu0 %v268
    %v4915 = vpop.f32.mrb[0].mxu0
    %v4916 = vadd.f32 %v4876, %v4915
    %v4917 = vpop.f32.mrb[0].mxu0
    %v4918 = vpop.f32.mrb[0].mxu0
    %v4919 = vpop.f32.mrb[0].mxu0
    %4920 = vdwg.mxu0
    %4921 = vmatprep.subr.bf16.mxu0 0
    %4922 = vmatpush1.bf16.msra.mxu0 %v3206
    %4923 = vmatprep.subr.bf16.mxu0 0
    %4924 = vmatpush1.bf16.msra.mxu0 %v3209
    %4925 = vmatprep.subr.bf16.mxu0 0
    %4926 = vmatpush1.bf16.msra.mxu0 %v3212
    %4927 = vmatprep.subr.bf16.mxu0 0
    %4928 = vmatpush1.bf16.msra.mxu0 %v3215
    %4929 = vmatprep.subr.bf16.mxu0 0
    %4930 = vmatpush1.bf16.msra.mxu0 %v3218
    %4931 = vmatprep.subr.bf16.mxu0 0
    %4932 = vmatpush1.bf16.msra.mxu0 %v3221
    %4933 = vmatprep.subr.bf16.mxu0 0
    %4934 = vmatpush1.bf16.msra.mxu0 %v3224
    %4935 = vmatprep.subr.bf16.mxu0 0
    %4936 = vmatpush1.bf16.msra.mxu0 %v3227
    %4937 = vmatprep.subr.bf16.mxu0 0
    %4938 = vmatpush1.bf16.msra.mxu0 %v3230
    %4939 = vmatprep.subr.bf16.mxu0 0
    %4940 = vmatpush1.bf16.msra.mxu0 %v3233
    %4941 = vmatprep.subr.bf16.mxu0 0
    %4942 = vmatpush1.bf16.msra.mxu0 %v3236
    %4943 = vmatprep.subr.bf16.mxu0 0
    %4944 = vmatpush1.bf16.msra.mxu0 %v3239
    %4945 = vmatprep.subr.bf16.mxu0 0
    %4946 = vmatpush1.bf16.msra.mxu0 %v3242
    %4947 = vmatprep.subr.bf16.mxu0 0
    %4948 = vmatpush1.bf16.msra.mxu0 %v3245
    %4949 = vmatprep.subr.bf16.mxu0 0
    %4950 = vmatpush1.bf16.msra.mxu0 %v3248
    %4951 = vmatprep.subr.bf16.mxu0 0
    %4952 = vmatpush1.bf16.msra.mxu0 %v3251
    %4953 = vmatprep.mubr.bf16.mxu0 %v271
    %4954 = vmatmul.mubr.bf16.gmra.mrb[0].mxu0 %v270
    %v4955 = vpop.f32.mrb[0].mxu0
    %v4956 = vadd.f32 %v4916, %v4955
    %v4957 = vpop.f32.mrb[0].mxu0
    %v4958 = vpop.f32.mrb[0].mxu0
    %v4959 = vpop.f32.mrb[0].mxu0
    %4960 = vdwg.mxu0
    %4961 = vmatprep.subr.bf16.mxu0 0
    %4962 = vmatpush1.bf16.msra.mxu0 %v3254
    %4963 = vmatprep.subr.bf16.mxu0 0
    %4964 = vmatpush1.bf16.msra.mxu0 %v3257
    %4965 = vmatprep.subr.bf16.mxu0 0
    %4966 = vmatpush1.bf16.msra.mxu0 %v3260
    %4967 = vmatprep.subr.bf16.mxu0 0
    %4968 = vmatpush1.bf16.msra.mxu0 %v3263
    %4969 = vmatprep.subr.bf16.mxu0 0
    %4970 = vmatpush1.bf16.msra.mxu0 %v3266
    %4971 = vmatprep.subr.bf16.mxu0 0
    %4972 = vmatpush1.bf16.msra.mxu0 %v3269
    %4973 = vmatprep.subr.bf16.mxu0 0
    %4974 = vmatpush1.bf16.msra.mxu0 %v3272
    %4975 = vmatprep.subr.bf16.mxu0 0
    %4976 = vmatpush1.bf16.msra.mxu0 %v3275
    %4977 = vmatprep.subr.bf16.mxu0 0
    %4978 = vmatpush1.bf16.msra.mxu0 %v3278
    %4979 = vmatprep.subr.bf16.mxu0 0
    %4980 = vmatpush1.bf16.msra.mxu0 %v3281
    %4981 = vmatprep.subr.bf16.mxu0 0
    %4982 = vmatpush1.bf16.msra.mxu0 %v3284
    %4983 = vmatprep.subr.bf16.mxu0 0
    %4984 = vmatpush1.bf16.msra.mxu0 %v3287
    %4985 = vmatprep.subr.bf16.mxu0 0
    %4986 = vmatpush1.bf16.msra.mxu0 %v3290
    %4987 = vmatprep.subr.bf16.mxu0 0
    %4988 = vmatpush1.bf16.msra.mxu0 %v3293
    %4989 = vmatprep.subr.bf16.mxu0 0
    %4990 = vmatpush1.bf16.msra.mxu0 %v3296
    %4991 = vmatprep.subr.bf16.mxu0 0
    %4992 = vmatpush1.bf16.msra.mxu0 %v3299
    %4993 = vmatprep.mubr.bf16.mxu0 %v273
    %4994 = vmatmul.mubr.bf16.gmra.mrb[0].mxu0 %v272
    %v4995 = vpop.f32.mrb[0].mxu0
    %v4996 = vadd.f32 %v4956, %v4995
    %v4997 = vpop.f32.mrb[0].mxu0
    %v4998 = vpop.f32.mrb[0].mxu0
    %v4999 = vpop.f32.mrb[0].mxu0
    %5000 = vdwg.mxu0
    %5001 = vmatprep.subr.bf16.mxu0 0
    %5002 = vmatpush1.bf16.msra.mxu0 %v3302
    %5003 = vmatprep.subr.bf16.mxu0 0
    %5004 = vmatpush1.bf16.msra.mxu0 %v3305
    %5005 = vmatprep.subr.bf16.mxu0 0
    %5006 = vmatpush1.bf16.msra.mxu0 %v3308
    %5007 = vmatprep.subr.bf16.mxu0 0
    %5008 = vmatpush1.bf16.msra.mxu0 %v3311
    %5009 = vmatprep.subr.bf16.mxu0 0
    %5010 = vmatpush1.bf16.msra.mxu0 %v3314
    %5011 = vmatprep.subr.bf16.mxu0 0
    %5012 = vmatpush1.bf16.msra.mxu0 %v3317
    %5013 = vmatprep.subr.bf16.mxu0 0
    %5014 = vmatpush1.bf16.msra.mxu0 %v3320
    %5015 = vmatprep.subr.bf16.mxu0 0
    %5016 = vmatpush1.bf16.msra.mxu0 %v3323
    %5017 = vmatprep.subr.bf16.mxu0 0
    %5018 = vmatpush1.bf16.msra.mxu0 %v3326
    %5019 = vmatprep.subr.bf16.mxu0 0
    %5020 = vmatpush1.bf16.msra.mxu0 %v3329
    %5021 = vmatprep.subr.bf16.mxu0 0
    %5022 = vmatpush1.bf16.msra.mxu0 %v3332
    %5023 = vmatprep.subr.bf16.mxu0 0
    %5024 = vmatpush1.bf16.msra.mxu0 %v3335
    %5025 = vmatprep.subr.bf16.mxu0 0
    %5026 = vmatpush1.bf16.msra.mxu0 %v3338
    %5027 = vmatprep.subr.bf16.mxu0 0
    %5028 = vmatpush1.bf16.msra.mxu0 %v3341
    %5029 = vmatprep.subr.bf16.mxu0 0
    %5030 = vmatpush1.bf16.msra.mxu0 %v3344
    %5031 = vmatprep.subr.bf16.mxu0 0
    %5032 = vmatpush1.bf16.msra.mxu0 %v3347
    %5033 = vmatprep.mubr.bf16.mxu0 %v275
    %5034 = vmatmul.mubr.bf16.gmra.mrb[0].mxu0 %v274
    %v5035 = vpop.f32.mrb[0].mxu0
    %v5036 = vadd.f32 %v4996, %v5035
    %v5037 = vpop.f32.mrb[0].mxu0
    %v5038 = vpop.f32.mrb[0].mxu0
    %v5039 = vpop.f32.mrb[0].mxu0
    %5040 = vdwg.mxu0
    %5041 = vmatprep.subr.bf16.mxu0 0
    %5042 = vmatpush1.bf16.msra.mxu0 %v3350
    %5043 = vmatprep.subr.bf16.mxu0 0
    %5044 = vmatpush1.bf16.msra.mxu0 %v3353
    %5045 = vmatprep.subr.bf16.mxu0 0
    %5046 = vmatpush1.bf16.msra.mxu0 %v3356
    %5047 = vmatprep.subr.bf16.mxu0 0
    %5048 = vmatpush1.bf16.msra.mxu0 %v3359
    %5049 = vmatprep.subr.bf16.mxu0 0
    %5050 = vmatpush1.bf16.msra.mxu0 %v3362
    %5051 = vmatprep.subr.bf16.mxu0 0
    %5052 = vmatpush1.bf16.msra.mxu0 %v3365
    %5053 = vmatprep.subr.bf16.mxu0 0
    %5054 = vmatpush1.bf16.msra.mxu0 %v3368
    %5055 = vmatprep.subr.bf16.mxu0 0
    %5056 = vmatpush1.bf16.msra.mxu0 %v3371
    %5057 = vmatprep.subr.bf16.mxu0 0
    %5058 = vmatpush1.bf16.msra.mxu0 %v3374
    %5059 = vmatprep.subr.bf16.mxu0 0
    %5060 = vmatpush1.bf16.msra.mxu0 %v3377
    %5061 = vmatprep.subr.bf16.mxu0 0
    %5062 = vmatpush1.bf16.msra.mxu0 %v3380
    %5063 = vmatprep.subr.bf16.mxu0 0
    %5064 = vmatpush1.bf16.msra.mxu0 %v3383
    %5065 = vmatprep.subr.bf16.mxu0 0
    %5066 = vmatpush1.bf16.msra.mxu0 %v3386
    %5067 = vmatprep.subr.bf16.mxu0 0
    %5068 = vmatpush1.bf16.msra.mxu0 %v3389
    %5069 = vmatprep.subr.bf16.mxu0 0
    %5070 = vmatpush1.bf16.msra.mxu0 %v3392
    %5071 = vmatprep.subr.bf16.mxu0 0
    %5072 = vmatpush1.bf16.msra.mxu0 %v3395
    %5073 = vmatprep.mubr.bf16.mxu0 %v277
    %5074 = vmatmul.mubr.bf16.gmra.mrb[0].mxu0 %v276
    %v5075 = vpop.f32.mrb[0].mxu0
    %v5076 = vadd.f32 %v5036, %v5075
    %v5077 = vpop.f32.mrb[0].mxu0
    %v5078 = vpop.f32.mrb[0].mxu0
    %v5079 = vpop.f32.mrb[0].mxu0
    %5080 = vdwg.mxu0
    %5081 = vmatprep.subr.bf16.mxu0 0
    %5082 = vmatpush1.bf16.msra.mxu0 %v3398
    %5083 = vmatprep.subr.bf16.mxu0 0
    %5084 = vmatpush1.bf16.msra.mxu0 %v3401
    %5085 = vmatprep.subr.bf16.mxu0 0
    %5086 = vmatpush1.bf16.msra.mxu0 %v3404
    %5087 = vmatprep.subr.bf16.mxu0 0
    %5088 = vmatpush1.bf16.msra.mxu0 %v3407
    %5089 = vmatprep.subr.bf16.mxu0 0
    %5090 = vmatpush1.bf16.msra.mxu0 %v3410
    %5091 = vmatprep.subr.bf16.mxu0 0
    %5092 = vmatpush1.bf16.msra.mxu0 %v3413
    %5093 = vmatprep.subr.bf16.mxu0 0
    %5094 = vmatpush1.bf16.msra.mxu0 %v3416
    %5095 = vmatprep.subr.bf16.mxu0 0
    %5096 = vmatpush1.bf16.msra.mxu0 %v3419
    %5097 = vmatprep.subr.bf16.mxu0 0
    %5098 = vmatpush1.bf16.msra.mxu0 %v3422
    %5099 = vmatprep.subr.bf16.mxu0 0
    %5100 = vmatpush1.bf16.msra.mxu0 %v3425
    %5101 = vmatprep.subr.bf16.mxu0 0
    %5102 = vmatpush1.bf16.msra.mxu0 %v3428
    %5103 = vmatprep.subr.bf16.mxu0 0
    %5104 = vmatpush1.bf16.msra.mxu0 %v3431
    %5105 = vmatprep.subr.bf16.mxu0 0
    %5106 = vmatpush1.bf16.msra.mxu0 %v3434
    %5107 = vmatprep.subr.bf16.mxu0 0
    %5108 = vmatpush1.bf16.msra.mxu0 %v3437
    %5109 = vmatprep.subr.bf16.mxu0 0
    %5110 = vmatpush1.bf16.msra.mxu0 %v3440
    %5111 = vmatprep.subr.bf16.mxu0 0
    %5112 = vmatpush1.bf16.msra.mxu0 %v3443
    %5113 = vmatprep.mubr.bf16.mxu0 %v279
    %5114 = vmatmul.mubr.bf16.gmra.mrb[0].mxu0 %v278
    %v5115 = vpop.f32.mrb[0].mxu0
    %v5116 = vadd.f32 %v5076, %v5115
    %v5117 = vpop.f32.mrb[0].mxu0
    %v5118 = vpop.f32.mrb[0].mxu0
    %v5119 = vpop.f32.mrb[0].mxu0
    %5120 = vdwg.mxu0
    %5121 = vmatprep.subr.bf16.mxu0 0
    %5122 = vmatpush1.bf16.msra.mxu0 %v3446
    %5123 = vmatprep.subr.bf16.mxu0 0
    %5124 = vmatpush1.bf16.msra.mxu0 %v3449
    %5125 = vmatprep.subr.bf16.mxu0 0
    %5126 = vmatpush1.bf16.msra.mxu0 %v3452
    %5127 = vmatprep.subr.bf16.mxu0 0
    %5128 = vmatpush1.bf16.msra.mxu0 %v3455
    %5129 = vmatprep.subr.bf16.mxu0 0
    %5130 = vmatpush1.bf16.msra.mxu0 %v3458
    %5131 = vmatprep.subr.bf16.mxu0 0
    %5132 = vmatpush1.bf16.msra.mxu0 %v3461
    %5133 = vmatprep.subr.bf16.mxu0 0
    %5134 = vmatpush1.bf16.msra.mxu0 %v3464
    %5135 = vmatprep.subr.bf16.mxu0 0
    %5136 = vmatpush1.bf16.msra.mxu0 %v3467
    %5137 = vmatprep.subr.bf16.mxu0 0
    %5138 = vmatpush1.bf16.msra.mxu0 %v3470
    %5139 = vmatprep.subr.bf16.mxu0 0
    %5140 = vmatpush1.bf16.msra.mxu0 %v3473
    %5141 = vmatprep.subr.bf16.mxu0 0
    %5142 = vmatpush1.bf16.msra.mxu0 %v3476
    %5143 = vmatprep.subr.bf16.mxu0 0
    %5144 = vmatpush1.bf16.msra.mxu0 %v3479
    %5145 = vmatprep.subr.bf16.mxu0 0
    %5146 = vmatpush1.bf16.msra.mxu0 %v3482
    %5147 = vmatprep.subr.bf16.mxu0 0
    %5148 = vmatpush1.bf16.msra.mxu0 %v3485
    %5149 = vmatprep.subr.bf16.mxu0 0
    %5150 = vmatpush1.bf16.msra.mxu0 %v3488
    %5151 = vmatprep.subr.bf16.mxu0 0
    %5152 = vmatpush1.bf16.msra.mxu0 %v3491
    %5153 = vmatprep.mubr.bf16.mxu0 %v281
    %5154 = vmatmul.mubr.bf16.gmra.mrb[0].mxu0 %v280
    %v5155 = vpop.f32.mrb[0].mxu0
    %v5156 = vadd.f32 %v5116, %v5155
    %v5157 = vpop.f32.mrb[0].mxu0
    %v5158 = vpop.f32.mrb[0].mxu0
    %v5159 = vpop.f32.mrb[0].mxu0
    %5160 = vdwg.mxu0
    %5161 = vmatprep.subr.bf16.mxu0 0
    %5162 = vmatpush1.bf16.msra.mxu0 %v3494
    %5163 = vmatprep.subr.bf16.mxu0 0
    %5164 = vmatpush1.bf16.msra.mxu0 %v3497
    %5165 = vmatprep.subr.bf16.mxu0 0
    %5166 = vmatpush1.bf16.msra.mxu0 %v3500
    %5167 = vmatprep.subr.bf16.mxu0 0
    %5168 = vmatpush1.bf16.msra.mxu0 %v3503
    %5169 = vmatprep.subr.bf16.mxu0 0
    %5170 = vmatpush1.bf16.msra.mxu0 %v3506
    %5171 = vmatprep.subr.bf16.mxu0 0
    %5172 = vmatpush1.bf16.msra.mxu0 %v3509
    %5173 = vmatprep.subr.bf16.mxu0 0
    %5174 = vmatpush1.bf16.msra.mxu0 %v3512
    %5175 = vmatprep.subr.bf16.mxu0 0
    %5176 = vmatpush1.bf16.msra.mxu0 %v3515
    %5177 = vmatprep.subr.bf16.mxu0 0
    %5178 = vmatpush1.bf16.msra.mxu0 %v3518
    %5179 = vmatprep.subr.bf16.mxu0 0
    %5180 = vmatpush1.bf16.msra.mxu0 %v3521
    %5181 = vmatprep.subr.bf16.mxu0 0
    %5182 = vmatpush1.bf16.msra.mxu0 %v3524
    %5183 = vmatprep.subr.bf16.mxu0 0
    %5184 = vmatpush1.bf16.msra.mxu0 %v3527
    %5185 = vmatprep.subr.bf16.mxu0 0
    %5186 = vmatpush1.bf16.msra.mxu0 %v3530
    %5187 = vmatprep.subr.bf16.mxu0 0
    %5188 = vmatpush1.bf16.msra.mxu0 %v3533
    %5189 = vmatprep.subr.bf16.mxu0 0
    %5190 = vmatpush1.bf16.msra.mxu0 %v3536
    %5191 = vmatprep.subr.bf16.mxu0 0
    %5192 = vmatpush1.bf16.msra.mxu0 %v3539
    %5193 = vmatprep.mubr.bf16.mxu0 %v283
    %5194 = vmatmul.mubr.bf16.gmra.mrb[0].mxu0 %v282
    %v5195 = vpop.f32.mrb[0].mxu0
    %v5196 = vadd.f32 %v5156, %v5195
    %v5197 = vpop.f32.mrb[0].mxu0
    %v5198 = vpop.f32.mrb[0].mxu0
    %v5199 = vpop.f32.mrb[0].mxu0
    %5200 = vdwg.mxu0
    %5201 = vmatprep.subr.bf16.mxu0 0
    %5202 = vmatpush1.bf16.msra.mxu0 %v3542
    %5203 = vmatprep.subr.bf16.mxu0 0
    %5204 = vmatpush1.bf16.msra.mxu0 %v3545
    %5205 = vmatprep.subr.bf16.mxu0 0
    %5206 = vmatpush1.bf16.msra.mxu0 %v3548
    %5207 = vmatprep.subr.bf16.mxu0 0
    %5208 = vmatpush1.bf16.msra.mxu0 %v3551
    %5209 = vmatprep.subr.bf16.mxu0 0
    %5210 = vmatpush1.bf16.msra.mxu0 %v3554
    %5211 = vmatprep.subr.bf16.mxu0 0
    %5212 = vmatpush1.bf16.msra.mxu0 %v3557
    %5213 = vmatprep.subr.bf16.mxu0 0
    %5214 = vmatpush1.bf16.msra.mxu0 %v3560
    %5215 = vmatprep.subr.bf16.mxu0 0
    %5216 = vmatpush1.bf16.msra.mxu0 %v3563
    %5217 = vmatprep.subr.bf16.mxu0 0
    %5218 = vmatpush1.bf16.msra.mxu0 %v3566
    %5219 = vmatprep.subr.bf16.mxu0 0
    %5220 = vmatpush1.bf16.msra.mxu0 %v3569
    %5221 = vmatprep.subr.bf16.mxu0 0
    %5222 = vmatpush1.bf16.msra.mxu0 %v3572
    %5223 = vmatprep.subr.bf16.mxu0 0
    %5224 = vmatpush1.bf16.msra.mxu0 %v3575
    %5225 = vmatprep.subr.bf16.mxu0 0
    %5226 = vmatpush1.bf16.msra.mxu0 %v3578
    %5227 = vmatprep.subr.bf16.mxu0 0
    %5228 = vmatpush1.bf16.msra.mxu0 %v3581
    %5229 = vmatprep.subr.bf16.mxu0 0
    %5230 = vmatpush1.bf16.msra.mxu0 %v3584
    %5231 = vmatprep.subr.bf16.mxu0 0
    %5232 = vmatpush1.bf16.msra.mxu0 %v3587
    %5233 = vmatprep.mubr.bf16.mxu0 %v285
    %5234 = vmatmul.mubr.bf16.gmra.mrb[0].mxu0 %v284
    %v5235 = vpop.f32.mrb[0].mxu0
    %v5236 = vadd.f32 %v5196, %v5235
    %v5237 = vpop.f32.mrb[0].mxu0
    %v5238 = vpop.f32.mrb[0].mxu0
    %v5239 = vpop.f32.mrb[0].mxu0
    %5240 = vdwg.mxu0
    %5241 = vmatprep.subr.bf16.mxu0 0
    %5242 = vmatpush1.bf16.msra.mxu0 %v3590
    %5243 = vmatprep.subr.bf16.mxu0 0
    %5244 = vmatpush1.bf16.msra.mxu0 %v3593
    %5245 = vmatprep.subr.bf16.mxu0 0
    %5246 = vmatpush1.bf16.msra.mxu0 %v3596
    %5247 = vmatprep.subr.bf16.mxu0 0
    %5248 = vmatpush1.bf16.msra.mxu0 %v3599
    %5249 = vmatprep.subr.bf16.mxu0 0
    %5250 = vmatpush1.bf16.msra.mxu0 %v3602
    %5251 = vmatprep.subr.bf16.mxu0 0
    %5252 = vmatpush1.bf16.msra.mxu0 %v3605
    %5253 = vmatprep.subr.bf16.mxu0 0
    %5254 = vmatpush1.bf16.msra.mxu0 %v3608
    %5255 = vmatprep.subr.bf16.mxu0 0
    %5256 = vmatpush1.bf16.msra.mxu0 %v3611
    %5257 = vmatprep.subr.bf16.mxu0 0
    %5258 = vmatpush1.bf16.msra.mxu0 %v3614
    %5259 = vmatprep.subr.bf16.mxu0 0
    %5260 = vmatpush1.bf16.msra.mxu0 %v3617
    %5261 = vmatprep.subr.bf16.mxu0 0
    %5262 = vmatpush1.bf16.msra.mxu0 %v3620
    %5263 = vmatprep.subr.bf16.mxu0 0
    %5264 = vmatpush1.bf16.msra.mxu0 %v3623
    %5265 = vmatprep.subr.bf16.mxu0 0
    %5266 = vmatpush1.bf16.msra.mxu0 %v3626
    %5267 = vmatprep.subr.bf16.mxu0 0
    %5268 = vmatpush1.bf16.msra.mxu0 %v3629
    %5269 = vmatprep.subr.bf16.mxu0 0
    %5270 = vmatpush1.bf16.msra.mxu0 %v3632
    %5271 = vmatprep.subr.bf16.mxu0 0
    %5272 = vmatpush1.bf16.msra.mxu0 %v3635
    %5273 = vmatprep.mubr.bf16.mxu0 %v287
    %5274 = vmatmul.mubr.bf16.gmra.mrb[0].mxu0 %v286
    %v5275 = vpop.f32.mrb[0].mxu0
    %v5276 = vadd.f32 %v5236, %v5275
    %v5277 = vpop.f32.mrb[0].mxu0
    %v5278 = vpop.f32.mrb[0].mxu0
    %v5279 = vpop.f32.mrb[0].mxu0
    %5280 = vdwg.mxu0
    %5281 = vmatprep.subr.bf16.mxu0 0
    %5282 = vmatpush1.bf16.msra.mxu0 %v3638
    %5283 = vmatprep.subr.bf16.mxu0 0
    %5284 = vmatpush1.bf16.msra.mxu0 %v3641
    %5285 = vmatprep.subr.bf16.mxu0 0
    %5286 = vmatpush1.bf16.msra.mxu0 %v3644
    %5287 = vmatprep.subr.bf16.mxu0 0
    %5288 = vmatpush1.bf16.msra.mxu0 %v3647
    %5289 = vmatprep.subr.bf16.mxu0 0
    %5290 = vmatpush1.bf16.msra.mxu0 %v3650
    %5291 = vmatprep.subr.bf16.mxu0 0
    %5292 = vmatpush1.bf16.msra.mxu0 %v3653
    %5293 = vmatprep.subr.bf16.mxu0 0
    %5294 = vmatpush1.bf16.msra.mxu0 %v3656
    %5295 = vmatprep.subr.bf16.mxu0 0
    %5296 = vmatpush1.bf16.msra.mxu0 %v3659
    %5297 = vmatprep.subr.bf16.mxu0 0
    %5298 = vmatpush1.bf16.msra.mxu0 %v3662
    %5299 = vmatprep.subr.bf16.mxu0 0
    %5300 = vmatpush1.bf16.msra.mxu0 %v3665
    %5301 = vmatprep.subr.bf16.mxu0 0
    %5302 = vmatpush1.bf16.msra.mxu0 %v3668
    %5303 = vmatprep.subr.bf16.mxu0 0
    %5304 = vmatpush1.bf16.msra.mxu0 %v3671
    %5305 = vmatprep.subr.bf16.mxu0 0
    %5306 = vmatpush1.bf16.msra.mxu0 %v3674
    %5307 = vmatprep.subr.bf16.mxu0 0
    %5308 = vmatpush1.bf16.msra.mxu0 %v3677
    %5309 = vmatprep.subr.bf16.mxu0 0
    %5310 = vmatpush1.bf16.msra.mxu0 %v3680
    %5311 = vmatprep.subr.bf16.mxu0 0
    %5312 = vmatpush1.bf16.msra.mxu0 %v3683
    %5313 = vmatprep.mubr.bf16.mxu0 %v289
    %5314 = vmatmul.mubr.bf16.gmra.mrb[0].mxu0 %v288
    %v5315 = vpop.f32.mrb[0].mxu0
    %v5316 = vadd.f32 %v5276, %v5315
    %v5317 = vpop.f32.mrb[0].mxu0
    %v5318 = vpop.f32.mrb[0].mxu0
    %v5319 = vpop.f32.mrb[0].mxu0
    %5320 = vdwg.mxu0
    %5321 = vmatprep.subr.bf16.mxu0 0
    %5322 = vmatpush1.bf16.msra.mxu0 %v3686
    %5323 = vmatprep.subr.bf16.mxu0 0
    %5324 = vmatpush1.bf16.msra.mxu0 %v3689
    %5325 = vmatprep.subr.bf16.mxu0 0
    %5326 = vmatpush1.bf16.msra.mxu0 %v3692
    %5327 = vmatprep.subr.bf16.mxu0 0
    %5328 = vmatpush1.bf16.msra.mxu0 %v3695
    %5329 = vmatprep.subr.bf16.mxu0 0
    %5330 = vmatpush1.bf16.msra.mxu0 %v3698
    %5331 = vmatprep.subr.bf16.mxu0 0
    %5332 = vmatpush1.bf16.msra.mxu0 %v3701
    %5333 = vmatprep.subr.bf16.mxu0 0
    %5334 = vmatpush1.bf16.msra.mxu0 %v3704
    %5335 = vmatprep.subr.bf16.mxu0 0
    %5336 = vmatpush1.bf16.msra.mxu0 %v3707
    %5337 = vmatprep.subr.bf16.mxu0 0
    %5338 = vmatpush1.bf16.msra.mxu0 0
    %5339 = vmatprep.subr.bf16.mxu0 0
    %5340 = vmatpush1.bf16.msra.mxu0 0
    %5341 = vmatprep.subr.bf16.mxu0 0
    %5342 = vmatpush1.bf16.msra.mxu0 0
    %5343 = vmatprep.subr.bf16.mxu0 0
    %5344 = vmatpush1.bf16.msra.mxu0 0
    %5345 = vmatprep.subr.bf16.mxu0 0
    %5346 = vmatpush1.bf16.msra.mxu0 0
    %5347 = vmatprep.subr.bf16.mxu0 0
    %5348 = vmatpush1.bf16.msra.mxu0 0
    %5349 = vmatprep.subr.bf16.mxu0 0
    %5350 = vmatpush1.bf16.msra.mxu0 0
    %5351 = vmatprep.subr.bf16.mxu0 0
    %5352 = vmatpush1.bf16.msra.mxu0 0
    %5353 = vmatprep.mubr.bf16.mxu0 0
    %5354 = vmatmul.mubr.bf16.gmra.mrb[0].mxu0 %v290
    %v5355 = vpop.f32.mrb[0].mxu0
    %v5356 = vadd.f32 %v5316, %v5355
    %v5357 = vpop.f32.mrb[0].mxu0
    %v5358 = vpop.f32.mrb[0].mxu0
    %v5359 = vpop.f32.mrb[0].mxu0
    %5360 = vdwg.mxu0
    %v5361 = vmax.f32 %v4835, 0.0
    %v5362 = vmax.f32 %v4837, 0.0
    %v5363 = vmax.f32 %v5356, 0.0
    %v5364 = vpack.c.bf16 %v5361, %v5361
    %v5365 = vpack.c.bf16 %v5362, %v5362
    %v5366 = vpack.c.bf16 %v5363, %v5363
    %v5367 = vld [vmem:[#allocation8] sm:$0xff]
    %v5368 = vld [vmem:[#allocation8 + $0x8] sm:$0xff]
    %v5369 = vld [vmem:[#allocation8 + $0x10] sm:$0xff]
    %v5370 = vld [vmem:[#allocation8 + $0x18] sm:$0xff]
    %v5371 = vld [vmem:[#allocation8 + $0x20] sm:$0xff]
    %v5372 = vld [vmem:[#allocation8 + $0x28] sm:$0xff]
    %v5373 = vld [vmem:[#allocation8 + $0x30] sm:$0xff]
    %v5374 = vld [vmem:[#allocation8 + $0x38] sm:$0xff]
    %v5375 = vld [vmem:[#allocation8 + $0x40] sm:$0xff]
    %v5376 = vld [vmem:[#allocation8 + $0x48] sm:$0xff]
    %v5377 = vld [vmem:[#allocation8 + $0x50] sm:$0xff]
    %v5378 = vld [vmem:[#allocation8 + $0x58] sm:$0xff]
    %v5379 = vld [vmem:[#allocation8 + $0x60] sm:$0xff]
    %v5380 = vld [vmem:[#allocation8 + $0x68] sm:$0xff]
    %v5381 = vld [vmem:[#allocation8 + $0x70] sm:$0xff]
    %v5382 = vld [vmem:[#allocation8 + $0x78] sm:$0xff]
    %v5383 = vld [vmem:[#allocation8 + $0x80] sm:$0xff]
    %v5384 = vld [vmem:[#allocation8 + $0x88] sm:$0xff]
    %v5385 = vld [vmem:[#allocation8 + $0x90] sm:$0xff]
    %v5386 = vld [vmem:[#allocation8 + $0x98] sm:$0xff]
    %v5387 = vld [vmem:[#allocation8 + $0xa0] sm:$0xff]
    %v5388 = vld [vmem:[#allocation8 + $0xa8] sm:$0xff]
    %v5389 = vld [vmem:[#allocation8 + $0xb0] sm:$0xff]
    %v5390 = vld [vmem:[#allocation8 + $0xb8] sm:$0xff]
    %v5391 = vld [vmem:[#allocation8 + $0xc0] sm:$0xff]
    %v5392 = vld [vmem:[#allocation8 + $0xc8] sm:$0xff]
    %v5393 = vld [vmem:[#allocation8 + $0xd0] sm:$0xff]
    %v5394 = vld [vmem:[#allocation8 + $0xd8] sm:$0xff]
    %v5395 = vld [vmem:[#allocation8 + $0xe0] sm:$0xff]
    %v5396 = vld [vmem:[#allocation8 + $0xe8] sm:$0xff]
    %v5397 = vld [vmem:[#allocation8 + $0xf0] sm:$0xff]
    %v5398 = vld [vmem:[#allocation8 + $0xf8] sm:$0xff]
    %v5399 = vld [vmem:[#allocation8 + $0x100] sm:$0xff]
    %v5400 = vld [vmem:[#allocation8 + $0x108] sm:$0xff]
    %v5401 = vld [vmem:[#allocation8 + $0x110] sm:$0xff]
    %v5402 = vld [vmem:[#allocation8 + $0x118] sm:$0xff]
    %v5403 = vld [vmem:[#allocation8 + $0x120] sm:$0xff]
    %v5404 = vld [vmem:[#allocation8 + $0x128] sm:$0xff]
    %v5405 = vld [vmem:[#allocation8 + $0x130] sm:$0xff]
    %v5406 = vld [vmem:[#allocation8 + $0x138] sm:$0xff]
    %v5407 = vld [vmem:[#allocation8 + $0x140] sm:$0xff]
    %v5408 = vld [vmem:[#allocation8 + $0x148] sm:$0xff]
    %v5409 = vld [vmem:[#allocation8 + $0x150] sm:$0xff]
    %v5410 = vld [vmem:[#allocation8 + $0x158] sm:$0xff]
    %v5411 = vld [vmem:[#allocation8 + $0x160] sm:$0xff]
    %v5412 = vld [vmem:[#allocation8 + $0x168] sm:$0xff]
    %v5413 = vld [vmem:[#allocation8 + $0x170] sm:$0xff]
    %v5414 = vld [vmem:[#allocation8 + $0x178] sm:$0xff]
    %v5415 = vld [vmem:[#allocation9] sm:$0x3]
    %v5417 = vlaneseq
    %v5418 = vshrl.u32 %v5417, 7
    %v5419 = vsub.s32 0, %v5418
    %v5420 = vrot.slane %v5415, %v5419
    %v5421 = vlaneseq
    %v5422 = vshrl.u32 %v5421, 7
    %v5423 = vsub.s32 1, %v5422
    %v5424 = vrot.slane %v5415, %v5423
    %v5475 = vunpack.c.l.b16 %v5367
    %v5476 = vunpack.c.h.b16 %v5367
    %v5477 = vunpack.c.l.b16 %v5368
    %v5478 = vunpack.c.h.b16 %v5368
    %v5479 = vunpack.c.l.b16 %v5369
    %v5480 = vunpack.c.h.b16 %v5369
    %v5481 = vunpack.c.l.b16 %v5370
    %v5482 = vunpack.c.h.b16 %v5370
    %v5483 = vunpack.c.l.b16 %v5371
    %v5484 = vunpack.c.h.b16 %v5371
    %v5485 = vunpack.c.l.b16 %v5372
    %v5486 = vunpack.c.h.b16 %v5372
    %v5487 = vunpack.c.l.b16 %v5373
    %v5488 = vunpack.c.h.b16 %v5373
    %v5489 = vunpack.c.l.b16 %v5374
    %v5490 = vunpack.c.h.b16 %v5374
    %v5491 = vunpack.c.l.b16 %v5375
    %v5492 = vunpack.c.h.b16 %v5375
    %v5493 = vunpack.c.l.b16 %v5376
    %v5494 = vunpack.c.h.b16 %v5376
    %v5495 = vunpack.c.l.b16 %v5377
    %v5496 = vunpack.c.h.b16 %v5377
    %v5497 = vunpack.c.l.b16 %v5378
    %v5498 = vunpack.c.h.b16 %v5378
    %v5499 = vunpack.c.l.b16 %v5379
    %v5500 = vunpack.c.h.b16 %v5379
    %v5501 = vunpack.c.l.b16 %v5380
    %v5502 = vunpack.c.h.b16 %v5380
    %v5503 = vunpack.c.l.b16 %v5381
    %v5504 = vunpack.c.h.b16 %v5381
    %v5505 = vunpack.c.l.b16 %v5382
    %v5506 = vunpack.c.h.b16 %v5382
    %v5507 = vunpack.c.l.b16 %v5383
    %v5508 = vunpack.c.h.b16 %v5383
    %v5509 = vunpack.c.l.b16 %v5384
    %v5510 = vunpack.c.h.b16 %v5384
    %v5511 = vunpack.c.l.b16 %v5385
    %v5512 = vunpack.c.h.b16 %v5385
    %v5513 = vunpack.c.l.b16 %v5386
    %v5514 = vunpack.c.h.b16 %v5386
    %v5515 = vunpack.c.l.b16 %v5387
    %v5516 = vunpack.c.h.b16 %v5387
    %v5517 = vunpack.c.l.b16 %v5388
    %v5518 = vunpack.c.h.b16 %v5388
    %v5519 = vunpack.c.l.b16 %v5389
    %v5520 = vunpack.c.h.b16 %v5389
    %v5521 = vunpack.c.l.b16 %v5390
    %v5522 = vunpack.c.h.b16 %v5390
    %v5523 = vunpack.c.l.b16 %v5391
    %v5524 = vunpack.c.h.b16 %v5391
    %v5525 = vunpack.c.l.b16 %v5392
    %v5526 = vunpack.c.h.b16 %v5392
    %v5527 = vunpack.c.l.b16 %v5393
    %v5528 = vunpack.c.h.b16 %v5393
    %v5529 = vunpack.c.l.b16 %v5394
    %v5530 = vunpack.c.h.b16 %v5394
    %v5531 = vunpack.c.l.b16 %v5395
    %v5532 = vunpack.c.h.b16 %v5395
    %v5533 = vunpack.c.l.b16 %v5396
    %v5534 = vunpack.c.h.b16 %v5396
    %v5535 = vunpack.c.l.b16 %v5397
    %v5536 = vunpack.c.h.b16 %v5397
    %v5537 = vunpack.c.l.b16 %v5398
    %v5538 = vunpack.c.h.b16 %v5398
    %v5539 = vunpack.c.l.b16 %v5399
    %v5540 = vunpack.c.h.b16 %v5399
    %v5541 = vunpack.c.l.b16 %v5400
    %v5542 = vunpack.c.h.b16 %v5400
    %v5543 = vunpack.c.l.b16 %v5401
    %v5544 = vunpack.c.h.b16 %v5401
    %v5545 = vunpack.c.l.b16 %v5402
    %v5546 = vunpack.c.h.b16 %v5402
    %v5547 = vunpack.c.l.b16 %v5403
    %v5548 = vunpack.c.h.b16 %v5403
    %v5549 = vunpack.c.l.b16 %v5404
    %v5550 = vunpack.c.h.b16 %v5404
    %v5551 = vunpack.c.l.b16 %v5405
    %v5552 = vunpack.c.h.b16 %v5405
    %v5553 = vunpack.c.l.b16 %v5406
    %v5554 = vunpack.c.h.b16 %v5406
    %v5555 = vunpack.c.l.b16 %v5407
    %v5556 = vunpack.c.h.b16 %v5407
    %v5557 = vunpack.c.l.b16 %v5408
    %v5558 = vunpack.c.h.b16 %v5408
    %v5559 = vunpack.c.l.b16 %v5409
    %v5560 = vunpack.c.h.b16 %v5409
    %v5561 = vunpack.c.l.b16 %v5410
    %v5562 = vunpack.c.h.b16 %v5410
    %v5563 = vunpack.c.l.b16 %v5411
    %v5564 = vunpack.c.h.b16 %v5411
    %v5565 = vunpack.c.l.b16 %v5412
    %v5566 = vunpack.c.h.b16 %v5412
    %v5567 = vunpack.c.l.b16 %v5413
    %v5568 = vunpack.c.h.b16 %v5413
    %v5569 = vunpack.c.l.b16 %v5414
    %v5570 = vunpack.c.h.b16 %v5414
    %v5571 = vpack.c.b16 %v5477, %v5475
    %v5572 = vpack.c.b16 %v5478, %v5476
    %v5573 = vpack.c.b16 %v5481, %v5479
    %v5574 = vpack.c.b16 %v5482, %v5480
    %v5575 = vpack.c.b16 %v5485, %v5483
    %v5576 = vpack.c.b16 %v5486, %v5484
    %v5577 = vpack.c.b16 %v5489, %v5487
    %v5578 = vpack.c.b16 %v5490, %v5488
    %v5579 = vpack.c.b16 %v5493, %v5491
    %v5580 = vpack.c.b16 %v5494, %v5492
    %v5581 = vpack.c.b16 %v5497, %v5495
    %v5582 = vpack.c.b16 %v5498, %v5496
    %v5583 = vpack.c.b16 %v5501, %v5499
    %v5584 = vpack.c.b16 %v5502, %v5500
    %v5585 = vpack.c.b16 %v5505, %v5503
    %v5586 = vpack.c.b16 %v5506, %v5504
    %v5587 = vpack.c.b16 %v5509, %v5507
    %v5588 = vpack.c.b16 %v5510, %v5508
    %v5589 = vpack.c.b16 %v5513, %v5511
    %v5590 = vpack.c.b16 %v5514, %v5512
    %v5591 = vpack.c.b16 %v5517, %v5515
    %v5592 = vpack.c.b16 %v5518, %v5516
    %v5593 = vpack.c.b16 %v5521, %v5519
    %v5594 = vpack.c.b16 %v5522, %v5520
    %v5595 = vpack.c.b16 %v5525, %v5523
    %v5596 = vpack.c.b16 %v5526, %v5524
    %v5597 = vpack.c.b16 %v5529, %v5527
    %v5598 = vpack.c.b16 %v5530, %v5528
    %v5599 = vpack.c.b16 %v5533, %v5531
    %v5600 = vpack.c.b16 %v5534, %v5532
    %v5601 = vpack.c.b16 %v5537, %v5535
    %v5602 = vpack.c.b16 %v5538, %v5536
    %v5603 = vpack.c.b16 %v5541, %v5539
    %v5604 = vpack.c.b16 %v5542, %v5540
    %v5605 = vpack.c.b16 %v5545, %v5543
    %v5606 = vpack.c.b16 %v5546, %v5544
    %v5607 = vpack.c.b16 %v5549, %v5547
    %v5608 = vpack.c.b16 %v5550, %v5548
    %v5609 = vpack.c.b16 %v5553, %v5551
    %v5610 = vpack.c.b16 %v5554, %v5552
    %v5611 = vpack.c.b16 %v5557, %v5555
    %v5612 = vpack.c.b16 %v5558, %v5556
    %v5613 = vpack.c.b16 %v5561, %v5559
    %v5614 = vpack.c.b16 %v5562, %v5560
    %v5615 = vpack.c.b16 %v5565, %v5563
    %v5616 = vpack.c.b16 %v5566, %v5564
    %v5617 = vpack.c.b16 %v5569, %v5567
    %v5618 = vpack.c.b16 %v5570, %v5568
    %5667 = vmatprep.subr.bf16.mxu0 %v5572
    %5668 = vmatpush1.bf16.msra.mxu0 %v5571
    %5669 = vmatprep.subr.bf16.mxu0 %v5574
    %5670 = vmatpush1.bf16.msra.mxu0 %v5573
    %5671 = vmatprep.subr.bf16.mxu0 %v5576
    %5672 = vmatpush1.bf16.msra.mxu0 %v5575
    %5673 = vmatprep.subr.bf16.mxu0 %v5578
    %5674 = vmatpush1.bf16.msra.mxu0 %v5577
    %5675 = vmatprep.subr.bf16.mxu0 %v5580
    %5676 = vmatpush1.bf16.msra.mxu0 %v5579
    %5677 = vmatprep.subr.bf16.mxu0 %v5582
    %5678 = vmatpush1.bf16.msra.mxu0 %v5581
    %5679 = vmatprep.subr.bf16.mxu0 %v5584
    %5680 = vmatpush1.bf16.msra.mxu0 %v5583
    %5681 = vmatprep.subr.bf16.mxu0 %v5586
    %5682 = vmatpush1.bf16.msra.mxu0 %v5585
    %5683 = vmatprep.subr.bf16.mxu0 %v5588
    %5684 = vmatpush1.bf16.msra.mxu0 %v5587
    %5685 = vmatprep.subr.bf16.mxu0 %v5590
    %5686 = vmatpush1.bf16.msra.mxu0 %v5589
    %5687 = vmatprep.subr.bf16.mxu0 %v5592
    %5688 = vmatpush1.bf16.msra.mxu0 %v5591
    %5689 = vmatprep.subr.bf16.mxu0 %v5594
    %5690 = vmatpush1.bf16.msra.mxu0 %v5593
    %5691 = vmatprep.subr.bf16.mxu0 %v5596
    %5692 = vmatpush1.bf16.msra.mxu0 %v5595
    %5693 = vmatprep.subr.bf16.mxu0 %v5598
    %5694 = vmatpush1.bf16.msra.mxu0 %v5597
    %5695 = vmatprep.subr.bf16.mxu0 %v5600
    %5696 = vmatpush1.bf16.msra.mxu0 %v5599
    %5697 = vmatprep.subr.bf16.mxu0 %v5602
    %5698 = vmatpush1.bf16.msra.mxu0 %v5601
    %5699 = vmatprep.mubr.bf16.mxu0 %v5365
    %5700 = vmatmul.mubr.bf16.gmra.mrb[0].mxu0 %v5364
    %v5701 = vpop.f32.mrb[0].mxu0
    %v5702 = vadd.f32 %v5420, %v5701
    %v5703 = vpop.f32.mrb[0].mxu0
    %v5704 = vadd.f32 %v5424, %v5703
    %v5705 = vpop.f32.mrb[0].mxu0
    %v5706 = vpop.f32.mrb[0].mxu0
    %5707 = vdwg.mxu0
    %5708 = vmatprep.subr.bf16.mxu0 %v5604
    %5709 = vmatpush1.bf16.msra.mxu0 %v5603
    %5710 = vmatprep.subr.bf16.mxu0 %v5606
    %5711 = vmatpush1.bf16.msra.mxu0 %v5605
    %5712 = vmatprep.subr.bf16.mxu0 %v5608
    %5713 = vmatpush1.bf16.msra.mxu0 %v5607
    %5714 = vmatprep.subr.bf16.mxu0 %v5610
    %5715 = vmatpush1.bf16.msra.mxu0 %v5609
    %5716 = vmatprep.subr.bf16.mxu0 %v5612
    %5717 = vmatpush1.bf16.msra.mxu0 %v5611
    %5718 = vmatprep.subr.bf16.mxu0 %v5614
    %5719 = vmatpush1.bf16.msra.mxu0 %v5613
    %5720 = vmatprep.subr.bf16.mxu0 %v5616
    %5721 = vmatpush1.bf16.msra.mxu0 %v5615
    %5722 = vmatprep.subr.bf16.mxu0 %v5618
    %5723 = vmatpush1.bf16.msra.mxu0 %v5617
    %5724 = vmatprep.subr.bf16.mxu0 0
    %5725 = vmatpush1.bf16.msra.mxu0 0
    %5726 = vmatprep.subr.bf16.mxu0 0
    %5727 = vmatpush1.bf16.msra.mxu0 0
    %5728 = vmatprep.subr.bf16.mxu0 0
    %5729 = vmatpush1.bf16.msra.mxu0 0
    %5730 = vmatprep.subr.bf16.mxu0 0
    %5731 = vmatpush1.bf16.msra.mxu0 0
    %5732 = vmatprep.subr.bf16.mxu0 0
    %5733 = vmatpush1.bf16.msra.mxu0 0
    %5734 = vmatprep.subr.bf16.mxu0 0
    %5735 = vmatpush1.bf16.msra.mxu0 0
    %5736 = vmatprep.subr.bf16.mxu0 0
    %5737 = vmatpush1.bf16.msra.mxu0 0
    %5738 = vmatprep.subr.bf16.mxu0 0
    %5739 = vmatpush1.bf16.msra.mxu0 0
    %5740 = vmatprep.mubr.bf16.mxu0 0
    %5741 = vmatmul.mubr.bf16.gmra.mrb[0].mxu0 %v5366
    %v5742 = vpop.f32.mrb[0].mxu0
    %v5743 = vadd.f32 %v5702, %v5742
    %v5744 = vpop.f32.mrb[0].mxu0
    %v5745 = vadd.f32 %v5704, %v5744
    %v5746 = vpop.f32.mrb[0].mxu0
    %v5747 = vpop.f32.mrb[0].mxu0
    %5748 = vdwg.mxu0
    %v5749 = vmax.f32 %v5743, 0.0
    %v5750 = vmax.f32 %v5745, 0.0
    %v5751 = vpack.c.bf16 %v5749, %v5749
    %v5752 = vpack.c.bf16 %v5750, %v5750
    %v5753 = vld [vmem:[#allocation11] sm:$0xf]
    %v5754 = vld [vmem:[#allocation11 + $0x4] sm:$0xf]
    %v5755 = vld [vmem:[#allocation11 + $0x8] sm:$0xf]
    %v5756 = vld [vmem:[#allocation11 + $0xc] sm:$0xf]
    %v5757 = vld [vmem:[#allocation11 + $0x10] sm:$0xf]
    %v5758 = vld [vmem:[#allocation11 + $0x14] sm:$0xf]
    %v5759 = vld [vmem:[#allocation11 + $0x18] sm:$0xf]
    %v5760 = vld [vmem:[#allocation11 + $0x1c] sm:$0xf]
    %v5761 = vld [vmem:[#allocation11 + $0x20] sm:$0xf]
    %v5762 = vld [vmem:[#allocation11 + $0x24] sm:$0xf]
    %v5763 = vld [vmem:[#allocation11 + $0x28] sm:$0xf]
    %v5764 = vld [vmem:[#allocation11 + $0x2c] sm:$0xf]
    %v5765 = vld [vmem:[#allocation11 + $0x30] sm:$0xf]
    %v5766 = vld [vmem:[#allocation11 + $0x34] sm:$0xf]
    %v5767 = vld [vmem:[#allocation11 + $0x38] sm:$0xf]
    %v5768 = vld [vmem:[#allocation11 + $0x3c] sm:$0xf]
    %v5769 = vld [vmem:[#allocation11 + $0x40] sm:$0xf]
    %v5770 = vld [vmem:[#allocation11 + $0x44] sm:$0xf]
    %v5771 = vld [vmem:[#allocation11 + $0x48] sm:$0xf]
    %v5772 = vld [vmem:[#allocation11 + $0x4c] sm:$0xf]
    %v5773 = vld [vmem:[#allocation11 + $0x50] sm:$0xf]
    %v5774 = vld [vmem:[#allocation11 + $0x54] sm:$0xf]
    %v5775 = vld [vmem:[#allocation11 + $0x58] sm:$0xf]
    %v5776 = vld [vmem:[#allocation11 + $0x5c] sm:$0xf]
    %v5777 = vld [vmem:[#allocation11 + $0x60] sm:$0xf]
    %v5778 = vld [vmem:[#allocation11 + $0x64] sm:$0xf]
    %v5779 = vld [vmem:[#allocation11 + $0x68] sm:$0xf]
    %v5780 = vld [vmem:[#allocation11 + $0x6c] sm:$0xf]
    %v5781 = vld [vmem:[#allocation11 + $0x70] sm:$0xf]
    %v5782 = vld [vmem:[#allocation11 + $0x74] sm:$0xf]
    %v5783 = vld [vmem:[#allocation11 + $0x78] sm:$0xf]
    %v5784 = vld [vmem:[#allocation11 + $0x7c] sm:$0xf]
    %v5785 = vld [vmem:[#allocation12] sm:$0x1]
    %v5787 = vlaneseq
    %v5788 = vshrl.u32 %v5787, 7
    %v5789 = vsub.s32 0, %v5788
    %v5790 = vrot.slane %v5785, %v5789
    %v5824 = vunpack.c.l.b16 %v5753
    %v5825 = vunpack.c.l.b16 %v5754
    %v5826 = vunpack.c.l.b16 %v5755
    %v5827 = vunpack.c.l.b16 %v5756
    %v5828 = vunpack.c.l.b16 %v5757
    %v5829 = vunpack.c.l.b16 %v5758
    %v5830 = vunpack.c.l.b16 %v5759
    %v5831 = vunpack.c.l.b16 %v5760
    %v5832 = vunpack.c.l.b16 %v5761
    %v5833 = vunpack.c.l.b16 %v5762
    %v5834 = vunpack.c.l.b16 %v5763
    %v5835 = vunpack.c.l.b16 %v5764
    %v5836 = vunpack.c.l.b16 %v5765
    %v5837 = vunpack.c.l.b16 %v5766
    %v5838 = vunpack.c.l.b16 %v5767
    %v5839 = vunpack.c.l.b16 %v5768
    %v5840 = vunpack.c.l.b16 %v5769
    %v5841 = vunpack.c.l.b16 %v5770
    %v5842 = vunpack.c.l.b16 %v5771
    %v5843 = vunpack.c.l.b16 %v5772
    %v5844 = vunpack.c.l.b16 %v5773
    %v5845 = vunpack.c.l.b16 %v5774
    %v5846 = vunpack.c.l.b16 %v5775
    %v5847 = vunpack.c.l.b16 %v5776
    %v5848 = vunpack.c.l.b16 %v5777
    %v5849 = vunpack.c.l.b16 %v5778
    %v5850 = vunpack.c.l.b16 %v5779
    %v5851 = vunpack.c.l.b16 %v5780
    %v5852 = vunpack.c.l.b16 %v5781
    %v5853 = vunpack.c.l.b16 %v5782
    %v5854 = vunpack.c.l.b16 %v5783
    %v5855 = vunpack.c.l.b16 %v5784
    %v5856 = vpack.c.b16 %v5825, %v5824
    %v5857 = vpack.c.b16 %v5827, %v5826
    %v5858 = vpack.c.b16 %v5829, %v5828
    %v5859 = vpack.c.b16 %v5831, %v5830
    %v5860 = vpack.c.b16 %v5833, %v5832
    %v5861 = vpack.c.b16 %v5835, %v5834
    %v5862 = vpack.c.b16 %v5837, %v5836
    %v5863 = vpack.c.b16 %v5839, %v5838
    %v5864 = vpack.c.b16 %v5841, %v5840
    %v5865 = vpack.c.b16 %v5843, %v5842
    %v5866 = vpack.c.b16 %v5845, %v5844
    %v5867 = vpack.c.b16 %v5847, %v5846
    %v5868 = vpack.c.b16 %v5849, %v5848
    %v5869 = vpack.c.b16 %v5851, %v5850
    %v5870 = vpack.c.b16 %v5853, %v5852
    %v5871 = vpack.c.b16 %v5855, %v5854
    %5888 = vmatprep.subr.bf16.mxu0 0
    %5889 = vmatpush1.bf16.msra.mxu0 %v5856
    %5890 = vmatprep.subr.bf16.mxu0 0
    %5891 = vmatpush1.bf16.msra.mxu0 %v5857
    %5892 = vmatprep.subr.bf16.mxu0 0
    %5893 = vmatpush1.bf16.msra.mxu0 %v5858
    %5894 = vmatprep.subr.bf16.mxu0 0
    %5895 = vmatpush1.bf16.msra.mxu0 %v5859
    %5896 = vmatprep.subr.bf16.mxu0 0
    %5897 = vmatpush1.bf16.msra.mxu0 %v5860
    %5898 = vmatprep.subr.bf16.mxu0 0
    %5899 = vmatpush1.bf16.msra.mxu0 %v5861
    %5900 = vmatprep.subr.bf16.mxu0 0
    %5901 = vmatpush1.bf16.msra.mxu0 %v5862
    %5902 = vmatprep.subr.bf16.mxu0 0
    %5903 = vmatpush1.bf16.msra.mxu0 %v5863
    %5904 = vmatprep.subr.bf16.mxu0 0
    %5905 = vmatpush1.bf16.msra.mxu0 %v5864
    %5906 = vmatprep.subr.bf16.mxu0 0
    %5907 = vmatpush1.bf16.msra.mxu0 %v5865
    %5908 = vmatprep.subr.bf16.mxu0 0
    %5909 = vmatpush1.bf16.msra.mxu0 %v5866
    %5910 = vmatprep.subr.bf16.mxu0 0
    %5911 = vmatpush1.bf16.msra.mxu0 %v5867
    %5912 = vmatprep.subr.bf16.mxu0 0
    %5913 = vmatpush1.bf16.msra.mxu0 %v5868
    %5914 = vmatprep.subr.bf16.mxu0 0
    %5915 = vmatpush1.bf16.msra.mxu0 %v5869
    %5916 = vmatprep.subr.bf16.mxu0 0
    %5917 = vmatpush1.bf16.msra.mxu0 %v5870
    %5918 = vmatprep.subr.bf16.mxu0 0
    %5919 = vmatpush1.bf16.msra.mxu0 %v5871
    %5920 = vmatprep.mubr.bf16.mxu0 %v5752
    %5921 = vmatmul.mubr.bf16.gmra.mrb[0].mxu0 %v5751
    %v5922 = vpop.f32.mrb[0].mxu0
    %v5923 = vadd.f32 %v5790, %v5922
    %v5924 = vpop.f32.mrb[0].mxu0
    %v5925 = vpop.f32.mrb[0].mxu0
    %v5926 = vpop.f32.mrb[0].mxu0
    %5927 = vdwg.mxu0
    %v5928 = vmax.f32 %v5923, 0.0
    %vm5929 = vcmask 74752
    %v5930 = vsel %vm5929, %v5928, 0.0
    %5931 = vadd.xlane.f32.xlu0 %v5930
    %v5932 = vpop.xlane.xlu0 %5931
    %v5933 = vrot.slane %v5932, 4
    %v5934 = vadd.f32 %v5932, %v5933
    %v5935 = vrot.slane %v5934, 2
    %v5936 = vadd.f32 %v5934, %v5935
    %v5937 = vrot.slane %v5936, 1
    %v5938 = vadd.f32 %v5936, %v5937
    %s5939 = vtos %v5938
    %v5940 = vrcp.pop 20.0
    %s5941 = vtos %v5940
    %s5942 = smul.f32 %s5939, %s5941
    %v5943 = vstv %s5942
    %v5944 = vsub.f32 %v5928, %v5943
    %v5945 = vmul.f32 %v5944, %v5944
    %v5946 = vsel %vm5929, %v5945, 0.0
    %5947 = vadd.xlane.f32.xlu0 %v5946
    %v5948 = vpop.xlane.xlu0 %5947
    %v5949 = vrot.slane %v5948, 4
    %v5950 = vadd.f32 %v5948, %v5949
    %v5951 = vrot.slane %v5950, 2
    %v5952 = vadd.f32 %v5950, %v5951
    %v5953 = vrot.slane %v5952, 1
    %v5954 = vadd.f32 %v5952, %v5953
    %s5955 = vtos %v5954
    %v5956 = vrcp.pop 19.0
    %s5957 = vtos %v5956
    %s5958 = smul.f32 %s5955, %s5957
    %s5959 = sadd.f32 %s5958, 0.0001
    %v5960 = vstv %s5959
    %v5961 = vrsqrt.pop %v5960
    %s5962 = vtos %v5961
    %v5963 = vstv %s5962
    %v5964 = vmul.f32 %v5944, %v5963
    %s5965 = sld [smem:[#allocation14]]
    %v5966 = vstv %s5965
    %v5967 = vmul.f32 %v5964, %v5966
    %s5968 = sld [smem:[#allocation14 + $0x1]]
    %v5969 = vstv %s5968
    %v5970 = vadd.f32 %v5967, %v5969
    %5971 = vst.msk [vmem:[#allocation15] sm:$0x3] %vm5929, %v5970
    // Predicated region
    $region62: #{lenet5v5_forward.3} parent=1 // pred_check
      _
    $region63: #{lenet5v5_forward.3} parent=1 // pred_check_branch
      %5973 = sbr.rel (0) target = $region65
    $region64: #{lenet5v5_forward.3} parent=1 // pred_region
      %s5975 = ssub.s32 32, 32
      %5976 = vsyncadd [#allocation4], %s5975
      %s5978 = sshll.u32 [#allocation15], 4
      %s5979 = int_to_ptr.vmem [resolvable:$true] %s5978
      %5981 = dma.vmem_to_hbm [thread:$0]  %s5979, 32, %s8, [#allocation4]
    $region65: #{lenet5v5_forward.3} parent=1 // pred_fallthru
      _
    // Predicated region
    $region66: #{lenet5v5_forward.3} parent=1 // pred_check
      _
    $region67: #{lenet5v5_forward.3} parent=1 // pred_check_branch
      %5983 = sbr.rel (0) target = $region69
    $region68: #{lenet5v5_forward.3} parent=1 // pred_region
      %5984 = dma.done [#allocation4], 32
    $region69: #{lenet5v5_forward.3} parent=1 // pred_fallthru
      _
    %5985 = vsyncpa [#allocation3], 1
    %5986 = vsyncpa [#allocation7], 1
    %5987 = vsyncpa [#allocation10], 1
    %5988 = vsyncpa [#allocation13], 1
    %5989 = vsyncpa [#allocation4], 1
    %5990 = vsyncpa [#allocation5], 1

// kernel: lenet5v5_forward.2
$region0: #{lenet5v5_forward.2}
  #allocation0 [shape = 'u32[]', space=smem, size = 0x4, offset = 0x4, fixed_abs, tag = 'smem constant byte address 0x4 - core index']
  #allocation1 [shape = 'u32[144,128]{1,0:T(1,128)}', space=vmem, size = 0x12000, scoped, tag = 'internal scratch']
  %s0 = inlined_call_operand.hbm [shape: bf16[2,28,32,80], index: 0, kind: input, shape index: {}]
  %s1 = inlined_call_operand.hbm [shape: bf16[80,32], index: 1, kind: input, shape index: {}]
  %s2 = inlined_call_operand.hbm [shape: f32[1,32], index: 2, kind: input, shape index: {}]
  %s3 = inlined_call_operand.hbm [shape: bf16[800,128], index: 3, kind: input, shape index: {}]
  %s4 = inlined_call_operand.hbm [shape: f32[1,128], index: 4, kind: input, shape index: {}]
  %s5 = inlined_call_operand.hbm [shape: f32[2,5,5,128], index: 5, kind: output, shape index: {}]
  %s6 = sld [smem:[#allocation0]]
  $region50: #{lenet5v5_forward.2} parent=0
    _
  %s8 = ssub.s32 1, %s6
  %s9 = scalar_select 0, %s8, %s6
  $region1: #{lenet5v5_forward.2} parent=0
    #allocation2 [shape = 'u8[458752]{0}', space=vmem, size = 0x70000, scoped, tag = 'input window, operand 0, single buffered']
    #allocation3 [shape = 's32[1]{0}', space=sflag, size = 0x4, scoped, tag = 'scoped memory for lenet5v5_forward.2']
    #allocation4 [shape = 's32[1]{0}', space=sflag, size = 0x4, scoped, tag = 'scoped memory for lenet5v5_forward.2']
    #allocation5 [shape = 'u8[20480]{0}', space=vmem, size = 0x5000, scoped, tag = 'input window, operand 1, single buffered']
    #allocation6 [shape = 's32[1]{0}', space=sflag, size = 0x4, scoped, tag = 'scoped memory for lenet5v5_forward.2']
    #allocation7 [shape = 'u8[512]{0}', space=vmem, size = 0x400, scoped, tag = 'input window, operand 2, single buffered']
    #allocation8 [shape = 'u8[204800]{0}', space=vmem, size = 0x32000, scoped, tag = 'input window, operand 3, single buffered']
    #allocation9 [shape = 's32[1]{0}', space=sflag, size = 0x4, scoped, tag = 'scoped memory for lenet5v5_forward.2']
    #allocation10 [shape = 'u8[512]{0}', space=vmem, size = 0x400, scoped, tag = 'input window, operand 4, single buffered']
    #allocation11 [shape = 'u8[40960]{0}', space=vmem, size = 0xa000, scoped, tag = 'output window, operand 0, single buffered']
    %10 = vsyncpa [#allocation3], 0
    %11 = vsyncpa [#allocation6], 0
    %12 = vsyncpa [#allocation9], 0
    %13 = vsyncpa [#allocation4], 0
    // Predicated region
    $region2: #{lenet5v5_forward.2} parent=1 // pred_check
      _
    $region3: #{lenet5v5_forward.2} parent=1 // pred_check_branch
      %15 = sbr.rel (0) target = $region5
    $region4: #{lenet5v5_forward.2} parent=1 // pred_region
      %s17 = ssub.s32 14336, 14336
      %18 = vsyncadd [#allocation3], %s17
      %s19 = sshll.u32 [#allocation2], 4
      %s20 = int_to_ptr.vmem [resolvable:$true] %s19
      %25 = dma.hbm_to_vmem [thread:$0]  %s0, 14336, %s20, [#allocation3], 64, 64, 4
    $region5: #{lenet5v5_forward.2} parent=1 // pred_fallthru
      _
    // Predicated region
    $region6: #{lenet5v5_forward.2} parent=1 // pred_check
      _
    $region7: #{lenet5v5_forward.2} parent=1 // pred_check_branch
      %27 = sbr.rel (0) target = $region9
    $region8: #{lenet5v5_forward.2} parent=1 // pred_region
      %s29 = ssub.s32 640, 640
      %30 = vsyncadd [#allocation6], %s29
      %s31 = sshll.u32 [#allocation5], 4
      %s32 = int_to_ptr.vmem [resolvable:$true] %s31
      %37 = dma.hbm_to_vmem [thread:$0]  %s1, 640, %s32, [#allocation6], 64, 64, 4
    $region9: #{lenet5v5_forward.2} parent=1 // pred_fallthru
      _
    // Predicated region
    $region10: #{lenet5v5_forward.2} parent=1 // pred_check
      _
    $region11: #{lenet5v5_forward.2} parent=1 // pred_check_branch
      %39 = sbr.rel (0) target = $region13
    $region12: #{lenet5v5_forward.2} parent=1 // pred_region
      %s41 = ssub.s32 16, 16
      %42 = vsyncadd [#allocation6], %s41
      %s44 = sshll.u32 [#allocation7], 4
      %s45 = int_to_ptr.vmem [resolvable:$true] %s44
      %47 = dma.hbm_to_vmem [thread:$0]  %s2, 16, %s45, [#allocation6]
    $region13: #{lenet5v5_forward.2} parent=1 // pred_fallthru
      _
    // Predicated region
    $region14: #{lenet5v5_forward.2} parent=1 // pred_check
      _
    $region15: #{lenet5v5_forward.2} parent=1 // pred_check_branch
      %49 = sbr.rel (0) target = $region17
    $region16: #{lenet5v5_forward.2} parent=1 // pred_region
      %s51 = ssub.s32 6400, 6400
      %52 = vsyncadd [#allocation9], %s51
      %s53 = sshll.u32 [#allocation8], 4
      %s54 = int_to_ptr.vmem [resolvable:$true] %s53
      %59 = dma.hbm_to_vmem [thread:$0]  %s3, 6400, %s54, [#allocation9], 64, 64, 4
    $region17: #{lenet5v5_forward.2} parent=1 // pred_fallthru
      _
    // Predicated region
    $region18: #{lenet5v5_forward.2} parent=1 // pred_check
      _
    $region19: #{lenet5v5_forward.2} parent=1 // pred_check_branch
      %61 = sbr.rel (0) target = $region21
    $region20: #{lenet5v5_forward.2} parent=1 // pred_region
      %s63 = ssub.s32 16, 16
      %64 = vsyncadd [#allocation9], %s63
      %s66 = sshll.u32 [#allocation10], 4
      %s67 = int_to_ptr.vmem [resolvable:$true] %s66
      %69 = dma.hbm_to_vmem [thread:$0]  %s4, 16, %s67, [#allocation9]
    $region21: #{lenet5v5_forward.2} parent=1 // pred_fallthru
      _
    // Predicated region
    $region22: #{lenet5v5_forward.2} parent=1 // pred_check
      _
    $region23: #{lenet5v5_forward.2} parent=1 // pred_check_branch
      %71 = sbr.rel (0) target = $region25
    $region24: #{lenet5v5_forward.2} parent=1 // pred_region
      %72 = dma.done [#allocation3], 14336
    $region25: #{lenet5v5_forward.2} parent=1 // pred_fallthru
      _
    // Predicated region
    $region26: #{lenet5v5_forward.2} parent=1 // pred_check
      _
    $region27: #{lenet5v5_forward.2} parent=1 // pred_check_branch
      %74 = sbr.rel (0) target = $region29
    $region28: #{lenet5v5_forward.2} parent=1 // pred_region
      %75 = dma.done [#allocation6], 640
    $region29: #{lenet5v5_forward.2} parent=1 // pred_fallthru
      _
    // Predicated region
    $region30: #{lenet5v5_forward.2} parent=1 // pred_check
      _
    $region31: #{lenet5v5_forward.2} parent=1 // pred_check_branch
      %77 = sbr.rel (0) target = $region33
    $region32: #{lenet5v5_forward.2} parent=1 // pred_region
      %78 = dma.done [#allocation6], 16
    $region33: #{lenet5v5_forward.2} parent=1 // pred_fallthru
      _
    // Predicated region
    $region34: #{lenet5v5_forward.2} parent=1 // pred_check
      _
    $region35: #{lenet5v5_forward.2} parent=1 // pred_check_branch
      %80 = sbr.rel (0) target = $region37
    $region36: #{lenet5v5_forward.2} parent=1 // pred_region
      %81 = dma.done [#allocation9], 6400
    $region37: #{lenet5v5_forward.2} parent=1 // pred_fallthru
      _
    // Predicated region
    $region38: #{lenet5v5_forward.2} parent=1 // pred_check
      _
    $region39: #{lenet5v5_forward.2} parent=1 // pred_check_branch
      %83 = sbr.rel (0) target = $region41
    $region40: #{lenet5v5_forward.2} parent=1 // pred_region
      %84 = dma.done [#allocation9], 16
    $region41: #{lenet5v5_forward.2} parent=1 // pred_fallthru
      _
    %v86 = vld [vmem:[#allocation2] sm:$0xf]
    %v87 = vld [vmem:[#allocation2 + $0x4] sm:$0xf]
    %v88 = vld [vmem:[#allocation2 + $0x8] sm:$0xf]
    %v89 = vld [vmem:[#allocation2 + $0xc] sm:$0xf]
    %v90 = vld [vmem:[#allocation2 + $0x10] sm:$0xf]
    %v91 = vld [vmem:[#allocation2 + $0x14] sm:$0xf]
    %v92 = vld [vmem:[#allocation2 + $0x18] sm:$0xf]
    %v93 = vld [vmem:[#allocation2 + $0x1c] sm:$0xf]
    %v94 = vld [vmem:[#allocation2 + $0x20] sm:$0xf]
    %v95 = vld [vmem:[#allocation2 + $0x24] sm:$0xf]
    %v96 = vld [vmem:[#allocation2 + $0x28] sm:$0xf]
    %v97 = vld [vmem:[#allocation2 + $0x2c] sm:$0xf]
    %v98 = vld [vmem:[#allocation2 + $0x30] sm:$0xf]
    %v99 = vld [vmem:[#allocation2 + $0x34] sm:$0xf]
    %v100 = vld [vmem:[#allocation2 + $0x38] sm:$0xf]
    %v101 = vld [vmem:[#allocation2 + $0x3c] sm:$0xf]
    %v102 = vld [vmem:[#allocation2 + $0x40] sm:$0xf]
    %v103 = vld [vmem:[#allocation2 + $0x44] sm:$0xf]
    %v104 = vld [vmem:[#allocation2 + $0x48] sm:$0xf]
    %v105 = vld [vmem:[#allocation2 + $0x4c] sm:$0xf]
    %v106 = vld [vmem:[#allocation2 + $0x50] sm:$0xf]
    %v107 = vld [vmem:[#allocation2 + $0x54] sm:$0xf]
    %v108 = vld [vmem:[#allocation2 + $0x58] sm:$0xf]
    %v109 = vld [vmem:[#allocation2 + $0x5c] sm:$0xf]
    %v110 = vld [vmem:[#allocation2 + $0x60] sm:$0xf]
    %v111 = vld [vmem:[#allocation2 + $0x64] sm:$0xf]
    %v112 = vld [vmem:[#allocation2 + $0x68] sm:$0xf]
    %v113 = vld [vmem:[#allocation2 + $0x6c] sm:$0xf]
    %v114 = vld [vmem:[#allocation2 + $0x70] sm:$0xf]
    %v115 = vld [vmem:[#allocation2 + $0x74] sm:$0xf]
    %v116 = vld [vmem:[#allocation2 + $0x78] sm:$0xf]
    %v117 = vld [vmem:[#allocation2 + $0x7c] sm:$0xf]
    %v118 = vld [vmem:[#allocation2 + $0x80] sm:$0xf]
    %v119 = vld [vmem:[#allocation2 + $0x84] sm:$0xf]
    %v120 = vld [vmem:[#allocation2 + $0x88] sm:$0xf]
    %v121 = vld [vmem:[#allocation2 + $0x8c] sm:$0xf]
    %v122 = vld [vmem:[#allocation2 + $0x90] sm:$0xf]
    %v123 = vld [vmem:[#allocation2 + $0x94] sm:$0xf]
    %v124 = vld [vmem:[#allocation2 + $0x98] sm:$0xf]
    %v125 = vld [vmem:[#allocation2 + $0x9c] sm:$0xf]
    %v126 = vld [vmem:[#allocation2 + $0xa0] sm:$0xf]
    %v127 = vld [vmem:[#allocation2 + $0xa4] sm:$0xf]
    %v128 = vld [vmem:[#allocation2 + $0xa8] sm:$0xf]
    %v129 = vld [vmem:[#allocation2 + $0xac] sm:$0xf]
    %v130 = vld [vmem:[#allocation2 + $0xb0] sm:$0xf]
    %v131 = vld [vmem:[#allocation2 + $0xb4] sm:$0xf]
    %v132 = vld [vmem:[#allocation2 + $0xb8] sm:$0xf]
    %v133 = vld [vmem:[#allocation2 + $0xbc] sm:$0xf]
    %v134 = vld [vmem:[#allocation2 + $0xc0] sm:$0xf]
    %v135 = vld [vmem:[#allocation2 + $0xc4] sm:$0xf]
    %v136 = vld [vmem:[#allocation2 + $0xc8] sm:$0xf]
    %v137 = vld [vmem:[#allocation2 + $0xcc] sm:$0xf]
    %v138 = vld [vmem:[#allocation2 + $0xd0] sm:$0xf]
    %v139 = vld [vmem:[#allocation2 + $0xd4] sm:$0xf]
    %v140 = vld [vmem:[#allocation2 + $0xd8] sm:$0xf]
    %v141 = vld [vmem:[#allocation2 + $0xdc] sm:$0xf]
    %v142 = vld [vmem:[#allocation2 + $0xe0] sm:$0xf]
    %v143 = vld [vmem:[#allocation2 + $0xe4] sm:$0xf]
    %v144 = vld [vmem:[#allocation2 + $0xe8] sm:$0xf]
    %v145 = vld [vmem:[#allocation2 + $0xec] sm:$0xf]
    %v146 = vld [vmem:[#allocation2 + $0xf0] sm:$0xf]
    %v147 = vld [vmem:[#allocation2 + $0xf4] sm:$0xf]
    %v148 = vld [vmem:[#allocation2 + $0xf8] sm:$0xf]
    %v149 = vld [vmem:[#allocation2 + $0xfc] sm:$0xf]
    %v150 = vld [vmem:[#allocation2 + $0x100] sm:$0xf]
    %v151 = vld [vmem:[#allocation2 + $0x104] sm:$0xf]
    %v152 = vld [vmem:[#allocation2 + $0x108] sm:$0xf]
    %v153 = vld [vmem:[#allocation2 + $0x10c] sm:$0xf]
    %v154 = vld [vmem:[#allocation2 + $0x110] sm:$0xf]
    %v155 = vld [vmem:[#allocation2 + $0x114] sm:$0xf]
    %v156 = vld [vmem:[#allocation2 + $0x118] sm:$0xf]
    %v157 = vld [vmem:[#allocation2 + $0x11c] sm:$0xf]
    %v158 = vld [vmem:[#allocation2 + $0x120] sm:$0xf]
    %v159 = vld [vmem:[#allocation2 + $0x124] sm:$0xf]
    %v160 = vld [vmem:[#allocation2 + $0x128] sm:$0xf]
    %v161 = vld [vmem:[#allocation2 + $0x12c] sm:$0xf]
    %v162 = vld [vmem:[#allocation2 + $0x130] sm:$0xf]
    %v163 = vld [vmem:[#allocation2 + $0x134] sm:$0xf]
    %v164 = vld [vmem:[#allocation2 + $0x138] sm:$0xf]
    %v165 = vld [vmem:[#allocation2 + $0x13c] sm:$0xf]
    %v166 = vld [vmem:[#allocation2 + $0x140] sm:$0xf]
    %v167 = vld [vmem:[#allocation2 + $0x144] sm:$0xf]
    %v168 = vld [vmem:[#allocation2 + $0x148] sm:$0xf]
    %v169 = vld [vmem:[#allocation2 + $0x14c] sm:$0xf]
    %v170 = vld [vmem:[#allocation2 + $0x150] sm:$0xf]
    %v171 = vld [vmem:[#allocation2 + $0x154] sm:$0xf]
    %v172 = vld [vmem:[#allocation2 + $0x158] sm:$0xf]
    %v173 = vld [vmem:[#allocation2 + $0x15c] sm:$0xf]
    %v174 = vld [vmem:[#allocation2 + $0x160] sm:$0xf]
    %v175 = vld [vmem:[#allocation2 + $0x164] sm:$0xf]
    %v176 = vld [vmem:[#allocation2 + $0x168] sm:$0xf]
    %v177 = vld [vmem:[#allocation2 + $0x16c] sm:$0xf]
    %v178 = vld [vmem:[#allocation2 + $0x170] sm:$0xf]
    %v179 = vld [vmem:[#allocation2 + $0x174] sm:$0xf]
    %v180 = vld [vmem:[#allocation2 + $0x178] sm:$0xf]
    %v181 = vld [vmem:[#allocation2 + $0x17c] sm:$0xf]
    %v182 = vld [vmem:[#allocation2 + $0x180] sm:$0xf]
    %v183 = vld [vmem:[#allocation2 + $0x184] sm:$0xf]
    %v184 = vld [vmem:[#allocation2 + $0x188] sm:$0xf]
    %v185 = vld [vmem:[#allocation2 + $0x18c] sm:$0xf]
    %v186 = vld [vmem:[#allocation2 + $0x190] sm:$0xf]
    %v187 = vld [vmem:[#allocation2 + $0x194] sm:$0xf]
    %v188 = vld [vmem:[#allocation2 + $0x198] sm:$0xf]
    %v189 = vld [vmem:[#allocation2 + $0x19c] sm:$0xf]
    %v190 = vld [vmem:[#allocation2 + $0x1a0] sm:$0xf]
    %v191 = vld [vmem:[#allocation2 + $0x1a4] sm:$0xf]
    %v192 = vld [vmem:[#allocation2 + $0x1a8] sm:$0xf]
    %v193 = vld [vmem:[#allocation2 + $0x1ac] sm:$0xf]
    %v194 = vld [vmem:[#allocation2 + $0x1b0] sm:$0xf]
    %v195 = vld [vmem:[#allocation2 + $0x1b4] sm:$0xf]
    %v196 = vld [vmem:[#allocation2 + $0x1b8] sm:$0xf]
    %v197 = vld [vmem:[#allocation2 + $0x1bc] sm:$0xf]
    %v198 = vld [vmem:[#allocation2 + $0x1c0] sm:$0xf]
    %v199 = vld [vmem:[#allocation2 + $0x1c4] sm:$0xf]
    %v200 = vld [vmem:[#allocation2 + $0x1c8] sm:$0xf]
    %v201 = vld [vmem:[#allocation2 + $0x1cc] sm:$0xf]
    %v202 = vld [vmem:[#allocation2 + $0x1d0] sm:$0xf]
    %v203 = vld [vmem:[#allocation2 + $0x1d4] sm:$0xf]
    %v204 = vld [vmem:[#allocation2 + $0x1d8] sm:$0xf]
    %v205 = vld [vmem:[#allocation2 + $0x1dc] sm:$0xf]
    %v206 = vld [vmem:[#allocation2 + $0x1e0] sm:$0xf]
    %v207 = vld [vmem:[#allocation2 + $0x1e4] sm:$0xf]
    %v208 = vld [vmem:[#allocation2 + $0x1e8] sm:$0xf]
    %v209 = vld [vmem:[#allocation2 + $0x1ec] sm:$0xf]
    %v210 = vld [vmem:[#allocation2 + $0x1f0] sm:$0xf]
    %v211 = vld [vmem:[#allocation2 + $0x1f4] sm:$0xf]
    %v212 = vld [vmem:[#allocation2 + $0x1f8] sm:$0xf]
    %v213 = vld [vmem:[#allocation2 + $0x1fc] sm:$0xf]
    %v214 = vld [vmem:[#allocation2 + $0x200] sm:$0xf]
    %v215 = vld [vmem:[#allocation2 + $0x204] sm:$0xf]
    %v216 = vld [vmem:[#allocation2 + $0x208] sm:$0xf]
    %v217 = vld [vmem:[#allocation2 + $0x20c] sm:$0xf]
    %v218 = vld [vmem:[#allocation2 + $0x210] sm:$0xf]
    %v219 = vld [vmem:[#allocation2 + $0x214] sm:$0xf]
    %v220 = vld [vmem:[#allocation2 + $0x218] sm:$0xf]
    %v221 = vld [vmem:[#allocation2 + $0x21c] sm:$0xf]
    %v222 = vld [vmem:[#allocation2 + $0x220] sm:$0xf]
    %v223 = vld [vmem:[#allocation2 + $0x224] sm:$0xf]
    %v224 = vld [vmem:[#allocation2 + $0x228] sm:$0xf]
    %v225 = vld [vmem:[#allocation2 + $0x22c] sm:$0xf]
    %v226 = vld [vmem:[#allocation2 + $0x230] sm:$0xf]
    %v227 = vld [vmem:[#allocation2 + $0x234] sm:$0xf]
    %v228 = vld [vmem:[#allocation2 + $0x238] sm:$0xf]
    %v229 = vld [vmem:[#allocation2 + $0x23c] sm:$0xf]
    %v230 = vld [vmem:[#allocation2 + $0x240] sm:$0xf]
    %v231 = vld [vmem:[#allocation2 + $0x244] sm:$0xf]
    %v232 = vld [vmem:[#allocation2 + $0x248] sm:$0xf]
    %v233 = vld [vmem:[#allocation2 + $0x24c] sm:$0xf]
    %v234 = vld [vmem:[#allocation2 + $0x250] sm:$0xf]
    %v235 = vld [vmem:[#allocation2 + $0x254] sm:$0xf]
    %v236 = vld [vmem:[#allocation2 + $0x258] sm:$0xf]
    %v237 = vld [vmem:[#allocation2 + $0x25c] sm:$0xf]
    %v238 = vld [vmem:[#allocation2 + $0x260] sm:$0xf]
    %v239 = vld [vmem:[#allocation2 + $0x264] sm:$0xf]
    %v240 = vld [vmem:[#allocation2 + $0x268] sm:$0xf]
    %v241 = vld [vmem:[#allocation2 + $0x26c] sm:$0xf]
    %v242 = vld [vmem:[#allocation2 + $0x270] sm:$0xf]
    %v243 = vld [vmem:[#allocation2 + $0x274] sm:$0xf]
    %v244 = vld [vmem:[#allocation2 + $0x278] sm:$0xf]
    %v245 = vld [vmem:[#allocation2 + $0x27c] sm:$0xf]
    %v246 = vld [vmem:[#allocation2 + $0x280] sm:$0xf]
    %v247 = vld [vmem:[#allocation2 + $0x284] sm:$0xf]
    %v248 = vld [vmem:[#allocation2 + $0x288] sm:$0xf]
    %v249 = vld [vmem:[#allocation2 + $0x28c] sm:$0xf]
    %v250 = vld [vmem:[#allocation2 + $0x290] sm:$0xf]
    %v251 = vld [vmem:[#allocation2 + $0x294] sm:$0xf]
    %v252 = vld [vmem:[#allocation2 + $0x298] sm:$0xf]
    %v253 = vld [vmem:[#allocation2 + $0x29c] sm:$0xf]
    %v254 = vld [vmem:[#allocation2 + $0x2a0] sm:$0xf]
    %v255 = vld [vmem:[#allocation2 + $0x2a4] sm:$0xf]
    %v256 = vld [vmem:[#allocation2 + $0x2a8] sm:$0xf]
    %v257 = vld [vmem:[#allocation2 + $0x2ac] sm:$0xf]
    %v258 = vld [vmem:[#allocation2 + $0x2b0] sm:$0xf]
    %v259 = vld [vmem:[#allocation2 + $0x2b4] sm:$0xf]
    %v260 = vld [vmem:[#allocation2 + $0x2b8] sm:$0xf]
    %v261 = vld [vmem:[#allocation2 + $0x2bc] sm:$0xf]
    %v262 = vld [vmem:[#allocation2 + $0x2c0] sm:$0xf]
    %v263 = vld [vmem:[#allocation2 + $0x2c4] sm:$0xf]
    %v264 = vld [vmem:[#allocation2 + $0x2c8] sm:$0xf]
    %v265 = vld [vmem:[#allocation2 + $0x2cc] sm:$0xf]
    %v266 = vld [vmem:[#allocation2 + $0x2d0] sm:$0xf]
    %v267 = vld [vmem:[#allocation2 + $0x2d4] sm:$0xf]
    %v268 = vld [vmem:[#allocation2 + $0x2d8] sm:$0xf]
    %v269 = vld [vmem:[#allocation2 + $0x2dc] sm:$0xf]
    %v270 = vld [vmem:[#allocation2 + $0x2e0] sm:$0xf]
    %v271 = vld [vmem:[#allocation2 + $0x2e4] sm:$0xf]
    %v272 = vld [vmem:[#allocation2 + $0x2e8] sm:$0xf]
    %v273 = vld [vmem:[#allocation2 + $0x2ec] sm:$0xf]
    %v274 = vld [vmem:[#allocation2 + $0x2f0] sm:$0xf]
    %v275 = vld [vmem:[#allocation2 + $0x2f4] sm:$0xf]
    %v276 = vld [vmem:[#allocation2 + $0x2f8] sm:$0xf]
    %v277 = vld [vmem:[#allocation2 + $0x2fc] sm:$0xf]
    %v278 = vld [vmem:[#allocation2 + $0x300] sm:$0xf]
    %v279 = vld [vmem:[#allocation2 + $0x304] sm:$0xf]
    %v280 = vld [vmem:[#allocation2 + $0x308] sm:$0xf]
    %v281 = vld [vmem:[#allocation2 + $0x30c] sm:$0xf]
    %v282 = vld [vmem:[#allocation2 + $0x310] sm:$0xf]
    %v283 = vld [vmem:[#allocation2 + $0x314] sm:$0xf]
    %v284 = vld [vmem:[#allocation2 + $0x318] sm:$0xf]
    %v285 = vld [vmem:[#allocation2 + $0x31c] sm:$0xf]
    %v286 = vld [vmem:[#allocation2 + $0x320] sm:$0xf]
    %v287 = vld [vmem:[#allocation2 + $0x324] sm:$0xf]
    %v288 = vld [vmem:[#allocation2 + $0x328] sm:$0xf]
    %v289 = vld [vmem:[#allocation2 + $0x32c] sm:$0xf]
    %v290 = vld [vmem:[#allocation2 + $0x330] sm:$0xf]
    %v291 = vld [vmem:[#allocation2 + $0x334] sm:$0xf]
    %v292 = vld [vmem:[#allocation2 + $0x338] sm:$0xf]
    %v293 = vld [vmem:[#allocation2 + $0x33c] sm:$0xf]
    %v294 = vld [vmem:[#allocation2 + $0x340] sm:$0xf]
    %v295 = vld [vmem:[#allocation2 + $0x344] sm:$0xf]
    %v296 = vld [vmem:[#allocation2 + $0x348] sm:$0xf]
    %v297 = vld [vmem:[#allocation2 + $0x34c] sm:$0xf]
    %v298 = vld [vmem:[#allocation2 + $0x350] sm:$0xf]
    %v299 = vld [vmem:[#allocation2 + $0x354] sm:$0xf]
    %v300 = vld [vmem:[#allocation2 + $0x358] sm:$0xf]
    %v301 = vld [vmem:[#allocation2 + $0x35c] sm:$0xf]
    %v302 = vld [vmem:[#allocation2 + $0x360] sm:$0xf]
    %v303 = vld [vmem:[#allocation2 + $0x364] sm:$0xf]
    %v304 = vld [vmem:[#allocation2 + $0x368] sm:$0xf]
    %v305 = vld [vmem:[#allocation2 + $0x36c] sm:$0xf]
    %v306 = vld [vmem:[#allocation2 + $0x370] sm:$0xf]
    %v307 = vld [vmem:[#allocation2 + $0x374] sm:$0xf]
    %v308 = vld [vmem:[#allocation2 + $0x378] sm:$0xf]
    %v309 = vld [vmem:[#allocation2 + $0x37c] sm:$0xf]
    %v310 = vld [vmem:[#allocation5] sm:$0xf]
    %v311 = vld [vmem:[#allocation5 + $0x4] sm:$0xf]
    %v312 = vld [vmem:[#allocation5 + $0x8] sm:$0xf]
    %v313 = vld [vmem:[#allocation5 + $0xc] sm:$0xf]
    %v314 = vld [vmem:[#allocation5 + $0x10] sm:$0xf]
    %v315 = vld [vmem:[#allocation5 + $0x14] sm:$0xf]
    %v316 = vld [vmem:[#allocation5 + $0x18] sm:$0xf]
    %v317 = vld [vmem:[#allocation5 + $0x1c] sm:$0xf]
    %v318 = vld [vmem:[#allocation5 + $0x20] sm:$0xf]
    %v319 = vld [vmem:[#allocation5 + $0x24] sm:$0xf]
    %v320 = vld [vmem:[#allocation7] sm:$0x1]
    %v322 = vlaneseq
    %v323 = vshrl.u32 %v322, 7
    %v324 = vsub.s32 0, %v323
    %v325 = vrot.slane %v320, %v324
    %v551 = vunpack.c.l.b16 %v86
    %v552 = vunpack.c.l.b16 %v87
    %v553 = vunpack.c.l.b16 %v88
    %v554 = vunpack.c.l.b16 %v89
    %v555 = vunpack.c.l.b16 %v90
    %v556 = vunpack.c.l.b16 %v91
    %v557 = vunpack.c.l.b16 %v92
    %v558 = vunpack.c.l.b16 %v93
    %v559 = vunpack.c.l.b16 %v94
    %v560 = vunpack.c.l.b16 %v95
    %v561 = vunpack.c.l.b16 %v96
    %v562 = vunpack.c.l.b16 %v97
    %v563 = vunpack.c.l.b16 %v98
    %v564 = vunpack.c.l.b16 %v99
    %v565 = vunpack.c.l.b16 %v100
    %v566 = vunpack.c.l.b16 %v101
    %v567 = vunpack.c.l.b16 %v102
    %v568 = vunpack.c.l.b16 %v103
    %v569 = vunpack.c.l.b16 %v104
    %v570 = vunpack.c.l.b16 %v105
    %v571 = vunpack.c.l.b16 %v106
    %v572 = vunpack.c.l.b16 %v107
    %v573 = vunpack.c.l.b16 %v108
    %v574 = vunpack.c.l.b16 %v109
    %v575 = vunpack.c.l.b16 %v110
    %v576 = vunpack.c.l.b16 %v111
    %v577 = vunpack.c.l.b16 %v112
    %v578 = vunpack.c.l.b16 %v113
    %v579 = vunpack.c.l.b16 %v114
    %v580 = vunpack.c.l.b16 %v115
    %v581 = vunpack.c.l.b16 %v116
    %v582 = vunpack.c.l.b16 %v117
    %v583 = vunpack.c.l.b16 %v118
    %v584 = vunpack.c.l.b16 %v119
    %v585 = vunpack.c.l.b16 %v120
    %v586 = vunpack.c.l.b16 %v121
    %v587 = vunpack.c.l.b16 %v122
    %v588 = vunpack.c.l.b16 %v123
    %v589 = vunpack.c.l.b16 %v124
    %v590 = vunpack.c.l.b16 %v125
    %v591 = vunpack.c.l.b16 %v126
    %v592 = vunpack.c.l.b16 %v127
    %v593 = vunpack.c.l.b16 %v128
    %v594 = vunpack.c.l.b16 %v129
    %v595 = vunpack.c.l.b16 %v130
    %v596 = vunpack.c.l.b16 %v131
    %v597 = vunpack.c.l.b16 %v132
    %v598 = vunpack.c.l.b16 %v133
    %v599 = vunpack.c.l.b16 %v134
    %v600 = vunpack.c.l.b16 %v135
    %v601 = vunpack.c.l.b16 %v136
    %v602 = vunpack.c.l.b16 %v137
    %v603 = vunpack.c.l.b16 %v138
    %v604 = vunpack.c.l.b16 %v139
    %v605 = vunpack.c.l.b16 %v140
    %v606 = vunpack.c.l.b16 %v141
    %v607 = vunpack.c.l.b16 %v142
    %v608 = vunpack.c.l.b16 %v143
    %v609 = vunpack.c.l.b16 %v144
    %v610 = vunpack.c.l.b16 %v145
    %v611 = vunpack.c.l.b16 %v146
    %v612 = vunpack.c.l.b16 %v147
    %v613 = vunpack.c.l.b16 %v148
    %v614 = vunpack.c.l.b16 %v149
    %v615 = vunpack.c.l.b16 %v150
    %v616 = vunpack.c.l.b16 %v151
    %v617 = vunpack.c.l.b16 %v152
    %v618 = vunpack.c.l.b16 %v153
    %v619 = vunpack.c.l.b16 %v154
    %v620 = vunpack.c.l.b16 %v155
    %v621 = vunpack.c.l.b16 %v156
    %v622 = vunpack.c.l.b16 %v157
    %v623 = vunpack.c.l.b16 %v158
    %v624 = vunpack.c.l.b16 %v159
    %v625 = vunpack.c.l.b16 %v160
    %v626 = vunpack.c.l.b16 %v161
    %v627 = vunpack.c.l.b16 %v162
    %v628 = vunpack.c.l.b16 %v163
    %v629 = vunpack.c.l.b16 %v164
    %v630 = vunpack.c.l.b16 %v165
    %v631 = vunpack.c.l.b16 %v166
    %v632 = vunpack.c.l.b16 %v167
    %v633 = vunpack.c.l.b16 %v168
    %v634 = vunpack.c.l.b16 %v169
    %v635 = vunpack.c.l.b16 %v170
    %v636 = vunpack.c.l.b16 %v171
    %v637 = vunpack.c.l.b16 %v172
    %v638 = vunpack.c.l.b16 %v173
    %v639 = vunpack.c.l.b16 %v174
    %v640 = vunpack.c.l.b16 %v175
    %v641 = vunpack.c.l.b16 %v176
    %v642 = vunpack.c.l.b16 %v177
    %v643 = vunpack.c.l.b16 %v178
    %v644 = vunpack.c.l.b16 %v179
    %v645 = vunpack.c.l.b16 %v180
    %v646 = vunpack.c.l.b16 %v181
    %v647 = vunpack.c.l.b16 %v182
    %v648 = vunpack.c.l.b16 %v183
    %v649 = vunpack.c.l.b16 %v184
    %v650 = vunpack.c.l.b16 %v185
    %v651 = vunpack.c.l.b16 %v186
    %v652 = vunpack.c.l.b16 %v187
    %v653 = vunpack.c.l.b16 %v188
    %v654 = vunpack.c.l.b16 %v189
    %v655 = vunpack.c.l.b16 %v190
    %v656 = vunpack.c.l.b16 %v191
    %v657 = vunpack.c.l.b16 %v192
    %v658 = vunpack.c.l.b16 %v193
    %v659 = vunpack.c.l.b16 %v194
    %v660 = vunpack.c.l.b16 %v195
    %v661 = vunpack.c.l.b16 %v196
    %v662 = vunpack.c.l.b16 %v197
    %v663 = vunpack.c.l.b16 %v198
    %v664 = vunpack.c.l.b16 %v199
    %v665 = vunpack.c.l.b16 %v200
    %v666 = vunpack.c.l.b16 %v201
    %v667 = vunpack.c.l.b16 %v202
    %v668 = vunpack.c.l.b16 %v203
    %v669 = vunpack.c.l.b16 %v204
    %v670 = vunpack.c.l.b16 %v205
    %v671 = vunpack.c.l.b16 %v206
    %v672 = vunpack.c.l.b16 %v207
    %v673 = vunpack.c.l.b16 %v208
    %v674 = vunpack.c.l.b16 %v209
    %v675 = vunpack.c.l.b16 %v210
    %v676 = vunpack.c.l.b16 %v211
    %v677 = vunpack.c.l.b16 %v212
    %v678 = vunpack.c.l.b16 %v213
    %v679 = vunpack.c.l.b16 %v214
    %v680 = vunpack.c.l.b16 %v215
    %v681 = vunpack.c.l.b16 %v216
    %v682 = vunpack.c.l.b16 %v217
    %v683 = vunpack.c.l.b16 %v218
    %v684 = vunpack.c.l.b16 %v219
    %v685 = vunpack.c.l.b16 %v220
    %v686 = vunpack.c.l.b16 %v221
    %v687 = vunpack.c.l.b16 %v222
    %v688 = vunpack.c.l.b16 %v223
    %v689 = vunpack.c.l.b16 %v224
    %v690 = vunpack.c.l.b16 %v225
    %v691 = vunpack.c.l.b16 %v226
    %v692 = vunpack.c.l.b16 %v227
    %v693 = vunpack.c.l.b16 %v228
    %v694 = vunpack.c.l.b16 %v229
    %v695 = vunpack.c.l.b16 %v230
    %v696 = vunpack.c.l.b16 %v231
    %v697 = vunpack.c.l.b16 %v232
    %v698 = vunpack.c.l.b16 %v233
    %v699 = vunpack.c.l.b16 %v234
    %v700 = vunpack.c.l.b16 %v235
    %v701 = vunpack.c.l.b16 %v236
    %v702 = vunpack.c.l.b16 %v237
    %v703 = vunpack.c.l.b16 %v238
    %v704 = vunpack.c.l.b16 %v239
    %v705 = vunpack.c.l.b16 %v240
    %v706 = vunpack.c.l.b16 %v241
    %v707 = vunpack.c.l.b16 %v242
    %v708 = vunpack.c.l.b16 %v243
    %v709 = vunpack.c.l.b16 %v244
    %v710 = vunpack.c.l.b16 %v245
    %v711 = vunpack.c.l.b16 %v246
    %v712 = vunpack.c.l.b16 %v247
    %v713 = vunpack.c.l.b16 %v248
    %v714 = vunpack.c.l.b16 %v249
    %v715 = vunpack.c.l.b16 %v250
    %v716 = vunpack.c.l.b16 %v251
    %v717 = vunpack.c.l.b16 %v252
    %v718 = vunpack.c.l.b16 %v253
    %v719 = vunpack.c.l.b16 %v254
    %v720 = vunpack.c.l.b16 %v255
    %v721 = vunpack.c.l.b16 %v256
    %v722 = vunpack.c.l.b16 %v257
    %v723 = vunpack.c.l.b16 %v258
    %v724 = vunpack.c.l.b16 %v259
    %v725 = vunpack.c.l.b16 %v260
    %v726 = vunpack.c.l.b16 %v261
    %v727 = vunpack.c.l.b16 %v262
    %v728 = vunpack.c.l.b16 %v263
    %v729 = vunpack.c.l.b16 %v264
    %v730 = vunpack.c.l.b16 %v265
    %v731 = vunpack.c.l.b16 %v266
    %v732 = vunpack.c.l.b16 %v267
    %v733 = vunpack.c.l.b16 %v268
    %v734 = vunpack.c.l.b16 %v269
    %v735 = vunpack.c.l.b16 %v270
    %v736 = vunpack.c.l.b16 %v271
    %v737 = vunpack.c.l.b16 %v272
    %v738 = vunpack.c.l.b16 %v273
    %v739 = vunpack.c.l.b16 %v274
    %v740 = vunpack.c.l.b16 %v275
    %v741 = vunpack.c.l.b16 %v276
    %v742 = vunpack.c.l.b16 %v277
    %v743 = vunpack.c.l.b16 %v278
    %v744 = vunpack.c.l.b16 %v279
    %v745 = vunpack.c.l.b16 %v280
    %v746 = vunpack.c.l.b16 %v281
    %v747 = vunpack.c.l.b16 %v282
    %v748 = vunpack.c.l.b16 %v283
    %v749 = vunpack.c.l.b16 %v284
    %v750 = vunpack.c.l.b16 %v285
    %v751 = vunpack.c.l.b16 %v286
    %v752 = vunpack.c.l.b16 %v287
    %v753 = vunpack.c.l.b16 %v288
    %v754 = vunpack.c.l.b16 %v289
    %v755 = vunpack.c.l.b16 %v290
    %v756 = vunpack.c.l.b16 %v291
    %v757 = vunpack.c.l.b16 %v292
    %v758 = vunpack.c.l.b16 %v293
    %v759 = vunpack.c.l.b16 %v294
    %v760 = vunpack.c.l.b16 %v295
    %v761 = vunpack.c.l.b16 %v296
    %v762 = vunpack.c.l.b16 %v297
    %v763 = vunpack.c.l.b16 %v298
    %v764 = vunpack.c.l.b16 %v299
    %v765 = vunpack.c.l.b16 %v300
    %v766 = vunpack.c.l.b16 %v301
    %v767 = vunpack.c.l.b16 %v302
    %v768 = vunpack.c.l.b16 %v303
    %v769 = vunpack.c.l.b16 %v304
    %v770 = vunpack.c.l.b16 %v305
    %v771 = vunpack.c.l.b16 %v306
    %v772 = vunpack.c.l.b16 %v307
    %v773 = vunpack.c.l.b16 %v308
    %v774 = vunpack.c.l.b16 %v309
    %v775 = vpack.c.b16 %v552, %v551
    %v776 = vpack.c.b16 %v554, %v553
    %v777 = vpack.c.b16 %v556, %v555
    %v778 = vpack.c.b16 %v558, %v557
    %v779 = vpack.c.b16 %v560, %v559
    %v780 = vpack.c.b16 %v562, %v561
    %v781 = vpack.c.b16 %v564, %v563
    %v782 = vpack.c.b16 %v566, %v565
    %v783 = vpack.c.b16 %v568, %v567
    %v784 = vpack.c.b16 %v570, %v569
    %v785 = vpack.c.b16 %v572, %v571
    %v786 = vpack.c.b16 %v574, %v573
    %v787 = vpack.c.b16 %v576, %v575
    %v788 = vpack.c.b16 %v578, %v577
    %v789 = vpack.c.b16 %v580, %v579
    %v790 = vpack.c.b16 %v582, %v581
    %v791 = vpack.c.b16 %v584, %v583
    %v792 = vpack.c.b16 %v586, %v585
    %v793 = vpack.c.b16 %v588, %v587
    %v794 = vpack.c.b16 %v590, %v589
    %v795 = vpack.c.b16 %v592, %v591
    %v796 = vpack.c.b16 %v594, %v593
    %v797 = vpack.c.b16 %v596, %v595
    %v798 = vpack.c.b16 %v598, %v597
    %v799 = vpack.c.b16 %v600, %v599
    %v800 = vpack.c.b16 %v602, %v601
    %v801 = vpack.c.b16 %v604, %v603
    %v802 = vpack.c.b16 %v606, %v605
    %v803 = vpack.c.b16 %v608, %v607
    %v804 = vpack.c.b16 %v610, %v609
    %v805 = vpack.c.b16 %v612, %v611
    %v806 = vpack.c.b16 %v614, %v613
    %v807 = vpack.c.b16 %v616, %v615
    %v808 = vpack.c.b16 %v618, %v617
    %v809 = vpack.c.b16 %v620, %v619
    %v810 = vpack.c.b16 %v622, %v621
    %v811 = vpack.c.b16 %v624, %v623
    %v812 = vpack.c.b16 %v626, %v625
    %v813 = vpack.c.b16 %v628, %v627
    %v814 = vpack.c.b16 %v630, %v629
    %v815 = vpack.c.b16 %v632, %v631
    %v816 = vpack.c.b16 %v634, %v633
    %v817 = vpack.c.b16 %v636, %v635
    %v818 = vpack.c.b16 %v638, %v637
    %v819 = vpack.c.b16 %v640, %v639
    %v820 = vpack.c.b16 %v642, %v641
    %v821 = vpack.c.b16 %v644, %v643
    %v822 = vpack.c.b16 %v646, %v645
    %v823 = vpack.c.b16 %v648, %v647
    %v824 = vpack.c.b16 %v650, %v649
    %v825 = vpack.c.b16 %v652, %v651
    %v826 = vpack.c.b16 %v654, %v653
    %v827 = vpack.c.b16 %v656, %v655
    %v828 = vpack.c.b16 %v658, %v657
    %v829 = vpack.c.b16 %v660, %v659
    %v830 = vpack.c.b16 %v662, %v661
    %v831 = vpack.c.b16 %v664, %v663
    %v832 = vpack.c.b16 %v666, %v665
    %v833 = vpack.c.b16 %v668, %v667
    %v834 = vpack.c.b16 %v670, %v669
    %v835 = vpack.c.b16 %v672, %v671
    %v836 = vpack.c.b16 %v674, %v673
    %v837 = vpack.c.b16 %v676, %v675
    %v838 = vpack.c.b16 %v678, %v677
    %v839 = vpack.c.b16 %v680, %v679
    %v840 = vpack.c.b16 %v682, %v681
    %v841 = vpack.c.b16 %v684, %v683
    %v842 = vpack.c.b16 %v686, %v685
    %v843 = vpack.c.b16 %v688, %v687
    %v844 = vpack.c.b16 %v690, %v689
    %v845 = vpack.c.b16 %v692, %v691
    %v846 = vpack.c.b16 %v694, %v693
    %v847 = vpack.c.b16 %v696, %v695
    %v848 = vpack.c.b16 %v698, %v697
    %v849 = vpack.c.b16 %v700, %v699
    %v850 = vpack.c.b16 %v702, %v701
    %v851 = vpack.c.b16 %v704, %v703
    %v852 = vpack.c.b16 %v706, %v705
    %v853 = vpack.c.b16 %v708, %v707
    %v854 = vpack.c.b16 %v710, %v709
    %v855 = vpack.c.b16 %v712, %v711
    %v856 = vpack.c.b16 %v714, %v713
    %v857 = vpack.c.b16 %v716, %v715
    %v858 = vpack.c.b16 %v718, %v717
    %v859 = vpack.c.b16 %v720, %v719
    %v860 = vpack.c.b16 %v722, %v721
    %v861 = vpack.c.b16 %v724, %v723
    %v862 = vpack.c.b16 %v726, %v725
    %v863 = vpack.c.b16 %v728, %v727
    %v864 = vpack.c.b16 %v730, %v729
    %v865 = vpack.c.b16 %v732, %v731
    %v866 = vpack.c.b16 %v734, %v733
    %v867 = vpack.c.b16 %v736, %v735
    %v868 = vpack.c.b16 %v738, %v737
    %v869 = vpack.c.b16 %v740, %v739
    %v870 = vpack.c.b16 %v742, %v741
    %v871 = vpack.c.b16 %v744, %v743
    %v872 = vpack.c.b16 %v746, %v745
    %v873 = vpack.c.b16 %v748, %v747
    %v874 = vpack.c.b16 %v750, %v749
    %v875 = vpack.c.b16 %v752, %v751
    %v876 = vpack.c.b16 %v754, %v753
    %v877 = vpack.c.b16 %v756, %v755
    %v878 = vpack.c.b16 %v758, %v757
    %v879 = vpack.c.b16 %v760, %v759
    %v880 = vpack.c.b16 %v762, %v761
    %v881 = vpack.c.b16 %v764, %v763
    %v882 = vpack.c.b16 %v766, %v765
    %v883 = vpack.c.b16 %v768, %v767
    %v884 = vpack.c.b16 %v770, %v769
    %v885 = vpack.c.b16 %v772, %v771
    %v886 = vpack.c.b16 %v774, %v773
    %v897 = vunpack.c.l.b16 %v310
    %v898 = vunpack.c.l.b16 %v311
    %v899 = vunpack.c.l.b16 %v312
    %v900 = vunpack.c.l.b16 %v313
    %v901 = vunpack.c.l.b16 %v314
    %v902 = vunpack.c.l.b16 %v315
    %v903 = vunpack.c.l.b16 %v316
    %v904 = vunpack.c.l.b16 %v317
    %v905 = vunpack.c.l.b16 %v318
    %v906 = vunpack.c.l.b16 %v319
    %v907 = vpack.c.b16 %v898, %v897
    %v908 = vpack.c.b16 %v900, %v899
    %v909 = vpack.c.b16 %v902, %v901
    %v910 = vpack.c.b16 %v904, %v903
    %v911 = vpack.c.b16 %v906, %v905
    %vm917 = vcmask 654336
    %v919 = vsel %vm917, %v775, 0
    %v922 = vsel %vm917, %v776, 0
    %v925 = vsel %vm917, %v777, 0
    %v928 = vsel %vm917, %v778, 0
    %v931 = vsel %vm917, %v779, 0
    %v934 = vsel %vm917, %v780, 0
    %v937 = vsel %vm917, %v781, 0
    %v940 = vsel %vm917, %v782, 0
    %v943 = vsel %vm917, %v783, 0
    %v946 = vsel %vm917, %v784, 0
    %v949 = vsel %vm917, %v785, 0
    %v952 = vsel %vm917, %v786, 0
    %v955 = vsel %vm917, %v787, 0
    %v958 = vsel %vm917, %v788, 0
    %v961 = vsel %vm917, %v789, 0
    %v964 = vsel %vm917, %v790, 0
    %v967 = vsel %vm917, %v791, 0
    %v970 = vsel %vm917, %v792, 0
    %v973 = vsel %vm917, %v793, 0
    %v976 = vsel %vm917, %v794, 0
    %v979 = vsel %vm917, %v795, 0
    %v982 = vsel %vm917, %v796, 0
    %v985 = vsel %vm917, %v797, 0
    %v988 = vsel %vm917, %v798, 0
    %v991 = vsel %vm917, %v799, 0
    %v994 = vsel %vm917, %v800, 0
    %v997 = vsel %vm917, %v801, 0
    %v1000 = vsel %vm917, %v802, 0
    %v1003 = vsel %vm917, %v803, 0
    %v1006 = vsel %vm917, %v804, 0
    %v1009 = vsel %vm917, %v805, 0
    %v1012 = vsel %vm917, %v806, 0
    %v1015 = vsel %vm917, %v807, 0
    %v1018 = vsel %vm917, %v808, 0
    %v1021 = vsel %vm917, %v809, 0
    %v1024 = vsel %vm917, %v810, 0
    %v1027 = vsel %vm917, %v811, 0
    %v1030 = vsel %vm917, %v812, 0
    %v1033 = vsel %vm917, %v813, 0
    %v1036 = vsel %vm917, %v814, 0
    %v1039 = vsel %vm917, %v815, 0
    %v1042 = vsel %vm917, %v816, 0
    %v1045 = vsel %vm917, %v817, 0
    %v1048 = vsel %vm917, %v818, 0
    %v1051 = vsel %vm917, %v819, 0
    %v1054 = vsel %vm917, %v820, 0
    %v1057 = vsel %vm917, %v821, 0
    %v1060 = vsel %vm917, %v822, 0
    %v1063 = vsel %vm917, %v823, 0
    %v1066 = vsel %vm917, %v824, 0
    %v1069 = vsel %vm917, %v825, 0
    %v1072 = vsel %vm917, %v826, 0
    %v1075 = vsel %vm917, %v827, 0
    %v1078 = vsel %vm917, %v828, 0
    %v1081 = vsel %vm917, %v829, 0
    %v1084 = vsel %vm917, %v830, 0
    %v1087 = vsel %vm917, %v831, 0
    %v1090 = vsel %vm917, %v832, 0
    %v1093 = vsel %vm917, %v833, 0
    %v1096 = vsel %vm917, %v834, 0
    %v1099 = vsel %vm917, %v835, 0
    %v1102 = vsel %vm917, %v836, 0
    %v1105 = vsel %vm917, %v837, 0
    %v1108 = vsel %vm917, %v838, 0
    %v1111 = vsel %vm917, %v839, 0
    %v1114 = vsel %vm917, %v840, 0
    %v1117 = vsel %vm917, %v841, 0
    %v1120 = vsel %vm917, %v842, 0
    %v1123 = vsel %vm917, %v843, 0
    %v1126 = vsel %vm917, %v844, 0
    %v1129 = vsel %vm917, %v845, 0
    %v1132 = vsel %vm917, %v846, 0
    %v1135 = vsel %vm917, %v847, 0
    %v1138 = vsel %vm917, %v848, 0
    %v1141 = vsel %vm917, %v849, 0
    %v1144 = vsel %vm917, %v850, 0
    %v1147 = vsel %vm917, %v851, 0
    %v1150 = vsel %vm917, %v852, 0
    %v1153 = vsel %vm917, %v853, 0
    %v1156 = vsel %vm917, %v854, 0
    %v1159 = vsel %vm917, %v855, 0
    %v1162 = vsel %vm917, %v856, 0
    %v1165 = vsel %vm917, %v857, 0
    %v1168 = vsel %vm917, %v858, 0
    %v1171 = vsel %vm917, %v859, 0
    %v1174 = vsel %vm917, %v860, 0
    %v1177 = vsel %vm917, %v861, 0
    %v1180 = vsel %vm917, %v862, 0
    %v1183 = vsel %vm917, %v863, 0
    %v1186 = vsel %vm917, %v864, 0
    %v1189 = vsel %vm917, %v865, 0
    %v1192 = vsel %vm917, %v866, 0
    %v1195 = vsel %vm917, %v867, 0
    %v1198 = vsel %vm917, %v868, 0
    %v1201 = vsel %vm917, %v869, 0
    %v1204 = vsel %vm917, %v870, 0
    %v1207 = vsel %vm917, %v871, 0
    %v1210 = vsel %vm917, %v872, 0
    %v1213 = vsel %vm917, %v873, 0
    %v1216 = vsel %vm917, %v874, 0
    %v1219 = vsel %vm917, %v875, 0
    %v1222 = vsel %vm917, %v876, 0
    %v1225 = vsel %vm917, %v877, 0
    %v1228 = vsel %vm917, %v878, 0
    %v1231 = vsel %vm917, %v879, 0
    %v1234 = vsel %vm917, %v880, 0
    %v1237 = vsel %vm917, %v881, 0
    %v1240 = vsel %vm917, %v882, 0
    %v1243 = vsel %vm917, %v883, 0
    %v1246 = vsel %vm917, %v884, 0
    %v1249 = vsel %vm917, %v885, 0
    %v1252 = vsel %vm917, %v886, 0
    %1254 = vmatprep.subr.bf16.mxu0 0
    %1255 = vmatpush1.bf16.msra.mxu0 %v907
    %1256 = vmatprep.subr.bf16.mxu0 0
    %1257 = vmatpush1.bf16.msra.mxu0 %v908
    %1258 = vmatprep.subr.bf16.mxu0 0
    %1259 = vmatpush1.bf16.msra.mxu0 %v909
    %1260 = vmatprep.subr.bf16.mxu0 0
    %1261 = vmatpush1.bf16.msra.mxu0 %v910
    %1262 = vmatprep.subr.bf16.mxu0 0
    %1263 = vmatpush1.bf16.msra.mxu0 %v911
    %1264 = vmatprep.subr.bf16.mxu0 0
    %1265 = vmatpush1.bf16.msra.mxu0 0
    %1266 = vmatprep.subr.bf16.mxu0 0
    %1267 = vmatpush1.bf16.msra.mxu0 0
    %1268 = vmatprep.subr.bf16.mxu0 0
    %1269 = vmatpush1.bf16.msra.mxu0 0
    %1270 = vmatprep.subr.bf16.mxu0 0
    %1271 = vmatpush1.bf16.msra.mxu0 0
    %1272 = vmatprep.subr.bf16.mxu0 0
    %1273 = vmatpush1.bf16.msra.mxu0 0
    %1274 = vmatprep.subr.bf16.mxu0 0
    %1275 = vmatpush1.bf16.msra.mxu0 0
    %1276 = vmatprep.subr.bf16.mxu0 0
    %1277 = vmatpush1.bf16.msra.mxu0 0
    %1278 = vmatprep.subr.bf16.mxu0 0
    %1279 = vmatpush1.bf16.msra.mxu0 0
    %1280 = vmatprep.subr.bf16.mxu0 0
    %1281 = vmatpush1.bf16.msra.mxu0 0
    %1282 = vmatprep.subr.bf16.mxu0 0
    %1283 = vmatpush1.bf16.msra.mxu0 0
    %1284 = vmatprep.subr.bf16.mxu0 0
    %1285 = vmatpush1.bf16.msra.mxu0 0
    %1286 = vmatprep.mubr.bf16.mxu0 0
    %1287 = vmatmul.mubr.bf16.gmra.mrb[0].mxu0 %v919
    %v1288 = vpop.f32.mrb[0].mxu0
    %v1289 = vadd.f32 %v325, %v1288
    %v1290 = vpop.f32.mrb[0].mxu0
    %v1291 = vpop.f32.mrb[0].mxu0
    %v1292 = vadd.f32 %v325, %v1291
    %v1293 = vpop.f32.mrb[0].mxu0
    %1294 = vmatprep.mubr.bf16.mxu0 0
    %1295 = vmatmul.mubr.bf16.gmra.mrb[0].mxu0 %v922
    %v1296 = vpop.f32.mrb[0].mxu0
    %v1297 = vadd.f32 %v325, %v1296
    %v1298 = vpop.f32.mrb[0].mxu0
    %v1299 = vpop.f32.mrb[0].mxu0
    %v1300 = vadd.f32 %v325, %v1299
    %v1301 = vpop.f32.mrb[0].mxu0
    %1302 = vmatprep.mubr.bf16.mxu0 0
    %1303 = vmatmul.mubr.bf16.gmra.mrb[0].mxu0 %v925
    %v1304 = vpop.f32.mrb[0].mxu0
    %v1305 = vadd.f32 %v325, %v1304
    %v1306 = vpop.f32.mrb[0].mxu0
    %v1307 = vpop.f32.mrb[0].mxu0
    %v1308 = vadd.f32 %v325, %v1307
    %v1309 = vpop.f32.mrb[0].mxu0
    %1310 = vmatprep.mubr.bf16.mxu0 0
    %1311 = vmatmul.mubr.bf16.gmra.mrb[0].mxu0 %v928
    %v1312 = vpop.f32.mrb[0].mxu0
    %v1313 = vadd.f32 %v325, %v1312
    %v1314 = vpop.f32.mrb[0].mxu0
    %v1315 = vpop.f32.mrb[0].mxu0
    %v1316 = vadd.f32 %v325, %v1315
    %v1317 = vpop.f32.mrb[0].mxu0
    %1318 = vmatprep.mubr.bf16.mxu0 0
    %1319 = vmatmul.mubr.bf16.gmra.mrb[0].mxu0 %v931
    %v1320 = vpop.f32.mrb[0].mxu0
    %v1321 = vadd.f32 %v325, %v1320
    %v1322 = vpop.f32.mrb[0].mxu0
    %v1323 = vpop.f32.mrb[0].mxu0
    %v1324 = vadd.f32 %v325, %v1323
    %v1325 = vpop.f32.mrb[0].mxu0
    %1326 = vmatprep.mubr.bf16.mxu0 0
    %1327 = vmatmul.mubr.bf16.gmra.mrb[0].mxu0 %v934
    %v1328 = vpop.f32.mrb[0].mxu0
    %v1329 = vadd.f32 %v325, %v1328
    %v1330 = vpop.f32.mrb[0].mxu0
    %v1331 = vpop.f32.mrb[0].mxu0
    %v1332 = vadd.f32 %v325, %v1331
    %v1333 = vpop.f32.mrb[0].mxu0
    %1334 = vmatprep.mubr.bf16.mxu0 0
    %1335 = vmatmul.mubr.bf16.gmra.mrb[0].mxu0 %v937
    %v1336 = vpop.f32.mrb[0].mxu0
    %v1337 = vadd.f32 %v325, %v1336
    %v1338 = vpop.f32.mrb[0].mxu0
    %v1339 = vpop.f32.mrb[0].mxu0
    %v1340 = vadd.f32 %v325, %v1339
    %v1341 = vpop.f32.mrb[0].mxu0
    %1342 = vmatprep.mubr.bf16.mxu0 0
    %1343 = vmatmul.mubr.bf16.gmra.mrb[0].mxu0 %v940
    %v1344 = vpop.f32.mrb[0].mxu0
    %v1345 = vadd.f32 %v325, %v1344
    %v1346 = vpop.f32.mrb[0].mxu0
    %v1347 = vpop.f32.mrb[0].mxu0
    %v1348 = vadd.f32 %v325, %v1347
    %v1349 = vpop.f32.mrb[0].mxu0
    %1350 = vmatprep.mubr.bf16.mxu0 0
    %1351 = vmatmul.mubr.bf16.gmra.mrb[0].mxu0 %v943
    %v1352 = vpop.f32.mrb[0].mxu0
    %v1353 = vadd.f32 %v325, %v1352
    %v1354 = vpop.f32.mrb[0].mxu0
    %v1355 = vpop.f32.mrb[0].mxu0
    %v1356 = vadd.f32 %v325, %v1355
    %v1357 = vpop.f32.mrb[0].mxu0
    %1358 = vmatprep.mubr.bf16.mxu0 0
    %1359 = vmatmul.mubr.bf16.gmra.mrb[0].mxu0 %v946
    %v1360 = vpop.f32.mrb[0].mxu0
    %v1361 = vadd.f32 %v325, %v1360
    %v1362 = vpop.f32.mrb[0].mxu0
    %v1363 = vpop.f32.mrb[0].mxu0
    %v1364 = vadd.f32 %v325, %v1363
    %v1365 = vpop.f32.mrb[0].mxu0
    %1366 = vmatprep.mubr.bf16.mxu0 0
    %1367 = vmatmul.mubr.bf16.gmra.mrb[0].mxu0 %v949
    %v1368 = vpop.f32.mrb[0].mxu0
    %v1369 = vadd.f32 %v325, %v1368
    %v1370 = vpop.f32.mrb[0].mxu0
    %v1371 = vpop.f32.mrb[0].mxu0
    %v1372 = vadd.f32 %v325, %v1371
    %v1373 = vpop.f32.mrb[0].mxu0
    %1374 = vmatprep.mubr.bf16.mxu0 0
    %1375 = vmatmul.mubr.bf16.gmra.mrb[0].mxu0 %v952
    %v1376 = vpop.f32.mrb[0].mxu0
    %v1377 = vadd.f32 %v325, %v1376
    %v1378 = vpop.f32.mrb[0].mxu0
    %v1379 = vpop.f32.mrb[0].mxu0
    %v1380 = vadd.f32 %v325, %v1379
    %v1381 = vpop.f32.mrb[0].mxu0
    %1382 = vmatprep.mubr.bf16.mxu0 0
    %1383 = vmatmul.mubr.bf16.gmra.mrb[0].mxu0 %v955
    %v1384 = vpop.f32.mrb[0].mxu0
    %v1385 = vadd.f32 %v325, %v1384
    %v1386 = vpop.f32.mrb[0].mxu0
    %v1387 = vpop.f32.mrb[0].mxu0
    %v1388 = vadd.f32 %v325, %v1387
    %v1389 = vpop.f32.mrb[0].mxu0
    %1390 = vmatprep.mubr.bf16.mxu0 0
    %1391 = vmatmul.mubr.bf16.gmra.mrb[0].mxu0 %v958
    %v1392 = vpop.f32.mrb[0].mxu0
    %v1393 = vadd.f32 %v325, %v1392
    %v1394 = vpop.f32.mrb[0].mxu0
    %v1395 = vpop.f32.mrb[0].mxu0
    %v1396 = vadd.f32 %v325, %v1395
    %v1397 = vpop.f32.mrb[0].mxu0
    %1398 = vmatprep.mubr.bf16.mxu0 0
    %1399 = vmatmul.mubr.bf16.gmra.mrb[0].mxu0 %v961
    %v1400 = vpop.f32.mrb[0].mxu0
    %v1401 = vadd.f32 %v325, %v1400
    %v1402 = vpop.f32.mrb[0].mxu0
    %v1403 = vpop.f32.mrb[0].mxu0
    %v1404 = vadd.f32 %v325, %v1403
    %v1405 = vpop.f32.mrb[0].mxu0
    %1406 = vmatprep.mubr.bf16.mxu0 0
    %1407 = vmatmul.mubr.bf16.gmra.mrb[0].mxu0 %v964
    %v1408 = vpop.f32.mrb[0].mxu0
    %v1409 = vadd.f32 %v325, %v1408
    %v1410 = vpop.f32.mrb[0].mxu0
    %v1411 = vpop.f32.mrb[0].mxu0
    %v1412 = vadd.f32 %v325, %v1411
    %v1413 = vpop.f32.mrb[0].mxu0
    %1414 = vmatprep.mubr.bf16.mxu0 0
    %1415 = vmatmul.mubr.bf16.gmra.mrb[0].mxu0 %v967
    %v1416 = vpop.f32.mrb[0].mxu0
    %v1417 = vadd.f32 %v325, %v1416
    %v1418 = vpop.f32.mrb[0].mxu0
    %v1419 = vpop.f32.mrb[0].mxu0
    %v1420 = vadd.f32 %v325, %v1419
    %v1421 = vpop.f32.mrb[0].mxu0
    %1422 = vmatprep.mubr.bf16.mxu0 0
    %1423 = vmatmul.mubr.bf16.gmra.mrb[0].mxu0 %v970
    %v1424 = vpop.f32.mrb[0].mxu0
    %v1425 = vadd.f32 %v325, %v1424
    %v1426 = vpop.f32.mrb[0].mxu0
    %v1427 = vpop.f32.mrb[0].mxu0
    %v1428 = vadd.f32 %v325, %v1427
    %v1429 = vpop.f32.mrb[0].mxu0
    %1430 = vmatprep.mubr.bf16.mxu0 0
    %1431 = vmatmul.mubr.bf16.gmra.mrb[0].mxu0 %v973
    %v1432 = vpop.f32.mrb[0].mxu0
    %v1433 = vadd.f32 %v325, %v1432
    %v1434 = vpop.f32.mrb[0].mxu0
    %v1435 = vpop.f32.mrb[0].mxu0
    %v1436 = vadd.f32 %v325, %v1435
    %v1437 = vpop.f32.mrb[0].mxu0
    %1438 = vmatprep.mubr.bf16.mxu0 0
    %1439 = vmatmul.mubr.bf16.gmra.mrb[0].mxu0 %v976
    %v1440 = vpop.f32.mrb[0].mxu0
    %v1441 = vadd.f32 %v325, %v1440
    %v1442 = vpop.f32.mrb[0].mxu0
    %v1443 = vpop.f32.mrb[0].mxu0
    %v1444 = vadd.f32 %v325, %v1443
    %v1445 = vpop.f32.mrb[0].mxu0
    %1446 = vmatprep.mubr.bf16.mxu0 0
    %1447 = vmatmul.mubr.bf16.gmra.mrb[0].mxu0 %v979
    %v1448 = vpop.f32.mrb[0].mxu0
    %v1449 = vadd.f32 %v325, %v1448
    %v1450 = vpop.f32.mrb[0].mxu0
    %v1451 = vpop.f32.mrb[0].mxu0
    %v1452 = vadd.f32 %v325, %v1451
    %v1453 = vpop.f32.mrb[0].mxu0
    %1454 = vmatprep.mubr.bf16.mxu0 0
    %1455 = vmatmul.mubr.bf16.gmra.mrb[0].mxu0 %v982
    %v1456 = vpop.f32.mrb[0].mxu0
    %v1457 = vadd.f32 %v325, %v1456
    %v1458 = vpop.f32.mrb[0].mxu0
    %v1459 = vpop.f32.mrb[0].mxu0
    %v1460 = vadd.f32 %v325, %v1459
    %v1461 = vpop.f32.mrb[0].mxu0
    %1462 = vmatprep.mubr.bf16.mxu0 0
    %1463 = vmatmul.mubr.bf16.gmra.mrb[0].mxu0 %v985
    %v1464 = vpop.f32.mrb[0].mxu0
    %v1465 = vadd.f32 %v325, %v1464
    %v1466 = vpop.f32.mrb[0].mxu0
    %v1467 = vpop.f32.mrb[0].mxu0
    %v1468 = vadd.f32 %v325, %v1467
    %v1469 = vpop.f32.mrb[0].mxu0
    %1470 = vmatprep.mubr.bf16.mxu0 0
    %1471 = vmatmul.mubr.bf16.gmra.mrb[0].mxu0 %v988
    %v1472 = vpop.f32.mrb[0].mxu0
    %v1473 = vadd.f32 %v325, %v1472
    %v1474 = vpop.f32.mrb[0].mxu0
    %v1475 = vpop.f32.mrb[0].mxu0
    %v1476 = vadd.f32 %v325, %v1475
    %v1477 = vpop.f32.mrb[0].mxu0
    %1478 = vmatprep.mubr.bf16.mxu0 0
    %1479 = vmatmul.mubr.bf16.gmra.mrb[0].mxu0 %v991
    %v1480 = vpop.f32.mrb[0].mxu0
    %v1481 = vadd.f32 %v325, %v1480
    %v1482 = vpop.f32.mrb[0].mxu0
    %v1483 = vpop.f32.mrb[0].mxu0
    %v1484 = vadd.f32 %v325, %v1483
    %v1485 = vpop.f32.mrb[0].mxu0
    %1486 = vmatprep.mubr.bf16.mxu0 0
    %1487 = vmatmul.mubr.bf16.gmra.mrb[0].mxu0 %v994
    %v1488 = vpop.f32.mrb[0].mxu0
    %v1489 = vadd.f32 %v325, %v1488
    %v1490 = vpop.f32.mrb[0].mxu0
    %v1491 = vpop.f32.mrb[0].mxu0
    %v1492 = vadd.f32 %v325, %v1491
    %v1493 = vpop.f32.mrb[0].mxu0
    %1494 = vmatprep.mubr.bf16.mxu0 0
    %1495 = vmatmul.mubr.bf16.gmra.mrb[0].mxu0 %v997
    %v1496 = vpop.f32.mrb[0].mxu0
    %v1497 = vadd.f32 %v325, %v1496
    %v1498 = vpop.f32.mrb[0].mxu0
    %v1499 = vpop.f32.mrb[0].mxu0
    %v1500 = vadd.f32 %v325, %v1499
    %v1501 = vpop.f32.mrb[0].mxu0
    %1502 = vmatprep.mubr.bf16.mxu0 0
    %1503 = vmatmul.mubr.bf16.gmra.mrb[0].mxu0 %v1000
    %v1504 = vpop.f32.mrb[0].mxu0
    %v1505 = vadd.f32 %v325, %v1504
    %v1506 = vpop.f32.mrb[0].mxu0
    %v1507 = vpop.f32.mrb[0].mxu0
    %v1508 = vadd.f32 %v325, %v1507
    %v1509 = vpop.f32.mrb[0].mxu0
    %1510 = vmatprep.mubr.bf16.mxu0 0
    %1511 = vmatmul.mubr.bf16.gmra.mrb[0].mxu0 %v1003
    %v1512 = vpop.f32.mrb[0].mxu0
    %v1513 = vadd.f32 %v325, %v1512
    %v1514 = vpop.f32.mrb[0].mxu0
    %v1515 = vpop.f32.mrb[0].mxu0
    %v1516 = vadd.f32 %v325, %v1515
    %v1517 = vpop.f32.mrb[0].mxu0
    %1518 = vmatprep.mubr.bf16.mxu0 0
    %1519 = vmatmul.mubr.bf16.gmra.mrb[0].mxu0 %v1006
    %v1520 = vpop.f32.mrb[0].mxu0
    %v1521 = vadd.f32 %v325, %v1520
    %v1522 = vpop.f32.mrb[0].mxu0
    %v1523 = vpop.f32.mrb[0].mxu0
    %v1524 = vadd.f32 %v325, %v1523
    %v1525 = vpop.f32.mrb[0].mxu0
    %1526 = vmatprep.mubr.bf16.mxu0 0
    %1527 = vmatmul.mubr.bf16.gmra.mrb[0].mxu0 %v1009
    %v1528 = vpop.f32.mrb[0].mxu0
    %v1529 = vadd.f32 %v325, %v1528
    %v1530 = vpop.f32.mrb[0].mxu0
    %v1531 = vpop.f32.mrb[0].mxu0
    %v1532 = vadd.f32 %v325, %v1531
    %v1533 = vpop.f32.mrb[0].mxu0
    %1534 = vmatprep.mubr.bf16.mxu0 0
    %1535 = vmatmul.mubr.bf16.gmra.mrb[0].mxu0 %v1012
    %v1536 = vpop.f32.mrb[0].mxu0
    %v1537 = vadd.f32 %v325, %v1536
    %v1538 = vpop.f32.mrb[0].mxu0
    %v1539 = vpop.f32.mrb[0].mxu0
    %v1540 = vadd.f32 %v325, %v1539
    %v1541 = vpop.f32.mrb[0].mxu0
    %1542 = vmatprep.mubr.bf16.mxu0 0
    %1543 = vmatmul.mubr.bf16.gmra.mrb[0].mxu0 %v1015
    %v1544 = vpop.f32.mrb[0].mxu0
    %v1545 = vadd.f32 %v325, %v1544
    %v1546 = vpop.f32.mrb[0].mxu0
    %v1547 = vpop.f32.mrb[0].mxu0
    %v1548 = vadd.f32 %v325, %v1547
    %v1549 = vpop.f32.mrb[0].mxu0
    %1550 = vmatprep.mubr.bf16.mxu0 0
    %1551 = vmatmul.mubr.bf16.gmra.mrb[0].mxu0 %v1018
    %v1552 = vpop.f32.mrb[0].mxu0
    %v1553 = vadd.f32 %v325, %v1552
    %v1554 = vpop.f32.mrb[0].mxu0
    %v1555 = vpop.f32.mrb[0].mxu0
    %v1556 = vadd.f32 %v325, %v1555
    %v1557 = vpop.f32.mrb[0].mxu0
    %1558 = vmatprep.mubr.bf16.mxu0 0
    %1559 = vmatmul.mubr.bf16.gmra.mrb[0].mxu0 %v1021
    %v1560 = vpop.f32.mrb[0].mxu0
    %v1561 = vadd.f32 %v325, %v1560
    %v1562 = vpop.f32.mrb[0].mxu0
    %v1563 = vpop.f32.mrb[0].mxu0
    %v1564 = vadd.f32 %v325, %v1563
    %v1565 = vpop.f32.mrb[0].mxu0
    %1566 = vmatprep.mubr.bf16.mxu0 0
    %1567 = vmatmul.mubr.bf16.gmra.mrb[0].mxu0 %v1024
    %v1568 = vpop.f32.mrb[0].mxu0
    %v1569 = vadd.f32 %v325, %v1568
    %v1570 = vpop.f32.mrb[0].mxu0
    %v1571 = vpop.f32.mrb[0].mxu0
    %v1572 = vadd.f32 %v325, %v1571
    %v1573 = vpop.f32.mrb[0].mxu0
    %1574 = vmatprep.mubr.bf16.mxu0 0
    %1575 = vmatmul.mubr.bf16.gmra.mrb[0].mxu0 %v1027
    %v1576 = vpop.f32.mrb[0].mxu0
    %v1577 = vadd.f32 %v325, %v1576
    %v1578 = vpop.f32.mrb[0].mxu0
    %v1579 = vpop.f32.mrb[0].mxu0
    %v1580 = vadd.f32 %v325, %v1579
    %v1581 = vpop.f32.mrb[0].mxu0
    %1582 = vmatprep.mubr.bf16.mxu0 0
    %1583 = vmatmul.mubr.bf16.gmra.mrb[0].mxu0 %v1030
    %v1584 = vpop.f32.mrb[0].mxu0
    %v1585 = vadd.f32 %v325, %v1584
    %v1586 = vpop.f32.mrb[0].mxu0
    %v1587 = vpop.f32.mrb[0].mxu0
    %v1588 = vadd.f32 %v325, %v1587
    %v1589 = vpop.f32.mrb[0].mxu0
    %1590 = vmatprep.mubr.bf16.mxu0 0
    %1591 = vmatmul.mubr.bf16.gmra.mrb[0].mxu0 %v1033
    %v1592 = vpop.f32.mrb[0].mxu0
    %v1593 = vadd.f32 %v325, %v1592
    %v1594 = vpop.f32.mrb[0].mxu0
    %v1595 = vpop.f32.mrb[0].mxu0
    %v1596 = vadd.f32 %v325, %v1595
    %v1597 = vpop.f32.mrb[0].mxu0
    %1598 = vmatprep.mubr.bf16.mxu0 0
    %1599 = vmatmul.mubr.bf16.gmra.mrb[0].mxu0 %v1036
    %v1600 = vpop.f32.mrb[0].mxu0
    %v1601 = vadd.f32 %v325, %v1600
    %v1602 = vpop.f32.mrb[0].mxu0
    %v1603 = vpop.f32.mrb[0].mxu0
    %v1604 = vadd.f32 %v325, %v1603
    %v1605 = vpop.f32.mrb[0].mxu0
    %1606 = vmatprep.mubr.bf16.mxu0 0
    %1607 = vmatmul.mubr.bf16.gmra.mrb[0].mxu0 %v1039
    %v1608 = vpop.f32.mrb[0].mxu0
    %v1609 = vadd.f32 %v325, %v1608
    %v1610 = vpop.f32.mrb[0].mxu0
    %v1611 = vpop.f32.mrb[0].mxu0
    %v1612 = vadd.f32 %v325, %v1611
    %v1613 = vpop.f32.mrb[0].mxu0
    %1614 = vmatprep.mubr.bf16.mxu0 0
    %1615 = vmatmul.mubr.bf16.gmra.mrb[0].mxu0 %v1042
    %v1616 = vpop.f32.mrb[0].mxu0
    %v1617 = vadd.f32 %v325, %v1616
    %v1618 = vpop.f32.mrb[0].mxu0
    %v1619 = vpop.f32.mrb[0].mxu0
    %v1620 = vadd.f32 %v325, %v1619
    %v1621 = vpop.f32.mrb[0].mxu0
    %1622 = vmatprep.mubr.bf16.mxu0 0
    %1623 = vmatmul.mubr.bf16.gmra.mrb[0].mxu0 %v1045
    %v1624 = vpop.f32.mrb[0].mxu0
    %v1625 = vadd.f32 %v325, %v1624
    %v1626 = vpop.f32.mrb[0].mxu0
    %v1627 = vpop.f32.mrb[0].mxu0
    %v1628 = vadd.f32 %v325, %v1627
    %v1629 = vpop.f32.mrb[0].mxu0
    %1630 = vmatprep.mubr.bf16.mxu0 0
    %1631 = vmatmul.mubr.bf16.gmra.mrb[0].mxu0 %v1048
    %v1632 = vpop.f32.mrb[0].mxu0
    %v1633 = vadd.f32 %v325, %v1632
    %v1634 = vpop.f32.mrb[0].mxu0
    %v1635 = vpop.f32.mrb[0].mxu0
    %v1636 = vadd.f32 %v325, %v1635
    %v1637 = vpop.f32.mrb[0].mxu0
    %1638 = vmatprep.mubr.bf16.mxu0 0
    %1639 = vmatmul.mubr.bf16.gmra.mrb[0].mxu0 %v1051
    %v1640 = vpop.f32.mrb[0].mxu0
    %v1641 = vadd.f32 %v325, %v1640
    %v1642 = vpop.f32.mrb[0].mxu0
    %v1643 = vpop.f32.mrb[0].mxu0
    %v1644 = vadd.f32 %v325, %v1643
    %v1645 = vpop.f32.mrb[0].mxu0
    %1646 = vmatprep.mubr.bf16.mxu0 0
    %1647 = vmatmul.mubr.bf16.gmra.mrb[0].mxu0 %v1054
    %v1648 = vpop.f32.mrb[0].mxu0
    %v1649 = vadd.f32 %v325, %v1648
    %v1650 = vpop.f32.mrb[0].mxu0
    %v1651 = vpop.f32.mrb[0].mxu0
    %v1652 = vadd.f32 %v325, %v1651
    %v1653 = vpop.f32.mrb[0].mxu0
    %1654 = vmatprep.mubr.bf16.mxu0 0
    %1655 = vmatmul.mubr.bf16.gmra.mrb[0].mxu0 %v1057
    %v1656 = vpop.f32.mrb[0].mxu0
    %v1657 = vadd.f32 %v325, %v1656
    %v1658 = vpop.f32.mrb[0].mxu0
    %v1659 = vpop.f32.mrb[0].mxu0
    %v1660 = vadd.f32 %v325, %v1659
    %v1661 = vpop.f32.mrb[0].mxu0
    %1662 = vmatprep.mubr.bf16.mxu0 0
    %1663 = vmatmul.mubr.bf16.gmra.mrb[0].mxu0 %v1060
    %v1664 = vpop.f32.mrb[0].mxu0
    %v1665 = vadd.f32 %v325, %v1664
    %v1666 = vpop.f32.mrb[0].mxu0
    %v1667 = vpop.f32.mrb[0].mxu0
    %v1668 = vadd.f32 %v325, %v1667
    %v1669 = vpop.f32.mrb[0].mxu0
    %1670 = vmatprep.mubr.bf16.mxu0 0
    %1671 = vmatmul.mubr.bf16.gmra.mrb[0].mxu0 %v1063
    %v1672 = vpop.f32.mrb[0].mxu0
    %v1673 = vadd.f32 %v325, %v1672
    %v1674 = vpop.f32.mrb[0].mxu0
    %v1675 = vpop.f32.mrb[0].mxu0
    %v1676 = vadd.f32 %v325, %v1675
    %v1677 = vpop.f32.mrb[0].mxu0
    %1678 = vmatprep.mubr.bf16.mxu0 0
    %1679 = vmatmul.mubr.bf16.gmra.mrb[0].mxu0 %v1066
    %v1680 = vpop.f32.mrb[0].mxu0
    %v1681 = vadd.f32 %v325, %v1680
    %v1682 = vpop.f32.mrb[0].mxu0
    %v1683 = vpop.f32.mrb[0].mxu0
    %v1684 = vadd.f32 %v325, %v1683
    %v1685 = vpop.f32.mrb[0].mxu0
    %1686 = vmatprep.mubr.bf16.mxu0 0
    %1687 = vmatmul.mubr.bf16.gmra.mrb[0].mxu0 %v1069
    %v1688 = vpop.f32.mrb[0].mxu0
    %v1689 = vadd.f32 %v325, %v1688
    %v1690 = vpop.f32.mrb[0].mxu0
    %v1691 = vpop.f32.mrb[0].mxu0
    %v1692 = vadd.f32 %v325, %v1691
    %v1693 = vpop.f32.mrb[0].mxu0
    %1694 = vmatprep.mubr.bf16.mxu0 0
    %1695 = vmatmul.mubr.bf16.gmra.mrb[0].mxu0 %v1072
    %v1696 = vpop.f32.mrb[0].mxu0
    %v1697 = vadd.f32 %v325, %v1696
    %v1698 = vpop.f32.mrb[0].mxu0
    %v1699 = vpop.f32.mrb[0].mxu0
    %v1700 = vadd.f32 %v325, %v1699
    %v1701 = vpop.f32.mrb[0].mxu0
    %1702 = vmatprep.mubr.bf16.mxu0 0
    %1703 = vmatmul.mubr.bf16.gmra.mrb[0].mxu0 %v1075
    %v1704 = vpop.f32.mrb[0].mxu0
    %v1705 = vadd.f32 %v325, %v1704
    %v1706 = vpop.f32.mrb[0].mxu0
    %v1707 = vpop.f32.mrb[0].mxu0
    %v1708 = vadd.f32 %v325, %v1707
    %v1709 = vpop.f32.mrb[0].mxu0
    %1710 = vmatprep.mubr.bf16.mxu0 0
    %1711 = vmatmul.mubr.bf16.gmra.mrb[0].mxu0 %v1078
    %v1712 = vpop.f32.mrb[0].mxu0
    %v1713 = vadd.f32 %v325, %v1712
    %v1714 = vpop.f32.mrb[0].mxu0
    %v1715 = vpop.f32.mrb[0].mxu0
    %v1716 = vadd.f32 %v325, %v1715
    %v1717 = vpop.f32.mrb[0].mxu0
    %1718 = vmatprep.mubr.bf16.mxu0 0
    %1719 = vmatmul.mubr.bf16.gmra.mrb[0].mxu0 %v1081
    %v1720 = vpop.f32.mrb[0].mxu0
    %v1721 = vadd.f32 %v325, %v1720
    %v1722 = vpop.f32.mrb[0].mxu0
    %v1723 = vpop.f32.mrb[0].mxu0
    %v1724 = vadd.f32 %v325, %v1723
    %v1725 = vpop.f32.mrb[0].mxu0
    %1726 = vmatprep.mubr.bf16.mxu0 0
    %1727 = vmatmul.mubr.bf16.gmra.mrb[0].mxu0 %v1084
    %v1728 = vpop.f32.mrb[0].mxu0
    %v1729 = vadd.f32 %v325, %v1728
    %v1730 = vpop.f32.mrb[0].mxu0
    %v1731 = vpop.f32.mrb[0].mxu0
    %v1732 = vadd.f32 %v325, %v1731
    %v1733 = vpop.f32.mrb[0].mxu0
    %1734 = vmatprep.mubr.bf16.mxu0 0
    %1735 = vmatmul.mubr.bf16.gmra.mrb[0].mxu0 %v1087
    %v1736 = vpop.f32.mrb[0].mxu0
    %v1737 = vadd.f32 %v325, %v1736
    %v1738 = vpop.f32.mrb[0].mxu0
    %v1739 = vpop.f32.mrb[0].mxu0
    %v1740 = vadd.f32 %v325, %v1739
    %v1741 = vpop.f32.mrb[0].mxu0
    %1742 = vmatprep.mubr.bf16.mxu0 0
    %1743 = vmatmul.mubr.bf16.gmra.mrb[0].mxu0 %v1090
    %v1744 = vpop.f32.mrb[0].mxu0
    %v1745 = vadd.f32 %v325, %v1744
    %v1746 = vpop.f32.mrb[0].mxu0
    %v1747 = vpop.f32.mrb[0].mxu0
    %v1748 = vadd.f32 %v325, %v1747
    %v1749 = vpop.f32.mrb[0].mxu0
    %1750 = vmatprep.mubr.bf16.mxu0 0
    %1751 = vmatmul.mubr.bf16.gmra.mrb[0].mxu0 %v1093
    %v1752 = vpop.f32.mrb[0].mxu0
    %v1753 = vadd.f32 %v325, %v1752
    %v1754 = vpop.f32.mrb[0].mxu0
    %v1755 = vpop.f32.mrb[0].mxu0
    %v1756 = vadd.f32 %v325, %v1755
    %v1757 = vpop.f32.mrb[0].mxu0
    %1758 = vmatprep.mubr.bf16.mxu0 0
    %1759 = vmatmul.mubr.bf16.gmra.mrb[0].mxu0 %v1096
    %v1760 = vpop.f32.mrb[0].mxu0
    %v1761 = vadd.f32 %v325, %v1760
    %v1762 = vpop.f32.mrb[0].mxu0
    %v1763 = vpop.f32.mrb[0].mxu0
    %v1764 = vadd.f32 %v325, %v1763
    %v1765 = vpop.f32.mrb[0].mxu0
    %1766 = vmatprep.mubr.bf16.mxu0 0
    %1767 = vmatmul.mubr.bf16.gmra.mrb[0].mxu0 %v1099
    %v1768 = vpop.f32.mrb[0].mxu0
    %v1769 = vadd.f32 %v325, %v1768
    %v1770 = vpop.f32.mrb[0].mxu0
    %v1771 = vpop.f32.mrb[0].mxu0
    %v1772 = vadd.f32 %v325, %v1771
    %v1773 = vpop.f32.mrb[0].mxu0
    %1774 = vmatprep.mubr.bf16.mxu0 0
    %1775 = vmatmul.mubr.bf16.gmra.mrb[0].mxu0 %v1102
    %v1776 = vpop.f32.mrb[0].mxu0
    %v1777 = vadd.f32 %v325, %v1776
    %v1778 = vpop.f32.mrb[0].mxu0
    %v1779 = vpop.f32.mrb[0].mxu0
    %v1780 = vadd.f32 %v325, %v1779
    %v1781 = vpop.f32.mrb[0].mxu0
    %1782 = vmatprep.mubr.bf16.mxu0 0
    %1783 = vmatmul.mubr.bf16.gmra.mrb[0].mxu0 %v1105
    %v1784 = vpop.f32.mrb[0].mxu0
    %v1785 = vadd.f32 %v325, %v1784
    %v1786 = vpop.f32.mrb[0].mxu0
    %v1787 = vpop.f32.mrb[0].mxu0
    %v1788 = vadd.f32 %v325, %v1787
    %v1789 = vpop.f32.mrb[0].mxu0
    %1790 = vmatprep.mubr.bf16.mxu0 0
    %1791 = vmatmul.mubr.bf16.gmra.mrb[0].mxu0 %v1108
    %v1792 = vpop.f32.mrb[0].mxu0
    %v1793 = vadd.f32 %v325, %v1792
    %v1794 = vpop.f32.mrb[0].mxu0
    %v1795 = vpop.f32.mrb[0].mxu0
    %v1796 = vadd.f32 %v325, %v1795
    %v1797 = vpop.f32.mrb[0].mxu0
    %1798 = vmatprep.mubr.bf16.mxu0 0
    %1799 = vmatmul.mubr.bf16.gmra.mrb[0].mxu0 %v1111
    %v1800 = vpop.f32.mrb[0].mxu0
    %v1801 = vadd.f32 %v325, %v1800
    %v1802 = vpop.f32.mrb[0].mxu0
    %v1803 = vpop.f32.mrb[0].mxu0
    %v1804 = vadd.f32 %v325, %v1803
    %v1805 = vpop.f32.mrb[0].mxu0
    %1806 = vmatprep.mubr.bf16.mxu0 0
    %1807 = vmatmul.mubr.bf16.gmra.mrb[0].mxu0 %v1114
    %v1808 = vpop.f32.mrb[0].mxu0
    %v1809 = vadd.f32 %v325, %v1808
    %v1810 = vpop.f32.mrb[0].mxu0
    %v1811 = vpop.f32.mrb[0].mxu0
    %v1812 = vadd.f32 %v325, %v1811
    %v1813 = vpop.f32.mrb[0].mxu0
    %1814 = vmatprep.mubr.bf16.mxu0 0
    %1815 = vmatmul.mubr.bf16.gmra.mrb[0].mxu0 %v1117
    %v1816 = vpop.f32.mrb[0].mxu0
    %v1817 = vadd.f32 %v325, %v1816
    %v1818 = vpop.f32.mrb[0].mxu0
    %v1819 = vpop.f32.mrb[0].mxu0
    %v1820 = vadd.f32 %v325, %v1819
    %v1821 = vpop.f32.mrb[0].mxu0
    %1822 = vmatprep.mubr.bf16.mxu0 0
    %1823 = vmatmul.mubr.bf16.gmra.mrb[0].mxu0 %v1120
    %v1824 = vpop.f32.mrb[0].mxu0
    %v1825 = vadd.f32 %v325, %v1824
    %v1826 = vpop.f32.mrb[0].mxu0
    %v1827 = vpop.f32.mrb[0].mxu0
    %v1828 = vadd.f32 %v325, %v1827
    %v1829 = vpop.f32.mrb[0].mxu0
    %1830 = vmatprep.mubr.bf16.mxu0 0
    %1831 = vmatmul.mubr.bf16.gmra.mrb[0].mxu0 %v1123
    %v1832 = vpop.f32.mrb[0].mxu0
    %v1833 = vadd.f32 %v325, %v1832
    %v1834 = vpop.f32.mrb[0].mxu0
    %v1835 = vpop.f32.mrb[0].mxu0
    %v1836 = vadd.f32 %v325, %v1835
    %v1837 = vpop.f32.mrb[0].mxu0
    %1838 = vmatprep.mubr.bf16.mxu0 0
    %1839 = vmatmul.mubr.bf16.gmra.mrb[0].mxu0 %v1126
    %v1840 = vpop.f32.mrb[0].mxu0
    %v1841 = vadd.f32 %v325, %v1840
    %v1842 = vpop.f32.mrb[0].mxu0
    %v1843 = vpop.f32.mrb[0].mxu0
    %v1844 = vadd.f32 %v325, %v1843
    %v1845 = vpop.f32.mrb[0].mxu0
    %1846 = vmatprep.mubr.bf16.mxu0 0
    %1847 = vmatmul.mubr.bf16.gmra.mrb[0].mxu0 %v1129
    %v1848 = vpop.f32.mrb[0].mxu0
    %v1849 = vadd.f32 %v325, %v1848
    %v1850 = vpop.f32.mrb[0].mxu0
    %v1851 = vpop.f32.mrb[0].mxu0
    %v1852 = vadd.f32 %v325, %v1851
    %v1853 = vpop.f32.mrb[0].mxu0
    %1854 = vmatprep.mubr.bf16.mxu0 0
    %1855 = vmatmul.mubr.bf16.gmra.mrb[0].mxu0 %v1132
    %v1856 = vpop.f32.mrb[0].mxu0
    %v1857 = vadd.f32 %v325, %v1856
    %v1858 = vpop.f32.mrb[0].mxu0
    %v1859 = vpop.f32.mrb[0].mxu0
    %v1860 = vadd.f32 %v325, %v1859
    %v1861 = vpop.f32.mrb[0].mxu0
    %1862 = vmatprep.mubr.bf16.mxu0 0
    %1863 = vmatmul.mubr.bf16.gmra.mrb[0].mxu0 %v1135
    %v1864 = vpop.f32.mrb[0].mxu0
    %v1865 = vadd.f32 %v325, %v1864
    %v1866 = vpop.f32.mrb[0].mxu0
    %v1867 = vpop.f32.mrb[0].mxu0
    %v1868 = vadd.f32 %v325, %v1867
    %v1869 = vpop.f32.mrb[0].mxu0
    %1870 = vmatprep.mubr.bf16.mxu0 0
    %1871 = vmatmul.mubr.bf16.gmra.mrb[0].mxu0 %v1138
    %v1872 = vpop.f32.mrb[0].mxu0
    %v1873 = vadd.f32 %v325, %v1872
    %v1874 = vpop.f32.mrb[0].mxu0
    %v1875 = vpop.f32.mrb[0].mxu0
    %v1876 = vadd.f32 %v325, %v1875
    %v1877 = vpop.f32.mrb[0].mxu0
    %1878 = vmatprep.mubr.bf16.mxu0 0
    %1879 = vmatmul.mubr.bf16.gmra.mrb[0].mxu0 %v1141
    %v1880 = vpop.f32.mrb[0].mxu0
    %v1881 = vadd.f32 %v325, %v1880
    %v1882 = vpop.f32.mrb[0].mxu0
    %v1883 = vpop.f32.mrb[0].mxu0
    %v1884 = vadd.f32 %v325, %v1883
    %v1885 = vpop.f32.mrb[0].mxu0
    %1886 = vmatprep.mubr.bf16.mxu0 0
    %1887 = vmatmul.mubr.bf16.gmra.mrb[0].mxu0 %v1144
    %v1888 = vpop.f32.mrb[0].mxu0
    %v1889 = vadd.f32 %v325, %v1888
    %v1890 = vpop.f32.mrb[0].mxu0
    %v1891 = vpop.f32.mrb[0].mxu0
    %v1892 = vadd.f32 %v325, %v1891
    %v1893 = vpop.f32.mrb[0].mxu0
    %1894 = vmatprep.mubr.bf16.mxu0 0
    %1895 = vmatmul.mubr.bf16.gmra.mrb[0].mxu0 %v1147
    %v1896 = vpop.f32.mrb[0].mxu0
    %v1897 = vadd.f32 %v325, %v1896
    %v1898 = vpop.f32.mrb[0].mxu0
    %v1899 = vpop.f32.mrb[0].mxu0
    %v1900 = vadd.f32 %v325, %v1899
    %v1901 = vpop.f32.mrb[0].mxu0
    %1902 = vmatprep.mubr.bf16.mxu0 0
    %1903 = vmatmul.mubr.bf16.gmra.mrb[0].mxu0 %v1150
    %v1904 = vpop.f32.mrb[0].mxu0
    %v1905 = vadd.f32 %v325, %v1904
    %v1906 = vpop.f32.mrb[0].mxu0
    %v1907 = vpop.f32.mrb[0].mxu0
    %v1908 = vadd.f32 %v325, %v1907
    %v1909 = vpop.f32.mrb[0].mxu0
    %1910 = vmatprep.mubr.bf16.mxu0 0
    %1911 = vmatmul.mubr.bf16.gmra.mrb[0].mxu0 %v1153
    %v1912 = vpop.f32.mrb[0].mxu0
    %v1913 = vadd.f32 %v325, %v1912
    %v1914 = vpop.f32.mrb[0].mxu0
    %v1915 = vpop.f32.mrb[0].mxu0
    %v1916 = vadd.f32 %v325, %v1915
    %v1917 = vpop.f32.mrb[0].mxu0
    %1918 = vmatprep.mubr.bf16.mxu0 0
    %1919 = vmatmul.mubr.bf16.gmra.mrb[0].mxu0 %v1156
    %v1920 = vpop.f32.mrb[0].mxu0
    %v1921 = vadd.f32 %v325, %v1920
    %v1922 = vpop.f32.mrb[0].mxu0
    %v1923 = vpop.f32.mrb[0].mxu0
    %v1924 = vadd.f32 %v325, %v1923
    %v1925 = vpop.f32.mrb[0].mxu0
    %1926 = vmatprep.mubr.bf16.mxu0 0
    %1927 = vmatmul.mubr.bf16.gmra.mrb[0].mxu0 %v1159
    %v1928 = vpop.f32.mrb[0].mxu0
    %v1929 = vadd.f32 %v325, %v1928
    %v1930 = vpop.f32.mrb[0].mxu0
    %v1931 = vpop.f32.mrb[0].mxu0
    %v1932 = vadd.f32 %v325, %v1931
    %v1933 = vpop.f32.mrb[0].mxu0
    %1934 = vmatprep.mubr.bf16.mxu0 0
    %1935 = vmatmul.mubr.bf16.gmra.mrb[0].mxu0 %v1162
    %v1936 = vpop.f32.mrb[0].mxu0
    %v1937 = vadd.f32 %v325, %v1936
    %v1938 = vpop.f32.mrb[0].mxu0
    %v1939 = vpop.f32.mrb[0].mxu0
    %v1940 = vadd.f32 %v325, %v1939
    %v1941 = vpop.f32.mrb[0].mxu0
    %1942 = vmatprep.mubr.bf16.mxu0 0
    %1943 = vmatmul.mubr.bf16.gmra.mrb[0].mxu0 %v1165
    %v1944 = vpop.f32.mrb[0].mxu0
    %v1945 = vadd.f32 %v325, %v1944
    %v1946 = vpop.f32.mrb[0].mxu0
    %v1947 = vpop.f32.mrb[0].mxu0
    %v1948 = vadd.f32 %v325, %v1947
    %v1949 = vpop.f32.mrb[0].mxu0
    %1950 = vmatprep.mubr.bf16.mxu0 0
    %1951 = vmatmul.mubr.bf16.gmra.mrb[0].mxu0 %v1168
    %v1952 = vpop.f32.mrb[0].mxu0
    %v1953 = vadd.f32 %v325, %v1952
    %v1954 = vpop.f32.mrb[0].mxu0
    %v1955 = vpop.f32.mrb[0].mxu0
    %v1956 = vadd.f32 %v325, %v1955
    %v1957 = vpop.f32.mrb[0].mxu0
    %1958 = vmatprep.mubr.bf16.mxu0 0
    %1959 = vmatmul.mubr.bf16.gmra.mrb[0].mxu0 %v1171
    %v1960 = vpop.f32.mrb[0].mxu0
    %v1961 = vadd.f32 %v325, %v1960
    %v1962 = vpop.f32.mrb[0].mxu0
    %v1963 = vpop.f32.mrb[0].mxu0
    %v1964 = vadd.f32 %v325, %v1963
    %v1965 = vpop.f32.mrb[0].mxu0
    %1966 = vmatprep.mubr.bf16.mxu0 0
    %1967 = vmatmul.mubr.bf16.gmra.mrb[0].mxu0 %v1174
    %v1968 = vpop.f32.mrb[0].mxu0
    %v1969 = vadd.f32 %v325, %v1968
    %v1970 = vpop.f32.mrb[0].mxu0
    %v1971 = vpop.f32.mrb[0].mxu0
    %v1972 = vadd.f32 %v325, %v1971
    %v1973 = vpop.f32.mrb[0].mxu0
    %1974 = vmatprep.mubr.bf16.mxu0 0
    %1975 = vmatmul.mubr.bf16.gmra.mrb[0].mxu0 %v1177
    %v1976 = vpop.f32.mrb[0].mxu0
    %v1977 = vadd.f32 %v325, %v1976
    %v1978 = vpop.f32.mrb[0].mxu0
    %v1979 = vpop.f32.mrb[0].mxu0
    %v1980 = vadd.f32 %v325, %v1979
    %v1981 = vpop.f32.mrb[0].mxu0
    %1982 = vmatprep.mubr.bf16.mxu0 0
    %1983 = vmatmul.mubr.bf16.gmra.mrb[0].mxu0 %v1180
    %v1984 = vpop.f32.mrb[0].mxu0
    %v1985 = vadd.f32 %v325, %v1984
    %v1986 = vpop.f32.mrb[0].mxu0
    %v1987 = vpop.f32.mrb[0].mxu0
    %v1988 = vadd.f32 %v325, %v1987
    %v1989 = vpop.f32.mrb[0].mxu0
    %1990 = vmatprep.mubr.bf16.mxu0 0
    %1991 = vmatmul.mubr.bf16.gmra.mrb[0].mxu0 %v1183
    %v1992 = vpop.f32.mrb[0].mxu0
    %v1993 = vadd.f32 %v325, %v1992
    %v1994 = vpop.f32.mrb[0].mxu0
    %v1995 = vpop.f32.mrb[0].mxu0
    %v1996 = vadd.f32 %v325, %v1995
    %v1997 = vpop.f32.mrb[0].mxu0
    %1998 = vmatprep.mubr.bf16.mxu0 0
    %1999 = vmatmul.mubr.bf16.gmra.mrb[0].mxu0 %v1186
    %v2000 = vpop.f32.mrb[0].mxu0
    %v2001 = vadd.f32 %v325, %v2000
    %v2002 = vpop.f32.mrb[0].mxu0
    %v2003 = vpop.f32.mrb[0].mxu0
    %v2004 = vadd.f32 %v325, %v2003
    %v2005 = vpop.f32.mrb[0].mxu0
    %2006 = vmatprep.mubr.bf16.mxu0 0
    %2007 = vmatmul.mubr.bf16.gmra.mrb[0].mxu0 %v1189
    %v2008 = vpop.f32.mrb[0].mxu0
    %v2009 = vadd.f32 %v325, %v2008
    %v2010 = vpop.f32.mrb[0].mxu0
    %v2011 = vpop.f32.mrb[0].mxu0
    %v2012 = vadd.f32 %v325, %v2011
    %v2013 = vpop.f32.mrb[0].mxu0
    %2014 = vmatprep.mubr.bf16.mxu0 0
    %2015 = vmatmul.mubr.bf16.gmra.mrb[0].mxu0 %v1192
    %v2016 = vpop.f32.mrb[0].mxu0
    %v2017 = vadd.f32 %v325, %v2016
    %v2018 = vpop.f32.mrb[0].mxu0
    %v2019 = vpop.f32.mrb[0].mxu0
    %v2020 = vadd.f32 %v325, %v2019
    %v2021 = vpop.f32.mrb[0].mxu0
    %2022 = vmatprep.mubr.bf16.mxu0 0
    %2023 = vmatmul.mubr.bf16.gmra.mrb[0].mxu0 %v1195
    %v2024 = vpop.f32.mrb[0].mxu0
    %v2025 = vadd.f32 %v325, %v2024
    %v2026 = vpop.f32.mrb[0].mxu0
    %v2027 = vpop.f32.mrb[0].mxu0
    %v2028 = vadd.f32 %v325, %v2027
    %v2029 = vpop.f32.mrb[0].mxu0
    %2030 = vmatprep.mubr.bf16.mxu0 0
    %2031 = vmatmul.mubr.bf16.gmra.mrb[0].mxu0 %v1198
    %v2032 = vpop.f32.mrb[0].mxu0
    %v2033 = vadd.f32 %v325, %v2032
    %v2034 = vpop.f32.mrb[0].mxu0
    %v2035 = vpop.f32.mrb[0].mxu0
    %v2036 = vadd.f32 %v325, %v2035
    %v2037 = vpop.f32.mrb[0].mxu0
    %2038 = vmatprep.mubr.bf16.mxu0 0
    %2039 = vmatmul.mubr.bf16.gmra.mrb[0].mxu0 %v1201
    %v2040 = vpop.f32.mrb[0].mxu0
    %v2041 = vadd.f32 %v325, %v2040
    %v2042 = vpop.f32.mrb[0].mxu0
    %v2043 = vpop.f32.mrb[0].mxu0
    %v2044 = vadd.f32 %v325, %v2043
    %v2045 = vpop.f32.mrb[0].mxu0
    %2046 = vmatprep.mubr.bf16.mxu0 0
    %2047 = vmatmul.mubr.bf16.gmra.mrb[0].mxu0 %v1204
    %v2048 = vpop.f32.mrb[0].mxu0
    %v2049 = vadd.f32 %v325, %v2048
    %v2050 = vpop.f32.mrb[0].mxu0
    %v2051 = vpop.f32.mrb[0].mxu0
    %v2052 = vadd.f32 %v325, %v2051
    %v2053 = vpop.f32.mrb[0].mxu0
    %2054 = vmatprep.mubr.bf16.mxu0 0
    %2055 = vmatmul.mubr.bf16.gmra.mrb[0].mxu0 %v1207
    %v2056 = vpop.f32.mrb[0].mxu0
    %v2057 = vadd.f32 %v325, %v2056
    %v2058 = vpop.f32.mrb[0].mxu0
    %v2059 = vpop.f32.mrb[0].mxu0
    %v2060 = vadd.f32 %v325, %v2059
    %v2061 = vpop.f32.mrb[0].mxu0
    %2062 = vmatprep.mubr.bf16.mxu0 0
    %2063 = vmatmul.mubr.bf16.gmra.mrb[0].mxu0 %v1210
    %v2064 = vpop.f32.mrb[0].mxu0
    %v2065 = vadd.f32 %v325, %v2064
    %v2066 = vpop.f32.mrb[0].mxu0
    %v2067 = vpop.f32.mrb[0].mxu0
    %v2068 = vadd.f32 %v325, %v2067
    %v2069 = vpop.f32.mrb[0].mxu0
    %2070 = vmatprep.mubr.bf16.mxu0 0
    %2071 = vmatmul.mubr.bf16.gmra.mrb[0].mxu0 %v1213
    %v2072 = vpop.f32.mrb[0].mxu0
    %v2073 = vadd.f32 %v325, %v2072
    %v2074 = vpop.f32.mrb[0].mxu0
    %v2075 = vpop.f32.mrb[0].mxu0
    %v2076 = vadd.f32 %v325, %v2075
    %v2077 = vpop.f32.mrb[0].mxu0
    %2078 = vmatprep.mubr.bf16.mxu0 0
    %2079 = vmatmul.mubr.bf16.gmra.mrb[0].mxu0 %v1216
    %v2080 = vpop.f32.mrb[0].mxu0
    %v2081 = vadd.f32 %v325, %v2080
    %v2082 = vpop.f32.mrb[0].mxu0
    %v2083 = vpop.f32.mrb[0].mxu0
    %v2084 = vadd.f32 %v325, %v2083
    %v2085 = vpop.f32.mrb[0].mxu0
    %2086 = vmatprep.mubr.bf16.mxu0 0
    %2087 = vmatmul.mubr.bf16.gmra.mrb[0].mxu0 %v1219
    %v2088 = vpop.f32.mrb[0].mxu0
    %v2089 = vadd.f32 %v325, %v2088
    %v2090 = vpop.f32.mrb[0].mxu0
    %v2091 = vpop.f32.mrb[0].mxu0
    %v2092 = vadd.f32 %v325, %v2091
    %v2093 = vpop.f32.mrb[0].mxu0
    %2094 = vmatprep.mubr.bf16.mxu0 0
    %2095 = vmatmul.mubr.bf16.gmra.mrb[0].mxu0 %v1222
    %v2096 = vpop.f32.mrb[0].mxu0
    %v2097 = vadd.f32 %v325, %v2096
    %v2098 = vpop.f32.mrb[0].mxu0
    %v2099 = vpop.f32.mrb[0].mxu0
    %v2100 = vadd.f32 %v325, %v2099
    %v2101 = vpop.f32.mrb[0].mxu0
    %2102 = vmatprep.mubr.bf16.mxu0 0
    %2103 = vmatmul.mubr.bf16.gmra.mrb[0].mxu0 %v1225
    %v2104 = vpop.f32.mrb[0].mxu0
    %v2105 = vadd.f32 %v325, %v2104
    %v2106 = vpop.f32.mrb[0].mxu0
    %v2107 = vpop.f32.mrb[0].mxu0
    %v2108 = vadd.f32 %v325, %v2107
    %v2109 = vpop.f32.mrb[0].mxu0
    %2110 = vmatprep.mubr.bf16.mxu0 0
    %2111 = vmatmul.mubr.bf16.gmra.mrb[0].mxu0 %v1228
    %v2112 = vpop.f32.mrb[0].mxu0
    %v2113 = vadd.f32 %v325, %v2112
    %v2114 = vpop.f32.mrb[0].mxu0
    %v2115 = vpop.f32.mrb[0].mxu0
    %v2116 = vadd.f32 %v325, %v2115
    %v2117 = vpop.f32.mrb[0].mxu0
    %2118 = vmatprep.mubr.bf16.mxu0 0
    %2119 = vmatmul.mubr.bf16.gmra.mrb[0].mxu0 %v1231
    %v2120 = vpop.f32.mrb[0].mxu0
    %v2121 = vadd.f32 %v325, %v2120
    %v2122 = vpop.f32.mrb[0].mxu0
    %v2123 = vpop.f32.mrb[0].mxu0
    %v2124 = vadd.f32 %v325, %v2123
    %v2125 = vpop.f32.mrb[0].mxu0
    %2126 = vmatprep.mubr.bf16.mxu0 0
    %2127 = vmatmul.mubr.bf16.gmra.mrb[0].mxu0 %v1234
    %v2128 = vpop.f32.mrb[0].mxu0
    %v2129 = vadd.f32 %v325, %v2128
    %v2130 = vpop.f32.mrb[0].mxu0
    %v2131 = vpop.f32.mrb[0].mxu0
    %v2132 = vadd.f32 %v325, %v2131
    %v2133 = vpop.f32.mrb[0].mxu0
    %2134 = vmatprep.mubr.bf16.mxu0 0
    %2135 = vmatmul.mubr.bf16.gmra.mrb[0].mxu0 %v1237
    %v2136 = vpop.f32.mrb[0].mxu0
    %v2137 = vadd.f32 %v325, %v2136
    %v2138 = vpop.f32.mrb[0].mxu0
    %v2139 = vpop.f32.mrb[0].mxu0
    %v2140 = vadd.f32 %v325, %v2139
    %v2141 = vpop.f32.mrb[0].mxu0
    %2142 = vmatprep.mubr.bf16.mxu0 0
    %2143 = vmatmul.mubr.bf16.gmra.mrb[0].mxu0 %v1240
    %v2144 = vpop.f32.mrb[0].mxu0
    %v2145 = vadd.f32 %v325, %v2144
    %v2146 = vpop.f32.mrb[0].mxu0
    %v2147 = vpop.f32.mrb[0].mxu0
    %v2148 = vadd.f32 %v325, %v2147
    %v2149 = vpop.f32.mrb[0].mxu0
    %2150 = vmatprep.mubr.bf16.mxu0 0
    %2151 = vmatmul.mubr.bf16.gmra.mrb[0].mxu0 %v1243
    %v2152 = vpop.f32.mrb[0].mxu0
    %v2153 = vadd.f32 %v325, %v2152
    %v2154 = vpop.f32.mrb[0].mxu0
    %v2155 = vpop.f32.mrb[0].mxu0
    %v2156 = vadd.f32 %v325, %v2155
    %v2157 = vpop.f32.mrb[0].mxu0
    %2158 = vmatprep.mubr.bf16.mxu0 0
    %2159 = vmatmul.mubr.bf16.gmra.mrb[0].mxu0 %v1246
    %v2160 = vpop.f32.mrb[0].mxu0
    %v2161 = vadd.f32 %v325, %v2160
    %v2162 = vpop.f32.mrb[0].mxu0
    %v2163 = vpop.f32.mrb[0].mxu0
    %v2164 = vadd.f32 %v325, %v2163
    %v2165 = vpop.f32.mrb[0].mxu0
    %2166 = vmatprep.mubr.bf16.mxu0 0
    %2167 = vmatmul.mubr.bf16.gmra.mrb[0].mxu0 %v1249
    %v2168 = vpop.f32.mrb[0].mxu0
    %v2169 = vadd.f32 %v325, %v2168
    %v2170 = vpop.f32.mrb[0].mxu0
    %v2171 = vpop.f32.mrb[0].mxu0
    %v2172 = vadd.f32 %v325, %v2171
    %v2173 = vpop.f32.mrb[0].mxu0
    %2174 = vmatprep.mubr.bf16.mxu0 0
    %2175 = vmatmul.mubr.bf16.gmra.mrb[0].mxu0 %v1252
    %v2176 = vpop.f32.mrb[0].mxu0
    %v2177 = vadd.f32 %v325, %v2176
    %v2178 = vpop.f32.mrb[0].mxu0
    %v2179 = vpop.f32.mrb[0].mxu0
    %v2180 = vadd.f32 %v325, %v2179
    %v2181 = vpop.f32.mrb[0].mxu0
    %2182 = vdwg.mxu0
    %v2183 = vmax.f32 %v1289, 0.0
    %v2184 = vmax.f32 %v1292, 0.0
    %v2185 = vmax.f32 %v1297, 0.0
    %v2186 = vmax.f32 %v1300, 0.0
    %v2187 = vmax.f32 %v1305, 0.0
    %v2188 = vmax.f32 %v1308, 0.0
    %v2189 = vmax.f32 %v1313, 0.0
    %v2190 = vmax.f32 %v1316, 0.0
    %v2191 = vmax.f32 %v1321, 0.0
    %v2192 = vmax.f32 %v1324, 0.0
    %v2193 = vmax.f32 %v1329, 0.0
    %v2194 = vmax.f32 %v1332, 0.0
    %v2195 = vmax.f32 %v1337, 0.0
    %v2196 = vmax.f32 %v1340, 0.0
    %v2197 = vmax.f32 %v1345, 0.0
    %v2198 = vmax.f32 %v1348, 0.0
    %v2199 = vmax.f32 %v1353, 0.0
    %v2200 = vmax.f32 %v1356, 0.0
    %v2201 = vmax.f32 %v1361, 0.0
    %v2202 = vmax.f32 %v1364, 0.0
    %v2203 = vmax.f32 %v1369, 0.0
    %v2204 = vmax.f32 %v1372, 0.0
    %v2205 = vmax.f32 %v1377, 0.0
    %v2206 = vmax.f32 %v1380, 0.0
    %v2207 = vmax.f32 %v1385, 0.0
    %v2208 = vmax.f32 %v1388, 0.0
    %v2209 = vmax.f32 %v1393, 0.0
    %v2210 = vmax.f32 %v1396, 0.0
    %v2211 = vmax.f32 %v1401, 0.0
    %v2212 = vmax.f32 %v1404, 0.0
    %v2213 = vmax.f32 %v1409, 0.0
    %v2214 = vmax.f32 %v1412, 0.0
    %v2215 = vmax.f32 %v1417, 0.0
    %v2216 = vmax.f32 %v1420, 0.0
    %v2217 = vmax.f32 %v1425, 0.0
    %v2218 = vmax.f32 %v1428, 0.0
    %v2219 = vmax.f32 %v1433, 0.0
    %v2220 = vmax.f32 %v1436, 0.0
    %v2221 = vmax.f32 %v1441, 0.0
    %v2222 = vmax.f32 %v1444, 0.0
    %v2223 = vmax.f32 %v1449, 0.0
    %v2224 = vmax.f32 %v1452, 0.0
    %v2225 = vmax.f32 %v1457, 0.0
    %v2226 = vmax.f32 %v1460, 0.0
    %v2227 = vmax.f32 %v1465, 0.0
    %v2228 = vmax.f32 %v1468, 0.0
    %v2229 = vmax.f32 %v1473, 0.0
    %v2230 = vmax.f32 %v1476, 0.0
    %v2231 = vmax.f32 %v1481, 0.0
    %v2232 = vmax.f32 %v1484, 0.0
    %v2233 = vmax.f32 %v1489, 0.0
    %v2234 = vmax.f32 %v1492, 0.0
    %v2235 = vmax.f32 %v1497, 0.0
    %v2236 = vmax.f32 %v1500, 0.0
    %v2237 = vmax.f32 %v1505, 0.0
    %v2238 = vmax.f32 %v1508, 0.0
    %v2239 = vmax.f32 %v1513, 0.0
    %v2240 = vmax.f32 %v1516, 0.0
    %v2241 = vmax.f32 %v1521, 0.0
    %v2242 = vmax.f32 %v1524, 0.0
    %v2243 = vmax.f32 %v1529, 0.0
    %v2244 = vmax.f32 %v1532, 0.0
    %v2245 = vmax.f32 %v1537, 0.0
    %v2246 = vmax.f32 %v1540, 0.0
    %v2247 = vmax.f32 %v1545, 0.0
    %v2248 = vmax.f32 %v1548, 0.0
    %v2249 = vmax.f32 %v1553, 0.0
    %v2250 = vmax.f32 %v1556, 0.0
    %v2251 = vmax.f32 %v1561, 0.0
    %v2252 = vmax.f32 %v1564, 0.0
    %v2253 = vmax.f32 %v1569, 0.0
    %v2254 = vmax.f32 %v1572, 0.0
    %v2255 = vmax.f32 %v1577, 0.0
    %v2256 = vmax.f32 %v1580, 0.0
    %v2257 = vmax.f32 %v1585, 0.0
    %v2258 = vmax.f32 %v1588, 0.0
    %v2259 = vmax.f32 %v1593, 0.0
    %v2260 = vmax.f32 %v1596, 0.0
    %v2261 = vmax.f32 %v1601, 0.0
    %v2262 = vmax.f32 %v1604, 0.0
    %v2263 = vmax.f32 %v1609, 0.0
    %v2264 = vmax.f32 %v1612, 0.0
    %v2265 = vmax.f32 %v1617, 0.0
    %v2266 = vmax.f32 %v1620, 0.0
    %v2267 = vmax.f32 %v1625, 0.0
    %v2268 = vmax.f32 %v1628, 0.0
    %v2269 = vmax.f32 %v1633, 0.0
    %v2270 = vmax.f32 %v1636, 0.0
    %v2271 = vmax.f32 %v1641, 0.0
    %v2272 = vmax.f32 %v1644, 0.0
    %v2273 = vmax.f32 %v1649, 0.0
    %v2274 = vmax.f32 %v1652, 0.0
    %v2275 = vmax.f32 %v1657, 0.0
    %v2276 = vmax.f32 %v1660, 0.0
    %v2277 = vmax.f32 %v1665, 0.0
    %v2278 = vmax.f32 %v1668, 0.0
    %v2279 = vmax.f32 %v1673, 0.0
    %v2280 = vmax.f32 %v1676, 0.0
    %v2281 = vmax.f32 %v1681, 0.0
    %v2282 = vmax.f32 %v1684, 0.0
    %v2283 = vmax.f32 %v1689, 0.0
    %v2284 = vmax.f32 %v1692, 0.0
    %v2285 = vmax.f32 %v1697, 0.0
    %v2286 = vmax.f32 %v1700, 0.0
    %v2287 = vmax.f32 %v1705, 0.0
    %v2288 = vmax.f32 %v1708, 0.0
    %v2289 = vmax.f32 %v1713, 0.0
    %v2290 = vmax.f32 %v1716, 0.0
    %v2291 = vmax.f32 %v1721, 0.0
    %v2292 = vmax.f32 %v1724, 0.0
    %v2293 = vmax.f32 %v1729, 0.0
    %v2294 = vmax.f32 %v1732, 0.0
    %v2295 = vmax.f32 %v1737, 0.0
    %v2296 = vmax.f32 %v1740, 0.0
    %v2297 = vmax.f32 %v1745, 0.0
    %v2298 = vmax.f32 %v1748, 0.0
    %v2299 = vmax.f32 %v1753, 0.0
    %v2300 = vmax.f32 %v1756, 0.0
    %v2301 = vmax.f32 %v1761, 0.0
    %v2302 = vmax.f32 %v1764, 0.0
    %v2303 = vmax.f32 %v1769, 0.0
    %v2304 = vmax.f32 %v1772, 0.0
    %v2305 = vmax.f32 %v1777, 0.0
    %v2306 = vmax.f32 %v1780, 0.0
    %v2307 = vmax.f32 %v1785, 0.0
    %v2308 = vmax.f32 %v1788, 0.0
    %v2309 = vmax.f32 %v1793, 0.0
    %v2310 = vmax.f32 %v1796, 0.0
    %v2311 = vmax.f32 %v1801, 0.0
    %v2312 = vmax.f32 %v1804, 0.0
    %v2313 = vmax.f32 %v1809, 0.0
    %v2314 = vmax.f32 %v1812, 0.0
    %v2315 = vmax.f32 %v1817, 0.0
    %v2316 = vmax.f32 %v1820, 0.0
    %v2317 = vmax.f32 %v1825, 0.0
    %v2318 = vmax.f32 %v1828, 0.0
    %v2319 = vmax.f32 %v1833, 0.0
    %v2320 = vmax.f32 %v1836, 0.0
    %v2321 = vmax.f32 %v1841, 0.0
    %v2322 = vmax.f32 %v1844, 0.0
    %v2323 = vmax.f32 %v1849, 0.0
    %v2324 = vmax.f32 %v1852, 0.0
    %v2325 = vmax.f32 %v1857, 0.0
    %v2326 = vmax.f32 %v1860, 0.0
    %v2327 = vmax.f32 %v1865, 0.0
    %v2328 = vmax.f32 %v1868, 0.0
    %v2329 = vmax.f32 %v1873, 0.0
    %v2330 = vmax.f32 %v1876, 0.0
    %v2331 = vmax.f32 %v1881, 0.0
    %v2332 = vmax.f32 %v1884, 0.0
    %v2333 = vmax.f32 %v1889, 0.0
    %v2334 = vmax.f32 %v1892, 0.0
    %v2335 = vmax.f32 %v1897, 0.0
    %v2336 = vmax.f32 %v1900, 0.0
    %v2337 = vmax.f32 %v1905, 0.0
    %v2338 = vmax.f32 %v1908, 0.0
    %v2339 = vmax.f32 %v1913, 0.0
    %v2340 = vmax.f32 %v1916, 0.0
    %v2341 = vmax.f32 %v1921, 0.0
    %v2342 = vmax.f32 %v1924, 0.0
    %v2343 = vmax.f32 %v1929, 0.0
    %v2344 = vmax.f32 %v1932, 0.0
    %v2345 = vmax.f32 %v1937, 0.0
    %v2346 = vmax.f32 %v1940, 0.0
    %v2347 = vmax.f32 %v1945, 0.0
    %v2348 = vmax.f32 %v1948, 0.0
    %v2349 = vmax.f32 %v1953, 0.0
    %v2350 = vmax.f32 %v1956, 0.0
    %v2351 = vmax.f32 %v1961, 0.0
    %v2352 = vmax.f32 %v1964, 0.0
    %v2353 = vmax.f32 %v1969, 0.0
    %v2354 = vmax.f32 %v1972, 0.0
    %v2355 = vmax.f32 %v1977, 0.0
    %v2356 = vmax.f32 %v1980, 0.0
    %v2357 = vmax.f32 %v1985, 0.0
    %v2358 = vmax.f32 %v1988, 0.0
    %v2359 = vmax.f32 %v1993, 0.0
    %v2360 = vmax.f32 %v1996, 0.0
    %v2361 = vmax.f32 %v2001, 0.0
    %v2362 = vmax.f32 %v2004, 0.0
    %v2363 = vmax.f32 %v2009, 0.0
    %v2364 = vmax.f32 %v2012, 0.0
    %v2365 = vmax.f32 %v2017, 0.0
    %v2366 = vmax.f32 %v2020, 0.0
    %v2367 = vmax.f32 %v2025, 0.0
    %v2368 = vmax.f32 %v2028, 0.0
    %v2369 = vmax.f32 %v2033, 0.0
    %v2370 = vmax.f32 %v2036, 0.0
    %v2371 = vmax.f32 %v2041, 0.0
    %v2372 = vmax.f32 %v2044, 0.0
    %v2373 = vmax.f32 %v2049, 0.0
    %v2374 = vmax.f32 %v2052, 0.0
    %v2375 = vmax.f32 %v2057, 0.0
    %v2376 = vmax.f32 %v2060, 0.0
    %v2377 = vmax.f32 %v2065, 0.0
    %v2378 = vmax.f32 %v2068, 0.0
    %v2379 = vmax.f32 %v2073, 0.0
    %v2380 = vmax.f32 %v2076, 0.0
    %v2381 = vmax.f32 %v2081, 0.0
    %v2382 = vmax.f32 %v2084, 0.0
    %v2383 = vmax.f32 %v2089, 0.0
    %v2384 = vmax.f32 %v2092, 0.0
    %v2385 = vmax.f32 %v2097, 0.0
    %v2386 = vmax.f32 %v2100, 0.0
    %v2387 = vmax.f32 %v2105, 0.0
    %v2388 = vmax.f32 %v2108, 0.0
    %v2389 = vmax.f32 %v2113, 0.0
    %v2390 = vmax.f32 %v2116, 0.0
    %v2391 = vmax.f32 %v2121, 0.0
    %v2392 = vmax.f32 %v2124, 0.0
    %v2393 = vmax.f32 %v2129, 0.0
    %v2394 = vmax.f32 %v2132, 0.0
    %v2395 = vmax.f32 %v2137, 0.0
    %v2396 = vmax.f32 %v2140, 0.0
    %v2397 = vmax.f32 %v2145, 0.0
    %v2398 = vmax.f32 %v2148, 0.0
    %v2399 = vmax.f32 %v2153, 0.0
    %v2400 = vmax.f32 %v2156, 0.0
    %v2401 = vmax.f32 %v2161, 0.0
    %v2402 = vmax.f32 %v2164, 0.0
    %v2403 = vmax.f32 %v2169, 0.0
    %v2404 = vmax.f32 %v2172, 0.0
    %v2405 = vmax.f32 %v2177, 0.0
    %v2406 = vmax.f32 %v2180, 0.0
    %v2407 = vmax.f32 %v2183, %v2185
    %v2408 = vmax.f32 %v2184, %v2186
    %v2409 = vmax.f32 %v2187, %v2189
    %v2410 = vmax.f32 %v2188, %v2190
    %v2411 = vmax.f32 %v2191, %v2193
    %v2412 = vmax.f32 %v2192, %v2194
    %v2413 = vmax.f32 %v2195, %v2197
    %v2414 = vmax.f32 %v2196, %v2198
    %v2415 = vmax.f32 %v2199, %v2201
    %v2416 = vmax.f32 %v2200, %v2202
    %v2417 = vmax.f32 %v2203, %v2205
    %v2418 = vmax.f32 %v2204, %v2206
    %v2419 = vmax.f32 %v2207, %v2209
    %v2420 = vmax.f32 %v2208, %v2210
    %v2421 = vmax.f32 %v2211, %v2213
    %v2422 = vmax.f32 %v2212, %v2214
    %v2423 = vmax.f32 %v2215, %v2217
    %v2424 = vmax.f32 %v2216, %v2218
    %v2425 = vmax.f32 %v2219, %v2221
    %v2426 = vmax.f32 %v2220, %v2222
    %v2427 = vmax.f32 %v2223, %v2225
    %v2428 = vmax.f32 %v2224, %v2226
    %v2429 = vmax.f32 %v2227, %v2229
    %v2430 = vmax.f32 %v2228, %v2230
    %v2431 = vmax.f32 %v2231, %v2233
    %v2432 = vmax.f32 %v2232, %v2234
    %v2433 = vmax.f32 %v2235, %v2237
    %v2434 = vmax.f32 %v2236, %v2238
    %v2435 = vmax.f32 %v2239, %v2241
    %v2436 = vmax.f32 %v2240, %v2242
    %v2437 = vmax.f32 %v2243, %v2245
    %v2438 = vmax.f32 %v2244, %v2246
    %v2439 = vmax.f32 %v2247, %v2249
    %v2440 = vmax.f32 %v2248, %v2250
    %v2441 = vmax.f32 %v2251, %v2253
    %v2442 = vmax.f32 %v2252, %v2254
    %v2443 = vmax.f32 %v2255, %v2257
    %v2444 = vmax.f32 %v2256, %v2258
    %v2445 = vmax.f32 %v2259, %v2261
    %v2446 = vmax.f32 %v2260, %v2262
    %v2447 = vmax.f32 %v2263, %v2265
    %v2448 = vmax.f32 %v2264, %v2266
    %v2449 = vmax.f32 %v2267, %v2269
    %v2450 = vmax.f32 %v2268, %v2270
    %v2451 = vmax.f32 %v2271, %v2273
    %v2452 = vmax.f32 %v2272, %v2274
    %v2453 = vmax.f32 %v2275, %v2277
    %v2454 = vmax.f32 %v2276, %v2278
    %v2455 = vmax.f32 %v2279, %v2281
    %v2456 = vmax.f32 %v2280, %v2282
    %v2457 = vmax.f32 %v2283, %v2285
    %v2458 = vmax.f32 %v2284, %v2286
    %v2459 = vmax.f32 %v2287, %v2289
    %v2460 = vmax.f32 %v2288, %v2290
    %v2461 = vmax.f32 %v2291, %v2293
    %v2462 = vmax.f32 %v2292, %v2294
    %v2463 = vmax.f32 %v2295, %v2297
    %v2464 = vmax.f32 %v2296, %v2298
    %v2465 = vmax.f32 %v2299, %v2301
    %v2466 = vmax.f32 %v2300, %v2302
    %v2467 = vmax.f32 %v2303, %v2305
    %v2468 = vmax.f32 %v2304, %v2306
    %v2469 = vmax.f32 %v2307, %v2309
    %v2470 = vmax.f32 %v2308, %v2310
    %v2471 = vmax.f32 %v2311, %v2313
    %v2472 = vmax.f32 %v2312, %v2314
    %v2473 = vmax.f32 %v2315, %v2317
    %v2474 = vmax.f32 %v2316, %v2318
    %v2475 = vmax.f32 %v2319, %v2321
    %v2476 = vmax.f32 %v2320, %v2322
    %v2477 = vmax.f32 %v2323, %v2325
    %v2478 = vmax.f32 %v2324, %v2326
    %v2479 = vmax.f32 %v2327, %v2329
    %v2480 = vmax.f32 %v2328, %v2330
    %v2481 = vmax.f32 %v2331, %v2333
    %v2482 = vmax.f32 %v2332, %v2334
    %v2483 = vmax.f32 %v2335, %v2337
    %v2484 = vmax.f32 %v2336, %v2338
    %v2485 = vmax.f32 %v2339, %v2341
    %v2486 = vmax.f32 %v2340, %v2342
    %v2487 = vmax.f32 %v2343, %v2345
    %v2488 = vmax.f32 %v2344, %v2346
    %v2489 = vmax.f32 %v2347, %v2349
    %v2490 = vmax.f32 %v2348, %v2350
    %v2491 = vmax.f32 %v2351, %v2353
    %v2492 = vmax.f32 %v2352, %v2354
    %v2493 = vmax.f32 %v2355, %v2357
    %v2494 = vmax.f32 %v2356, %v2358
    %v2495 = vmax.f32 %v2359, %v2361
    %v2496 = vmax.f32 %v2360, %v2362
    %v2497 = vmax.f32 %v2363, %v2365
    %v2498 = vmax.f32 %v2364, %v2366
    %v2499 = vmax.f32 %v2367, %v2369
    %v2500 = vmax.f32 %v2368, %v2370
    %v2501 = vmax.f32 %v2371, %v2373
    %v2502 = vmax.f32 %v2372, %v2374
    %v2503 = vmax.f32 %v2375, %v2377
    %v2504 = vmax.f32 %v2376, %v2378
    %v2505 = vmax.f32 %v2379, %v2381
    %v2506 = vmax.f32 %v2380, %v2382
    %v2507 = vmax.f32 %v2383, %v2385
    %v2508 = vmax.f32 %v2384, %v2386
    %v2509 = vmax.f32 %v2387, %v2389
    %v2510 = vmax.f32 %v2388, %v2390
    %v2511 = vmax.f32 %v2391, %v2393
    %v2512 = vmax.f32 %v2392, %v2394
    %v2513 = vmax.f32 %v2395, %v2397
    %v2514 = vmax.f32 %v2396, %v2398
    %v2515 = vmax.f32 %v2399, %v2401
    %v2516 = vmax.f32 %v2400, %v2402
    %v2517 = vmax.f32 %v2403, %v2405
    %v2518 = vmax.f32 %v2404, %v2406
    %v2519 = vmax.f32 %v2407, %v2435
    %v2520 = vmax.f32 %v2408, %v2436
    %v2521 = vmax.f32 %v2409, %v2437
    %v2522 = vmax.f32 %v2410, %v2438
    %v2523 = vmax.f32 %v2411, %v2439
    %v2524 = vmax.f32 %v2412, %v2440
    %v2525 = vmax.f32 %v2413, %v2441
    %v2526 = vmax.f32 %v2414, %v2442
    %v2527 = vmax.f32 %v2415, %v2443
    %v2528 = vmax.f32 %v2416, %v2444
    %v2529 = vmax.f32 %v2417, %v2445
    %v2530 = vmax.f32 %v2418, %v2446
    %v2531 = vmax.f32 %v2419, %v2447
    %v2532 = vmax.f32 %v2420, %v2448
    %v2533 = vmax.f32 %v2421, %v2449
    %v2534 = vmax.f32 %v2422, %v2450
    %v2535 = vmax.f32 %v2423, %v2451
    %v2536 = vmax.f32 %v2424, %v2452
    %v2537 = vmax.f32 %v2425, %v2453
    %v2538 = vmax.f32 %v2426, %v2454
    %v2539 = vmax.f32 %v2427, %v2455
    %v2540 = vmax.f32 %v2428, %v2456
    %v2541 = vmax.f32 %v2429, %v2457
    %v2542 = vmax.f32 %v2430, %v2458
    %v2543 = vmax.f32 %v2431, %v2459
    %v2544 = vmax.f32 %v2432, %v2460
    %v2545 = vmax.f32 %v2433, %v2461
    %v2546 = vmax.f32 %v2434, %v2462
    %v2547 = vmax.f32 %v2463, %v2491
    %v2548 = vmax.f32 %v2464, %v2492
    %v2549 = vmax.f32 %v2465, %v2493
    %v2550 = vmax.f32 %v2466, %v2494
    %v2551 = vmax.f32 %v2467, %v2495
    %v2552 = vmax.f32 %v2468, %v2496
    %v2553 = vmax.f32 %v2469, %v2497
    %v2554 = vmax.f32 %v2470, %v2498
    %v2555 = vmax.f32 %v2471, %v2499
    %v2556 = vmax.f32 %v2472, %v2500
    %v2557 = vmax.f32 %v2473, %v2501
    %v2558 = vmax.f32 %v2474, %v2502
    %v2559 = vmax.f32 %v2475, %v2503
    %v2560 = vmax.f32 %v2476, %v2504
    %v2561 = vmax.f32 %v2477, %v2505
    %v2562 = vmax.f32 %v2478, %v2506
    %v2563 = vmax.f32 %v2479, %v2507
    %v2564 = vmax.f32 %v2480, %v2508
    %v2565 = vmax.f32 %v2481, %v2509
    %v2566 = vmax.f32 %v2482, %v2510
    %v2567 = vmax.f32 %v2483, %v2511
    %v2568 = vmax.f32 %v2484, %v2512
    %v2569 = vmax.f32 %v2485, %v2513
    %v2570 = vmax.f32 %v2486, %v2514
    %v2571 = vmax.f32 %v2487, %v2515
    %v2572 = vmax.f32 %v2488, %v2516
    %v2573 = vmax.f32 %v2489, %v2517
    %v2574 = vmax.f32 %v2490, %v2518
    %vm2615 = vcmask 1046528
    %v2616 = vrot.slane %v2519, 1
    %v2617 = vrot.slane %v2520, 1
    %v2618 = vsel %vm2615, %v2616, %v2617
    %v2619 = vrot.slane %v2521, 1
    %v2620 = vrot.slane %v2522, 1
    %v2621 = vsel %vm2615, %v2619, %v2620
    %v2622 = vrot.slane %v2523, 1
    %v2623 = vrot.slane %v2524, 1
    %v2624 = vsel %vm2615, %v2622, %v2623
    %v2625 = vrot.slane %v2525, 1
    %v2626 = vrot.slane %v2526, 1
    %v2627 = vsel %vm2615, %v2625, %v2626
    %v2628 = vrot.slane %v2527, 1
    %v2629 = vrot.slane %v2528, 1
    %v2630 = vsel %vm2615, %v2628, %v2629
    %v2631 = vrot.slane %v2529, 1
    %v2632 = vrot.slane %v2530, 1
    %v2633 = vsel %vm2615, %v2631, %v2632
    %v2634 = vrot.slane %v2531, 1
    %v2635 = vrot.slane %v2532, 1
    %v2636 = vsel %vm2615, %v2634, %v2635
    %v2637 = vrot.slane %v2533, 1
    %v2638 = vrot.slane %v2534, 1
    %v2639 = vsel %vm2615, %v2637, %v2638
    %v2640 = vrot.slane %v2535, 1
    %v2641 = vrot.slane %v2536, 1
    %v2642 = vsel %vm2615, %v2640, %v2641
    %v2643 = vrot.slane %v2537, 1
    %v2644 = vrot.slane %v2538, 1
    %v2645 = vsel %vm2615, %v2643, %v2644
    %v2646 = vrot.slane %v2547, 1
    %v2647 = vrot.slane %v2548, 1
    %v2648 = vsel %vm2615, %v2646, %v2647
    %v2649 = vrot.slane %v2549, 1
    %v2650 = vrot.slane %v2550, 1
    %v2651 = vsel %vm2615, %v2649, %v2650
    %v2652 = vrot.slane %v2551, 1
    %v2653 = vrot.slane %v2552, 1
    %v2654 = vsel %vm2615, %v2652, %v2653
    %v2655 = vrot.slane %v2553, 1
    %v2656 = vrot.slane %v2554, 1
    %v2657 = vsel %vm2615, %v2655, %v2656
    %v2658 = vrot.slane %v2555, 1
    %v2659 = vrot.slane %v2556, 1
    %v2660 = vsel %vm2615, %v2658, %v2659
    %v2661 = vrot.slane %v2557, 1
    %v2662 = vrot.slane %v2558, 1
    %v2663 = vsel %vm2615, %v2661, %v2662
    %v2664 = vrot.slane %v2559, 1
    %v2665 = vrot.slane %v2560, 1
    %v2666 = vsel %vm2615, %v2664, %v2665
    %v2667 = vrot.slane %v2561, 1
    %v2668 = vrot.slane %v2562, 1
    %v2669 = vsel %vm2615, %v2667, %v2668
    %v2670 = vrot.slane %v2563, 1
    %v2671 = vrot.slane %v2564, 1
    %v2672 = vsel %vm2615, %v2670, %v2671
    %v2673 = vrot.slane %v2565, 1
    %v2674 = vrot.slane %v2566, 1
    %v2675 = vsel %vm2615, %v2673, %v2674
    %v2716 = vsel %vm2615, %v2617, %v2616
    %v2717 = vsel %vm2615, %v2620, %v2619
    %v2718 = vsel %vm2615, %v2623, %v2622
    %v2719 = vsel %vm2615, %v2626, %v2625
    %v2720 = vsel %vm2615, %v2629, %v2628
    %v2721 = vsel %vm2615, %v2632, %v2631
    %v2722 = vsel %vm2615, %v2635, %v2634
    %v2723 = vsel %vm2615, %v2638, %v2637
    %v2724 = vsel %vm2615, %v2641, %v2640
    %v2725 = vsel %vm2615, %v2644, %v2643
    %v2726 = vsel %vm2615, %v2647, %v2646
    %v2727 = vsel %vm2615, %v2650, %v2649
    %v2728 = vsel %vm2615, %v2653, %v2652
    %v2729 = vsel %vm2615, %v2656, %v2655
    %v2730 = vsel %vm2615, %v2659, %v2658
    %v2731 = vsel %vm2615, %v2662, %v2661
    %v2732 = vsel %vm2615, %v2665, %v2664
    %v2733 = vsel %vm2615, %v2668, %v2667
    %v2734 = vsel %vm2615, %v2671, %v2670
    %v2735 = vsel %vm2615, %v2674, %v2673
    %vm2736 = vcmask 1045504
    %v2737 = vrot.slane %v2519, 2
    %v2738 = vrot.slane %v2520, 2
    %v2739 = vsel %vm2736, %v2737, %v2738
    %v2740 = vrot.slane %v2521, 2
    %v2741 = vrot.slane %v2522, 2
    %v2742 = vsel %vm2736, %v2740, %v2741
    %v2743 = vrot.slane %v2523, 2
    %v2744 = vrot.slane %v2524, 2
    %v2745 = vsel %vm2736, %v2743, %v2744
    %v2746 = vrot.slane %v2525, 2
    %v2747 = vrot.slane %v2526, 2
    %v2748 = vsel %vm2736, %v2746, %v2747
    %v2749 = vrot.slane %v2527, 2
    %v2750 = vrot.slane %v2528, 2
    %v2751 = vsel %vm2736, %v2749, %v2750
    %v2752 = vrot.slane %v2529, 2
    %v2753 = vrot.slane %v2530, 2
    %v2754 = vsel %vm2736, %v2752, %v2753
    %v2755 = vrot.slane %v2531, 2
    %v2756 = vrot.slane %v2532, 2
    %v2757 = vsel %vm2736, %v2755, %v2756
    %v2758 = vrot.slane %v2533, 2
    %v2759 = vrot.slane %v2534, 2
    %v2760 = vsel %vm2736, %v2758, %v2759
    %v2761 = vrot.slane %v2535, 2
    %v2762 = vrot.slane %v2536, 2
    %v2763 = vsel %vm2736, %v2761, %v2762
    %v2764 = vrot.slane %v2537, 2
    %v2765 = vrot.slane %v2538, 2
    %v2766 = vsel %vm2736, %v2764, %v2765
    %v2767 = vrot.slane %v2547, 2
    %v2768 = vrot.slane %v2548, 2
    %v2769 = vsel %vm2736, %v2767, %v2768
    %v2770 = vrot.slane %v2549, 2
    %v2771 = vrot.slane %v2550, 2
    %v2772 = vsel %vm2736, %v2770, %v2771
    %v2773 = vrot.slane %v2551, 2
    %v2774 = vrot.slane %v2552, 2
    %v2775 = vsel %vm2736, %v2773, %v2774
    %v2776 = vrot.slane %v2553, 2
    %v2777 = vrot.slane %v2554, 2
    %v2778 = vsel %vm2736, %v2776, %v2777
    %v2779 = vrot.slane %v2555, 2
    %v2780 = vrot.slane %v2556, 2
    %v2781 = vsel %vm2736, %v2779, %v2780
    %v2782 = vrot.slane %v2557, 2
    %v2783 = vrot.slane %v2558, 2
    %v2784 = vsel %vm2736, %v2782, %v2783
    %v2785 = vrot.slane %v2559, 2
    %v2786 = vrot.slane %v2560, 2
    %v2787 = vsel %vm2736, %v2785, %v2786
    %v2788 = vrot.slane %v2561, 2
    %v2789 = vrot.slane %v2562, 2
    %v2790 = vsel %vm2736, %v2788, %v2789
    %v2791 = vrot.slane %v2563, 2
    %v2792 = vrot.slane %v2564, 2
    %v2793 = vsel %vm2736, %v2791, %v2792
    %v2794 = vrot.slane %v2565, 2
    %v2795 = vrot.slane %v2566, 2
    %v2796 = vsel %vm2736, %v2794, %v2795
    %v2837 = vsel %vm2736, %v2738, %v2737
    %v2838 = vsel %vm2736, %v2741, %v2740
    %v2839 = vsel %vm2736, %v2744, %v2743
    %v2840 = vsel %vm2736, %v2747, %v2746
    %v2841 = vsel %vm2736, %v2750, %v2749
    %v2842 = vsel %vm2736, %v2753, %v2752
    %v2843 = vsel %vm2736, %v2756, %v2755
    %v2844 = vsel %vm2736, %v2759, %v2758
    %v2845 = vsel %vm2736, %v2762, %v2761
    %v2846 = vsel %vm2736, %v2765, %v2764
    %v2847 = vsel %vm2736, %v2768, %v2767
    %v2848 = vsel %vm2736, %v2771, %v2770
    %v2849 = vsel %vm2736, %v2774, %v2773
    %v2850 = vsel %vm2736, %v2777, %v2776
    %v2851 = vsel %vm2736, %v2780, %v2779
    %v2852 = vsel %vm2736, %v2783, %v2782
    %v2853 = vsel %vm2736, %v2786, %v2785
    %v2854 = vsel %vm2736, %v2789, %v2788
    %v2855 = vsel %vm2736, %v2792, %v2791
    %v2856 = vsel %vm2736, %v2795, %v2794
    %vm2857 = vcmask 1044480
    %v2858 = vrot.slane %v2519, 3
    %v2859 = vrot.slane %v2520, 3
    %v2860 = vsel %vm2857, %v2858, %v2859
    %v2861 = vrot.slane %v2521, 3
    %v2862 = vrot.slane %v2522, 3
    %v2863 = vsel %vm2857, %v2861, %v2862
    %v2864 = vrot.slane %v2523, 3
    %v2865 = vrot.slane %v2524, 3
    %v2866 = vsel %vm2857, %v2864, %v2865
    %v2867 = vrot.slane %v2525, 3
    %v2868 = vrot.slane %v2526, 3
    %v2869 = vsel %vm2857, %v2867, %v2868
    %v2870 = vrot.slane %v2527, 3
    %v2871 = vrot.slane %v2528, 3
    %v2872 = vsel %vm2857, %v2870, %v2871
    %v2873 = vrot.slane %v2529, 3
    %v2874 = vrot.slane %v2530, 3
    %v2875 = vsel %vm2857, %v2873, %v2874
    %v2876 = vrot.slane %v2531, 3
    %v2877 = vrot.slane %v2532, 3
    %v2878 = vsel %vm2857, %v2876, %v2877
    %v2879 = vrot.slane %v2533, 3
    %v2880 = vrot.slane %v2534, 3
    %v2881 = vsel %vm2857, %v2879, %v2880
    %v2882 = vrot.slane %v2535, 3
    %v2883 = vrot.slane %v2536, 3
    %v2884 = vsel %vm2857, %v2882, %v2883
    %v2885 = vrot.slane %v2537, 3
    %v2886 = vrot.slane %v2538, 3
    %v2887 = vsel %vm2857, %v2885, %v2886
    %v2888 = vrot.slane %v2547, 3
    %v2889 = vrot.slane %v2548, 3
    %v2890 = vsel %vm2857, %v2888, %v2889
    %v2891 = vrot.slane %v2549, 3
    %v2892 = vrot.slane %v2550, 3
    %v2893 = vsel %vm2857, %v2891, %v2892
    %v2894 = vrot.slane %v2551, 3
    %v2895 = vrot.slane %v2552, 3
    %v2896 = vsel %vm2857, %v2894, %v2895
    %v2897 = vrot.slane %v2553, 3
    %v2898 = vrot.slane %v2554, 3
    %v2899 = vsel %vm2857, %v2897, %v2898
    %v2900 = vrot.slane %v2555, 3
    %v2901 = vrot.slane %v2556, 3
    %v2902 = vsel %vm2857, %v2900, %v2901
    %v2903 = vrot.slane %v2557, 3
    %v2904 = vrot.slane %v2558, 3
    %v2905 = vsel %vm2857, %v2903, %v2904
    %v2906 = vrot.slane %v2559, 3
    %v2907 = vrot.slane %v2560, 3
    %v2908 = vsel %vm2857, %v2906, %v2907
    %v2909 = vrot.slane %v2561, 3
    %v2910 = vrot.slane %v2562, 3
    %v2911 = vsel %vm2857, %v2909, %v2910
    %v2912 = vrot.slane %v2563, 3
    %v2913 = vrot.slane %v2564, 3
    %v2914 = vsel %vm2857, %v2912, %v2913
    %v2915 = vrot.slane %v2565, 3
    %v2916 = vrot.slane %v2566, 3
    %v2917 = vsel %vm2857, %v2915, %v2916
    %v2958 = vsel %vm2857, %v2859, %v2858
    %v2959 = vsel %vm2857, %v2862, %v2861
    %v2960 = vsel %vm2857, %v2865, %v2864
    %v2961 = vsel %vm2857, %v2868, %v2867
    %v2962 = vsel %vm2857, %v2871, %v2870
    %v2963 = vsel %vm2857, %v2874, %v2873
    %v2964 = vsel %vm2857, %v2877, %v2876
    %v2965 = vsel %vm2857, %v2880, %v2879
    %v2966 = vsel %vm2857, %v2883, %v2882
    %v2967 = vsel %vm2857, %v2886, %v2885
    %v2968 = vsel %vm2857, %v2889, %v2888
    %v2969 = vsel %vm2857, %v2892, %v2891
    %v2970 = vsel %vm2857, %v2895, %v2894
    %v2971 = vsel %vm2857, %v2898, %v2897
    %v2972 = vsel %vm2857, %v2901, %v2900
    %v2973 = vsel %vm2857, %v2904, %v2903
    %v2974 = vsel %vm2857, %v2907, %v2906
    %v2975 = vsel %vm2857, %v2910, %v2909
    %v2976 = vsel %vm2857, %v2913, %v2912
    %v2977 = vsel %vm2857, %v2916, %v2915
    %vm2978 = vcmask 1043456
    %v2979 = vrot.slane %v2519, 4
    %v2980 = vrot.slane %v2520, 4
    %v2981 = vsel %vm2978, %v2979, %v2980
    %v2982 = vrot.slane %v2521, 4
    %v2983 = vrot.slane %v2522, 4
    %v2984 = vsel %vm2978, %v2982, %v2983
    %v2985 = vrot.slane %v2523, 4
    %v2986 = vrot.slane %v2524, 4
    %v2987 = vsel %vm2978, %v2985, %v2986
    %v2988 = vrot.slane %v2525, 4
    %v2989 = vrot.slane %v2526, 4
    %v2990 = vsel %vm2978, %v2988, %v2989
    %v2991 = vrot.slane %v2527, 4
    %v2992 = vrot.slane %v2528, 4
    %v2993 = vsel %vm2978, %v2991, %v2992
    %v2994 = vrot.slane %v2529, 4
    %v2995 = vrot.slane %v2530, 4
    %v2996 = vsel %vm2978, %v2994, %v2995
    %v2997 = vrot.slane %v2531, 4
    %v2998 = vrot.slane %v2532, 4
    %v2999 = vsel %vm2978, %v2997, %v2998
    %v3000 = vrot.slane %v2533, 4
    %v3001 = vrot.slane %v2534, 4
    %v3002 = vsel %vm2978, %v3000, %v3001
    %v3003 = vrot.slane %v2535, 4
    %v3004 = vrot.slane %v2536, 4
    %v3005 = vsel %vm2978, %v3003, %v3004
    %v3006 = vrot.slane %v2537, 4
    %v3007 = vrot.slane %v2538, 4
    %v3008 = vsel %vm2978, %v3006, %v3007
    %v3009 = vrot.slane %v2547, 4
    %v3010 = vrot.slane %v2548, 4
    %v3011 = vsel %vm2978, %v3009, %v3010
    %v3012 = vrot.slane %v2549, 4
    %v3013 = vrot.slane %v2550, 4
    %v3014 = vsel %vm2978, %v3012, %v3013
    %v3015 = vrot.slane %v2551, 4
    %v3016 = vrot.slane %v2552, 4
    %v3017 = vsel %vm2978, %v3015, %v3016
    %v3018 = vrot.slane %v2553, 4
    %v3019 = vrot.slane %v2554, 4
    %v3020 = vsel %vm2978, %v3018, %v3019
    %v3021 = vrot.slane %v2555, 4
    %v3022 = vrot.slane %v2556, 4
    %v3023 = vsel %vm2978, %v3021, %v3022
    %v3024 = vrot.slane %v2557, 4
    %v3025 = vrot.slane %v2558, 4
    %v3026 = vsel %vm2978, %v3024, %v3025
    %v3027 = vrot.slane %v2559, 4
    %v3028 = vrot.slane %v2560, 4
    %v3029 = vsel %vm2978, %v3027, %v3028
    %v3030 = vrot.slane %v2561, 4
    %v3031 = vrot.slane %v2562, 4
    %v3032 = vsel %vm2978, %v3030, %v3031
    %v3033 = vrot.slane %v2563, 4
    %v3034 = vrot.slane %v2564, 4
    %v3035 = vsel %vm2978, %v3033, %v3034
    %v3036 = vrot.slane %v2565, 4
    %v3037 = vrot.slane %v2566, 4
    %v3038 = vsel %vm2978, %v3036, %v3037
    %v3099 = vsel %vm2978, %v2980, %v2979
    %v3100 = vsel %vm2978, %v2983, %v2982
    %v3101 = vsel %vm2978, %v2986, %v2985
    %v3102 = vsel %vm2978, %v2989, %v2988
    %v3103 = vsel %vm2978, %v2992, %v2991
    %v3104 = vsel %vm2978, %v2995, %v2994
    %v3105 = vsel %vm2978, %v2998, %v2997
    %v3106 = vsel %vm2978, %v3001, %v3000
    %v3107 = vsel %vm2978, %v3004, %v3003
    %v3108 = vsel %vm2978, %v3007, %v3006
    %v3109 = vsel %vm2978, %v3010, %v3009
    %v3110 = vsel %vm2978, %v3013, %v3012
    %v3111 = vsel %vm2978, %v3016, %v3015
    %v3112 = vsel %vm2978, %v3019, %v3018
    %v3113 = vsel %vm2978, %v3022, %v3021
    %v3114 = vsel %vm2978, %v3025, %v3024
    %v3115 = vsel %vm2978, %v3028, %v3027
    %v3116 = vsel %vm2978, %v3031, %v3030
    %v3117 = vsel %vm2978, %v3034, %v3033
    %v3118 = vsel %vm2978, %v3037, %v3036
    %v3123 = vrot.slane %v2539, 1
    %v3124 = vrot.slane %v2540, 1
    %v3125 = vsel %vm2615, %v3123, %v3124
    %v3126 = vrot.slane %v2567, 1
    %v3127 = vrot.slane %v2568, 1
    %v3128 = vsel %vm2615, %v3126, %v3127
    %v3133 = vsel %vm2615, %v3124, %v3123
    %v3134 = vsel %vm2615, %v3127, %v3126
    %v3135 = vrot.slane %v2539, 2
    %v3136 = vrot.slane %v2540, 2
    %v3137 = vsel %vm2736, %v3135, %v3136
    %v3138 = vrot.slane %v2567, 2
    %v3139 = vrot.slane %v2568, 2
    %v3140 = vsel %vm2736, %v3138, %v3139
    %v3145 = vsel %vm2736, %v3136, %v3135
    %v3146 = vsel %vm2736, %v3139, %v3138
    %v3147 = vrot.slane %v2539, 3
    %v3148 = vrot.slane %v2540, 3
    %v3149 = vsel %vm2857, %v3147, %v3148
    %v3150 = vrot.slane %v2567, 3
    %v3151 = vrot.slane %v2568, 3
    %v3152 = vsel %vm2857, %v3150, %v3151
    %v3177 = vsel %vm2857, %v3148, %v3147
    %v3178 = vsel %vm2857, %v3151, %v3150
    %v3179 = vrot.slane %v2539, 4
    %v3180 = vrot.slane %v2540, 4
    %v3181 = vsel %vm2978, %v3179, %v3180
    %v3182 = vrot.slane %v2567, 4
    %v3183 = vrot.slane %v2568, 4
    %v3184 = vsel %vm2978, %v3182, %v3183
    %v3189 = vsel %vm2978, %v3180, %v3179
    %v3190 = vsel %vm2978, %v3183, %v3182
    %v3195 = vrot.slane %v2541, 1
    %v3196 = vrot.slane %v2542, 1
    %v3197 = vsel %vm2615, %v3195, %v3196
    %v3198 = vrot.slane %v2569, 1
    %v3199 = vrot.slane %v2570, 1
    %v3200 = vsel %vm2615, %v3198, %v3199
    %v3205 = vsel %vm2615, %v3196, %v3195
    %v3206 = vsel %vm2615, %v3199, %v3198
    %v3207 = vrot.slane %v2541, 2
    %v3208 = vrot.slane %v2542, 2
    %v3209 = vsel %vm2736, %v3207, %v3208
    %v3210 = vrot.slane %v2569, 2
    %v3211 = vrot.slane %v2570, 2
    %v3212 = vsel %vm2736, %v3210, %v3211
    %v3237 = vsel %vm2736, %v3208, %v3207
    %v3238 = vsel %vm2736, %v3211, %v3210
    %v3239 = vrot.slane %v2541, 3
    %v3240 = vrot.slane %v2542, 3
    %v3241 = vsel %vm2857, %v3239, %v3240
    %v3242 = vrot.slane %v2569, 3
    %v3243 = vrot.slane %v2570, 3
    %v3244 = vsel %vm2857, %v3242, %v3243
    %v3249 = vsel %vm2857, %v3240, %v3239
    %v3250 = vsel %vm2857, %v3243, %v3242
    %v3251 = vrot.slane %v2541, 4
    %v3252 = vrot.slane %v2542, 4
    %v3253 = vsel %vm2978, %v3251, %v3252
    %v3254 = vrot.slane %v2569, 4
    %v3255 = vrot.slane %v2570, 4
    %v3256 = vsel %vm2978, %v3254, %v3255
    %v3261 = vsel %vm2978, %v3252, %v3251
    %v3262 = vsel %vm2978, %v3255, %v3254
    %v3267 = vrot.slane %v2543, 1
    %v3268 = vrot.slane %v2544, 1
    %v3269 = vsel %vm2615, %v3267, %v3268
    %v3270 = vrot.slane %v2571, 1
    %v3271 = vrot.slane %v2572, 1
    %v3272 = vsel %vm2615, %v3270, %v3271
    %v3297 = vsel %vm2615, %v3268, %v3267
    %v3298 = vsel %vm2615, %v3271, %v3270
    %v3299 = vrot.slane %v2543, 2
    %v3300 = vrot.slane %v2544, 2
    %v3301 = vsel %vm2736, %v3299, %v3300
    %v3302 = vrot.slane %v2571, 2
    %v3303 = vrot.slane %v2572, 2
    %v3304 = vsel %vm2736, %v3302, %v3303
    %v3309 = vsel %vm2736, %v3300, %v3299
    %v3310 = vsel %vm2736, %v3303, %v3302
    %v3311 = vrot.slane %v2543, 3
    %v3312 = vrot.slane %v2544, 3
    %v3313 = vsel %vm2857, %v3311, %v3312
    %v3314 = vrot.slane %v2571, 3
    %v3315 = vrot.slane %v2572, 3
    %v3316 = vsel %vm2857, %v3314, %v3315
    %v3321 = vsel %vm2857, %v3312, %v3311
    %v3322 = vsel %vm2857, %v3315, %v3314
    %v3323 = vrot.slane %v2543, 4
    %v3324 = vrot.slane %v2544, 4
    %v3325 = vsel %vm2978, %v3323, %v3324
    %v3326 = vrot.slane %v2571, 4
    %v3327 = vrot.slane %v2572, 4
    %v3328 = vsel %vm2978, %v3326, %v3327
    %v3333 = vsel %vm2978, %v3324, %v3323
    %v3334 = vsel %vm2978, %v3327, %v3326
    %v3339 = vrot.slane %v2545, 1
    %v3340 = vrot.slane %v2546, 1
    %v3341 = vsel %vm2615, %v3339, %v3340
    %v3342 = vrot.slane %v2573, 1
    %v3343 = vrot.slane %v2574, 1
    %v3344 = vsel %vm2615, %v3342, %v3343
    %v3349 = vsel %vm2615, %v3340, %v3339
    %v3350 = vsel %vm2615, %v3343, %v3342
    %v3351 = vrot.slane %v2545, 2
    %v3352 = vrot.slane %v2546, 2
    %v3353 = vsel %vm2736, %v3351, %v3352
    %v3354 = vrot.slane %v2573, 2
    %v3355 = vrot.slane %v2574, 2
    %v3356 = vsel %vm2736, %v3354, %v3355
    %v3361 = vsel %vm2736, %v3352, %v3351
    %v3362 = vsel %vm2736, %v3355, %v3354
    %v3363 = vrot.slane %v2545, 3
    %v3364 = vrot.slane %v2546, 3
    %v3365 = vsel %vm2857, %v3363, %v3364
    %v3366 = vrot.slane %v2573, 3
    %v3367 = vrot.slane %v2574, 3
    %v3368 = vsel %vm2857, %v3366, %v3367
    %v3373 = vsel %vm2857, %v3364, %v3363
    %v3374 = vsel %vm2857, %v3367, %v3366
    %v3375 = vrot.slane %v2545, 4
    %v3376 = vrot.slane %v2546, 4
    %v3377 = vsel %vm2978, %v3375, %v3376
    %v3378 = vrot.slane %v2573, 4
    %v3379 = vrot.slane %v2574, 4
    %v3380 = vsel %vm2978, %v3378, %v3379
    %v3393 = vsel %vm2978, %v3376, %v3375
    %v3394 = vsel %vm2978, %v3379, %v3378
    %3415 = vrot.lane.b32.xlu0 %v2618, 32
    %v3416 = vpop.permute.xlu0 %3415
    %3417 = vrot.lane.b32.xlu0 %v2716, 32
    %v3418 = vpop.permute.xlu0 %3417
    %3419 = vrot.lane.b32.xlu0 %v2621, 32
    %v3420 = vpop.permute.xlu0 %3419
    %3421 = vrot.lane.b32.xlu0 %v2717, 32
    %v3422 = vpop.permute.xlu0 %3421
    %3423 = vrot.lane.b32.xlu0 %v2624, 32
    %v3424 = vpop.permute.xlu0 %3423
    %3425 = vrot.lane.b32.xlu0 %v2718, 32
    %v3426 = vpop.permute.xlu0 %3425
    %3427 = vrot.lane.b32.xlu0 %v2627, 32
    %v3428 = vpop.permute.xlu0 %3427
    %3429 = vrot.lane.b32.xlu0 %v2719, 32
    %v3430 = vpop.permute.xlu0 %3429
    %3431 = vrot.lane.b32.xlu0 %v2630, 32
    %v3432 = vpop.permute.xlu0 %3431
    %3433 = vrot.lane.b32.xlu0 %v2720, 32
    %v3434 = vpop.permute.xlu0 %3433
    %3435 = vrot.lane.b32.xlu0 %v2633, 32
    %v3436 = vpop.permute.xlu0 %3435
    %3437 = vrot.lane.b32.xlu0 %v2721, 32
    %v3438 = vpop.permute.xlu0 %3437
    %3439 = vrot.lane.b32.xlu0 %v2636, 32
    %v3440 = vpop.permute.xlu0 %3439
    %3441 = vrot.lane.b32.xlu0 %v2722, 32
    %v3442 = vpop.permute.xlu0 %3441
    %3443 = vrot.lane.b32.xlu0 %v2639, 32
    %v3444 = vpop.permute.xlu0 %3443
    %3445 = vrot.lane.b32.xlu0 %v2723, 32
    %v3446 = vpop.permute.xlu0 %3445
    %3447 = vrot.lane.b32.xlu0 %v2642, 32
    %v3448 = vpop.permute.xlu0 %3447
    %3449 = vrot.lane.b32.xlu0 %v2724, 32
    %v3450 = vpop.permute.xlu0 %3449
    %3451 = vrot.lane.b32.xlu0 %v2645, 32
    %v3452 = vpop.permute.xlu0 %3451
    %3453 = vrot.lane.b32.xlu0 %v2725, 32
    %v3454 = vpop.permute.xlu0 %3453
    %3455 = vrot.lane.b32.xlu0 %v2648, 32
    %v3456 = vpop.permute.xlu0 %3455
    %3457 = vrot.lane.b32.xlu0 %v2726, 32
    %v3458 = vpop.permute.xlu0 %3457
    %3459 = vrot.lane.b32.xlu0 %v2651, 32
    %v3460 = vpop.permute.xlu0 %3459
    %3461 = vrot.lane.b32.xlu0 %v2727, 32
    %v3462 = vpop.permute.xlu0 %3461
    %3463 = vrot.lane.b32.xlu0 %v2654, 32
    %v3464 = vpop.permute.xlu0 %3463
    %3465 = vrot.lane.b32.xlu0 %v2728, 32
    %v3466 = vpop.permute.xlu0 %3465
    %3467 = vrot.lane.b32.xlu0 %v2657, 32
    %v3468 = vpop.permute.xlu0 %3467
    %3469 = vrot.lane.b32.xlu0 %v2729, 32
    %v3470 = vpop.permute.xlu0 %3469
    %3471 = vrot.lane.b32.xlu0 %v2660, 32
    %v3472 = vpop.permute.xlu0 %3471
    %3473 = vrot.lane.b32.xlu0 %v2730, 32
    %v3474 = vpop.permute.xlu0 %3473
    %3475 = vrot.lane.b32.xlu0 %v2663, 32
    %v3476 = vpop.permute.xlu0 %3475
    %3477 = vrot.lane.b32.xlu0 %v2731, 32
    %v3478 = vpop.permute.xlu0 %3477
    %3479 = vrot.lane.b32.xlu0 %v2666, 32
    %v3480 = vpop.permute.xlu0 %3479
    %3481 = vrot.lane.b32.xlu0 %v2732, 32
    %v3482 = vpop.permute.xlu0 %3481
    %3483 = vrot.lane.b32.xlu0 %v2669, 32
    %v3484 = vpop.permute.xlu0 %3483
    %3485 = vrot.lane.b32.xlu0 %v2733, 32
    %v3486 = vpop.permute.xlu0 %3485
    %3487 = vrot.lane.b32.xlu0 %v2672, 32
    %v3488 = vpop.permute.xlu0 %3487
    %3489 = vrot.lane.b32.xlu0 %v2734, 32
    %v3490 = vpop.permute.xlu0 %3489
    %3491 = vrot.lane.b32.xlu0 %v2675, 32
    %v3492 = vpop.permute.xlu0 %3491
    %3493 = vrot.lane.b32.xlu0 %v2735, 32
    %v3494 = vpop.permute.xlu0 %3493
    %3555 = vrot.lane.b32.xlu0 %v2739, 64
    %v3556 = vpop.permute.xlu0 %3555
    %3557 = vrot.lane.b32.xlu0 %v2837, 64
    %v3558 = vpop.permute.xlu0 %3557
    %3559 = vrot.lane.b32.xlu0 %v2742, 64
    %v3560 = vpop.permute.xlu0 %3559
    %3561 = vrot.lane.b32.xlu0 %v2838, 64
    %v3562 = vpop.permute.xlu0 %3561
    %3563 = vrot.lane.b32.xlu0 %v2745, 64
    %v3564 = vpop.permute.xlu0 %3563
    %3565 = vrot.lane.b32.xlu0 %v2839, 64
    %v3566 = vpop.permute.xlu0 %3565
    %3567 = vrot.lane.b32.xlu0 %v2748, 64
    %v3568 = vpop.permute.xlu0 %3567
    %3569 = vrot.lane.b32.xlu0 %v2840, 64
    %v3570 = vpop.permute.xlu0 %3569
    %3571 = vrot.lane.b32.xlu0 %v2751, 64
    %v3572 = vpop.permute.xlu0 %3571
    %3573 = vrot.lane.b32.xlu0 %v2841, 64
    %v3574 = vpop.permute.xlu0 %3573
    %3575 = vrot.lane.b32.xlu0 %v2754, 64
    %v3576 = vpop.permute.xlu0 %3575
    %3577 = vrot.lane.b32.xlu0 %v2842, 64
    %v3578 = vpop.permute.xlu0 %3577
    %3579 = vrot.lane.b32.xlu0 %v2757, 64
    %v3580 = vpop.permute.xlu0 %3579
    %3581 = vrot.lane.b32.xlu0 %v2843, 64
    %v3582 = vpop.permute.xlu0 %3581
    %3583 = vrot.lane.b32.xlu0 %v2760, 64
    %v3584 = vpop.permute.xlu0 %3583
    %3585 = vrot.lane.b32.xlu0 %v2844, 64
    %v3586 = vpop.permute.xlu0 %3585
    %3587 = vrot.lane.b32.xlu0 %v2763, 64
    %v3588 = vpop.permute.xlu0 %3587
    %3589 = vrot.lane.b32.xlu0 %v2845, 64
    %v3590 = vpop.permute.xlu0 %3589
    %3591 = vrot.lane.b32.xlu0 %v2766, 64
    %v3592 = vpop.permute.xlu0 %3591
    %3593 = vrot.lane.b32.xlu0 %v2846, 64
    %v3594 = vpop.permute.xlu0 %3593
    %3595 = vrot.lane.b32.xlu0 %v2769, 64
    %v3596 = vpop.permute.xlu0 %3595
    %3597 = vrot.lane.b32.xlu0 %v2847, 64
    %v3598 = vpop.permute.xlu0 %3597
    %3599 = vrot.lane.b32.xlu0 %v2772, 64
    %v3600 = vpop.permute.xlu0 %3599
    %3601 = vrot.lane.b32.xlu0 %v2848, 64
    %v3602 = vpop.permute.xlu0 %3601
    %3603 = vrot.lane.b32.xlu0 %v2775, 64
    %v3604 = vpop.permute.xlu0 %3603
    %3605 = vrot.lane.b32.xlu0 %v2849, 64
    %v3606 = vpop.permute.xlu0 %3605
    %3607 = vrot.lane.b32.xlu0 %v2778, 64
    %v3608 = vpop.permute.xlu0 %3607
    %3609 = vrot.lane.b32.xlu0 %v2850, 64
    %v3610 = vpop.permute.xlu0 %3609
    %3611 = vrot.lane.b32.xlu0 %v2781, 64
    %v3612 = vpop.permute.xlu0 %3611
    %3613 = vrot.lane.b32.xlu0 %v2851, 64
    %v3614 = vpop.permute.xlu0 %3613
    %3615 = vrot.lane.b32.xlu0 %v2784, 64
    %v3616 = vpop.permute.xlu0 %3615
    %3617 = vrot.lane.b32.xlu0 %v2852, 64
    %v3618 = vpop.permute.xlu0 %3617
    %3619 = vrot.lane.b32.xlu0 %v2787, 64
    %v3620 = vpop.permute.xlu0 %3619
    %3621 = vrot.lane.b32.xlu0 %v2853, 64
    %v3622 = vpop.permute.xlu0 %3621
    %3623 = vrot.lane.b32.xlu0 %v2790, 64
    %v3624 = vpop.permute.xlu0 %3623
    %3625 = vrot.lane.b32.xlu0 %v2854, 64
    %v3626 = vpop.permute.xlu0 %3625
    %3627 = vrot.lane.b32.xlu0 %v2793, 64
    %v3628 = vpop.permute.xlu0 %3627
    %3629 = vrot.lane.b32.xlu0 %v2855, 64
    %v3630 = vpop.permute.xlu0 %3629
    %3631 = vrot.lane.b32.xlu0 %v2796, 64
    %v3632 = vpop.permute.xlu0 %3631
    %3633 = vrot.lane.b32.xlu0 %v2856, 64
    %v3634 = vpop.permute.xlu0 %3633
    %3695 = vrot.lane.b32.xlu0 %v2860, 96
    %v3696 = vpop.permute.xlu0 %3695
    %3697 = vrot.lane.b32.xlu0 %v2958, 96
    %v3698 = vpop.permute.xlu0 %3697
    %3699 = vrot.lane.b32.xlu0 %v2863, 96
    %v3700 = vpop.permute.xlu0 %3699
    %3701 = vrot.lane.b32.xlu0 %v2959, 96
    %v3702 = vpop.permute.xlu0 %3701
    %3703 = vrot.lane.b32.xlu0 %v2866, 96
    %v3704 = vpop.permute.xlu0 %3703
    %3705 = vrot.lane.b32.xlu0 %v2960, 96
    %v3706 = vpop.permute.xlu0 %3705
    %3707 = vrot.lane.b32.xlu0 %v2869, 96
    %v3708 = vpop.permute.xlu0 %3707
    %3709 = vrot.lane.b32.xlu0 %v2961, 96
    %v3710 = vpop.permute.xlu0 %3709
    %3711 = vrot.lane.b32.xlu0 %v2872, 96
    %v3712 = vpop.permute.xlu0 %3711
    %3713 = vrot.lane.b32.xlu0 %v2962, 96
    %v3714 = vpop.permute.xlu0 %3713
    %3715 = vrot.lane.b32.xlu0 %v2875, 96
    %v3716 = vpop.permute.xlu0 %3715
    %3717 = vrot.lane.b32.xlu0 %v2963, 96
    %v3718 = vpop.permute.xlu0 %3717
    %3719 = vrot.lane.b32.xlu0 %v2878, 96
    %v3720 = vpop.permute.xlu0 %3719
    %3721 = vrot.lane.b32.xlu0 %v2964, 96
    %v3722 = vpop.permute.xlu0 %3721
    %3723 = vrot.lane.b32.xlu0 %v2881, 96
    %v3724 = vpop.permute.xlu0 %3723
    %3725 = vrot.lane.b32.xlu0 %v2965, 96
    %v3726 = vpop.permute.xlu0 %3725
    %3727 = vrot.lane.b32.xlu0 %v2884, 96
    %v3728 = vpop.permute.xlu0 %3727
    %3729 = vrot.lane.b32.xlu0 %v2966, 96
    %v3730 = vpop.permute.xlu0 %3729
    %3731 = vrot.lane.b32.xlu0 %v2887, 96
    %v3732 = vpop.permute.xlu0 %3731
    %3733 = vrot.lane.b32.xlu0 %v2967, 96
    %v3734 = vpop.permute.xlu0 %3733
    %3735 = vrot.lane.b32.xlu0 %v2890, 96
    %v3736 = vpop.permute.xlu0 %3735
    %3737 = vrot.lane.b32.xlu0 %v2968, 96
    %v3738 = vpop.permute.xlu0 %3737
    %3739 = vrot.lane.b32.xlu0 %v2893, 96
    %v3740 = vpop.permute.xlu0 %3739
    %3741 = vrot.lane.b32.xlu0 %v2969, 96
    %v3742 = vpop.permute.xlu0 %3741
    %3743 = vrot.lane.b32.xlu0 %v2896, 96
    %v3744 = vpop.permute.xlu0 %3743
    %3745 = vrot.lane.b32.xlu0 %v2970, 96
    %v3746 = vpop.permute.xlu0 %3745
    %3747 = vrot.lane.b32.xlu0 %v2899, 96
    %v3748 = vpop.permute.xlu0 %3747
    %3749 = vrot.lane.b32.xlu0 %v2971, 96
    %v3750 = vpop.permute.xlu0 %3749
    %3751 = vrot.lane.b32.xlu0 %v2902, 96
    %v3752 = vpop.permute.xlu0 %3751
    %3753 = vrot.lane.b32.xlu0 %v2972, 96
    %v3754 = vpop.permute.xlu0 %3753
    %3755 = vrot.lane.b32.xlu0 %v2905, 96
    %v3756 = vpop.permute.xlu0 %3755
    %3757 = vrot.lane.b32.xlu0 %v2973, 96
    %v3758 = vpop.permute.xlu0 %3757
    %3759 = vrot.lane.b32.xlu0 %v2908, 96
    %v3760 = vpop.permute.xlu0 %3759
    %3761 = vrot.lane.b32.xlu0 %v2974, 96
    %v3762 = vpop.permute.xlu0 %3761
    %3763 = vrot.lane.b32.xlu0 %v2911, 96
    %v3764 = vpop.permute.xlu0 %3763
    %3765 = vrot.lane.b32.xlu0 %v2975, 96
    %v3766 = vpop.permute.xlu0 %3765
    %3767 = vrot.lane.b32.xlu0 %v2914, 96
    %v3768 = vpop.permute.xlu0 %3767
    %3769 = vrot.lane.b32.xlu0 %v2976, 96
    %v3770 = vpop.permute.xlu0 %3769
    %3771 = vrot.lane.b32.xlu0 %v2917, 96
    %v3772 = vpop.permute.xlu0 %3771
    %3773 = vrot.lane.b32.xlu0 %v2977, 96
    %v3774 = vpop.permute.xlu0 %3773
    %3815 = vrot.lane.b32.xlu0 %v2521, 32
    %v3816 = vpop.permute.xlu0 %3815
    %3817 = vrot.lane.b32.xlu0 %v2522, 32
    %v3818 = vpop.permute.xlu0 %3817
    %3819 = vrot.lane.b32.xlu0 %v2523, 32
    %v3820 = vpop.permute.xlu0 %3819
    %3821 = vrot.lane.b32.xlu0 %v2524, 32
    %v3822 = vpop.permute.xlu0 %3821
    %3823 = vrot.lane.b32.xlu0 %v2525, 32
    %v3824 = vpop.permute.xlu0 %3823
    %3825 = vrot.lane.b32.xlu0 %v2526, 32
    %v3826 = vpop.permute.xlu0 %3825
    %3827 = vrot.lane.b32.xlu0 %v2527, 32
    %v3828 = vpop.permute.xlu0 %3827
    %3829 = vrot.lane.b32.xlu0 %v2528, 32
    %v3830 = vpop.permute.xlu0 %3829
    %3831 = vrot.lane.b32.xlu0 %v2529, 32
    %v3832 = vpop.permute.xlu0 %3831
    %3833 = vrot.lane.b32.xlu0 %v2530, 32
    %v3834 = vpop.permute.xlu0 %3833
    %3835 = vrot.lane.b32.xlu0 %v2531, 32
    %v3836 = vpop.permute.xlu0 %3835
    %3837 = vrot.lane.b32.xlu0 %v2532, 32
    %v3838 = vpop.permute.xlu0 %3837
    %3839 = vrot.lane.b32.xlu0 %v2533, 32
    %v3840 = vpop.permute.xlu0 %3839
    %3841 = vrot.lane.b32.xlu0 %v2534, 32
    %v3842 = vpop.permute.xlu0 %3841
    %3843 = vrot.lane.b32.xlu0 %v2535, 32
    %v3844 = vpop.permute.xlu0 %3843
    %3845 = vrot.lane.b32.xlu0 %v2536, 32
    %v3846 = vpop.permute.xlu0 %3845
    %3847 = vrot.lane.b32.xlu0 %v2537, 32
    %v3848 = vpop.permute.xlu0 %3847
    %3849 = vrot.lane.b32.xlu0 %v2538, 32
    %v3850 = vpop.permute.xlu0 %3849
    %3851 = vrot.lane.b32.xlu0 %v2539, 32
    %v3852 = vpop.permute.xlu0 %3851
    %3853 = vrot.lane.b32.xlu0 %v2540, 32
    %v3854 = vpop.permute.xlu0 %3853
    %3855 = vrot.lane.b32.xlu0 %v2549, 32
    %v3856 = vpop.permute.xlu0 %3855
    %3857 = vrot.lane.b32.xlu0 %v2550, 32
    %v3858 = vpop.permute.xlu0 %3857
    %3859 = vrot.lane.b32.xlu0 %v2551, 32
    %v3860 = vpop.permute.xlu0 %3859
    %3861 = vrot.lane.b32.xlu0 %v2552, 32
    %v3862 = vpop.permute.xlu0 %3861
    %3863 = vrot.lane.b32.xlu0 %v2553, 32
    %v3864 = vpop.permute.xlu0 %3863
    %3865 = vrot.lane.b32.xlu0 %v2554, 32
    %v3866 = vpop.permute.xlu0 %3865
    %3867 = vrot.lane.b32.xlu0 %v2555, 32
    %v3868 = vpop.permute.xlu0 %3867
    %3869 = vrot.lane.b32.xlu0 %v2556, 32
    %v3870 = vpop.permute.xlu0 %3869
    %3871 = vrot.lane.b32.xlu0 %v2557, 32
    %v3872 = vpop.permute.xlu0 %3871
    %3873 = vrot.lane.b32.xlu0 %v2558, 32
    %v3874 = vpop.permute.xlu0 %3873
    %3875 = vrot.lane.b32.xlu0 %v2559, 32
    %v3876 = vpop.permute.xlu0 %3875
    %3877 = vrot.lane.b32.xlu0 %v2560, 32
    %v3878 = vpop.permute.xlu0 %3877
    %3879 = vrot.lane.b32.xlu0 %v2561, 32
    %v3880 = vpop.permute.xlu0 %3879
    %3881 = vrot.lane.b32.xlu0 %v2562, 32
    %v3882 = vpop.permute.xlu0 %3881
    %3883 = vrot.lane.b32.xlu0 %v2563, 32
    %v3884 = vpop.permute.xlu0 %3883
    %3885 = vrot.lane.b32.xlu0 %v2564, 32
    %v3886 = vpop.permute.xlu0 %3885
    %3887 = vrot.lane.b32.xlu0 %v2565, 32
    %v3888 = vpop.permute.xlu0 %3887
    %3889 = vrot.lane.b32.xlu0 %v2566, 32
    %v3890 = vpop.permute.xlu0 %3889
    %3891 = vrot.lane.b32.xlu0 %v2567, 32
    %v3892 = vpop.permute.xlu0 %3891
    %3893 = vrot.lane.b32.xlu0 %v2568, 32
    %v3894 = vpop.permute.xlu0 %3893
    %3937 = vrot.lane.b32.xlu0 %v2621, 64
    %v3938 = vpop.permute.xlu0 %3937
    %3939 = vrot.lane.b32.xlu0 %v2717, 64
    %v3940 = vpop.permute.xlu0 %3939
    %3941 = vrot.lane.b32.xlu0 %v2624, 64
    %v3942 = vpop.permute.xlu0 %3941
    %3943 = vrot.lane.b32.xlu0 %v2718, 64
    %v3944 = vpop.permute.xlu0 %3943
    %3945 = vrot.lane.b32.xlu0 %v2627, 64
    %v3946 = vpop.permute.xlu0 %3945
    %3947 = vrot.lane.b32.xlu0 %v2719, 64
    %v3948 = vpop.permute.xlu0 %3947
    %3949 = vrot.lane.b32.xlu0 %v2630, 64
    %v3950 = vpop.permute.xlu0 %3949
    %3951 = vrot.lane.b32.xlu0 %v2720, 64
    %v3952 = vpop.permute.xlu0 %3951
    %3953 = vrot.lane.b32.xlu0 %v2633, 64
    %v3954 = vpop.permute.xlu0 %3953
    %3955 = vrot.lane.b32.xlu0 %v2721, 64
    %v3956 = vpop.permute.xlu0 %3955
    %3957 = vrot.lane.b32.xlu0 %v2636, 64
    %v3958 = vpop.permute.xlu0 %3957
    %3959 = vrot.lane.b32.xlu0 %v2722, 64
    %v3960 = vpop.permute.xlu0 %3959
    %3961 = vrot.lane.b32.xlu0 %v2639, 64
    %v3962 = vpop.permute.xlu0 %3961
    %3963 = vrot.lane.b32.xlu0 %v2723, 64
    %v3964 = vpop.permute.xlu0 %3963
    %3965 = vrot.lane.b32.xlu0 %v2642, 64
    %v3966 = vpop.permute.xlu0 %3965
    %3967 = vrot.lane.b32.xlu0 %v2724, 64
    %v3968 = vpop.permute.xlu0 %3967
    %3969 = vrot.lane.b32.xlu0 %v2645, 64
    %v3970 = vpop.permute.xlu0 %3969
    %3971 = vrot.lane.b32.xlu0 %v2725, 64
    %v3972 = vpop.permute.xlu0 %3971
    %3973 = vrot.lane.b32.xlu0 %v3125, 64
    %v3974 = vpop.permute.xlu0 %3973
    %3975 = vrot.lane.b32.xlu0 %v3133, 64
    %v3976 = vpop.permute.xlu0 %3975
    %3977 = vrot.lane.b32.xlu0 %v2651, 64
    %v3978 = vpop.permute.xlu0 %3977
    %3979 = vrot.lane.b32.xlu0 %v2727, 64
    %v3980 = vpop.permute.xlu0 %3979
    %3981 = vrot.lane.b32.xlu0 %v2654, 64
    %v3982 = vpop.permute.xlu0 %3981
    %3983 = vrot.lane.b32.xlu0 %v2728, 64
    %v3984 = vpop.permute.xlu0 %3983
    %3985 = vrot.lane.b32.xlu0 %v2657, 64
    %v3986 = vpop.permute.xlu0 %3985
    %3987 = vrot.lane.b32.xlu0 %v2729, 64
    %v3988 = vpop.permute.xlu0 %3987
    %3989 = vrot.lane.b32.xlu0 %v2660, 64
    %v3990 = vpop.permute.xlu0 %3989
    %3991 = vrot.lane.b32.xlu0 %v2730, 64
    %v3992 = vpop.permute.xlu0 %3991
    %3993 = vrot.lane.b32.xlu0 %v2663, 64
    %v3994 = vpop.permute.xlu0 %3993
    %3995 = vrot.lane.b32.xlu0 %v2731, 64
    %v3996 = vpop.permute.xlu0 %3995
    %3997 = vrot.lane.b32.xlu0 %v2666, 64
    %v3998 = vpop.permute.xlu0 %3997
    %3999 = vrot.lane.b32.xlu0 %v2732, 64
    %v4000 = vpop.permute.xlu0 %3999
    %4001 = vrot.lane.b32.xlu0 %v2669, 64
    %v4002 = vpop.permute.xlu0 %4001
    %4003 = vrot.lane.b32.xlu0 %v2733, 64
    %v4004 = vpop.permute.xlu0 %4003
    %4005 = vrot.lane.b32.xlu0 %v2672, 64
    %v4006 = vpop.permute.xlu0 %4005
    %4007 = vrot.lane.b32.xlu0 %v2734, 64
    %v4008 = vpop.permute.xlu0 %4007
    %4009 = vrot.lane.b32.xlu0 %v2675, 64
    %v4010 = vpop.permute.xlu0 %4009
    %4011 = vrot.lane.b32.xlu0 %v2735, 64
    %v4012 = vpop.permute.xlu0 %4011
    %4013 = vrot.lane.b32.xlu0 %v3128, 64
    %v4014 = vpop.permute.xlu0 %4013
    %4015 = vrot.lane.b32.xlu0 %v3134, 64
    %v4016 = vpop.permute.xlu0 %4015
    %4059 = vrot.lane.b32.xlu0 %v2742, 96
    %v4060 = vpop.permute.xlu0 %4059
    %4061 = vrot.lane.b32.xlu0 %v2838, 96
    %v4062 = vpop.permute.xlu0 %4061
    %4063 = vrot.lane.b32.xlu0 %v2745, 96
    %v4064 = vpop.permute.xlu0 %4063
    %4065 = vrot.lane.b32.xlu0 %v2839, 96
    %v4066 = vpop.permute.xlu0 %4065
    %4067 = vrot.lane.b32.xlu0 %v2748, 96
    %v4068 = vpop.permute.xlu0 %4067
    %4069 = vrot.lane.b32.xlu0 %v2840, 96
    %v4070 = vpop.permute.xlu0 %4069
    %4071 = vrot.lane.b32.xlu0 %v2751, 96
    %v4072 = vpop.permute.xlu0 %4071
    %4073 = vrot.lane.b32.xlu0 %v2841, 96
    %v4074 = vpop.permute.xlu0 %4073
    %4075 = vrot.lane.b32.xlu0 %v2754, 96
    %v4076 = vpop.permute.xlu0 %4075
    %4077 = vrot.lane.b32.xlu0 %v2842, 96
    %v4078 = vpop.permute.xlu0 %4077
    %4079 = vrot.lane.b32.xlu0 %v2757, 96
    %v4080 = vpop.permute.xlu0 %4079
    %4081 = vrot.lane.b32.xlu0 %v2843, 96
    %v4082 = vpop.permute.xlu0 %4081
    %4083 = vrot.lane.b32.xlu0 %v2760, 96
    %v4084 = vpop.permute.xlu0 %4083
    %4085 = vrot.lane.b32.xlu0 %v2844, 96
    %v4086 = vpop.permute.xlu0 %4085
    %4087 = vrot.lane.b32.xlu0 %v2763, 96
    %v4088 = vpop.permute.xlu0 %4087
    %4089 = vrot.lane.b32.xlu0 %v2845, 96
    %v4090 = vpop.permute.xlu0 %4089
    %4091 = vrot.lane.b32.xlu0 %v2766, 96
    %v4092 = vpop.permute.xlu0 %4091
    %4093 = vrot.lane.b32.xlu0 %v2846, 96
    %v4094 = vpop.permute.xlu0 %4093
    %4095 = vrot.lane.b32.xlu0 %v3137, 96
    %v4096 = vpop.permute.xlu0 %4095
    %4097 = vrot.lane.b32.xlu0 %v3145, 96
    %v4098 = vpop.permute.xlu0 %4097
    %4099 = vrot.lane.b32.xlu0 %v2772, 96
    %v4100 = vpop.permute.xlu0 %4099
    %4101 = vrot.lane.b32.xlu0 %v2848, 96
    %v4102 = vpop.permute.xlu0 %4101
    %4103 = vrot.lane.b32.xlu0 %v2775, 96
    %v4104 = vpop.permute.xlu0 %4103
    %4105 = vrot.lane.b32.xlu0 %v2849, 96
    %v4106 = vpop.permute.xlu0 %4105
    %4107 = vrot.lane.b32.xlu0 %v2778, 96
    %v4108 = vpop.permute.xlu0 %4107
    %4109 = vrot.lane.b32.xlu0 %v2850, 96
    %v4110 = vpop.permute.xlu0 %4109
    %4111 = vrot.lane.b32.xlu0 %v2781, 96
    %v4112 = vpop.permute.xlu0 %4111
    %4113 = vrot.lane.b32.xlu0 %v2851, 96
    %v4114 = vpop.permute.xlu0 %4113
    %4115 = vrot.lane.b32.xlu0 %v2784, 96
    %v4116 = vpop.permute.xlu0 %4115
    %4117 = vrot.lane.b32.xlu0 %v2852, 96
    %v4118 = vpop.permute.xlu0 %4117
    %4119 = vrot.lane.b32.xlu0 %v2787, 96
    %v4120 = vpop.permute.xlu0 %4119
    %4121 = vrot.lane.b32.xlu0 %v2853, 96
    %v4122 = vpop.permute.xlu0 %4121
    %4123 = vrot.lane.b32.xlu0 %v2790, 96
    %v4124 = vpop.permute.xlu0 %4123
    %4125 = vrot.lane.b32.xlu0 %v2854, 96
    %v4126 = vpop.permute.xlu0 %4125
    %4127 = vrot.lane.b32.xlu0 %v2793, 96
    %v4128 = vpop.permute.xlu0 %4127
    %4129 = vrot.lane.b32.xlu0 %v2855, 96
    %v4130 = vpop.permute.xlu0 %4129
    %4131 = vrot.lane.b32.xlu0 %v2796, 96
    %v4132 = vpop.permute.xlu0 %4131
    %4133 = vrot.lane.b32.xlu0 %v2856, 96
    %v4134 = vpop.permute.xlu0 %4133
    %4135 = vrot.lane.b32.xlu0 %v3140, 96
    %v4136 = vpop.permute.xlu0 %4135
    %4137 = vrot.lane.b32.xlu0 %v3146, 96
    %v4138 = vpop.permute.xlu0 %4137
    %4199 = vrot.lane.b32.xlu0 %v2984, 32
    %v4200 = vpop.permute.xlu0 %4199
    %4201 = vrot.lane.b32.xlu0 %v3100, 32
    %v4202 = vpop.permute.xlu0 %4201
    %4203 = vrot.lane.b32.xlu0 %v2987, 32
    %v4204 = vpop.permute.xlu0 %4203
    %4205 = vrot.lane.b32.xlu0 %v3101, 32
    %v4206 = vpop.permute.xlu0 %4205
    %4207 = vrot.lane.b32.xlu0 %v2990, 32
    %v4208 = vpop.permute.xlu0 %4207
    %4209 = vrot.lane.b32.xlu0 %v3102, 32
    %v4210 = vpop.permute.xlu0 %4209
    %4211 = vrot.lane.b32.xlu0 %v2993, 32
    %v4212 = vpop.permute.xlu0 %4211
    %4213 = vrot.lane.b32.xlu0 %v3103, 32
    %v4214 = vpop.permute.xlu0 %4213
    %4215 = vrot.lane.b32.xlu0 %v2996, 32
    %v4216 = vpop.permute.xlu0 %4215
    %4217 = vrot.lane.b32.xlu0 %v3104, 32
    %v4218 = vpop.permute.xlu0 %4217
    %4219 = vrot.lane.b32.xlu0 %v2999, 32
    %v4220 = vpop.permute.xlu0 %4219
    %4221 = vrot.lane.b32.xlu0 %v3105, 32
    %v4222 = vpop.permute.xlu0 %4221
    %4223 = vrot.lane.b32.xlu0 %v3002, 32
    %v4224 = vpop.permute.xlu0 %4223
    %4225 = vrot.lane.b32.xlu0 %v3106, 32
    %v4226 = vpop.permute.xlu0 %4225
    %4227 = vrot.lane.b32.xlu0 %v3005, 32
    %v4228 = vpop.permute.xlu0 %4227
    %4229 = vrot.lane.b32.xlu0 %v3107, 32
    %v4230 = vpop.permute.xlu0 %4229
    %4231 = vrot.lane.b32.xlu0 %v3008, 32
    %v4232 = vpop.permute.xlu0 %4231
    %4233 = vrot.lane.b32.xlu0 %v3108, 32
    %v4234 = vpop.permute.xlu0 %4233
    %4235 = vrot.lane.b32.xlu0 %v3181, 32
    %v4236 = vpop.permute.xlu0 %4235
    %4237 = vrot.lane.b32.xlu0 %v3189, 32
    %v4238 = vpop.permute.xlu0 %4237
    %4239 = vrot.lane.b32.xlu0 %v3014, 32
    %v4240 = vpop.permute.xlu0 %4239
    %4241 = vrot.lane.b32.xlu0 %v3110, 32
    %v4242 = vpop.permute.xlu0 %4241
    %4243 = vrot.lane.b32.xlu0 %v3017, 32
    %v4244 = vpop.permute.xlu0 %4243
    %4245 = vrot.lane.b32.xlu0 %v3111, 32
    %v4246 = vpop.permute.xlu0 %4245
    %4247 = vrot.lane.b32.xlu0 %v3020, 32
    %v4248 = vpop.permute.xlu0 %4247
    %4249 = vrot.lane.b32.xlu0 %v3112, 32
    %v4250 = vpop.permute.xlu0 %4249
    %4251 = vrot.lane.b32.xlu0 %v3023, 32
    %v4252 = vpop.permute.xlu0 %4251
    %4253 = vrot.lane.b32.xlu0 %v3113, 32
    %v4254 = vpop.permute.xlu0 %4253
    %4255 = vrot.lane.b32.xlu0 %v3026, 32
    %v4256 = vpop.permute.xlu0 %4255
    %4257 = vrot.lane.b32.xlu0 %v3114, 32
    %v4258 = vpop.permute.xlu0 %4257
    %4259 = vrot.lane.b32.xlu0 %v3029, 32
    %v4260 = vpop.permute.xlu0 %4259
    %4261 = vrot.lane.b32.xlu0 %v3115, 32
    %v4262 = vpop.permute.xlu0 %4261
    %4263 = vrot.lane.b32.xlu0 %v3032, 32
    %v4264 = vpop.permute.xlu0 %4263
    %4265 = vrot.lane.b32.xlu0 %v3116, 32
    %v4266 = vpop.permute.xlu0 %4265
    %4267 = vrot.lane.b32.xlu0 %v3035, 32
    %v4268 = vpop.permute.xlu0 %4267
    %4269 = vrot.lane.b32.xlu0 %v3117, 32
    %v4270 = vpop.permute.xlu0 %4269
    %4271 = vrot.lane.b32.xlu0 %v3038, 32
    %v4272 = vpop.permute.xlu0 %4271
    %4273 = vrot.lane.b32.xlu0 %v3118, 32
    %v4274 = vpop.permute.xlu0 %4273
    %4275 = vrot.lane.b32.xlu0 %v3184, 32
    %v4276 = vpop.permute.xlu0 %4275
    %4277 = vrot.lane.b32.xlu0 %v3190, 32
    %v4278 = vpop.permute.xlu0 %4277
    %4319 = vrot.lane.b32.xlu0 %v2523, 64
    %v4320 = vpop.permute.xlu0 %4319
    %4321 = vrot.lane.b32.xlu0 %v2524, 64
    %v4322 = vpop.permute.xlu0 %4321
    %4323 = vrot.lane.b32.xlu0 %v2525, 64
    %v4324 = vpop.permute.xlu0 %4323
    %4325 = vrot.lane.b32.xlu0 %v2526, 64
    %v4326 = vpop.permute.xlu0 %4325
    %4327 = vrot.lane.b32.xlu0 %v2527, 64
    %v4328 = vpop.permute.xlu0 %4327
    %4329 = vrot.lane.b32.xlu0 %v2528, 64
    %v4330 = vpop.permute.xlu0 %4329
    %4331 = vrot.lane.b32.xlu0 %v2529, 64
    %v4332 = vpop.permute.xlu0 %4331
    %4333 = vrot.lane.b32.xlu0 %v2530, 64
    %v4334 = vpop.permute.xlu0 %4333
    %4335 = vrot.lane.b32.xlu0 %v2531, 64
    %v4336 = vpop.permute.xlu0 %4335
    %4337 = vrot.lane.b32.xlu0 %v2532, 64
    %v4338 = vpop.permute.xlu0 %4337
    %4339 = vrot.lane.b32.xlu0 %v2533, 64
    %v4340 = vpop.permute.xlu0 %4339
    %4341 = vrot.lane.b32.xlu0 %v2534, 64
    %v4342 = vpop.permute.xlu0 %4341
    %4343 = vrot.lane.b32.xlu0 %v2535, 64
    %v4344 = vpop.permute.xlu0 %4343
    %4345 = vrot.lane.b32.xlu0 %v2536, 64
    %v4346 = vpop.permute.xlu0 %4345
    %4347 = vrot.lane.b32.xlu0 %v2537, 64
    %v4348 = vpop.permute.xlu0 %4347
    %4349 = vrot.lane.b32.xlu0 %v2538, 64
    %v4350 = vpop.permute.xlu0 %4349
    %4351 = vrot.lane.b32.xlu0 %v2539, 64
    %v4352 = vpop.permute.xlu0 %4351
    %4353 = vrot.lane.b32.xlu0 %v2540, 64
    %v4354 = vpop.permute.xlu0 %4353
    %4355 = vrot.lane.b32.xlu0 %v2541, 64
    %v4356 = vpop.permute.xlu0 %4355
    %4357 = vrot.lane.b32.xlu0 %v2542, 64
    %v4358 = vpop.permute.xlu0 %4357
    %4359 = vrot.lane.b32.xlu0 %v2551, 64
    %v4360 = vpop.permute.xlu0 %4359
    %4361 = vrot.lane.b32.xlu0 %v2552, 64
    %v4362 = vpop.permute.xlu0 %4361
    %4363 = vrot.lane.b32.xlu0 %v2553, 64
    %v4364 = vpop.permute.xlu0 %4363
    %4365 = vrot.lane.b32.xlu0 %v2554, 64
    %v4366 = vpop.permute.xlu0 %4365
    %4367 = vrot.lane.b32.xlu0 %v2555, 64
    %v4368 = vpop.permute.xlu0 %4367
    %4369 = vrot.lane.b32.xlu0 %v2556, 64
    %v4370 = vpop.permute.xlu0 %4369
    %4371 = vrot.lane.b32.xlu0 %v2557, 64
    %v4372 = vpop.permute.xlu0 %4371
    %4373 = vrot.lane.b32.xlu0 %v2558, 64
    %v4374 = vpop.permute.xlu0 %4373
    %4375 = vrot.lane.b32.xlu0 %v2559, 64
    %v4376 = vpop.permute.xlu0 %4375
    %4377 = vrot.lane.b32.xlu0 %v2560, 64
    %v4378 = vpop.permute.xlu0 %4377
    %4379 = vrot.lane.b32.xlu0 %v2561, 64
    %v4380 = vpop.permute.xlu0 %4379
    %4381 = vrot.lane.b32.xlu0 %v2562, 64
    %v4382 = vpop.permute.xlu0 %4381
    %4383 = vrot.lane.b32.xlu0 %v2563, 64
    %v4384 = vpop.permute.xlu0 %4383
    %4385 = vrot.lane.b32.xlu0 %v2564, 64
    %v4386 = vpop.permute.xlu0 %4385
    %4387 = vrot.lane.b32.xlu0 %v2565, 64
    %v4388 = vpop.permute.xlu0 %4387
    %4389 = vrot.lane.b32.xlu0 %v2566, 64
    %v4390 = vpop.permute.xlu0 %4389
    %4391 = vrot.lane.b32.xlu0 %v2567, 64
    %v4392 = vpop.permute.xlu0 %4391
    %4393 = vrot.lane.b32.xlu0 %v2568, 64
    %v4394 = vpop.permute.xlu0 %4393
    %4395 = vrot.lane.b32.xlu0 %v2569, 64
    %v4396 = vpop.permute.xlu0 %4395
    %4397 = vrot.lane.b32.xlu0 %v2570, 64
    %v4398 = vpop.permute.xlu0 %4397
    %4441 = vrot.lane.b32.xlu0 %v2624, 96
    %v4442 = vpop.permute.xlu0 %4441
    %4443 = vrot.lane.b32.xlu0 %v2718, 96
    %v4444 = vpop.permute.xlu0 %4443
    %4445 = vrot.lane.b32.xlu0 %v2627, 96
    %v4446 = vpop.permute.xlu0 %4445
    %4447 = vrot.lane.b32.xlu0 %v2719, 96
    %v4448 = vpop.permute.xlu0 %4447
    %4449 = vrot.lane.b32.xlu0 %v2630, 96
    %v4450 = vpop.permute.xlu0 %4449
    %4451 = vrot.lane.b32.xlu0 %v2720, 96
    %v4452 = vpop.permute.xlu0 %4451
    %4453 = vrot.lane.b32.xlu0 %v2633, 96
    %v4454 = vpop.permute.xlu0 %4453
    %4455 = vrot.lane.b32.xlu0 %v2721, 96
    %v4456 = vpop.permute.xlu0 %4455
    %4457 = vrot.lane.b32.xlu0 %v2636, 96
    %v4458 = vpop.permute.xlu0 %4457
    %4459 = vrot.lane.b32.xlu0 %v2722, 96
    %v4460 = vpop.permute.xlu0 %4459
    %4461 = vrot.lane.b32.xlu0 %v2639, 96
    %v4462 = vpop.permute.xlu0 %4461
    %4463 = vrot.lane.b32.xlu0 %v2723, 96
    %v4464 = vpop.permute.xlu0 %4463
    %4465 = vrot.lane.b32.xlu0 %v2642, 96
    %v4466 = vpop.permute.xlu0 %4465
    %4467 = vrot.lane.b32.xlu0 %v2724, 96
    %v4468 = vpop.permute.xlu0 %4467
    %4469 = vrot.lane.b32.xlu0 %v2645, 96
    %v4470 = vpop.permute.xlu0 %4469
    %4471 = vrot.lane.b32.xlu0 %v2725, 96
    %v4472 = vpop.permute.xlu0 %4471
    %4473 = vrot.lane.b32.xlu0 %v3125, 96
    %v4474 = vpop.permute.xlu0 %4473
    %4475 = vrot.lane.b32.xlu0 %v3133, 96
    %v4476 = vpop.permute.xlu0 %4475
    %4477 = vrot.lane.b32.xlu0 %v3197, 96
    %v4478 = vpop.permute.xlu0 %4477
    %4479 = vrot.lane.b32.xlu0 %v3205, 96
    %v4480 = vpop.permute.xlu0 %4479
    %4481 = vrot.lane.b32.xlu0 %v2654, 96
    %v4482 = vpop.permute.xlu0 %4481
    %4483 = vrot.lane.b32.xlu0 %v2728, 96
    %v4484 = vpop.permute.xlu0 %4483
    %4485 = vrot.lane.b32.xlu0 %v2657, 96
    %v4486 = vpop.permute.xlu0 %4485
    %4487 = vrot.lane.b32.xlu0 %v2729, 96
    %v4488 = vpop.permute.xlu0 %4487
    %4489 = vrot.lane.b32.xlu0 %v2660, 96
    %v4490 = vpop.permute.xlu0 %4489
    %4491 = vrot.lane.b32.xlu0 %v2730, 96
    %v4492 = vpop.permute.xlu0 %4491
    %4493 = vrot.lane.b32.xlu0 %v2663, 96
    %v4494 = vpop.permute.xlu0 %4493
    %4495 = vrot.lane.b32.xlu0 %v2731, 96
    %v4496 = vpop.permute.xlu0 %4495
    %4497 = vrot.lane.b32.xlu0 %v2666, 96
    %v4498 = vpop.permute.xlu0 %4497
    %4499 = vrot.lane.b32.xlu0 %v2732, 96
    %v4500 = vpop.permute.xlu0 %4499
    %4501 = vrot.lane.b32.xlu0 %v2669, 96
    %v4502 = vpop.permute.xlu0 %4501
    %4503 = vrot.lane.b32.xlu0 %v2733, 96
    %v4504 = vpop.permute.xlu0 %4503
    %4505 = vrot.lane.b32.xlu0 %v2672, 96
    %v4506 = vpop.permute.xlu0 %4505
    %4507 = vrot.lane.b32.xlu0 %v2734, 96
    %v4508 = vpop.permute.xlu0 %4507
    %4509 = vrot.lane.b32.xlu0 %v2675, 96
    %v4510 = vpop.permute.xlu0 %4509
    %4511 = vrot.lane.b32.xlu0 %v2735, 96
    %v4512 = vpop.permute.xlu0 %4511
    %4513 = vrot.lane.b32.xlu0 %v3128, 96
    %v4514 = vpop.permute.xlu0 %4513
    %4515 = vrot.lane.b32.xlu0 %v3134, 96
    %v4516 = vpop.permute.xlu0 %4515
    %4517 = vrot.lane.b32.xlu0 %v3200, 96
    %v4518 = vpop.permute.xlu0 %4517
    %4519 = vrot.lane.b32.xlu0 %v3206, 96
    %v4520 = vpop.permute.xlu0 %4519
    %4565 = vrot.lane.b32.xlu0 %v2866, 32
    %v4566 = vpop.permute.xlu0 %4565
    %4567 = vrot.lane.b32.xlu0 %v2960, 32
    %v4568 = vpop.permute.xlu0 %4567
    %4569 = vrot.lane.b32.xlu0 %v2869, 32
    %v4570 = vpop.permute.xlu0 %4569
    %4571 = vrot.lane.b32.xlu0 %v2961, 32
    %v4572 = vpop.permute.xlu0 %4571
    %4573 = vrot.lane.b32.xlu0 %v2872, 32
    %v4574 = vpop.permute.xlu0 %4573
    %4575 = vrot.lane.b32.xlu0 %v2962, 32
    %v4576 = vpop.permute.xlu0 %4575
    %4577 = vrot.lane.b32.xlu0 %v2875, 32
    %v4578 = vpop.permute.xlu0 %4577
    %4579 = vrot.lane.b32.xlu0 %v2963, 32
    %v4580 = vpop.permute.xlu0 %4579
    %4581 = vrot.lane.b32.xlu0 %v2878, 32
    %v4582 = vpop.permute.xlu0 %4581
    %4583 = vrot.lane.b32.xlu0 %v2964, 32
    %v4584 = vpop.permute.xlu0 %4583
    %4585 = vrot.lane.b32.xlu0 %v2881, 32
    %v4586 = vpop.permute.xlu0 %4585
    %4587 = vrot.lane.b32.xlu0 %v2965, 32
    %v4588 = vpop.permute.xlu0 %4587
    %4589 = vrot.lane.b32.xlu0 %v2884, 32
    %v4590 = vpop.permute.xlu0 %4589
    %4591 = vrot.lane.b32.xlu0 %v2966, 32
    %v4592 = vpop.permute.xlu0 %4591
    %4593 = vrot.lane.b32.xlu0 %v2887, 32
    %v4594 = vpop.permute.xlu0 %4593
    %4595 = vrot.lane.b32.xlu0 %v2967, 32
    %v4596 = vpop.permute.xlu0 %4595
    %4597 = vrot.lane.b32.xlu0 %v3149, 32
    %v4598 = vpop.permute.xlu0 %4597
    %4599 = vrot.lane.b32.xlu0 %v3177, 32
    %v4600 = vpop.permute.xlu0 %4599
    %4601 = vrot.lane.b32.xlu0 %v3241, 32
    %v4602 = vpop.permute.xlu0 %4601
    %4603 = vrot.lane.b32.xlu0 %v3249, 32
    %v4604 = vpop.permute.xlu0 %4603
    %4605 = vrot.lane.b32.xlu0 %v2896, 32
    %v4606 = vpop.permute.xlu0 %4605
    %4607 = vrot.lane.b32.xlu0 %v2970, 32
    %v4608 = vpop.permute.xlu0 %4607
    %4609 = vrot.lane.b32.xlu0 %v2899, 32
    %v4610 = vpop.permute.xlu0 %4609
    %4611 = vrot.lane.b32.xlu0 %v2971, 32
    %v4612 = vpop.permute.xlu0 %4611
    %4613 = vrot.lane.b32.xlu0 %v2902, 32
    %v4614 = vpop.permute.xlu0 %4613
    %4615 = vrot.lane.b32.xlu0 %v2972, 32
    %v4616 = vpop.permute.xlu0 %4615
    %4617 = vrot.lane.b32.xlu0 %v2905, 32
    %v4618 = vpop.permute.xlu0 %4617
    %4619 = vrot.lane.b32.xlu0 %v2973, 32
    %v4620 = vpop.permute.xlu0 %4619
    %4621 = vrot.lane.b32.xlu0 %v2908, 32
    %v4622 = vpop.permute.xlu0 %4621
    %4623 = vrot.lane.b32.xlu0 %v2974, 32
    %v4624 = vpop.permute.xlu0 %4623
    %4625 = vrot.lane.b32.xlu0 %v2911, 32
    %v4626 = vpop.permute.xlu0 %4625
    %4627 = vrot.lane.b32.xlu0 %v2975, 32
    %v4628 = vpop.permute.xlu0 %4627
    %4629 = vrot.lane.b32.xlu0 %v2914, 32
    %v4630 = vpop.permute.xlu0 %4629
    %4631 = vrot.lane.b32.xlu0 %v2976, 32
    %v4632 = vpop.permute.xlu0 %4631
    %4633 = vrot.lane.b32.xlu0 %v2917, 32
    %v4634 = vpop.permute.xlu0 %4633
    %4635 = vrot.lane.b32.xlu0 %v2977, 32
    %v4636 = vpop.permute.xlu0 %4635
    %4637 = vrot.lane.b32.xlu0 %v3152, 32
    %v4638 = vpop.permute.xlu0 %4637
    %4639 = vrot.lane.b32.xlu0 %v3178, 32
    %v4640 = vpop.permute.xlu0 %4639
    %4641 = vrot.lane.b32.xlu0 %v3244, 32
    %v4642 = vpop.permute.xlu0 %4641
    %4643 = vrot.lane.b32.xlu0 %v3250, 32
    %v4644 = vpop.permute.xlu0 %4643
    %4687 = vrot.lane.b32.xlu0 %v2987, 64
    %v4688 = vpop.permute.xlu0 %4687
    %4689 = vrot.lane.b32.xlu0 %v3101, 64
    %v4690 = vpop.permute.xlu0 %4689
    %4691 = vrot.lane.b32.xlu0 %v2990, 64
    %v4692 = vpop.permute.xlu0 %4691
    %4693 = vrot.lane.b32.xlu0 %v3102, 64
    %v4694 = vpop.permute.xlu0 %4693
    %4695 = vrot.lane.b32.xlu0 %v2993, 64
    %v4696 = vpop.permute.xlu0 %4695
    %4697 = vrot.lane.b32.xlu0 %v3103, 64
    %v4698 = vpop.permute.xlu0 %4697
    %4699 = vrot.lane.b32.xlu0 %v2996, 64
    %v4700 = vpop.permute.xlu0 %4699
    %4701 = vrot.lane.b32.xlu0 %v3104, 64
    %v4702 = vpop.permute.xlu0 %4701
    %4703 = vrot.lane.b32.xlu0 %v2999, 64
    %v4704 = vpop.permute.xlu0 %4703
    %4705 = vrot.lane.b32.xlu0 %v3105, 64
    %v4706 = vpop.permute.xlu0 %4705
    %4707 = vrot.lane.b32.xlu0 %v3002, 64
    %v4708 = vpop.permute.xlu0 %4707
    %4709 = vrot.lane.b32.xlu0 %v3106, 64
    %v4710 = vpop.permute.xlu0 %4709
    %4711 = vrot.lane.b32.xlu0 %v3005, 64
    %v4712 = vpop.permute.xlu0 %4711
    %4713 = vrot.lane.b32.xlu0 %v3107, 64
    %v4714 = vpop.permute.xlu0 %4713
    %4715 = vrot.lane.b32.xlu0 %v3008, 64
    %v4716 = vpop.permute.xlu0 %4715
    %4717 = vrot.lane.b32.xlu0 %v3108, 64
    %v4718 = vpop.permute.xlu0 %4717
    %4719 = vrot.lane.b32.xlu0 %v3181, 64
    %v4720 = vpop.permute.xlu0 %4719
    %4721 = vrot.lane.b32.xlu0 %v3189, 64
    %v4722 = vpop.permute.xlu0 %4721
    %4723 = vrot.lane.b32.xlu0 %v3253, 64
    %v4724 = vpop.permute.xlu0 %4723
    %4725 = vrot.lane.b32.xlu0 %v3261, 64
    %v4726 = vpop.permute.xlu0 %4725
    %4727 = vrot.lane.b32.xlu0 %v3017, 64
    %v4728 = vpop.permute.xlu0 %4727
    %4729 = vrot.lane.b32.xlu0 %v3111, 64
    %v4730 = vpop.permute.xlu0 %4729
    %4731 = vrot.lane.b32.xlu0 %v3020, 64
    %v4732 = vpop.permute.xlu0 %4731
    %4733 = vrot.lane.b32.xlu0 %v3112, 64
    %v4734 = vpop.permute.xlu0 %4733
    %4735 = vrot.lane.b32.xlu0 %v3023, 64
    %v4736 = vpop.permute.xlu0 %4735
    %4737 = vrot.lane.b32.xlu0 %v3113, 64
    %v4738 = vpop.permute.xlu0 %4737
    %4739 = vrot.lane.b32.xlu0 %v3026, 64
    %v4740 = vpop.permute.xlu0 %4739
    %4741 = vrot.lane.b32.xlu0 %v3114, 64
    %v4742 = vpop.permute.xlu0 %4741
    %4743 = vrot.lane.b32.xlu0 %v3029, 64
    %v4744 = vpop.permute.xlu0 %4743
    %4745 = vrot.lane.b32.xlu0 %v3115, 64
    %v4746 = vpop.permute.xlu0 %4745
    %4747 = vrot.lane.b32.xlu0 %v3032, 64
    %v4748 = vpop.permute.xlu0 %4747
    %4749 = vrot.lane.b32.xlu0 %v3116, 64
    %v4750 = vpop.permute.xlu0 %4749
    %4751 = vrot.lane.b32.xlu0 %v3035, 64
    %v4752 = vpop.permute.xlu0 %4751
    %4753 = vrot.lane.b32.xlu0 %v3117, 64
    %v4754 = vpop.permute.xlu0 %4753
    %4755 = vrot.lane.b32.xlu0 %v3038, 64
    %v4756 = vpop.permute.xlu0 %4755
    %4757 = vrot.lane.b32.xlu0 %v3118, 64
    %v4758 = vpop.permute.xlu0 %4757
    %4759 = vrot.lane.b32.xlu0 %v3184, 64
    %v4760 = vpop.permute.xlu0 %4759
    %4761 = vrot.lane.b32.xlu0 %v3190, 64
    %v4762 = vpop.permute.xlu0 %4761
    %4763 = vrot.lane.b32.xlu0 %v3256, 64
    %v4764 = vpop.permute.xlu0 %4763
    %4765 = vrot.lane.b32.xlu0 %v3262, 64
    %v4766 = vpop.permute.xlu0 %4765
    %4807 = vrot.lane.b32.xlu0 %v2525, 96
    %v4808 = vpop.permute.xlu0 %4807
    %4809 = vrot.lane.b32.xlu0 %v2526, 96
    %v4810 = vpop.permute.xlu0 %4809
    %4811 = vrot.lane.b32.xlu0 %v2527, 96
    %v4812 = vpop.permute.xlu0 %4811
    %4813 = vrot.lane.b32.xlu0 %v2528, 96
    %v4814 = vpop.permute.xlu0 %4813
    %4815 = vrot.lane.b32.xlu0 %v2529, 96
    %v4816 = vpop.permute.xlu0 %4815
    %4817 = vrot.lane.b32.xlu0 %v2530, 96
    %v4818 = vpop.permute.xlu0 %4817
    %4819 = vrot.lane.b32.xlu0 %v2531, 96
    %v4820 = vpop.permute.xlu0 %4819
    %4821 = vrot.lane.b32.xlu0 %v2532, 96
    %v4822 = vpop.permute.xlu0 %4821
    %4823 = vrot.lane.b32.xlu0 %v2533, 96
    %v4824 = vpop.permute.xlu0 %4823
    %4825 = vrot.lane.b32.xlu0 %v2534, 96
    %v4826 = vpop.permute.xlu0 %4825
    %4827 = vrot.lane.b32.xlu0 %v2535, 96
    %v4828 = vpop.permute.xlu0 %4827
    %4829 = vrot.lane.b32.xlu0 %v2536, 96
    %v4830 = vpop.permute.xlu0 %4829
    %4831 = vrot.lane.b32.xlu0 %v2537, 96
    %v4832 = vpop.permute.xlu0 %4831
    %4833 = vrot.lane.b32.xlu0 %v2538, 96
    %v4834 = vpop.permute.xlu0 %4833
    %4835 = vrot.lane.b32.xlu0 %v2539, 96
    %v4836 = vpop.permute.xlu0 %4835
    %4837 = vrot.lane.b32.xlu0 %v2540, 96
    %v4838 = vpop.permute.xlu0 %4837
    %4839 = vrot.lane.b32.xlu0 %v2541, 96
    %v4840 = vpop.permute.xlu0 %4839
    %4841 = vrot.lane.b32.xlu0 %v2542, 96
    %v4842 = vpop.permute.xlu0 %4841
    %4843 = vrot.lane.b32.xlu0 %v2543, 96
    %v4844 = vpop.permute.xlu0 %4843
    %4845 = vrot.lane.b32.xlu0 %v2544, 96
    %v4846 = vpop.permute.xlu0 %4845
    %4847 = vrot.lane.b32.xlu0 %v2553, 96
    %v4848 = vpop.permute.xlu0 %4847
    %4849 = vrot.lane.b32.xlu0 %v2554, 96
    %v4850 = vpop.permute.xlu0 %4849
    %4851 = vrot.lane.b32.xlu0 %v2555, 96
    %v4852 = vpop.permute.xlu0 %4851
    %4853 = vrot.lane.b32.xlu0 %v2556, 96
    %v4854 = vpop.permute.xlu0 %4853
    %4855 = vrot.lane.b32.xlu0 %v2557, 96
    %v4856 = vpop.permute.xlu0 %4855
    %4857 = vrot.lane.b32.xlu0 %v2558, 96
    %v4858 = vpop.permute.xlu0 %4857
    %4859 = vrot.lane.b32.xlu0 %v2559, 96
    %v4860 = vpop.permute.xlu0 %4859
    %4861 = vrot.lane.b32.xlu0 %v2560, 96
    %v4862 = vpop.permute.xlu0 %4861
    %4863 = vrot.lane.b32.xlu0 %v2561, 96
    %v4864 = vpop.permute.xlu0 %4863
    %4865 = vrot.lane.b32.xlu0 %v2562, 96
    %v4866 = vpop.permute.xlu0 %4865
    %4867 = vrot.lane.b32.xlu0 %v2563, 96
    %v4868 = vpop.permute.xlu0 %4867
    %4869 = vrot.lane.b32.xlu0 %v2564, 96
    %v4870 = vpop.permute.xlu0 %4869
    %4871 = vrot.lane.b32.xlu0 %v2565, 96
    %v4872 = vpop.permute.xlu0 %4871
    %4873 = vrot.lane.b32.xlu0 %v2566, 96
    %v4874 = vpop.permute.xlu0 %4873
    %4875 = vrot.lane.b32.xlu0 %v2567, 96
    %v4876 = vpop.permute.xlu0 %4875
    %4877 = vrot.lane.b32.xlu0 %v2568, 96
    %v4878 = vpop.permute.xlu0 %4877
    %4879 = vrot.lane.b32.xlu0 %v2569, 96
    %v4880 = vpop.permute.xlu0 %4879
    %4881 = vrot.lane.b32.xlu0 %v2570, 96
    %v4882 = vpop.permute.xlu0 %4881
    %4883 = vrot.lane.b32.xlu0 %v2571, 96
    %v4884 = vpop.permute.xlu0 %4883
    %4885 = vrot.lane.b32.xlu0 %v2572, 96
    %v4886 = vpop.permute.xlu0 %4885
    %vm4927 = vcmask 261120
    %v4928 = vsel %vm4927, %v2519, %v3416
    %v4929 = vsel %vm4927, %v2520, %v3418
    %v4930 = vsel %vm4927, %v2521, %v3420
    %v4931 = vsel %vm4927, %v2522, %v3422
    %v4932 = vsel %vm4927, %v2523, %v3424
    %v4933 = vsel %vm4927, %v2524, %v3426
    %v4934 = vsel %vm4927, %v2525, %v3428
    %v4935 = vsel %vm4927, %v2526, %v3430
    %v4936 = vsel %vm4927, %v2527, %v3432
    %v4937 = vsel %vm4927, %v2528, %v3434
    %v4938 = vsel %vm4927, %v2529, %v3436
    %v4939 = vsel %vm4927, %v2530, %v3438
    %v4940 = vsel %vm4927, %v2531, %v3440
    %v4941 = vsel %vm4927, %v2532, %v3442
    %v4942 = vsel %vm4927, %v2533, %v3444
    %v4943 = vsel %vm4927, %v2534, %v3446
    %v4944 = vsel %vm4927, %v2535, %v3448
    %v4945 = vsel %vm4927, %v2536, %v3450
    %v4946 = vsel %vm4927, %v2537, %v3452
    %v4947 = vsel %vm4927, %v2538, %v3454
    %v4948 = vsel %vm4927, %v2547, %v3456
    %v4949 = vsel %vm4927, %v2548, %v3458
    %v4950 = vsel %vm4927, %v2549, %v3460
    %v4951 = vsel %vm4927, %v2550, %v3462
    %v4952 = vsel %vm4927, %v2551, %v3464
    %v4953 = vsel %vm4927, %v2552, %v3466
    %v4954 = vsel %vm4927, %v2553, %v3468
    %v4955 = vsel %vm4927, %v2554, %v3470
    %v4956 = vsel %vm4927, %v2555, %v3472
    %v4957 = vsel %vm4927, %v2556, %v3474
    %v4958 = vsel %vm4927, %v2557, %v3476
    %v4959 = vsel %vm4927, %v2558, %v3478
    %v4960 = vsel %vm4927, %v2559, %v3480
    %v4961 = vsel %vm4927, %v2560, %v3482
    %v4962 = vsel %vm4927, %v2561, %v3484
    %v4963 = vsel %vm4927, %v2562, %v3486
    %v4964 = vsel %vm4927, %v2563, %v3488
    %v4965 = vsel %vm4927, %v2564, %v3490
    %v4966 = vsel %vm4927, %v2565, %v3492
    %v4967 = vsel %vm4927, %v2566, %v3494
    %vm4968 = vcmask 523264
    %v4969 = vsel %vm4968, %v4928, %v3556
    %v4970 = vsel %vm4968, %v4929, %v3558
    %v4971 = vsel %vm4968, %v4930, %v3560
    %v4972 = vsel %vm4968, %v4931, %v3562
    %v4973 = vsel %vm4968, %v4932, %v3564
    %v4974 = vsel %vm4968, %v4933, %v3566
    %v4975 = vsel %vm4968, %v4934, %v3568
    %v4976 = vsel %vm4968, %v4935, %v3570
    %v4977 = vsel %vm4968, %v4936, %v3572
    %v4978 = vsel %vm4968, %v4937, %v3574
    %v4979 = vsel %vm4968, %v4938, %v3576
    %v4980 = vsel %vm4968, %v4939, %v3578
    %v4981 = vsel %vm4968, %v4940, %v3580
    %v4982 = vsel %vm4968, %v4941, %v3582
    %v4983 = vsel %vm4968, %v4942, %v3584
    %v4984 = vsel %vm4968, %v4943, %v3586
    %v4985 = vsel %vm4968, %v4944, %v3588
    %v4986 = vsel %vm4968, %v4945, %v3590
    %v4987 = vsel %vm4968, %v4946, %v3592
    %v4988 = vsel %vm4968, %v4947, %v3594
    %v4989 = vsel %vm4968, %v4948, %v3596
    %v4990 = vsel %vm4968, %v4949, %v3598
    %v4991 = vsel %vm4968, %v4950, %v3600
    %v4992 = vsel %vm4968, %v4951, %v3602
    %v4993 = vsel %vm4968, %v4952, %v3604
    %v4994 = vsel %vm4968, %v4953, %v3606
    %v4995 = vsel %vm4968, %v4954, %v3608
    %v4996 = vsel %vm4968, %v4955, %v3610
    %v4997 = vsel %vm4968, %v4956, %v3612
    %v4998 = vsel %vm4968, %v4957, %v3614
    %v4999 = vsel %vm4968, %v4958, %v3616
    %v5000 = vsel %vm4968, %v4959, %v3618
    %v5001 = vsel %vm4968, %v4960, %v3620
    %v5002 = vsel %vm4968, %v4961, %v3622
    %v5003 = vsel %vm4968, %v4962, %v3624
    %v5004 = vsel %vm4968, %v4963, %v3626
    %v5005 = vsel %vm4968, %v4964, %v3628
    %v5006 = vsel %vm4968, %v4965, %v3630
    %v5007 = vsel %vm4968, %v4966, %v3632
    %v5008 = vsel %vm4968, %v4967, %v3634
    %vm5009 = vcmask 785408
    %v5010 = vsel %vm5009, %v4969, %v3696
    %v5011 = vsel %vm5009, %v4970, %v3698
    %v5012 = vsel %vm5009, %v4971, %v3700
    %v5013 = vsel %vm5009, %v4972, %v3702
    %v5014 = vsel %vm5009, %v4973, %v3704
    %v5015 = vsel %vm5009, %v4974, %v3706
    %v5016 = vsel %vm5009, %v4975, %v3708
    %v5017 = vsel %vm5009, %v4976, %v3710
    %v5018 = vsel %vm5009, %v4977, %v3712
    %v5019 = vsel %vm5009, %v4978, %v3714
    %v5020 = vsel %vm5009, %v4979, %v3716
    %v5021 = vsel %vm5009, %v4980, %v3718
    %v5022 = vsel %vm5009, %v4981, %v3720
    %v5023 = vsel %vm5009, %v4982, %v3722
    %v5024 = vsel %vm5009, %v4983, %v3724
    %v5025 = vsel %vm5009, %v4984, %v3726
    %v5026 = vsel %vm5009, %v4985, %v3728
    %v5027 = vsel %vm5009, %v4986, %v3730
    %v5028 = vsel %vm5009, %v4987, %v3732
    %v5029 = vsel %vm5009, %v4988, %v3734
    %v5030 = vsel %vm5009, %v4989, %v3736
    %v5031 = vsel %vm5009, %v4990, %v3738
    %v5032 = vsel %vm5009, %v4991, %v3740
    %v5033 = vsel %vm5009, %v4992, %v3742
    %v5034 = vsel %vm5009, %v4993, %v3744
    %v5035 = vsel %vm5009, %v4994, %v3746
    %v5036 = vsel %vm5009, %v4995, %v3748
    %v5037 = vsel %vm5009, %v4996, %v3750
    %v5038 = vsel %vm5009, %v4997, %v3752
    %v5039 = vsel %vm5009, %v4998, %v3754
    %v5040 = vsel %vm5009, %v4999, %v3756
    %v5041 = vsel %vm5009, %v5000, %v3758
    %v5042 = vsel %vm5009, %v5001, %v3760
    %v5043 = vsel %vm5009, %v5002, %v3762
    %v5044 = vsel %vm5009, %v5003, %v3764
    %v5045 = vsel %vm5009, %v5004, %v3766
    %v5046 = vsel %vm5009, %v5005, %v3768
    %v5047 = vsel %vm5009, %v5006, %v3770
    %v5048 = vsel %vm5009, %v5007, %v3772
    %v5049 = vsel %vm5009, %v5008, %v3774
    %v5050 = vsel %vm4927, %v2981, %v3816
    %v5051 = vsel %vm4927, %v3099, %v3818
    %v5052 = vsel %vm4927, %v2984, %v3820
    %v5053 = vsel %vm4927, %v3100, %v3822
    %v5054 = vsel %vm4927, %v2987, %v3824
    %v5055 = vsel %vm4927, %v3101, %v3826
    %v5056 = vsel %vm4927, %v2990, %v3828
    %v5057 = vsel %vm4927, %v3102, %v3830
    %v5058 = vsel %vm4927, %v2993, %v3832
    %v5059 = vsel %vm4927, %v3103, %v3834
    %v5060 = vsel %vm4927, %v2996, %v3836
    %v5061 = vsel %vm4927, %v3104, %v3838
    %v5062 = vsel %vm4927, %v2999, %v3840
    %v5063 = vsel %vm4927, %v3105, %v3842
    %v5064 = vsel %vm4927, %v3002, %v3844
    %v5065 = vsel %vm4927, %v3106, %v3846
    %v5066 = vsel %vm4927, %v3005, %v3848
    %v5067 = vsel %vm4927, %v3107, %v3850
    %v5068 = vsel %vm4927, %v3008, %v3852
    %v5069 = vsel %vm4927, %v3108, %v3854
    %v5070 = vsel %vm4927, %v3011, %v3856
    %v5071 = vsel %vm4927, %v3109, %v3858
    %v5072 = vsel %vm4927, %v3014, %v3860
    %v5073 = vsel %vm4927, %v3110, %v3862
    %v5074 = vsel %vm4927, %v3017, %v3864
    %v5075 = vsel %vm4927, %v3111, %v3866
    %v5076 = vsel %vm4927, %v3020, %v3868
    %v5077 = vsel %vm4927, %v3112, %v3870
    %v5078 = vsel %vm4927, %v3023, %v3872
    %v5079 = vsel %vm4927, %v3113, %v3874
    %v5080 = vsel %vm4927, %v3026, %v3876
    %v5081 = vsel %vm4927, %v3114, %v3878
    %v5082 = vsel %vm4927, %v3029, %v3880
    %v5083 = vsel %vm4927, %v3115, %v3882
    %v5084 = vsel %vm4927, %v3032, %v3884
    %v5085 = vsel %vm4927, %v3116, %v3886
    %v5086 = vsel %vm4927, %v3035, %v3888
    %v5087 = vsel %vm4927, %v3117, %v3890
    %v5088 = vsel %vm4927, %v3038, %v3892
    %v5089 = vsel %vm4927, %v3118, %v3894
    %v5090 = vsel %vm4968, %v5050, %v3938
    %v5091 = vsel %vm4968, %v5051, %v3940
    %v5092 = vsel %vm4968, %v5052, %v3942
    %v5093 = vsel %vm4968, %v5053, %v3944
    %v5094 = vsel %vm4968, %v5054, %v3946
    %v5095 = vsel %vm4968, %v5055, %v3948
    %v5096 = vsel %vm4968, %v5056, %v3950
    %v5097 = vsel %vm4968, %v5057, %v3952
    %v5098 = vsel %vm4968, %v5058, %v3954
    %v5099 = vsel %vm4968, %v5059, %v3956
    %v5100 = vsel %vm4968, %v5060, %v3958
    %v5101 = vsel %vm4968, %v5061, %v3960
    %v5102 = vsel %vm4968, %v5062, %v3962
    %v5103 = vsel %vm4968, %v5063, %v3964
    %v5104 = vsel %vm4968, %v5064, %v3966
    %v5105 = vsel %vm4968, %v5065, %v3968
    %v5106 = vsel %vm4968, %v5066, %v3970
    %v5107 = vsel %vm4968, %v5067, %v3972
    %v5108 = vsel %vm4968, %v5068, %v3974
    %v5109 = vsel %vm4968, %v5069, %v3976
    %v5110 = vsel %vm4968, %v5070, %v3978
    %v5111 = vsel %vm4968, %v5071, %v3980
    %v5112 = vsel %vm4968, %v5072, %v3982
    %v5113 = vsel %vm4968, %v5073, %v3984
    %v5114 = vsel %vm4968, %v5074, %v3986
    %v5115 = vsel %vm4968, %v5075, %v3988
    %v5116 = vsel %vm4968, %v5076, %v3990
    %v5117 = vsel %vm4968, %v5077, %v3992
    %v5118 = vsel %vm4968, %v5078, %v3994
    %v5119 = vsel %vm4968, %v5079, %v3996
    %v5120 = vsel %vm4968, %v5080, %v3998
    %v5121 = vsel %vm4968, %v5081, %v4000
    %v5122 = vsel %vm4968, %v5082, %v4002
    %v5123 = vsel %vm4968, %v5083, %v4004
    %v5124 = vsel %vm4968, %v5084, %v4006
    %v5125 = vsel %vm4968, %v5085, %v4008
    %v5126 = vsel %vm4968, %v5086, %v4010
    %v5127 = vsel %vm4968, %v5087, %v4012
    %v5128 = vsel %vm4968, %v5088, %v4014
    %v5129 = vsel %vm4968, %v5089, %v4016
    %v5130 = vsel %vm5009, %v5090, %v4060
    %v5131 = vsel %vm5009, %v5091, %v4062
    %v5132 = vsel %vm5009, %v5092, %v4064
    %v5133 = vsel %vm5009, %v5093, %v4066
    %v5134 = vsel %vm5009, %v5094, %v4068
    %v5135 = vsel %vm5009, %v5095, %v4070
    %v5136 = vsel %vm5009, %v5096, %v4072
    %v5137 = vsel %vm5009, %v5097, %v4074
    %v5138 = vsel %vm5009, %v5098, %v4076
    %v5139 = vsel %vm5009, %v5099, %v4078
    %v5140 = vsel %vm5009, %v5100, %v4080
    %v5141 = vsel %vm5009, %v5101, %v4082
    %v5142 = vsel %vm5009, %v5102, %v4084
    %v5143 = vsel %vm5009, %v5103, %v4086
    %v5144 = vsel %vm5009, %v5104, %v4088
    %v5145 = vsel %vm5009, %v5105, %v4090
    %v5146 = vsel %vm5009, %v5106, %v4092
    %v5147 = vsel %vm5009, %v5107, %v4094
    %v5148 = vsel %vm5009, %v5108, %v4096
    %v5149 = vsel %vm5009, %v5109, %v4098
    %v5150 = vsel %vm5009, %v5110, %v4100
    %v5151 = vsel %vm5009, %v5111, %v4102
    %v5152 = vsel %vm5009, %v5112, %v4104
    %v5153 = vsel %vm5009, %v5113, %v4106
    %v5154 = vsel %vm5009, %v5114, %v4108
    %v5155 = vsel %vm5009, %v5115, %v4110
    %v5156 = vsel %vm5009, %v5116, %v4112
    %v5157 = vsel %vm5009, %v5117, %v4114
    %v5158 = vsel %vm5009, %v5118, %v4116
    %v5159 = vsel %vm5009, %v5119, %v4118
    %v5160 = vsel %vm5009, %v5120, %v4120
    %v5161 = vsel %vm5009, %v5121, %v4122
    %v5162 = vsel %vm5009, %v5122, %v4124
    %v5163 = vsel %vm5009, %v5123, %v4126
    %v5164 = vsel %vm5009, %v5124, %v4128
    %v5165 = vsel %vm5009, %v5125, %v4130
    %v5166 = vsel %vm5009, %v5126, %v4132
    %v5167 = vsel %vm5009, %v5127, %v4134
    %v5168 = vsel %vm5009, %v5128, %v4136
    %v5169 = vsel %vm5009, %v5129, %v4138
    %v5170 = vsel %vm4927, %v2863, %v4200
    %v5171 = vsel %vm4927, %v2959, %v4202
    %v5172 = vsel %vm4927, %v2866, %v4204
    %v5173 = vsel %vm4927, %v2960, %v4206
    %v5174 = vsel %vm4927, %v2869, %v4208
    %v5175 = vsel %vm4927, %v2961, %v4210
    %v5176 = vsel %vm4927, %v2872, %v4212
    %v5177 = vsel %vm4927, %v2962, %v4214
    %v5178 = vsel %vm4927, %v2875, %v4216
    %v5179 = vsel %vm4927, %v2963, %v4218
    %v5180 = vsel %vm4927, %v2878, %v4220
    %v5181 = vsel %vm4927, %v2964, %v4222
    %v5182 = vsel %vm4927, %v2881, %v4224
    %v5183 = vsel %vm4927, %v2965, %v4226
    %v5184 = vsel %vm4927, %v2884, %v4228
    %v5185 = vsel %vm4927, %v2966, %v4230
    %v5186 = vsel %vm4927, %v2887, %v4232
    %v5187 = vsel %vm4927, %v2967, %v4234
    %v5188 = vsel %vm4927, %v3149, %v4236
    %v5189 = vsel %vm4927, %v3177, %v4238
    %v5190 = vsel %vm4927, %v2893, %v4240
    %v5191 = vsel %vm4927, %v2969, %v4242
    %v5192 = vsel %vm4927, %v2896, %v4244
    %v5193 = vsel %vm4927, %v2970, %v4246
    %v5194 = vsel %vm4927, %v2899, %v4248
    %v5195 = vsel %vm4927, %v2971, %v4250
    %v5196 = vsel %vm4927, %v2902, %v4252
    %v5197 = vsel %vm4927, %v2972, %v4254
    %v5198 = vsel %vm4927, %v2905, %v4256
    %v5199 = vsel %vm4927, %v2973, %v4258
    %v5200 = vsel %vm4927, %v2908, %v4260
    %v5201 = vsel %vm4927, %v2974, %v4262
    %v5202 = vsel %vm4927, %v2911, %v4264
    %v5203 = vsel %vm4927, %v2975, %v4266
    %v5204 = vsel %vm4927, %v2914, %v4268
    %v5205 = vsel %vm4927, %v2976, %v4270
    %v5206 = vsel %vm4927, %v2917, %v4272
    %v5207 = vsel %vm4927, %v2977, %v4274
    %v5208 = vsel %vm4927, %v3152, %v4276
    %v5209 = vsel %vm4927, %v3178, %v4278
    %v5210 = vsel %vm4968, %v5170, %v4320
    %v5211 = vsel %vm4968, %v5171, %v4322
    %v5212 = vsel %vm4968, %v5172, %v4324
    %v5213 = vsel %vm4968, %v5173, %v4326
    %v5214 = vsel %vm4968, %v5174, %v4328
    %v5215 = vsel %vm4968, %v5175, %v4330
    %v5216 = vsel %vm4968, %v5176, %v4332
    %v5217 = vsel %vm4968, %v5177, %v4334
    %v5218 = vsel %vm4968, %v5178, %v4336
    %v5219 = vsel %vm4968, %v5179, %v4338
    %v5220 = vsel %vm4968, %v5180, %v4340
    %v5221 = vsel %vm4968, %v5181, %v4342
    %v5222 = vsel %vm4968, %v5182, %v4344
    %v5223 = vsel %vm4968, %v5183, %v4346
    %v5224 = vsel %vm4968, %v5184, %v4348
    %v5225 = vsel %vm4968, %v5185, %v4350
    %v5226 = vsel %vm4968, %v5186, %v4352
    %v5227 = vsel %vm4968, %v5187, %v4354
    %v5228 = vsel %vm4968, %v5188, %v4356
    %v5229 = vsel %vm4968, %v5189, %v4358
    %v5230 = vsel %vm4968, %v5190, %v4360
    %v5231 = vsel %vm4968, %v5191, %v4362
    %v5232 = vsel %vm4968, %v5192, %v4364
    %v5233 = vsel %vm4968, %v5193, %v4366
    %v5234 = vsel %vm4968, %v5194, %v4368
    %v5235 = vsel %vm4968, %v5195, %v4370
    %v5236 = vsel %vm4968, %v5196, %v4372
    %v5237 = vsel %vm4968, %v5197, %v4374
    %v5238 = vsel %vm4968, %v5198, %v4376
    %v5239 = vsel %vm4968, %v5199, %v4378
    %v5240 = vsel %vm4968, %v5200, %v4380
    %v5241 = vsel %vm4968, %v5201, %v4382
    %v5242 = vsel %vm4968, %v5202, %v4384
    %v5243 = vsel %vm4968, %v5203, %v4386
    %v5244 = vsel %vm4968, %v5204, %v4388
    %v5245 = vsel %vm4968, %v5205, %v4390
    %v5246 = vsel %vm4968, %v5206, %v4392
    %v5247 = vsel %vm4968, %v5207, %v4394
    %v5248 = vsel %vm4968, %v5208, %v4396
    %v5249 = vsel %vm4968, %v5209, %v4398
    %v5250 = vsel %vm5009, %v5210, %v4442
    %v5251 = vsel %vm5009, %v5211, %v4444
    %v5252 = vsel %vm5009, %v5212, %v4446
    %v5253 = vsel %vm5009, %v5213, %v4448
    %v5254 = vsel %vm5009, %v5214, %v4450
    %v5255 = vsel %vm5009, %v5215, %v4452
    %v5256 = vsel %vm5009, %v5216, %v4454
    %v5257 = vsel %vm5009, %v5217, %v4456
    %v5258 = vsel %vm5009, %v5218, %v4458
    %v5259 = vsel %vm5009, %v5219, %v4460
    %v5260 = vsel %vm5009, %v5220, %v4462
    %v5261 = vsel %vm5009, %v5221, %v4464
    %v5262 = vsel %vm5009, %v5222, %v4466
    %v5263 = vsel %vm5009, %v5223, %v4468
    %v5264 = vsel %vm5009, %v5224, %v4470
    %v5265 = vsel %vm5009, %v5225, %v4472
    %v5266 = vsel %vm5009, %v5226, %v4474
    %v5267 = vsel %vm5009, %v5227, %v4476
    %v5268 = vsel %vm5009, %v5228, %v4478
    %v5269 = vsel %vm5009, %v5229, %v4480
    %v5270 = vsel %vm5009, %v5230, %v4482
    %v5271 = vsel %vm5009, %v5231, %v4484
    %v5272 = vsel %vm5009, %v5232, %v4486
    %v5273 = vsel %vm5009, %v5233, %v4488
    %v5274 = vsel %vm5009, %v5234, %v4490
    %v5275 = vsel %vm5009, %v5235, %v4492
    %v5276 = vsel %vm5009, %v5236, %v4494
    %v5277 = vsel %vm5009, %v5237, %v4496
    %v5278 = vsel %vm5009, %v5238, %v4498
    %v5279 = vsel %vm5009, %v5239, %v4500
    %v5280 = vsel %vm5009, %v5240, %v4502
    %v5281 = vsel %vm5009, %v5241, %v4504
    %v5282 = vsel %vm5009, %v5242, %v4506
    %v5283 = vsel %vm5009, %v5243, %v4508
    %v5284 = vsel %vm5009, %v5244, %v4510
    %v5285 = vsel %vm5009, %v5245, %v4512
    %v5286 = vsel %vm5009, %v5246, %v4514
    %v5287 = vsel %vm5009, %v5247, %v4516
    %v5288 = vsel %vm5009, %v5248, %v4518
    %v5289 = vsel %vm5009, %v5249, %v4520
    %v5290 = vsel %vm4927, %v2745, %v4566
    %v5291 = vsel %vm4927, %v2839, %v4568
    %v5292 = vsel %vm4927, %v2748, %v4570
    %v5293 = vsel %vm4927, %v2840, %v4572
    %v5294 = vsel %vm4927, %v2751, %v4574
    %v5295 = vsel %vm4927, %v2841, %v4576
    %v5296 = vsel %vm4927, %v2754, %v4578
    %v5297 = vsel %vm4927, %v2842, %v4580
    %v5298 = vsel %vm4927, %v2757, %v4582
    %v5299 = vsel %vm4927, %v2843, %v4584
    %v5300 = vsel %vm4927, %v2760, %v4586
    %v5301 = vsel %vm4927, %v2844, %v4588
    %v5302 = vsel %vm4927, %v2763, %v4590
    %v5303 = vsel %vm4927, %v2845, %v4592
    %v5304 = vsel %vm4927, %v2766, %v4594
    %v5305 = vsel %vm4927, %v2846, %v4596
    %v5306 = vsel %vm4927, %v3137, %v4598
    %v5307 = vsel %vm4927, %v3145, %v4600
    %v5308 = vsel %vm4927, %v3209, %v4602
    %v5309 = vsel %vm4927, %v3237, %v4604
    %v5310 = vsel %vm4927, %v2775, %v4606
    %v5311 = vsel %vm4927, %v2849, %v4608
    %v5312 = vsel %vm4927, %v2778, %v4610
    %v5313 = vsel %vm4927, %v2850, %v4612
    %v5314 = vsel %vm4927, %v2781, %v4614
    %v5315 = vsel %vm4927, %v2851, %v4616
    %v5316 = vsel %vm4927, %v2784, %v4618
    %v5317 = vsel %vm4927, %v2852, %v4620
    %v5318 = vsel %vm4927, %v2787, %v4622
    %v5319 = vsel %vm4927, %v2853, %v4624
    %v5320 = vsel %vm4927, %v2790, %v4626
    %v5321 = vsel %vm4927, %v2854, %v4628
    %v5322 = vsel %vm4927, %v2793, %v4630
    %v5323 = vsel %vm4927, %v2855, %v4632
    %v5324 = vsel %vm4927, %v2796, %v4634
    %v5325 = vsel %vm4927, %v2856, %v4636
    %v5326 = vsel %vm4927, %v3140, %v4638
    %v5327 = vsel %vm4927, %v3146, %v4640
    %v5328 = vsel %vm4927, %v3212, %v4642
    %v5329 = vsel %vm4927, %v3238, %v4644
    %v5330 = vsel %vm4968, %v5290, %v4688
    %v5331 = vsel %vm4968, %v5291, %v4690
    %v5332 = vsel %vm4968, %v5292, %v4692
    %v5333 = vsel %vm4968, %v5293, %v4694
    %v5334 = vsel %vm4968, %v5294, %v4696
    %v5335 = vsel %vm4968, %v5295, %v4698
    %v5336 = vsel %vm4968, %v5296, %v4700
    %v5337 = vsel %vm4968, %v5297, %v4702
    %v5338 = vsel %vm4968, %v5298, %v4704
    %v5339 = vsel %vm4968, %v5299, %v4706
    %v5340 = vsel %vm4968, %v5300, %v4708
    %v5341 = vsel %vm4968, %v5301, %v4710
    %v5342 = vsel %vm4968, %v5302, %v4712
    %v5343 = vsel %vm4968, %v5303, %v4714
    %v5344 = vsel %vm4968, %v5304, %v4716
    %v5345 = vsel %vm4968, %v5305, %v4718
    %v5346 = vsel %vm4968, %v5306, %v4720
    %v5347 = vsel %vm4968, %v5307, %v4722
    %v5348 = vsel %vm4968, %v5308, %v4724
    %v5349 = vsel %vm4968, %v5309, %v4726
    %v5350 = vsel %vm4968, %v5310, %v4728
    %v5351 = vsel %vm4968, %v5311, %v4730
    %v5352 = vsel %vm4968, %v5312, %v4732
    %v5353 = vsel %vm4968, %v5313, %v4734
    %v5354 = vsel %vm4968, %v5314, %v4736
    %v5355 = vsel %vm4968, %v5315, %v4738
    %v5356 = vsel %vm4968, %v5316, %v4740
    %v5357 = vsel %vm4968, %v5317, %v4742
    %v5358 = vsel %vm4968, %v5318, %v4744
    %v5359 = vsel %vm4968, %v5319, %v4746
    %v5360 = vsel %vm4968, %v5320, %v4748
    %v5361 = vsel %vm4968, %v5321, %v4750
    %v5362 = vsel %vm4968, %v5322, %v4752
    %v5363 = vsel %vm4968, %v5323, %v4754
    %v5364 = vsel %vm4968, %v5324, %v4756
    %v5365 = vsel %vm4968, %v5325, %v4758
    %v5366 = vsel %vm4968, %v5326, %v4760
    %v5367 = vsel %vm4968, %v5327, %v4762
    %v5368 = vsel %vm4968, %v5328, %v4764
    %v5369 = vsel %vm4968, %v5329, %v4766
    %v5370 = vsel %vm5009, %v5330, %v4808
    %v5371 = vsel %vm5009, %v5331, %v4810
    %v5372 = vsel %vm5009, %v5332, %v4812
    %v5373 = vsel %vm5009, %v5333, %v4814
    %v5374 = vsel %vm5009, %v5334, %v4816
    %v5375 = vsel %vm5009, %v5335, %v4818
    %v5376 = vsel %vm5009, %v5336, %v4820
    %v5377 = vsel %vm5009, %v5337, %v4822
    %v5378 = vsel %vm5009, %v5338, %v4824
    %v5379 = vsel %vm5009, %v5339, %v4826
    %v5380 = vsel %vm5009, %v5340, %v4828
    %v5381 = vsel %vm5009, %v5341, %v4830
    %v5382 = vsel %vm5009, %v5342, %v4832
    %v5383 = vsel %vm5009, %v5343, %v4834
    %v5384 = vsel %vm5009, %v5344, %v4836
    %v5385 = vsel %vm5009, %v5345, %v4838
    %v5386 = vsel %vm5009, %v5346, %v4840
    %v5387 = vsel %vm5009, %v5347, %v4842
    %v5388 = vsel %vm5009, %v5348, %v4844
    %v5389 = vsel %vm5009, %v5349, %v4846
    %v5390 = vsel %vm5009, %v5350, %v4848
    %v5391 = vsel %vm5009, %v5351, %v4850
    %v5392 = vsel %vm5009, %v5352, %v4852
    %v5393 = vsel %vm5009, %v5353, %v4854
    %v5394 = vsel %vm5009, %v5354, %v4856
    %v5395 = vsel %vm5009, %v5355, %v4858
    %v5396 = vsel %vm5009, %v5356, %v4860
    %v5397 = vsel %vm5009, %v5357, %v4862
    %v5398 = vsel %vm5009, %v5358, %v4864
    %v5399 = vsel %vm5009, %v5359, %v4866
    %v5400 = vsel %vm5009, %v5360, %v4868
    %v5401 = vsel %vm5009, %v5361, %v4870
    %v5402 = vsel %vm5009, %v5362, %v4872
    %v5403 = vsel %vm5009, %v5363, %v4874
    %v5404 = vsel %vm5009, %v5364, %v4876
    %v5405 = vsel %vm5009, %v5365, %v4878
    %v5406 = vsel %vm5009, %v5366, %v4880
    %v5407 = vsel %vm5009, %v5367, %v4882
    %v5408 = vsel %vm5009, %v5368, %v4884
    %v5409 = vsel %vm5009, %v5369, %v4886
    %5414 = vrot.lane.b32.xlu0 %v2748, 32
    %v5415 = vpop.permute.xlu0 %5414
    %5416 = vrot.lane.b32.xlu0 %v2840, 32
    %v5417 = vpop.permute.xlu0 %5416
    %5418 = vrot.lane.b32.xlu0 %v2751, 32
    %v5419 = vpop.permute.xlu0 %5418
    %5420 = vrot.lane.b32.xlu0 %v2841, 32
    %v5421 = vpop.permute.xlu0 %5420
    %5422 = vrot.lane.b32.xlu0 %v2754, 32
    %v5423 = vpop.permute.xlu0 %5422
    %5424 = vrot.lane.b32.xlu0 %v2842, 32
    %v5425 = vpop.permute.xlu0 %5424
    %5426 = vrot.lane.b32.xlu0 %v2757, 32
    %v5427 = vpop.permute.xlu0 %5426
    %5428 = vrot.lane.b32.xlu0 %v2843, 32
    %v5429 = vpop.permute.xlu0 %5428
    %5430 = vrot.lane.b32.xlu0 %v2760, 32
    %v5431 = vpop.permute.xlu0 %5430
    %5432 = vrot.lane.b32.xlu0 %v2844, 32
    %v5433 = vpop.permute.xlu0 %5432
    %5434 = vrot.lane.b32.xlu0 %v2763, 32
    %v5435 = vpop.permute.xlu0 %5434
    %5436 = vrot.lane.b32.xlu0 %v2845, 32
    %v5437 = vpop.permute.xlu0 %5436
    %5438 = vrot.lane.b32.xlu0 %v2766, 32
    %v5439 = vpop.permute.xlu0 %5438
    %5440 = vrot.lane.b32.xlu0 %v2846, 32
    %v5441 = vpop.permute.xlu0 %5440
    %5442 = vrot.lane.b32.xlu0 %v3137, 32
    %v5443 = vpop.permute.xlu0 %5442
    %5444 = vrot.lane.b32.xlu0 %v3145, 32
    %v5445 = vpop.permute.xlu0 %5444
    %5446 = vrot.lane.b32.xlu0 %v3209, 32
    %v5447 = vpop.permute.xlu0 %5446
    %5448 = vrot.lane.b32.xlu0 %v3237, 32
    %v5449 = vpop.permute.xlu0 %5448
    %5450 = vrot.lane.b32.xlu0 %v3301, 32
    %v5451 = vpop.permute.xlu0 %5450
    %5452 = vrot.lane.b32.xlu0 %v3309, 32
    %v5453 = vpop.permute.xlu0 %5452
    %5454 = vrot.lane.b32.xlu0 %v2778, 32
    %v5455 = vpop.permute.xlu0 %5454
    %5456 = vrot.lane.b32.xlu0 %v2850, 32
    %v5457 = vpop.permute.xlu0 %5456
    %5458 = vrot.lane.b32.xlu0 %v2781, 32
    %v5459 = vpop.permute.xlu0 %5458
    %5460 = vrot.lane.b32.xlu0 %v2851, 32
    %v5461 = vpop.permute.xlu0 %5460
    %5462 = vrot.lane.b32.xlu0 %v2784, 32
    %v5463 = vpop.permute.xlu0 %5462
    %5464 = vrot.lane.b32.xlu0 %v2852, 32
    %v5465 = vpop.permute.xlu0 %5464
    %5466 = vrot.lane.b32.xlu0 %v2787, 32
    %v5467 = vpop.permute.xlu0 %5466
    %5468 = vrot.lane.b32.xlu0 %v2853, 32
    %v5469 = vpop.permute.xlu0 %5468
    %5470 = vrot.lane.b32.xlu0 %v2790, 32
    %v5471 = vpop.permute.xlu0 %5470
    %5472 = vrot.lane.b32.xlu0 %v2854, 32
    %v5473 = vpop.permute.xlu0 %5472
    %5474 = vrot.lane.b32.xlu0 %v2793, 32
    %v5475 = vpop.permute.xlu0 %5474
    %5476 = vrot.lane.b32.xlu0 %v2855, 32
    %v5477 = vpop.permute.xlu0 %5476
    %5478 = vrot.lane.b32.xlu0 %v2796, 32
    %v5479 = vpop.permute.xlu0 %5478
    %5480 = vrot.lane.b32.xlu0 %v2856, 32
    %v5481 = vpop.permute.xlu0 %5480
    %5482 = vrot.lane.b32.xlu0 %v3140, 32
    %v5483 = vpop.permute.xlu0 %5482
    %5484 = vrot.lane.b32.xlu0 %v3146, 32
    %v5485 = vpop.permute.xlu0 %5484
    %5486 = vrot.lane.b32.xlu0 %v3212, 32
    %v5487 = vpop.permute.xlu0 %5486
    %5488 = vrot.lane.b32.xlu0 %v3238, 32
    %v5489 = vpop.permute.xlu0 %5488
    %5490 = vrot.lane.b32.xlu0 %v3304, 32
    %v5491 = vpop.permute.xlu0 %5490
    %5492 = vrot.lane.b32.xlu0 %v3310, 32
    %v5493 = vpop.permute.xlu0 %5492
    %5536 = vrot.lane.b32.xlu0 %v2869, 64
    %v5537 = vpop.permute.xlu0 %5536
    %5538 = vrot.lane.b32.xlu0 %v2961, 64
    %v5539 = vpop.permute.xlu0 %5538
    %5540 = vrot.lane.b32.xlu0 %v2872, 64
    %v5541 = vpop.permute.xlu0 %5540
    %5542 = vrot.lane.b32.xlu0 %v2962, 64
    %v5543 = vpop.permute.xlu0 %5542
    %5544 = vrot.lane.b32.xlu0 %v2875, 64
    %v5545 = vpop.permute.xlu0 %5544
    %5546 = vrot.lane.b32.xlu0 %v2963, 64
    %v5547 = vpop.permute.xlu0 %5546
    %5548 = vrot.lane.b32.xlu0 %v2878, 64
    %v5549 = vpop.permute.xlu0 %5548
    %5550 = vrot.lane.b32.xlu0 %v2964, 64
    %v5551 = vpop.permute.xlu0 %5550
    %5552 = vrot.lane.b32.xlu0 %v2881, 64
    %v5553 = vpop.permute.xlu0 %5552
    %5554 = vrot.lane.b32.xlu0 %v2965, 64
    %v5555 = vpop.permute.xlu0 %5554
    %5556 = vrot.lane.b32.xlu0 %v2884, 64
    %v5557 = vpop.permute.xlu0 %5556
    %5558 = vrot.lane.b32.xlu0 %v2966, 64
    %v5559 = vpop.permute.xlu0 %5558
    %5560 = vrot.lane.b32.xlu0 %v2887, 64
    %v5561 = vpop.permute.xlu0 %5560
    %5562 = vrot.lane.b32.xlu0 %v2967, 64
    %v5563 = vpop.permute.xlu0 %5562
    %5564 = vrot.lane.b32.xlu0 %v3149, 64
    %v5565 = vpop.permute.xlu0 %5564
    %5566 = vrot.lane.b32.xlu0 %v3177, 64
    %v5567 = vpop.permute.xlu0 %5566
    %5568 = vrot.lane.b32.xlu0 %v3241, 64
    %v5569 = vpop.permute.xlu0 %5568
    %5570 = vrot.lane.b32.xlu0 %v3249, 64
    %v5571 = vpop.permute.xlu0 %5570
    %5572 = vrot.lane.b32.xlu0 %v3313, 64
    %v5573 = vpop.permute.xlu0 %5572
    %5574 = vrot.lane.b32.xlu0 %v3321, 64
    %v5575 = vpop.permute.xlu0 %5574
    %5576 = vrot.lane.b32.xlu0 %v2899, 64
    %v5577 = vpop.permute.xlu0 %5576
    %5578 = vrot.lane.b32.xlu0 %v2971, 64
    %v5579 = vpop.permute.xlu0 %5578
    %5580 = vrot.lane.b32.xlu0 %v2902, 64
    %v5581 = vpop.permute.xlu0 %5580
    %5582 = vrot.lane.b32.xlu0 %v2972, 64
    %v5583 = vpop.permute.xlu0 %5582
    %5584 = vrot.lane.b32.xlu0 %v2905, 64
    %v5585 = vpop.permute.xlu0 %5584
    %5586 = vrot.lane.b32.xlu0 %v2973, 64
    %v5587 = vpop.permute.xlu0 %5586
    %5588 = vrot.lane.b32.xlu0 %v2908, 64
    %v5589 = vpop.permute.xlu0 %5588
    %5590 = vrot.lane.b32.xlu0 %v2974, 64
    %v5591 = vpop.permute.xlu0 %5590
    %5592 = vrot.lane.b32.xlu0 %v2911, 64
    %v5593 = vpop.permute.xlu0 %5592
    %5594 = vrot.lane.b32.xlu0 %v2975, 64
    %v5595 = vpop.permute.xlu0 %5594
    %5596 = vrot.lane.b32.xlu0 %v2914, 64
    %v5597 = vpop.permute.xlu0 %5596
    %5598 = vrot.lane.b32.xlu0 %v2976, 64
    %v5599 = vpop.permute.xlu0 %5598
    %5600 = vrot.lane.b32.xlu0 %v2917, 64
    %v5601 = vpop.permute.xlu0 %5600
    %5602 = vrot.lane.b32.xlu0 %v2977, 64
    %v5603 = vpop.permute.xlu0 %5602
    %5604 = vrot.lane.b32.xlu0 %v3152, 64
    %v5605 = vpop.permute.xlu0 %5604
    %5606 = vrot.lane.b32.xlu0 %v3178, 64
    %v5607 = vpop.permute.xlu0 %5606
    %5608 = vrot.lane.b32.xlu0 %v3244, 64
    %v5609 = vpop.permute.xlu0 %5608
    %5610 = vrot.lane.b32.xlu0 %v3250, 64
    %v5611 = vpop.permute.xlu0 %5610
    %5612 = vrot.lane.b32.xlu0 %v3316, 64
    %v5613 = vpop.permute.xlu0 %5612
    %5614 = vrot.lane.b32.xlu0 %v3322, 64
    %v5615 = vpop.permute.xlu0 %5614
    %5658 = vrot.lane.b32.xlu0 %v2990, 96
    %v5659 = vpop.permute.xlu0 %5658
    %5660 = vrot.lane.b32.xlu0 %v3102, 96
    %v5661 = vpop.permute.xlu0 %5660
    %5662 = vrot.lane.b32.xlu0 %v2993, 96
    %v5663 = vpop.permute.xlu0 %5662
    %5664 = vrot.lane.b32.xlu0 %v3103, 96
    %v5665 = vpop.permute.xlu0 %5664
    %5666 = vrot.lane.b32.xlu0 %v2996, 96
    %v5667 = vpop.permute.xlu0 %5666
    %5668 = vrot.lane.b32.xlu0 %v3104, 96
    %v5669 = vpop.permute.xlu0 %5668
    %5670 = vrot.lane.b32.xlu0 %v2999, 96
    %v5671 = vpop.permute.xlu0 %5670
    %5672 = vrot.lane.b32.xlu0 %v3105, 96
    %v5673 = vpop.permute.xlu0 %5672
    %5674 = vrot.lane.b32.xlu0 %v3002, 96
    %v5675 = vpop.permute.xlu0 %5674
    %5676 = vrot.lane.b32.xlu0 %v3106, 96
    %v5677 = vpop.permute.xlu0 %5676
    %5678 = vrot.lane.b32.xlu0 %v3005, 96
    %v5679 = vpop.permute.xlu0 %5678
    %5680 = vrot.lane.b32.xlu0 %v3107, 96
    %v5681 = vpop.permute.xlu0 %5680
    %5682 = vrot.lane.b32.xlu0 %v3008, 96
    %v5683 = vpop.permute.xlu0 %5682
    %5684 = vrot.lane.b32.xlu0 %v3108, 96
    %v5685 = vpop.permute.xlu0 %5684
    %5686 = vrot.lane.b32.xlu0 %v3181, 96
    %v5687 = vpop.permute.xlu0 %5686
    %5688 = vrot.lane.b32.xlu0 %v3189, 96
    %v5689 = vpop.permute.xlu0 %5688
    %5690 = vrot.lane.b32.xlu0 %v3253, 96
    %v5691 = vpop.permute.xlu0 %5690
    %5692 = vrot.lane.b32.xlu0 %v3261, 96
    %v5693 = vpop.permute.xlu0 %5692
    %5694 = vrot.lane.b32.xlu0 %v3325, 96
    %v5695 = vpop.permute.xlu0 %5694
    %5696 = vrot.lane.b32.xlu0 %v3333, 96
    %v5697 = vpop.permute.xlu0 %5696
    %5698 = vrot.lane.b32.xlu0 %v3020, 96
    %v5699 = vpop.permute.xlu0 %5698
    %5700 = vrot.lane.b32.xlu0 %v3112, 96
    %v5701 = vpop.permute.xlu0 %5700
    %5702 = vrot.lane.b32.xlu0 %v3023, 96
    %v5703 = vpop.permute.xlu0 %5702
    %5704 = vrot.lane.b32.xlu0 %v3113, 96
    %v5705 = vpop.permute.xlu0 %5704
    %5706 = vrot.lane.b32.xlu0 %v3026, 96
    %v5707 = vpop.permute.xlu0 %5706
    %5708 = vrot.lane.b32.xlu0 %v3114, 96
    %v5709 = vpop.permute.xlu0 %5708
    %5710 = vrot.lane.b32.xlu0 %v3029, 96
    %v5711 = vpop.permute.xlu0 %5710
    %5712 = vrot.lane.b32.xlu0 %v3115, 96
    %v5713 = vpop.permute.xlu0 %5712
    %5714 = vrot.lane.b32.xlu0 %v3032, 96
    %v5715 = vpop.permute.xlu0 %5714
    %5716 = vrot.lane.b32.xlu0 %v3116, 96
    %v5717 = vpop.permute.xlu0 %5716
    %5718 = vrot.lane.b32.xlu0 %v3035, 96
    %v5719 = vpop.permute.xlu0 %5718
    %5720 = vrot.lane.b32.xlu0 %v3117, 96
    %v5721 = vpop.permute.xlu0 %5720
    %5722 = vrot.lane.b32.xlu0 %v3038, 96
    %v5723 = vpop.permute.xlu0 %5722
    %5724 = vrot.lane.b32.xlu0 %v3118, 96
    %v5725 = vpop.permute.xlu0 %5724
    %5726 = vrot.lane.b32.xlu0 %v3184, 96
    %v5727 = vpop.permute.xlu0 %5726
    %5728 = vrot.lane.b32.xlu0 %v3190, 96
    %v5729 = vpop.permute.xlu0 %5728
    %5730 = vrot.lane.b32.xlu0 %v3256, 96
    %v5731 = vpop.permute.xlu0 %5730
    %5732 = vrot.lane.b32.xlu0 %v3262, 96
    %v5733 = vpop.permute.xlu0 %5732
    %5734 = vrot.lane.b32.xlu0 %v3328, 96
    %v5735 = vpop.permute.xlu0 %5734
    %5736 = vrot.lane.b32.xlu0 %v3334, 96
    %v5737 = vpop.permute.xlu0 %5736
    %5782 = vrot.lane.b32.xlu0 %v3125, 32
    %v5783 = vpop.permute.xlu0 %5782
    %5784 = vrot.lane.b32.xlu0 %v3133, 32
    %v5785 = vpop.permute.xlu0 %5784
    %5786 = vrot.lane.b32.xlu0 %v3197, 32
    %v5787 = vpop.permute.xlu0 %5786
    %5788 = vrot.lane.b32.xlu0 %v3205, 32
    %v5789 = vpop.permute.xlu0 %5788
    %5790 = vrot.lane.b32.xlu0 %v3269, 32
    %v5791 = vpop.permute.xlu0 %5790
    %5792 = vrot.lane.b32.xlu0 %v3297, 32
    %v5793 = vpop.permute.xlu0 %5792
    %5794 = vrot.lane.b32.xlu0 %v3341, 32
    %v5795 = vpop.permute.xlu0 %5794
    %5796 = vrot.lane.b32.xlu0 %v3349, 32
    %v5797 = vpop.permute.xlu0 %5796
    %5798 = vrot.lane.b32.xlu0 %v3128, 32
    %v5799 = vpop.permute.xlu0 %5798
    %5800 = vrot.lane.b32.xlu0 %v3134, 32
    %v5801 = vpop.permute.xlu0 %5800
    %5802 = vrot.lane.b32.xlu0 %v3200, 32
    %v5803 = vpop.permute.xlu0 %5802
    %5804 = vrot.lane.b32.xlu0 %v3206, 32
    %v5805 = vpop.permute.xlu0 %5804
    %5806 = vrot.lane.b32.xlu0 %v3272, 32
    %v5807 = vpop.permute.xlu0 %5806
    %5808 = vrot.lane.b32.xlu0 %v3298, 32
    %v5809 = vpop.permute.xlu0 %5808
    %5810 = vrot.lane.b32.xlu0 %v3344, 32
    %v5811 = vpop.permute.xlu0 %5810
    %5812 = vrot.lane.b32.xlu0 %v3350, 32
    %v5813 = vpop.permute.xlu0 %5812
    %5832 = vrot.lane.b32.xlu0 %v3137, 64
    %v5833 = vpop.permute.xlu0 %5832
    %5834 = vrot.lane.b32.xlu0 %v3145, 64
    %v5835 = vpop.permute.xlu0 %5834
    %5836 = vrot.lane.b32.xlu0 %v3209, 64
    %v5837 = vpop.permute.xlu0 %5836
    %5838 = vrot.lane.b32.xlu0 %v3237, 64
    %v5839 = vpop.permute.xlu0 %5838
    %5840 = vrot.lane.b32.xlu0 %v3301, 64
    %v5841 = vpop.permute.xlu0 %5840
    %5842 = vrot.lane.b32.xlu0 %v3309, 64
    %v5843 = vpop.permute.xlu0 %5842
    %5844 = vrot.lane.b32.xlu0 %v3353, 64
    %v5845 = vpop.permute.xlu0 %5844
    %5846 = vrot.lane.b32.xlu0 %v3361, 64
    %v5847 = vpop.permute.xlu0 %5846
    %5848 = vrot.lane.b32.xlu0 %v3140, 64
    %v5849 = vpop.permute.xlu0 %5848
    %5850 = vrot.lane.b32.xlu0 %v3146, 64
    %v5851 = vpop.permute.xlu0 %5850
    %5852 = vrot.lane.b32.xlu0 %v3212, 64
    %v5853 = vpop.permute.xlu0 %5852
    %5854 = vrot.lane.b32.xlu0 %v3238, 64
    %v5855 = vpop.permute.xlu0 %5854
    %5856 = vrot.lane.b32.xlu0 %v3304, 64
    %v5857 = vpop.permute.xlu0 %5856
    %5858 = vrot.lane.b32.xlu0 %v3310, 64
    %v5859 = vpop.permute.xlu0 %5858
    %5860 = vrot.lane.b32.xlu0 %v3356, 64
    %v5861 = vpop.permute.xlu0 %5860
    %5862 = vrot.lane.b32.xlu0 %v3362, 64
    %v5863 = vpop.permute.xlu0 %5862
    %5882 = vrot.lane.b32.xlu0 %v3149, 96
    %v5883 = vpop.permute.xlu0 %5882
    %5884 = vrot.lane.b32.xlu0 %v3177, 96
    %v5885 = vpop.permute.xlu0 %5884
    %5886 = vrot.lane.b32.xlu0 %v3241, 96
    %v5887 = vpop.permute.xlu0 %5886
    %5888 = vrot.lane.b32.xlu0 %v3249, 96
    %v5889 = vpop.permute.xlu0 %5888
    %5890 = vrot.lane.b32.xlu0 %v3313, 96
    %v5891 = vpop.permute.xlu0 %5890
    %5892 = vrot.lane.b32.xlu0 %v3321, 96
    %v5893 = vpop.permute.xlu0 %5892
    %5894 = vrot.lane.b32.xlu0 %v3365, 96
    %v5895 = vpop.permute.xlu0 %5894
    %5896 = vrot.lane.b32.xlu0 %v3373, 96
    %v5897 = vpop.permute.xlu0 %5896
    %5898 = vrot.lane.b32.xlu0 %v3152, 96
    %v5899 = vpop.permute.xlu0 %5898
    %5900 = vrot.lane.b32.xlu0 %v3178, 96
    %v5901 = vpop.permute.xlu0 %5900
    %5902 = vrot.lane.b32.xlu0 %v3244, 96
    %v5903 = vpop.permute.xlu0 %5902
    %5904 = vrot.lane.b32.xlu0 %v3250, 96
    %v5905 = vpop.permute.xlu0 %5904
    %5906 = vrot.lane.b32.xlu0 %v3316, 96
    %v5907 = vpop.permute.xlu0 %5906
    %5908 = vrot.lane.b32.xlu0 %v3322, 96
    %v5909 = vpop.permute.xlu0 %5908
    %5910 = vrot.lane.b32.xlu0 %v3368, 96
    %v5911 = vpop.permute.xlu0 %5910
    %5912 = vrot.lane.b32.xlu0 %v3374, 96
    %v5913 = vpop.permute.xlu0 %5912
    %v5930 = vsel %vm4927, %v2627, %v5415
    %v5931 = vsel %vm4927, %v2719, %v5417
    %v5932 = vsel %vm4927, %v2630, %v5419
    %v5933 = vsel %vm4927, %v2720, %v5421
    %v5934 = vsel %vm4927, %v2633, %v5423
    %v5935 = vsel %vm4927, %v2721, %v5425
    %v5936 = vsel %vm4927, %v2636, %v5427
    %v5937 = vsel %vm4927, %v2722, %v5429
    %v5938 = vsel %vm4927, %v2639, %v5431
    %v5939 = vsel %vm4927, %v2723, %v5433
    %v5940 = vsel %vm4927, %v2642, %v5435
    %v5941 = vsel %vm4927, %v2724, %v5437
    %v5942 = vsel %vm4927, %v2645, %v5439
    %v5943 = vsel %vm4927, %v2725, %v5441
    %v5944 = vsel %vm4927, %v3125, %v5443
    %v5945 = vsel %vm4927, %v3133, %v5445
    %v5946 = vsel %vm4927, %v3197, %v5447
    %v5947 = vsel %vm4927, %v3205, %v5449
    %v5948 = vsel %vm4927, %v3269, %v5451
    %v5949 = vsel %vm4927, %v3297, %v5453
    %v5950 = vsel %vm4927, %v2657, %v5455
    %v5951 = vsel %vm4927, %v2729, %v5457
    %v5952 = vsel %vm4927, %v2660, %v5459
    %v5953 = vsel %vm4927, %v2730, %v5461
    %v5954 = vsel %vm4927, %v2663, %v5463
    %v5955 = vsel %vm4927, %v2731, %v5465
    %v5956 = vsel %vm4927, %v2666, %v5467
    %v5957 = vsel %vm4927, %v2732, %v5469
    %v5958 = vsel %vm4927, %v2669, %v5471
    %v5959 = vsel %vm4927, %v2733, %v5473
    %v5960 = vsel %vm4927, %v2672, %v5475
    %v5961 = vsel %vm4927, %v2734, %v5477
    %v5962 = vsel %vm4927, %v2675, %v5479
    %v5963 = vsel %vm4927, %v2735, %v5481
    %v5964 = vsel %vm4927, %v3128, %v5483
    %v5965 = vsel %vm4927, %v3134, %v5485
    %v5966 = vsel %vm4927, %v3200, %v5487
    %v5967 = vsel %vm4927, %v3206, %v5489
    %v5968 = vsel %vm4927, %v3272, %v5491
    %v5969 = vsel %vm4927, %v3298, %v5493
    %v5970 = vsel %vm4968, %v5930, %v5537
    %v5971 = vsel %vm4968, %v5931, %v5539
    %v5972 = vsel %vm4968, %v5932, %v5541
    %v5973 = vsel %vm4968, %v5933, %v5543
    %v5974 = vsel %vm4968, %v5934, %v5545
    %v5975 = vsel %vm4968, %v5935, %v5547
    %v5976 = vsel %vm4968, %v5936, %v5549
    %v5977 = vsel %vm4968, %v5937, %v5551
    %v5978 = vsel %vm4968, %v5938, %v5553
    %v5979 = vsel %vm4968, %v5939, %v5555
    %v5980 = vsel %vm4968, %v5940, %v5557
    %v5981 = vsel %vm4968, %v5941, %v5559
    %v5982 = vsel %vm4968, %v5942, %v5561
    %v5983 = vsel %vm4968, %v5943, %v5563
    %v5984 = vsel %vm4968, %v5944, %v5565
    %v5985 = vsel %vm4968, %v5945, %v5567
    %v5986 = vsel %vm4968, %v5946, %v5569
    %v5987 = vsel %vm4968, %v5947, %v5571
    %v5988 = vsel %vm4968, %v5948, %v5573
    %v5989 = vsel %vm4968, %v5949, %v5575
    %v5990 = vsel %vm4968, %v5950, %v5577
    %v5991 = vsel %vm4968, %v5951, %v5579
    %v5992 = vsel %vm4968, %v5952, %v5581
    %v5993 = vsel %vm4968, %v5953, %v5583
    %v5994 = vsel %vm4968, %v5954, %v5585
    %v5995 = vsel %vm4968, %v5955, %v5587
    %v5996 = vsel %vm4968, %v5956, %v5589
    %v5997 = vsel %vm4968, %v5957, %v5591
    %v5998 = vsel %vm4968, %v5958, %v5593
    %v5999 = vsel %vm4968, %v5959, %v5595
    %v6000 = vsel %vm4968, %v5960, %v5597
    %v6001 = vsel %vm4968, %v5961, %v5599
    %v6002 = vsel %vm4968, %v5962, %v5601
    %v6003 = vsel %vm4968, %v5963, %v5603
    %v6004 = vsel %vm4968, %v5964, %v5605
    %v6005 = vsel %vm4968, %v5965, %v5607
    %v6006 = vsel %vm4968, %v5966, %v5609
    %v6007 = vsel %vm4968, %v5967, %v5611
    %v6008 = vsel %vm4968, %v5968, %v5613
    %v6009 = vsel %vm4968, %v5969, %v5615
    %v6010 = vsel %vm5009, %v5970, %v5659
    %v6011 = vsel %vm5009, %v5971, %v5661
    %v6012 = vsel %vm5009, %v5972, %v5663
    %v6013 = vsel %vm5009, %v5973, %v5665
    %v6014 = vsel %vm5009, %v5974, %v5667
    %v6015 = vsel %vm5009, %v5975, %v5669
    %v6016 = vsel %vm5009, %v5976, %v5671
    %v6017 = vsel %vm5009, %v5977, %v5673
    %v6018 = vsel %vm5009, %v5978, %v5675
    %v6019 = vsel %vm5009, %v5979, %v5677
    %v6020 = vsel %vm5009, %v5980, %v5679
    %v6021 = vsel %vm5009, %v5981, %v5681
    %v6022 = vsel %vm5009, %v5982, %v5683
    %v6023 = vsel %vm5009, %v5983, %v5685
    %v6024 = vsel %vm5009, %v5984, %v5687
    %v6025 = vsel %vm5009, %v5985, %v5689
    %v6026 = vsel %vm5009, %v5986, %v5691
    %v6027 = vsel %vm5009, %v5987, %v5693
    %v6028 = vsel %vm5009, %v5988, %v5695
    %v6029 = vsel %vm5009, %v5989, %v5697
    %v6030 = vsel %vm5009, %v5990, %v5699
    %v6031 = vsel %vm5009, %v5991, %v5701
    %v6032 = vsel %vm5009, %v5992, %v5703
    %v6033 = vsel %vm5009, %v5993, %v5705
    %v6034 = vsel %vm5009, %v5994, %v5707
    %v6035 = vsel %vm5009, %v5995, %v5709
    %v6036 = vsel %vm5009, %v5996, %v5711
    %v6037 = vsel %vm5009, %v5997, %v5713
    %v6038 = vsel %vm5009, %v5998, %v5715
    %v6039 = vsel %vm5009, %v5999, %v5717
    %v6040 = vsel %vm5009, %v6000, %v5719
    %v6041 = vsel %vm5009, %v6001, %v5721
    %v6042 = vsel %vm5009, %v6002, %v5723
    %v6043 = vsel %vm5009, %v6003, %v5725
    %v6044 = vsel %vm5009, %v6004, %v5727
    %v6045 = vsel %vm5009, %v6005, %v5729
    %v6046 = vsel %vm5009, %v6006, %v5731
    %v6047 = vsel %vm5009, %v6007, %v5733
    %v6048 = vsel %vm5009, %v6008, %v5735
    %v6049 = vsel %vm5009, %v6009, %v5737
    %v6050 = vsel %vm4927, %v2539, %v5783
    %v6051 = vsel %vm4927, %v2540, %v5785
    %v6052 = vsel %vm4927, %v2541, %v5787
    %v6053 = vsel %vm4927, %v2542, %v5789
    %v6054 = vsel %vm4927, %v2543, %v5791
    %v6055 = vsel %vm4927, %v2544, %v5793
    %v6056 = vsel %vm4927, %v2545, %v5795
    %v6057 = vsel %vm4927, %v2546, %v5797
    %v6058 = vsel %vm4927, %v2567, %v5799
    %v6059 = vsel %vm4927, %v2568, %v5801
    %v6060 = vsel %vm4927, %v2569, %v5803
    %v6061 = vsel %vm4927, %v2570, %v5805
    %v6062 = vsel %vm4927, %v2571, %v5807
    %v6063 = vsel %vm4927, %v2572, %v5809
    %v6064 = vsel %vm4927, %v2573, %v5811
    %v6065 = vsel %vm4927, %v2574, %v5813
    %v6066 = vsel %vm4968, %v6050, %v5833
    %v6067 = vsel %vm4968, %v6051, %v5835
    %v6068 = vsel %vm4968, %v6052, %v5837
    %v6069 = vsel %vm4968, %v6053, %v5839
    %v6070 = vsel %vm4968, %v6054, %v5841
    %v6071 = vsel %vm4968, %v6055, %v5843
    %v6072 = vsel %vm4968, %v6056, %v5845
    %v6073 = vsel %vm4968, %v6057, %v5847
    %v6074 = vsel %vm4968, %v6058, %v5849
    %v6075 = vsel %vm4968, %v6059, %v5851
    %v6076 = vsel %vm4968, %v6060, %v5853
    %v6077 = vsel %vm4968, %v6061, %v5855
    %v6078 = vsel %vm4968, %v6062, %v5857
    %v6079 = vsel %vm4968, %v6063, %v5859
    %v6080 = vsel %vm4968, %v6064, %v5861
    %v6081 = vsel %vm4968, %v6065, %v5863
    %v6082 = vsel %vm5009, %v6066, %v5883
    %v6083 = vsel %vm5009, %v6067, %v5885
    %v6084 = vsel %vm5009, %v6068, %v5887
    %v6085 = vsel %vm5009, %v6069, %v5889
    %v6086 = vsel %vm5009, %v6070, %v5891
    %v6087 = vsel %vm5009, %v6071, %v5893
    %v6088 = vsel %vm5009, %v6072, %v5895
    %v6089 = vsel %vm5009, %v6073, %v5897
    %v6090 = vsel %vm5009, %v6074, %v5899
    %v6091 = vsel %vm5009, %v6075, %v5901
    %v6092 = vsel %vm5009, %v6076, %v5903
    %v6093 = vsel %vm5009, %v6077, %v5905
    %v6094 = vsel %vm5009, %v6078, %v5907
    %v6095 = vsel %vm5009, %v6079, %v5909
    %v6096 = vsel %vm5009, %v6080, %v5911
    %v6097 = vsel %vm5009, %v6081, %v5913
    %v6098 = vpack.c.bf16 %v5011, %v5010
    %v6099 = vpack.c.bf16 %v5131, %v5130
    %v6100 = vpack.c.bf16 %v5251, %v5250
    %v6101 = vpack.c.bf16 %v5371, %v5370
    %v6102 = vpack.c.bf16 %v6011, %v6010
    %v6103 = vpack.c.bf16 %v5019, %v5018
    %v6104 = vpack.c.bf16 %v3103, %v2993
    %v6105 = vpack.c.bf16 %v5013, %v5012
    %v6106 = vpack.c.bf16 %v5133, %v5132
    %v6107 = vpack.c.bf16 %v5253, %v5252
    %v6108 = vpack.c.bf16 %v5373, %v5372
    %v6109 = vpack.c.bf16 %v6013, %v6012
    %v6110 = vpack.c.bf16 %v5021, %v5020
    %v6111 = vpack.c.bf16 %v3104, %v2996
    %v6112 = vpack.c.bf16 %v5015, %v5014
    %v6113 = vpack.c.bf16 %v5135, %v5134
    %v6114 = vpack.c.bf16 %v5255, %v5254
    %v6115 = vpack.c.bf16 %v5375, %v5374
    %v6116 = vpack.c.bf16 %v6015, %v6014
    %v6117 = vpack.c.bf16 %v5023, %v5022
    %v6118 = vpack.c.bf16 %v3105, %v2999
    %v6119 = vpack.c.bf16 %v5017, %v5016
    %v6120 = vpack.c.bf16 %v5137, %v5136
    %v6121 = vpack.c.bf16 %v5257, %v5256
    %v6122 = vpack.c.bf16 %v5377, %v5376
    %v6123 = vpack.c.bf16 %v6017, %v6016
    %v6124 = vpack.c.bf16 %v5025, %v5024
    %v6125 = vpack.c.bf16 %v3106, %v3002
    %v6126 = vpack.c.bf16 %v5139, %v5138
    %v6127 = vpack.c.bf16 %v5259, %v5258
    %v6128 = vpack.c.bf16 %v5379, %v5378
    %v6129 = vpack.c.bf16 %v6019, %v6018
    %v6130 = vpack.c.bf16 %v5027, %v5026
    %v6131 = vpack.c.bf16 %v3107, %v3005
    %v6132 = vpack.c.bf16 %v5141, %v5140
    %v6133 = vpack.c.bf16 %v5261, %v5260
    %v6134 = vpack.c.bf16 %v5381, %v5380
    %v6135 = vpack.c.bf16 %v6021, %v6020
    %v6136 = vpack.c.bf16 %v5029, %v5028
    %v6137 = vpack.c.bf16 %v3108, %v3008
    %v6138 = vpack.c.bf16 %v5143, %v5142
    %v6139 = vpack.c.bf16 %v5263, %v5262
    %v6140 = vpack.c.bf16 %v5383, %v5382
    %v6141 = vpack.c.bf16 %v6023, %v6022
    %v6142 = vpack.c.bf16 %v6083, %v6082
    %v6143 = vpack.c.bf16 %v3189, %v3181
    %v6144 = vpack.c.bf16 %v5145, %v5144
    %v6145 = vpack.c.bf16 %v5265, %v5264
    %v6146 = vpack.c.bf16 %v5385, %v5384
    %v6147 = vpack.c.bf16 %v6025, %v6024
    %v6148 = vpack.c.bf16 %v6085, %v6084
    %v6149 = vpack.c.bf16 %v3261, %v3253
    %v6150 = vpack.c.bf16 %v5147, %v5146
    %v6151 = vpack.c.bf16 %v5267, %v5266
    %v6152 = vpack.c.bf16 %v5387, %v5386
    %v6153 = vpack.c.bf16 %v6027, %v6026
    %v6154 = vpack.c.bf16 %v6087, %v6086
    %v6155 = vpack.c.bf16 %v3333, %v3325
    %v6156 = vpack.c.bf16 %v5149, %v5148
    %v6157 = vpack.c.bf16 %v5269, %v5268
    %v6158 = vpack.c.bf16 %v5389, %v5388
    %v6159 = vpack.c.bf16 %v6029, %v6028
    %v6160 = vpack.c.bf16 %v6089, %v6088
    %v6161 = vpack.c.bf16 %v3393, %v3377
    %v6162 = vpack.c.bf16 %v5031, %v5030
    %v6163 = vpack.c.bf16 %v5151, %v5150
    %v6164 = vpack.c.bf16 %v5271, %v5270
    %v6165 = vpack.c.bf16 %v5391, %v5390
    %v6166 = vpack.c.bf16 %v6031, %v6030
    %v6167 = vpack.c.bf16 %v5039, %v5038
    %v6168 = vpack.c.bf16 %v3113, %v3023
    %v6169 = vpack.c.bf16 %v5033, %v5032
    %v6170 = vpack.c.bf16 %v5153, %v5152
    %v6171 = vpack.c.bf16 %v5273, %v5272
    %v6172 = vpack.c.bf16 %v5393, %v5392
    %v6173 = vpack.c.bf16 %v6033, %v6032
    %v6174 = vpack.c.bf16 %v5041, %v5040
    %v6175 = vpack.c.bf16 %v3114, %v3026
    %v6176 = vpack.c.bf16 %v5035, %v5034
    %v6177 = vpack.c.bf16 %v5155, %v5154
    %v6178 = vpack.c.bf16 %v5275, %v5274
    %v6179 = vpack.c.bf16 %v5395, %v5394
    %v6180 = vpack.c.bf16 %v6035, %v6034
    %v6181 = vpack.c.bf16 %v5043, %v5042
    %v6182 = vpack.c.bf16 %v3115, %v3029
    %v6183 = vpack.c.bf16 %v5037, %v5036
    %v6184 = vpack.c.bf16 %v5157, %v5156
    %v6185 = vpack.c.bf16 %v5277, %v5276
    %v6186 = vpack.c.bf16 %v5397, %v5396
    %v6187 = vpack.c.bf16 %v6037, %v6036
    %v6188 = vpack.c.bf16 %v5045, %v5044
    %v6189 = vpack.c.bf16 %v3116, %v3032
    %v6190 = vpack.c.bf16 %v5159, %v5158
    %v6191 = vpack.c.bf16 %v5279, %v5278
    %v6192 = vpack.c.bf16 %v5399, %v5398
    %v6193 = vpack.c.bf16 %v6039, %v6038
    %v6194 = vpack.c.bf16 %v5047, %v5046
    %v6195 = vpack.c.bf16 %v3117, %v3035
    %v6196 = vpack.c.bf16 %v5161, %v5160
    %v6197 = vpack.c.bf16 %v5281, %v5280
    %v6198 = vpack.c.bf16 %v5401, %v5400
    %v6199 = vpack.c.bf16 %v6041, %v6040
    %v6200 = vpack.c.bf16 %v5049, %v5048
    %v6201 = vpack.c.bf16 %v3118, %v3038
    %v6202 = vpack.c.bf16 %v5163, %v5162
    %v6203 = vpack.c.bf16 %v5283, %v5282
    %v6204 = vpack.c.bf16 %v5403, %v5402
    %v6205 = vpack.c.bf16 %v6043, %v6042
    %v6206 = vpack.c.bf16 %v6091, %v6090
    %v6207 = vpack.c.bf16 %v3190, %v3184
    %v6208 = vpack.c.bf16 %v5165, %v5164
    %v6209 = vpack.c.bf16 %v5285, %v5284
    %v6210 = vpack.c.bf16 %v5405, %v5404
    %v6211 = vpack.c.bf16 %v6045, %v6044
    %v6212 = vpack.c.bf16 %v6093, %v6092
    %v6213 = vpack.c.bf16 %v3262, %v3256
    %v6214 = vpack.c.bf16 %v5167, %v5166
    %v6215 = vpack.c.bf16 %v5287, %v5286
    %v6216 = vpack.c.bf16 %v5407, %v5406
    %v6217 = vpack.c.bf16 %v6047, %v6046
    %v6218 = vpack.c.bf16 %v6095, %v6094
    %v6219 = vpack.c.bf16 %v3334, %v3328
    %v6220 = vpack.c.bf16 %v5169, %v5168
    %v6221 = vpack.c.bf16 %v5289, %v5288
    %v6222 = vpack.c.bf16 %v5409, %v5408
    %v6223 = vpack.c.bf16 %v6049, %v6048
    %v6224 = vpack.c.bf16 %v6097, %v6096
    %v6225 = vpack.c.bf16 %v3394, %v3380
    %v6226 = vld [vmem:[#allocation8] sm:$0xf]
    %v6227 = vld [vmem:[#allocation8 + $0x4] sm:$0xf]
    %v6228 = vld [vmem:[#allocation8 + $0x8] sm:$0xf]
    %v6229 = vld [vmem:[#allocation8 + $0xc] sm:$0xf]
    %v6230 = vld [vmem:[#allocation8 + $0x10] sm:$0xf]
    %v6231 = vld [vmem:[#allocation8 + $0x14] sm:$0xf]
    %v6232 = vld [vmem:[#allocation8 + $0x18] sm:$0xf]
    %v6233 = vld [vmem:[#allocation8 + $0x1c] sm:$0xf]
    %v6234 = vld [vmem:[#allocation8 + $0x20] sm:$0xf]
    %v6235 = vld [vmem:[#allocation8 + $0x24] sm:$0xf]
    %v6236 = vld [vmem:[#allocation8 + $0x28] sm:$0xf]
    %v6237 = vld [vmem:[#allocation8 + $0x2c] sm:$0xf]
    %v6238 = vld [vmem:[#allocation8 + $0x30] sm:$0xf]
    %v6239 = vld [vmem:[#allocation8 + $0x34] sm:$0xf]
    %v6240 = vld [vmem:[#allocation8 + $0x38] sm:$0xf]
    %v6241 = vld [vmem:[#allocation8 + $0x3c] sm:$0xf]
    %v6242 = vld [vmem:[#allocation8 + $0x40] sm:$0xf]
    %v6243 = vld [vmem:[#allocation8 + $0x44] sm:$0xf]
    %v6244 = vld [vmem:[#allocation8 + $0x48] sm:$0xf]
    %v6245 = vld [vmem:[#allocation8 + $0x4c] sm:$0xf]
    %v6246 = vld [vmem:[#allocation8 + $0x50] sm:$0xf]
    %v6247 = vld [vmem:[#allocation8 + $0x54] sm:$0xf]
    %v6248 = vld [vmem:[#allocation8 + $0x58] sm:$0xf]
    %v6249 = vld [vmem:[#allocation8 + $0x5c] sm:$0xf]
    %v6250 = vld [vmem:[#allocation8 + $0x60] sm:$0xf]
    %v6251 = vld [vmem:[#allocation8 + $0x64] sm:$0xf]
    %v6252 = vld [vmem:[#allocation8 + $0x68] sm:$0xf]
    %v6253 = vld [vmem:[#allocation8 + $0x6c] sm:$0xf]
    %v6254 = vld [vmem:[#allocation8 + $0x70] sm:$0xf]
    %v6255 = vld [vmem:[#allocation8 + $0x74] sm:$0xf]
    %v6256 = vld [vmem:[#allocation8 + $0x78] sm:$0xf]
    %v6257 = vld [vmem:[#allocation8 + $0x7c] sm:$0xf]
    %v6258 = vld [vmem:[#allocation8 + $0x80] sm:$0xf]
    %v6259 = vld [vmem:[#allocation8 + $0x84] sm:$0xf]
    %v6260 = vld [vmem:[#allocation8 + $0x88] sm:$0xf]
    %v6261 = vld [vmem:[#allocation8 + $0x8c] sm:$0xf]
    %v6262 = vld [vmem:[#allocation8 + $0x90] sm:$0xf]
    %v6263 = vld [vmem:[#allocation8 + $0x94] sm:$0xf]
    %v6264 = vld [vmem:[#allocation8 + $0x98] sm:$0xf]
    %v6265 = vld [vmem:[#allocation8 + $0x9c] sm:$0xf]
    %v6266 = vld [vmem:[#allocation8 + $0xa0] sm:$0xf]
    %v6267 = vld [vmem:[#allocation8 + $0xa4] sm:$0xf]
    %v6268 = vld [vmem:[#allocation8 + $0xa8] sm:$0xf]
    %v6269 = vld [vmem:[#allocation8 + $0xac] sm:$0xf]
    %v6270 = vld [vmem:[#allocation8 + $0xb0] sm:$0xf]
    %v6271 = vld [vmem:[#allocation8 + $0xb4] sm:$0xf]
    %v6272 = vld [vmem:[#allocation8 + $0xb8] sm:$0xf]
    %v6273 = vld [vmem:[#allocation8 + $0xbc] sm:$0xf]
    %v6274 = vld [vmem:[#allocation8 + $0xc0] sm:$0xf]
    %v6275 = vld [vmem:[#allocation8 + $0xc4] sm:$0xf]
    %v6276 = vld [vmem:[#allocation8 + $0xc8] sm:$0xf]
    %v6277 = vld [vmem:[#allocation8 + $0xcc] sm:$0xf]
    %v6278 = vld [vmem:[#allocation8 + $0xd0] sm:$0xf]
    %v6279 = vld [vmem:[#allocation8 + $0xd4] sm:$0xf]
    %v6280 = vld [vmem:[#allocation8 + $0xd8] sm:$0xf]
    %v6281 = vld [vmem:[#allocation8 + $0xdc] sm:$0xf]
    %v6282 = vld [vmem:[#allocation8 + $0xe0] sm:$0xf]
    %v6283 = vld [vmem:[#allocation8 + $0xe4] sm:$0xf]
    %v6284 = vld [vmem:[#allocation8 + $0xe8] sm:$0xf]
    %v6285 = vld [vmem:[#allocation8 + $0xec] sm:$0xf]
    %v6286 = vld [vmem:[#allocation8 + $0xf0] sm:$0xf]
    %v6287 = vld [vmem:[#allocation8 + $0xf4] sm:$0xf]
    %v6288 = vld [vmem:[#allocation8 + $0xf8] sm:$0xf]
    %v6289 = vld [vmem:[#allocation8 + $0xfc] sm:$0xf]
    %v6290 = vld [vmem:[#allocation8 + $0x100] sm:$0xf]
    %v6291 = vld [vmem:[#allocation8 + $0x104] sm:$0xf]
    %v6292 = vld [vmem:[#allocation8 + $0x108] sm:$0xf]
    %v6293 = vld [vmem:[#allocation8 + $0x10c] sm:$0xf]
    %v6294 = vld [vmem:[#allocation8 + $0x110] sm:$0xf]
    %v6295 = vld [vmem:[#allocation8 + $0x114] sm:$0xf]
    %v6296 = vld [vmem:[#allocation8 + $0x118] sm:$0xf]
    %v6297 = vld [vmem:[#allocation8 + $0x11c] sm:$0xf]
    %v6298 = vld [vmem:[#allocation8 + $0x120] sm:$0xf]
    %v6299 = vld [vmem:[#allocation8 + $0x124] sm:$0xf]
    %v6300 = vld [vmem:[#allocation8 + $0x128] sm:$0xf]
    %v6301 = vld [vmem:[#allocation8 + $0x12c] sm:$0xf]
    %v6302 = vld [vmem:[#allocation8 + $0x130] sm:$0xf]
    %v6303 = vld [vmem:[#allocation8 + $0x134] sm:$0xf]
    %v6304 = vld [vmem:[#allocation8 + $0x138] sm:$0xf]
    %v6305 = vld [vmem:[#allocation8 + $0x13c] sm:$0xf]
    %v6306 = vld [vmem:[#allocation8 + $0x140] sm:$0xf]
    %v6307 = vld [vmem:[#allocation8 + $0x144] sm:$0xf]
    %v6308 = vld [vmem:[#allocation8 + $0x148] sm:$0xf]
    %v6309 = vld [vmem:[#allocation8 + $0x14c] sm:$0xf]
    %v6310 = vld [vmem:[#allocation8 + $0x150] sm:$0xf]
    %v6311 = vld [vmem:[#allocation8 + $0x154] sm:$0xf]
    %v6312 = vld [vmem:[#allocation8 + $0x158] sm:$0xf]
    %v6313 = vld [vmem:[#allocation8 + $0x15c] sm:$0xf]
    %v6314 = vld [vmem:[#allocation8 + $0x160] sm:$0xf]
    %v6315 = vld [vmem:[#allocation8 + $0x164] sm:$0xf]
    %v6316 = vld [vmem:[#allocation8 + $0x168] sm:$0xf]
    %v6317 = vld [vmem:[#allocation8 + $0x16c] sm:$0xf]
    %v6318 = vld [vmem:[#allocation8 + $0x170] sm:$0xf]
    %v6319 = vld [vmem:[#allocation8 + $0x174] sm:$0xf]
    %v6320 = vld [vmem:[#allocation8 + $0x178] sm:$0xf]
    %v6321 = vld [vmem:[#allocation8 + $0x17c] sm:$0xf]
    %v6322 = vld [vmem:[#allocation8 + $0x180] sm:$0xf]
    %v6323 = vld [vmem:[#allocation8 + $0x184] sm:$0xf]
    %v6324 = vld [vmem:[#allocation8 + $0x188] sm:$0xf]
    %v6325 = vld [vmem:[#allocation8 + $0x18c] sm:$0xf]
    %v6326 = vld [vmem:[#allocation10] sm:$0x1]
    %v6328 = vlaneseq
    %v6329 = vshrl.u32 %v6328, 7
    %v6330 = vsub.s32 0, %v6329
    %v6331 = vrot.slane %v6326, %v6330
    %v6433 = vunpack.c.l.b16 %v6226
    %v6434 = vunpack.c.l.b16 %v6227
    %v6435 = vunpack.c.l.b16 %v6228
    %v6436 = vunpack.c.l.b16 %v6229
    %v6437 = vunpack.c.l.b16 %v6230
    %v6438 = vunpack.c.l.b16 %v6231
    %v6439 = vunpack.c.l.b16 %v6232
    %v6440 = vunpack.c.l.b16 %v6233
    %v6441 = vunpack.c.l.b16 %v6234
    %v6442 = vunpack.c.l.b16 %v6235
    %v6443 = vunpack.c.l.b16 %v6236
    %v6444 = vunpack.c.l.b16 %v6237
    %v6445 = vunpack.c.l.b16 %v6238
    %v6446 = vunpack.c.l.b16 %v6239
    %v6447 = vunpack.c.l.b16 %v6240
    %v6448 = vunpack.c.l.b16 %v6241
    %v6449 = vunpack.c.l.b16 %v6242
    %v6450 = vunpack.c.l.b16 %v6243
    %v6451 = vunpack.c.l.b16 %v6244
    %v6452 = vunpack.c.l.b16 %v6245
    %v6453 = vunpack.c.l.b16 %v6246
    %v6454 = vunpack.c.l.b16 %v6247
    %v6455 = vunpack.c.l.b16 %v6248
    %v6456 = vunpack.c.l.b16 %v6249
    %v6457 = vunpack.c.l.b16 %v6250
    %v6458 = vunpack.c.l.b16 %v6251
    %v6459 = vunpack.c.l.b16 %v6252
    %v6460 = vunpack.c.l.b16 %v6253
    %v6461 = vunpack.c.l.b16 %v6254
    %v6462 = vunpack.c.l.b16 %v6255
    %v6463 = vunpack.c.l.b16 %v6256
    %v6464 = vunpack.c.l.b16 %v6257
    %v6465 = vunpack.c.l.b16 %v6258
    %v6466 = vunpack.c.l.b16 %v6259
    %v6467 = vunpack.c.l.b16 %v6260
    %v6468 = vunpack.c.l.b16 %v6261
    %v6469 = vunpack.c.l.b16 %v6262
    %v6470 = vunpack.c.l.b16 %v6263
    %v6471 = vunpack.c.l.b16 %v6264
    %v6472 = vunpack.c.l.b16 %v6265
    %v6473 = vunpack.c.l.b16 %v6266
    %v6474 = vunpack.c.l.b16 %v6267
    %v6475 = vunpack.c.l.b16 %v6268
    %v6476 = vunpack.c.l.b16 %v6269
    %v6477 = vunpack.c.l.b16 %v6270
    %v6478 = vunpack.c.l.b16 %v6271
    %v6479 = vunpack.c.l.b16 %v6272
    %v6480 = vunpack.c.l.b16 %v6273
    %v6481 = vunpack.c.l.b16 %v6274
    %v6482 = vunpack.c.l.b16 %v6275
    %v6483 = vunpack.c.l.b16 %v6276
    %v6484 = vunpack.c.l.b16 %v6277
    %v6485 = vunpack.c.l.b16 %v6278
    %v6486 = vunpack.c.l.b16 %v6279
    %v6487 = vunpack.c.l.b16 %v6280
    %v6488 = vunpack.c.l.b16 %v6281
    %v6489 = vunpack.c.l.b16 %v6282
    %v6490 = vunpack.c.l.b16 %v6283
    %v6491 = vunpack.c.l.b16 %v6284
    %v6492 = vunpack.c.l.b16 %v6285
    %v6493 = vunpack.c.l.b16 %v6286
    %v6494 = vunpack.c.l.b16 %v6287
    %v6495 = vunpack.c.l.b16 %v6288
    %v6496 = vunpack.c.l.b16 %v6289
    %v6497 = vunpack.c.l.b16 %v6290
    %v6498 = vunpack.c.l.b16 %v6291
    %v6499 = vunpack.c.l.b16 %v6292
    %v6500 = vunpack.c.l.b16 %v6293
    %v6501 = vunpack.c.l.b16 %v6294
    %v6502 = vunpack.c.l.b16 %v6295
    %v6503 = vunpack.c.l.b16 %v6296
    %v6504 = vunpack.c.l.b16 %v6297
    %v6505 = vunpack.c.l.b16 %v6298
    %v6506 = vunpack.c.l.b16 %v6299
    %v6507 = vunpack.c.l.b16 %v6300
    %v6508 = vunpack.c.l.b16 %v6301
    %v6509 = vunpack.c.l.b16 %v6302
    %v6510 = vunpack.c.l.b16 %v6303
    %v6511 = vunpack.c.l.b16 %v6304
    %v6512 = vunpack.c.l.b16 %v6305
    %v6513 = vunpack.c.l.b16 %v6306
    %v6514 = vunpack.c.l.b16 %v6307
    %v6515 = vunpack.c.l.b16 %v6308
    %v6516 = vunpack.c.l.b16 %v6309
    %v6517 = vunpack.c.l.b16 %v6310
    %v6518 = vunpack.c.l.b16 %v6311
    %v6519 = vunpack.c.l.b16 %v6312
    %v6520 = vunpack.c.l.b16 %v6313
    %v6521 = vunpack.c.l.b16 %v6314
    %v6522 = vunpack.c.l.b16 %v6315
    %v6523 = vunpack.c.l.b16 %v6316
    %v6524 = vunpack.c.l.b16 %v6317
    %v6525 = vunpack.c.l.b16 %v6318
    %v6526 = vunpack.c.l.b16 %v6319
    %v6527 = vunpack.c.l.b16 %v6320
    %v6528 = vunpack.c.l.b16 %v6321
    %v6529 = vunpack.c.l.b16 %v6322
    %v6530 = vunpack.c.l.b16 %v6323
    %v6531 = vunpack.c.l.b16 %v6324
    %v6532 = vunpack.c.l.b16 %v6325
    %v6533 = vpack.c.b16 %v6434, %v6433
    %v6534 = vpack.c.b16 %v6436, %v6435
    %v6535 = vpack.c.b16 %v6438, %v6437
    %v6536 = vpack.c.b16 %v6440, %v6439
    %v6537 = vpack.c.b16 %v6442, %v6441
    %v6538 = vpack.c.b16 %v6444, %v6443
    %v6539 = vpack.c.b16 %v6446, %v6445
    %v6540 = vpack.c.b16 %v6448, %v6447
    %v6541 = vpack.c.b16 %v6450, %v6449
    %v6542 = vpack.c.b16 %v6452, %v6451
    %v6543 = vpack.c.b16 %v6454, %v6453
    %v6544 = vpack.c.b16 %v6456, %v6455
    %v6545 = vpack.c.b16 %v6458, %v6457
    %v6546 = vpack.c.b16 %v6460, %v6459
    %v6547 = vpack.c.b16 %v6462, %v6461
    %v6548 = vpack.c.b16 %v6464, %v6463
    %v6549 = vpack.c.b16 %v6466, %v6465
    %v6550 = vpack.c.b16 %v6468, %v6467
    %v6551 = vpack.c.b16 %v6470, %v6469
    %v6552 = vpack.c.b16 %v6472, %v6471
    %v6553 = vpack.c.b16 %v6474, %v6473
    %v6554 = vpack.c.b16 %v6476, %v6475
    %v6555 = vpack.c.b16 %v6478, %v6477
    %v6556 = vpack.c.b16 %v6480, %v6479
    %v6557 = vpack.c.b16 %v6482, %v6481
    %v6558 = vpack.c.b16 %v6484, %v6483
    %v6559 = vpack.c.b16 %v6486, %v6485
    %v6560 = vpack.c.b16 %v6488, %v6487
    %v6561 = vpack.c.b16 %v6490, %v6489
    %v6562 = vpack.c.b16 %v6492, %v6491
    %v6563 = vpack.c.b16 %v6494, %v6493
    %v6564 = vpack.c.b16 %v6496, %v6495
    %v6565 = vpack.c.b16 %v6498, %v6497
    %v6566 = vpack.c.b16 %v6500, %v6499
    %v6567 = vpack.c.b16 %v6502, %v6501
    %v6568 = vpack.c.b16 %v6504, %v6503
    %v6569 = vpack.c.b16 %v6506, %v6505
    %v6570 = vpack.c.b16 %v6508, %v6507
    %v6571 = vpack.c.b16 %v6510, %v6509
    %v6572 = vpack.c.b16 %v6512, %v6511
    %v6573 = vpack.c.b16 %v6514, %v6513
    %v6574 = vpack.c.b16 %v6516, %v6515
    %v6575 = vpack.c.b16 %v6518, %v6517
    %v6576 = vpack.c.b16 %v6520, %v6519
    %v6577 = vpack.c.b16 %v6522, %v6521
    %v6578 = vpack.c.b16 %v6524, %v6523
    %v6579 = vpack.c.b16 %v6526, %v6525
    %v6580 = vpack.c.b16 %v6528, %v6527
    %v6581 = vpack.c.b16 %v6530, %v6529
    %v6582 = vpack.c.b16 %v6532, %v6531
    %v6634 = vsel %vm4927, %v6104, 0
    %v6637 = vsel %vm4927, %v6111, 0
    %v6640 = vsel %vm4927, %v6118, 0
    %v6643 = vsel %vm4927, %v6125, 0
    %v6646 = vsel %vm4927, %v6131, 0
    %v6649 = vsel %vm4927, %v6137, 0
    %v6652 = vsel %vm4927, %v6143, 0
    %v6655 = vsel %vm4927, %v6149, 0
    %v6658 = vsel %vm4927, %v6155, 0
    %v6661 = vsel %vm4927, %v6161, 0
    %v6664 = vsel %vm4927, %v6168, 0
    %v6667 = vsel %vm4927, %v6175, 0
    %v6670 = vsel %vm4927, %v6182, 0
    %v6673 = vsel %vm4927, %v6189, 0
    %v6676 = vsel %vm4927, %v6195, 0
    %v6679 = vsel %vm4927, %v6201, 0
    %v6682 = vsel %vm4927, %v6207, 0
    %v6685 = vsel %vm4927, %v6213, 0
    %v6688 = vsel %vm4927, %v6219, 0
    %v6691 = vsel %vm4927, %v6225, 0
    %6693 = vmatprep.subr.bf16.mxu0 0
    %6694 = vmatpush1.bf16.msra.mxu0 %v6533
    %6695 = vmatprep.subr.bf16.mxu0 0
    %6696 = vmatpush1.bf16.msra.mxu0 %v6534
    %6697 = vmatprep.subr.bf16.mxu0 0
    %6698 = vmatpush1.bf16.msra.mxu0 %v6535
    %6699 = vmatprep.subr.bf16.mxu0 0
    %6700 = vmatpush1.bf16.msra.mxu0 %v6536
    %6701 = vmatprep.subr.bf16.mxu0 0
    %6702 = vmatpush1.bf16.msra.mxu0 %v6537
    %6703 = vmatprep.subr.bf16.mxu0 0
    %6704 = vmatpush1.bf16.msra.mxu0 %v6538
    %6705 = vmatprep.subr.bf16.mxu0 0
    %6706 = vmatpush1.bf16.msra.mxu0 %v6539
    %6707 = vmatprep.subr.bf16.mxu0 0
    %6708 = vmatpush1.bf16.msra.mxu0 %v6540
    %6709 = vmatprep.subr.bf16.mxu0 0
    %6710 = vmatpush1.bf16.msra.mxu0 %v6541
    %6711 = vmatprep.subr.bf16.mxu0 0
    %6712 = vmatpush1.bf16.msra.mxu0 %v6542
    %6713 = vmatprep.subr.bf16.mxu0 0
    %6714 = vmatpush1.bf16.msra.mxu0 %v6543
    %6715 = vmatprep.subr.bf16.mxu0 0
    %6716 = vmatpush1.bf16.msra.mxu0 %v6544
    %6717 = vmatprep.subr.bf16.mxu0 0
    %6718 = vmatpush1.bf16.msra.mxu0 %v6545
    %6719 = vmatprep.subr.bf16.mxu0 0
    %6720 = vmatpush1.bf16.msra.mxu0 %v6546
    %6721 = vmatprep.subr.bf16.mxu0 0
    %6722 = vmatpush1.bf16.msra.mxu0 %v6547
    %6723 = vmatprep.subr.bf16.mxu0 0
    %6724 = vmatpush1.bf16.msra.mxu0 %v6548
    %6725 = vmatprep.mubr.bf16.mxu0 %v6099
    %6726 = vmatmul.mubr.bf16.gmra.mrb[0].mxu0 %v6098
    %v6727 = vpop.f32.mrb[0].mxu0
    %v6728 = vadd.f32 %v6331, %v6727
    %v6729 = vpop.f32.mrb[0].mxu0
    %v6730 = vpop.f32.mrb[0].mxu0
    %v6731 = vadd.f32 %v6331, %v6730
    %v6732 = vpop.f32.mrb[0].mxu0
    %6733 = vmatprep.mubr.bf16.mxu0 %v6106
    %6734 = vmatmul.mubr.bf16.gmra.mrb[0].mxu0 %v6105
    %v6735 = vpop.f32.mrb[0].mxu0
    %v6736 = vadd.f32 %v6331, %v6735
    %v6737 = vpop.f32.mrb[0].mxu0
    %v6738 = vpop.f32.mrb[0].mxu0
    %v6739 = vadd.f32 %v6331, %v6738
    %v6740 = vpop.f32.mrb[0].mxu0
    %6741 = vmatprep.mubr.bf16.mxu0 %v6113
    %6742 = vmatmul.mubr.bf16.gmra.mrb[0].mxu0 %v6112
    %v6743 = vpop.f32.mrb[0].mxu0
    %v6744 = vadd.f32 %v6331, %v6743
    %v6745 = vpop.f32.mrb[0].mxu0
    %v6746 = vpop.f32.mrb[0].mxu0
    %v6747 = vadd.f32 %v6331, %v6746
    %v6748 = vpop.f32.mrb[0].mxu0
    %6749 = vmatprep.mubr.bf16.mxu0 %v6120
    %6750 = vmatmul.mubr.bf16.gmra.mrb[0].mxu0 %v6119
    %v6751 = vpop.f32.mrb[0].mxu0
    %v6752 = vadd.f32 %v6331, %v6751
    %v6753 = vpop.f32.mrb[0].mxu0
    %v6754 = vpop.f32.mrb[0].mxu0
    %v6755 = vadd.f32 %v6331, %v6754
    %v6756 = vpop.f32.mrb[0].mxu0
    %6757 = vmatprep.mubr.bf16.mxu0 %v6126
    %6758 = vmatmul.mubr.bf16.gmra.mrb[0].mxu0 %v6103
    %v6759 = vpop.f32.mrb[0].mxu0
    %v6760 = vadd.f32 %v6331, %v6759
    %v6761 = vpop.f32.mrb[0].mxu0
    %v6762 = vpop.f32.mrb[0].mxu0
    %v6763 = vadd.f32 %v6331, %v6762
    %v6764 = vpop.f32.mrb[0].mxu0
    %6765 = vmatprep.mubr.bf16.mxu0 %v6132
    %6766 = vmatmul.mubr.bf16.gmra.mrb[0].mxu0 %v6110
    %v6767 = vpop.f32.mrb[0].mxu0
    %v6768 = vadd.f32 %v6331, %v6767
    %v6769 = vpop.f32.mrb[0].mxu0
    %v6770 = vpop.f32.mrb[0].mxu0
    %v6771 = vadd.f32 %v6331, %v6770
    %v6772 = vpop.f32.mrb[0].mxu0
    %6773 = vmatprep.mubr.bf16.mxu0 %v6138
    %6774 = vmatmul.mubr.bf16.gmra.mrb[0].mxu0 %v6117
    %v6775 = vpop.f32.mrb[0].mxu0
    %v6776 = vadd.f32 %v6331, %v6775
    %v6777 = vpop.f32.mrb[0].mxu0
    %v6778 = vpop.f32.mrb[0].mxu0
    %v6779 = vadd.f32 %v6331, %v6778
    %v6780 = vpop.f32.mrb[0].mxu0
    %6781 = vmatprep.mubr.bf16.mxu0 %v6144
    %6782 = vmatmul.mubr.bf16.gmra.mrb[0].mxu0 %v6124
    %v6783 = vpop.f32.mrb[0].mxu0
    %v6784 = vadd.f32 %v6331, %v6783
    %v6785 = vpop.f32.mrb[0].mxu0
    %v6786 = vpop.f32.mrb[0].mxu0
    %v6787 = vadd.f32 %v6331, %v6786
    %v6788 = vpop.f32.mrb[0].mxu0
    %6789 = vmatprep.mubr.bf16.mxu0 %v6150
    %6790 = vmatmul.mubr.bf16.gmra.mrb[0].mxu0 %v6130
    %v6791 = vpop.f32.mrb[0].mxu0
    %v6792 = vadd.f32 %v6331, %v6791
    %v6793 = vpop.f32.mrb[0].mxu0
    %v6794 = vpop.f32.mrb[0].mxu0
    %v6795 = vadd.f32 %v6331, %v6794
    %v6796 = vpop.f32.mrb[0].mxu0
    %6797 = vmatprep.mubr.bf16.mxu0 %v6156
    %6798 = vmatmul.mubr.bf16.gmra.mrb[0].mxu0 %v6136
    %v6799 = vpop.f32.mrb[0].mxu0
    %v6800 = vadd.f32 %v6331, %v6799
    %v6801 = vpop.f32.mrb[0].mxu0
    %v6802 = vpop.f32.mrb[0].mxu0
    %v6803 = vadd.f32 %v6331, %v6802
    %v6804 = vpop.f32.mrb[0].mxu0
    %6805 = vmatprep.mubr.bf16.mxu0 %v6163
    %6806 = vmatmul.mubr.bf16.gmra.mrb[0].mxu0 %v6162
    %v6807 = vpop.f32.mrb[0].mxu0
    %v6808 = vadd.f32 %v6331, %v6807
    %v6809 = vpop.f32.mrb[0].mxu0
    %v6810 = vpop.f32.mrb[0].mxu0
    %v6811 = vadd.f32 %v6331, %v6810
    %v6812 = vpop.f32.mrb[0].mxu0
    %6813 = vmatprep.mubr.bf16.mxu0 %v6170
    %6814 = vmatmul.mubr.bf16.gmra.mrb[0].mxu0 %v6169
    %v6815 = vpop.f32.mrb[0].mxu0
    %v6816 = vadd.f32 %v6331, %v6815
    %v6817 = vpop.f32.mrb[0].mxu0
    %v6818 = vpop.f32.mrb[0].mxu0
    %v6819 = vadd.f32 %v6331, %v6818
    %v6820 = vpop.f32.mrb[0].mxu0
    %6821 = vmatprep.mubr.bf16.mxu0 %v6177
    %6822 = vmatmul.mubr.bf16.gmra.mrb[0].mxu0 %v6176
    %v6823 = vpop.f32.mrb[0].mxu0
    %v6824 = vadd.f32 %v6331, %v6823
    %v6825 = vpop.f32.mrb[0].mxu0
    %v6826 = vpop.f32.mrb[0].mxu0
    %v6827 = vadd.f32 %v6331, %v6826
    %v6828 = vpop.f32.mrb[0].mxu0
    %6829 = vmatprep.mubr.bf16.mxu0 %v6184
    %6830 = vmatmul.mubr.bf16.gmra.mrb[0].mxu0 %v6183
    %v6831 = vpop.f32.mrb[0].mxu0
    %v6832 = vadd.f32 %v6331, %v6831
    %v6833 = vpop.f32.mrb[0].mxu0
    %v6834 = vpop.f32.mrb[0].mxu0
    %v6835 = vadd.f32 %v6331, %v6834
    %v6836 = vpop.f32.mrb[0].mxu0
    %6837 = vmatprep.mubr.bf16.mxu0 %v6190
    %6838 = vmatmul.mubr.bf16.gmra.mrb[0].mxu0 %v6167
    %v6839 = vpop.f32.mrb[0].mxu0
    %v6840 = vadd.f32 %v6331, %v6839
    %v6841 = vpop.f32.mrb[0].mxu0
    %v6842 = vpop.f32.mrb[0].mxu0
    %v6843 = vadd.f32 %v6331, %v6842
    %v6844 = vpop.f32.mrb[0].mxu0
    %6845 = vmatprep.mubr.bf16.mxu0 %v6196
    %6846 = vmatmul.mubr.bf16.gmra.mrb[0].mxu0 %v6174
    %v6847 = vpop.f32.mrb[0].mxu0
    %v6848 = vadd.f32 %v6331, %v6847
    %v6849 = vpop.f32.mrb[0].mxu0
    %v6850 = vpop.f32.mrb[0].mxu0
    %v6851 = vadd.f32 %v6331, %v6850
    %v6852 = vpop.f32.mrb[0].mxu0
    %6853 = vmatprep.mubr.bf16.mxu0 %v6202
    %6854 = vmatmul.mubr.bf16.gmra.mrb[0].mxu0 %v6181
    %v6855 = vpop.f32.mrb[0].mxu0
    %v6856 = vadd.f32 %v6331, %v6855
    %v6857 = vpop.f32.mrb[0].mxu0
    %v6858 = vpop.f32.mrb[0].mxu0
    %v6859 = vadd.f32 %v6331, %v6858
    %v6860 = vpop.f32.mrb[0].mxu0
    %6861 = vmatprep.mubr.bf16.mxu0 %v6208
    %6862 = vmatmul.mubr.bf16.gmra.mrb[0].mxu0 %v6188
    %v6863 = vpop.f32.mrb[0].mxu0
    %v6864 = vadd.f32 %v6331, %v6863
    %v6865 = vpop.f32.mrb[0].mxu0
    %v6866 = vpop.f32.mrb[0].mxu0
    %v6867 = vadd.f32 %v6331, %v6866
    %v6868 = vpop.f32.mrb[0].mxu0
    %6869 = vmatprep.mubr.bf16.mxu0 %v6214
    %6870 = vmatmul.mubr.bf16.gmra.mrb[0].mxu0 %v6194
    %v6871 = vpop.f32.mrb[0].mxu0
    %v6872 = vadd.f32 %v6331, %v6871
    %v6873 = vpop.f32.mrb[0].mxu0
    %v6874 = vpop.f32.mrb[0].mxu0
    %v6875 = vadd.f32 %v6331, %v6874
    %v6876 = vpop.f32.mrb[0].mxu0
    %6877 = vmatprep.mubr.bf16.mxu0 %v6220
    %6878 = vmatmul.mubr.bf16.gmra.mrb[0].mxu0 %v6200
    %v6879 = vpop.f32.mrb[0].mxu0
    %v6880 = vadd.f32 %v6331, %v6879
    %v6881 = vpop.f32.mrb[0].mxu0
    %v6882 = vpop.f32.mrb[0].mxu0
    %v6883 = vadd.f32 %v6331, %v6882
    %v6884 = vpop.f32.mrb[0].mxu0
    %6885 = vdwg.mxu0
    %6886 = vmatprep.subr.bf16.mxu0 0
    %6887 = vmatpush1.bf16.msra.mxu0 %v6549
    %6888 = vmatprep.subr.bf16.mxu0 0
    %6889 = vmatpush1.bf16.msra.mxu0 %v6550
    %6890 = vmatprep.subr.bf16.mxu0 0
    %6891 = vmatpush1.bf16.msra.mxu0 %v6551
    %6892 = vmatprep.subr.bf16.mxu0 0
    %6893 = vmatpush1.bf16.msra.mxu0 %v6552
    %6894 = vmatprep.subr.bf16.mxu0 0
    %6895 = vmatpush1.bf16.msra.mxu0 %v6553
    %6896 = vmatprep.subr.bf16.mxu0 0
    %6897 = vmatpush1.bf16.msra.mxu0 %v6554
    %6898 = vmatprep.subr.bf16.mxu0 0
    %6899 = vmatpush1.bf16.msra.mxu0 %v6555
    %6900 = vmatprep.subr.bf16.mxu0 0
    %6901 = vmatpush1.bf16.msra.mxu0 %v6556
    %6902 = vmatprep.subr.bf16.mxu0 0
    %6903 = vmatpush1.bf16.msra.mxu0 %v6557
    %6904 = vmatprep.subr.bf16.mxu0 0
    %6905 = vmatpush1.bf16.msra.mxu0 %v6558
    %6906 = vmatprep.subr.bf16.mxu0 0
    %6907 = vmatpush1.bf16.msra.mxu0 %v6559
    %6908 = vmatprep.subr.bf16.mxu0 0
    %6909 = vmatpush1.bf16.msra.mxu0 %v6560
    %6910 = vmatprep.subr.bf16.mxu0 0
    %6911 = vmatpush1.bf16.msra.mxu0 %v6561
    %6912 = vmatprep.subr.bf16.mxu0 0
    %6913 = vmatpush1.bf16.msra.mxu0 %v6562
    %6914 = vmatprep.subr.bf16.mxu0 0
    %6915 = vmatpush1.bf16.msra.mxu0 %v6563
    %6916 = vmatprep.subr.bf16.mxu0 0
    %6917 = vmatpush1.bf16.msra.mxu0 %v6564
    %6918 = vmatprep.mubr.bf16.mxu0 %v6101
    %6919 = vmatmul.mubr.bf16.gmra.mrb[0].mxu0 %v6100
    %v6920 = vpop.f32.mrb[0].mxu0
    %v6921 = vadd.f32 %v6728, %v6920
    %v6922 = vpop.f32.mrb[0].mxu0
    %v6923 = vpop.f32.mrb[0].mxu0
    %v6924 = vadd.f32 %v6731, %v6923
    %v6925 = vpop.f32.mrb[0].mxu0
    %6926 = vmatprep.mubr.bf16.mxu0 %v6108
    %6927 = vmatmul.mubr.bf16.gmra.mrb[0].mxu0 %v6107
    %v6928 = vpop.f32.mrb[0].mxu0
    %v6929 = vadd.f32 %v6736, %v6928
    %v6930 = vpop.f32.mrb[0].mxu0
    %v6931 = vpop.f32.mrb[0].mxu0
    %v6932 = vadd.f32 %v6739, %v6931
    %v6933 = vpop.f32.mrb[0].mxu0
    %6934 = vmatprep.mubr.bf16.mxu0 %v6115
    %6935 = vmatmul.mubr.bf16.gmra.mrb[0].mxu0 %v6114
    %v6936 = vpop.f32.mrb[0].mxu0
    %v6937 = vadd.f32 %v6744, %v6936
    %v6938 = vpop.f32.mrb[0].mxu0
    %v6939 = vpop.f32.mrb[0].mxu0
    %v6940 = vadd.f32 %v6747, %v6939
    %v6941 = vpop.f32.mrb[0].mxu0
    %6942 = vmatprep.mubr.bf16.mxu0 %v6122
    %6943 = vmatmul.mubr.bf16.gmra.mrb[0].mxu0 %v6121
    %v6944 = vpop.f32.mrb[0].mxu0
    %v6945 = vadd.f32 %v6752, %v6944
    %v6946 = vpop.f32.mrb[0].mxu0
    %v6947 = vpop.f32.mrb[0].mxu0
    %v6948 = vadd.f32 %v6755, %v6947
    %v6949 = vpop.f32.mrb[0].mxu0
    %6950 = vmatprep.mubr.bf16.mxu0 %v6128
    %6951 = vmatmul.mubr.bf16.gmra.mrb[0].mxu0 %v6127
    %v6952 = vpop.f32.mrb[0].mxu0
    %v6953 = vadd.f32 %v6760, %v6952
    %v6954 = vpop.f32.mrb[0].mxu0
    %v6955 = vpop.f32.mrb[0].mxu0
    %v6956 = vadd.f32 %v6763, %v6955
    %v6957 = vpop.f32.mrb[0].mxu0
    %6958 = vmatprep.mubr.bf16.mxu0 %v6134
    %6959 = vmatmul.mubr.bf16.gmra.mrb[0].mxu0 %v6133
    %v6960 = vpop.f32.mrb[0].mxu0
    %v6961 = vadd.f32 %v6768, %v6960
    %v6962 = vpop.f32.mrb[0].mxu0
    %v6963 = vpop.f32.mrb[0].mxu0
    %v6964 = vadd.f32 %v6771, %v6963
    %v6965 = vpop.f32.mrb[0].mxu0
    %6966 = vmatprep.mubr.bf16.mxu0 %v6140
    %6967 = vmatmul.mubr.bf16.gmra.mrb[0].mxu0 %v6139
    %v6968 = vpop.f32.mrb[0].mxu0
    %v6969 = vadd.f32 %v6776, %v6968
    %v6970 = vpop.f32.mrb[0].mxu0
    %v6971 = vpop.f32.mrb[0].mxu0
    %v6972 = vadd.f32 %v6779, %v6971
    %v6973 = vpop.f32.mrb[0].mxu0
    %6974 = vmatprep.mubr.bf16.mxu0 %v6146
    %6975 = vmatmul.mubr.bf16.gmra.mrb[0].mxu0 %v6145
    %v6976 = vpop.f32.mrb[0].mxu0
    %v6977 = vadd.f32 %v6784, %v6976
    %v6978 = vpop.f32.mrb[0].mxu0
    %v6979 = vpop.f32.mrb[0].mxu0
    %v6980 = vadd.f32 %v6787, %v6979
    %v6981 = vpop.f32.mrb[0].mxu0
    %6982 = vmatprep.mubr.bf16.mxu0 %v6152
    %6983 = vmatmul.mubr.bf16.gmra.mrb[0].mxu0 %v6151
    %v6984 = vpop.f32.mrb[0].mxu0
    %v6985 = vadd.f32 %v6792, %v6984
    %v6986 = vpop.f32.mrb[0].mxu0
    %v6987 = vpop.f32.mrb[0].mxu0
    %v6988 = vadd.f32 %v6795, %v6987
    %v6989 = vpop.f32.mrb[0].mxu0
    %6990 = vmatprep.mubr.bf16.mxu0 %v6158
    %6991 = vmatmul.mubr.bf16.gmra.mrb[0].mxu0 %v6157
    %v6992 = vpop.f32.mrb[0].mxu0
    %v6993 = vadd.f32 %v6800, %v6992
    %v6994 = vpop.f32.mrb[0].mxu0
    %v6995 = vpop.f32.mrb[0].mxu0
    %v6996 = vadd.f32 %v6803, %v6995
    %v6997 = vpop.f32.mrb[0].mxu0
    %6998 = vmatprep.mubr.bf16.mxu0 %v6165
    %6999 = vmatmul.mubr.bf16.gmra.mrb[0].mxu0 %v6164
    %v7000 = vpop.f32.mrb[0].mxu0
    %v7001 = vadd.f32 %v6808, %v7000
    %v7002 = vpop.f32.mrb[0].mxu0
    %v7003 = vpop.f32.mrb[0].mxu0
    %v7004 = vadd.f32 %v6811, %v7003
    %v7005 = vpop.f32.mrb[0].mxu0
    %7006 = vmatprep.mubr.bf16.mxu0 %v6172
    %7007 = vmatmul.mubr.bf16.gmra.mrb[0].mxu0 %v6171
    %v7008 = vpop.f32.mrb[0].mxu0
    %v7009 = vadd.f32 %v6816, %v7008
    %v7010 = vpop.f32.mrb[0].mxu0
    %v7011 = vpop.f32.mrb[0].mxu0
    %v7012 = vadd.f32 %v6819, %v7011
    %v7013 = vpop.f32.mrb[0].mxu0
    %7014 = vmatprep.mubr.bf16.mxu0 %v6179
    %7015 = vmatmul.mubr.bf16.gmra.mrb[0].mxu0 %v6178
    %v7016 = vpop.f32.mrb[0].mxu0
    %v7017 = vadd.f32 %v6824, %v7016
    %v7018 = vpop.f32.mrb[0].mxu0
    %v7019 = vpop.f32.mrb[0].mxu0
    %v7020 = vadd.f32 %v6827, %v7019
    %v7021 = vpop.f32.mrb[0].mxu0
    %7022 = vmatprep.mubr.bf16.mxu0 %v6186
    %7023 = vmatmul.mubr.bf16.gmra.mrb[0].mxu0 %v6185
    %v7024 = vpop.f32.mrb[0].mxu0
    %v7025 = vadd.f32 %v6832, %v7024
    %v7026 = vpop.f32.mrb[0].mxu0
    %v7027 = vpop.f32.mrb[0].mxu0
    %v7028 = vadd.f32 %v6835, %v7027
    %v7029 = vpop.f32.mrb[0].mxu0
    %7030 = vmatprep.mubr.bf16.mxu0 %v6192
    %7031 = vmatmul.mubr.bf16.gmra.mrb[0].mxu0 %v6191
    %v7032 = vpop.f32.mrb[0].mxu0
    %v7033 = vadd.f32 %v6840, %v7032
    %v7034 = vpop.f32.mrb[0].mxu0
    %v7035 = vpop.f32.mrb[0].mxu0
    %v7036 = vadd.f32 %v6843, %v7035
    %v7037 = vpop.f32.mrb[0].mxu0
    %7038 = vmatprep.mubr.bf16.mxu0 %v6198
    %7039 = vmatmul.mubr.bf16.gmra.mrb[0].mxu0 %v6197
    %v7040 = vpop.f32.mrb[0].mxu0
    %v7041 = vadd.f32 %v6848, %v7040
    %v7042 = vpop.f32.mrb[0].mxu0
    %v7043 = vpop.f32.mrb[0].mxu0
    %v7044 = vadd.f32 %v6851, %v7043
    %v7045 = vpop.f32.mrb[0].mxu0
    %7046 = vmatprep.mubr.bf16.mxu0 %v6204
    %7047 = vmatmul.mubr.bf16.gmra.mrb[0].mxu0 %v6203
    %v7048 = vpop.f32.mrb[0].mxu0
    %v7049 = vadd.f32 %v6856, %v7048
    %v7050 = vpop.f32.mrb[0].mxu0
    %v7051 = vpop.f32.mrb[0].mxu0
    %v7052 = vadd.f32 %v6859, %v7051
    %v7053 = vpop.f32.mrb[0].mxu0
    %7054 = vmatprep.mubr.bf16.mxu0 %v6210
    %7055 = vmatmul.mubr.bf16.gmra.mrb[0].mxu0 %v6209
    %v7056 = vpop.f32.mrb[0].mxu0
    %v7057 = vadd.f32 %v6864, %v7056
    %v7058 = vpop.f32.mrb[0].mxu0
    %v7059 = vpop.f32.mrb[0].mxu0
    %v7060 = vadd.f32 %v6867, %v7059
    %v7061 = vpop.f32.mrb[0].mxu0
    %7062 = vmatprep.mubr.bf16.mxu0 %v6216
    %7063 = vmatmul.mubr.bf16.gmra.mrb[0].mxu0 %v6215
    %v7064 = vpop.f32.mrb[0].mxu0
    %v7065 = vadd.f32 %v6872, %v7064
    %v7066 = vpop.f32.mrb[0].mxu0
    %v7067 = vpop.f32.mrb[0].mxu0
    %v7068 = vadd.f32 %v6875, %v7067
    %v7069 = vpop.f32.mrb[0].mxu0
    %7070 = vmatprep.mubr.bf16.mxu0 %v6222
    %7071 = vmatmul.mubr.bf16.gmra.mrb[0].mxu0 %v6221
    %v7072 = vpop.f32.mrb[0].mxu0
    %v7073 = vadd.f32 %v6880, %v7072
    %v7074 = vpop.f32.mrb[0].mxu0
    %v7075 = vpop.f32.mrb[0].mxu0
    %v7076 = vadd.f32 %v6883, %v7075
    %v7077 = vpop.f32.mrb[0].mxu0
    %7078 = vdwg.mxu0
    %7079 = vmatprep.subr.bf16.mxu0 0
    %7080 = vmatpush1.bf16.msra.mxu0 %v6565
    %7081 = vmatprep.subr.bf16.mxu0 0
    %7082 = vmatpush1.bf16.msra.mxu0 %v6566
    %7083 = vmatprep.subr.bf16.mxu0 0
    %7084 = vmatpush1.bf16.msra.mxu0 %v6567
    %7085 = vmatprep.subr.bf16.mxu0 0
    %7086 = vmatpush1.bf16.msra.mxu0 %v6568
    %7087 = vmatprep.subr.bf16.mxu0 0
    %7088 = vmatpush1.bf16.msra.mxu0 %v6569
    %7089 = vmatprep.subr.bf16.mxu0 0
    %7090 = vmatpush1.bf16.msra.mxu0 %v6570
    %7091 = vmatprep.subr.bf16.mxu0 0
    %7092 = vmatpush1.bf16.msra.mxu0 %v6571
    %7093 = vmatprep.subr.bf16.mxu0 0
    %7094 = vmatpush1.bf16.msra.mxu0 %v6572
    %7095 = vmatprep.subr.bf16.mxu0 0
    %7096 = vmatpush1.bf16.msra.mxu0 %v6573
    %7097 = vmatprep.subr.bf16.mxu0 0
    %7098 = vmatpush1.bf16.msra.mxu0 %v6574
    %7099 = vmatprep.subr.bf16.mxu0 0
    %7100 = vmatpush1.bf16.msra.mxu0 %v6575
    %7101 = vmatprep.subr.bf16.mxu0 0
    %7102 = vmatpush1.bf16.msra.mxu0 %v6576
    %7103 = vmatprep.subr.bf16.mxu0 0
    %7104 = vmatpush1.bf16.msra.mxu0 %v6577
    %7105 = vmatprep.subr.bf16.mxu0 0
    %7106 = vmatpush1.bf16.msra.mxu0 %v6578
    %7107 = vmatprep.subr.bf16.mxu0 0
    %7108 = vmatpush1.bf16.msra.mxu0 %v6579
    %7109 = vmatprep.subr.bf16.mxu0 0
    %7110 = vmatpush1.bf16.msra.mxu0 %v6580
    %7111 = vmatprep.mubr.bf16.mxu0 %v6103
    %7112 = vmatmul.mubr.bf16.gmra.mrb[0].mxu0 %v6102
    %v7113 = vpop.f32.mrb[0].mxu0
    %v7114 = vadd.f32 %v6921, %v7113
    %v7115 = vpop.f32.mrb[0].mxu0
    %v7116 = vpop.f32.mrb[0].mxu0
    %v7117 = vadd.f32 %v6924, %v7116
    %v7118 = vpop.f32.mrb[0].mxu0
    %7119 = vmatprep.mubr.bf16.mxu0 %v6110
    %7120 = vmatmul.mubr.bf16.gmra.mrb[0].mxu0 %v6109
    %v7121 = vpop.f32.mrb[0].mxu0
    %v7122 = vadd.f32 %v6929, %v7121
    %v7123 = vpop.f32.mrb[0].mxu0
    %v7124 = vpop.f32.mrb[0].mxu0
    %v7125 = vadd.f32 %v6932, %v7124
    %v7126 = vpop.f32.mrb[0].mxu0
    %7127 = vmatprep.mubr.bf16.mxu0 %v6117
    %7128 = vmatmul.mubr.bf16.gmra.mrb[0].mxu0 %v6116
    %v7129 = vpop.f32.mrb[0].mxu0
    %v7130 = vadd.f32 %v6937, %v7129
    %v7131 = vpop.f32.mrb[0].mxu0
    %v7132 = vpop.f32.mrb[0].mxu0
    %v7133 = vadd.f32 %v6940, %v7132
    %v7134 = vpop.f32.mrb[0].mxu0
    %7135 = vmatprep.mubr.bf16.mxu0 %v6124
    %7136 = vmatmul.mubr.bf16.gmra.mrb[0].mxu0 %v6123
    %v7137 = vpop.f32.mrb[0].mxu0
    %v7138 = vadd.f32 %v6945, %v7137
    %v7139 = vpop.f32.mrb[0].mxu0
    %v7140 = vpop.f32.mrb[0].mxu0
    %v7141 = vadd.f32 %v6948, %v7140
    %v7142 = vpop.f32.mrb[0].mxu0
    %7143 = vmatprep.mubr.bf16.mxu0 %v6130
    %7144 = vmatmul.mubr.bf16.gmra.mrb[0].mxu0 %v6129
    %v7145 = vpop.f32.mrb[0].mxu0
    %v7146 = vadd.f32 %v6953, %v7145
    %v7147 = vpop.f32.mrb[0].mxu0
    %v7148 = vpop.f32.mrb[0].mxu0
    %v7149 = vadd.f32 %v6956, %v7148
    %v7150 = vpop.f32.mrb[0].mxu0
    %7151 = vmatprep.mubr.bf16.mxu0 %v6136
    %7152 = vmatmul.mubr.bf16.gmra.mrb[0].mxu0 %v6135
    %v7153 = vpop.f32.mrb[0].mxu0
    %v7154 = vadd.f32 %v6961, %v7153
    %v7155 = vpop.f32.mrb[0].mxu0
    %v7156 = vpop.f32.mrb[0].mxu0
    %v7157 = vadd.f32 %v6964, %v7156
    %v7158 = vpop.f32.mrb[0].mxu0
    %7159 = vmatprep.mubr.bf16.mxu0 %v6142
    %7160 = vmatmul.mubr.bf16.gmra.mrb[0].mxu0 %v6141
    %v7161 = vpop.f32.mrb[0].mxu0
    %v7162 = vadd.f32 %v6969, %v7161
    %v7163 = vpop.f32.mrb[0].mxu0
    %v7164 = vpop.f32.mrb[0].mxu0
    %v7165 = vadd.f32 %v6972, %v7164
    %v7166 = vpop.f32.mrb[0].mxu0
    %7167 = vmatprep.mubr.bf16.mxu0 %v6148
    %7168 = vmatmul.mubr.bf16.gmra.mrb[0].mxu0 %v6147
    %v7169 = vpop.f32.mrb[0].mxu0
    %v7170 = vadd.f32 %v6977, %v7169
    %v7171 = vpop.f32.mrb[0].mxu0
    %v7172 = vpop.f32.mrb[0].mxu0
    %v7173 = vadd.f32 %v6980, %v7172
    %v7174 = vpop.f32.mrb[0].mxu0
    %7175 = vmatprep.mubr.bf16.mxu0 %v6154
    %7176 = vmatmul.mubr.bf16.gmra.mrb[0].mxu0 %v6153
    %v7177 = vpop.f32.mrb[0].mxu0
    %v7178 = vadd.f32 %v6985, %v7177
    %v7179 = vpop.f32.mrb[0].mxu0
    %v7180 = vpop.f32.mrb[0].mxu0
    %v7181 = vadd.f32 %v6988, %v7180
    %v7182 = vpop.f32.mrb[0].mxu0
    %7183 = vmatprep.mubr.bf16.mxu0 %v6160
    %7184 = vmatmul.mubr.bf16.gmra.mrb[0].mxu0 %v6159
    %v7185 = vpop.f32.mrb[0].mxu0
    %v7186 = vadd.f32 %v6993, %v7185
    %v7187 = vpop.f32.mrb[0].mxu0
    %v7188 = vpop.f32.mrb[0].mxu0
    %v7189 = vadd.f32 %v6996, %v7188
    %v7190 = vpop.f32.mrb[0].mxu0
    %7191 = vmatprep.mubr.bf16.mxu0 %v6167
    %7192 = vmatmul.mubr.bf16.gmra.mrb[0].mxu0 %v6166
    %v7193 = vpop.f32.mrb[0].mxu0
    %v7194 = vadd.f32 %v7001, %v7193
    %v7195 = vpop.f32.mrb[0].mxu0
    %v7196 = vpop.f32.mrb[0].mxu0
    %v7197 = vadd.f32 %v7004, %v7196
    %v7198 = vpop.f32.mrb[0].mxu0
    %7199 = vmatprep.mubr.bf16.mxu0 %v6174
    %7200 = vmatmul.mubr.bf16.gmra.mrb[0].mxu0 %v6173
    %v7201 = vpop.f32.mrb[0].mxu0
    %v7202 = vadd.f32 %v7009, %v7201
    %v7203 = vpop.f32.mrb[0].mxu0
    %v7204 = vpop.f32.mrb[0].mxu0
    %v7205 = vadd.f32 %v7012, %v7204
    %v7206 = vpop.f32.mrb[0].mxu0
    %7207 = vmatprep.mubr.bf16.mxu0 %v6181
    %7208 = vmatmul.mubr.bf16.gmra.mrb[0].mxu0 %v6180
    %v7209 = vpop.f32.mrb[0].mxu0
    %v7210 = vadd.f32 %v7017, %v7209
    %v7211 = vpop.f32.mrb[0].mxu0
    %v7212 = vpop.f32.mrb[0].mxu0
    %v7213 = vadd.f32 %v7020, %v7212
    %v7214 = vpop.f32.mrb[0].mxu0
    %7215 = vmatprep.mubr.bf16.mxu0 %v6188
    %7216 = vmatmul.mubr.bf16.gmra.mrb[0].mxu0 %v6187
    %v7217 = vpop.f32.mrb[0].mxu0
    %v7218 = vadd.f32 %v7025, %v7217
    %v7219 = vpop.f32.mrb[0].mxu0
    %v7220 = vpop.f32.mrb[0].mxu0
    %v7221 = vadd.f32 %v7028, %v7220
    %v7222 = vpop.f32.mrb[0].mxu0
    %7223 = vmatprep.mubr.bf16.mxu0 %v6194
    %7224 = vmatmul.mubr.bf16.gmra.mrb[0].mxu0 %v6193
    %v7225 = vpop.f32.mrb[0].mxu0
    %v7226 = vadd.f32 %v7033, %v7225
    %v7227 = vpop.f32.mrb[0].mxu0
    %v7228 = vpop.f32.mrb[0].mxu0
    %v7229 = vadd.f32 %v7036, %v7228
    %v7230 = vpop.f32.mrb[0].mxu0
    %7231 = vmatprep.mubr.bf16.mxu0 %v6200
    %7232 = vmatmul.mubr.bf16.gmra.mrb[0].mxu0 %v6199
    %v7233 = vpop.f32.mrb[0].mxu0
    %v7234 = vadd.f32 %v7041, %v7233
    %v7235 = vpop.f32.mrb[0].mxu0
    %v7236 = vpop.f32.mrb[0].mxu0
    %v7237 = vadd.f32 %v7044, %v7236
    %v7238 = vpop.f32.mrb[0].mxu0
    %7239 = vmatprep.mubr.bf16.mxu0 %v6206
    %7240 = vmatmul.mubr.bf16.gmra.mrb[0].mxu0 %v6205
    %v7241 = vpop.f32.mrb[0].mxu0
    %v7242 = vadd.f32 %v7049, %v7241
    %v7243 = vpop.f32.mrb[0].mxu0
    %v7244 = vpop.f32.mrb[0].mxu0
    %v7245 = vadd.f32 %v7052, %v7244
    %v7246 = vpop.f32.mrb[0].mxu0
    %7247 = vmatprep.mubr.bf16.mxu0 %v6212
    %7248 = vmatmul.mubr.bf16.gmra.mrb[0].mxu0 %v6211
    %v7249 = vpop.f32.mrb[0].mxu0
    %v7250 = vadd.f32 %v7057, %v7249
    %v7251 = vpop.f32.mrb[0].mxu0
    %v7252 = vpop.f32.mrb[0].mxu0
    %v7253 = vadd.f32 %v7060, %v7252
    %v7254 = vpop.f32.mrb[0].mxu0
    %7255 = vmatprep.mubr.bf16.mxu0 %v6218
    %7256 = vmatmul.mubr.bf16.gmra.mrb[0].mxu0 %v6217
    %v7257 = vpop.f32.mrb[0].mxu0
    %v7258 = vadd.f32 %v7065, %v7257
    %v7259 = vpop.f32.mrb[0].mxu0
    %v7260 = vpop.f32.mrb[0].mxu0
    %v7261 = vadd.f32 %v7068, %v7260
    %v7262 = vpop.f32.mrb[0].mxu0
    %7263 = vmatprep.mubr.bf16.mxu0 %v6224
    %7264 = vmatmul.mubr.bf16.gmra.mrb[0].mxu0 %v6223
    %v7265 = vpop.f32.mrb[0].mxu0
    %v7266 = vadd.f32 %v7073, %v7265
    %v7267 = vpop.f32.mrb[0].mxu0
    %v7268 = vpop.f32.mrb[0].mxu0
    %v7269 = vadd.f32 %v7076, %v7268
    %v7270 = vpop.f32.mrb[0].mxu0
    %7271 = vdwg.mxu0
    %7272 = vmatprep.subr.bf16.mxu0 0
    %7273 = vmatpush1.bf16.msra.mxu0 %v6581
    %7274 = vmatprep.subr.bf16.mxu0 0
    %7275 = vmatpush1.bf16.msra.mxu0 %v6582
    %7276 = vmatprep.subr.bf16.mxu0 0
    %7277 = vmatpush1.bf16.msra.mxu0 0
    %7278 = vmatprep.subr.bf16.mxu0 0
    %7279 = vmatpush1.bf16.msra.mxu0 0
    %7280 = vmatprep.subr.bf16.mxu0 0
    %7281 = vmatpush1.bf16.msra.mxu0 0
    %7282 = vmatprep.subr.bf16.mxu0 0
    %7283 = vmatpush1.bf16.msra.mxu0 0
    %7284 = vmatprep.subr.bf16.mxu0 0
    %7285 = vmatpush1.bf16.msra.mxu0 0
    %7286 = vmatprep.subr.bf16.mxu0 0
    %7287 = vmatpush1.bf16.msra.mxu0 0
    %7288 = vmatprep.subr.bf16.mxu0 0
    %7289 = vmatpush1.bf16.msra.mxu0 0
    %7290 = vmatprep.subr.bf16.mxu0 0
    %7291 = vmatpush1.bf16.msra.mxu0 0
    %7292 = vmatprep.subr.bf16.mxu0 0
    %7293 = vmatpush1.bf16.msra.mxu0 0
    %7294 = vmatprep.subr.bf16.mxu0 0
    %7295 = vmatpush1.bf16.msra.mxu0 0
    %7296 = vmatprep.subr.bf16.mxu0 0
    %7297 = vmatpush1.bf16.msra.mxu0 0
    %7298 = vmatprep.subr.bf16.mxu0 0
    %7299 = vmatpush1.bf16.msra.mxu0 0
    %7300 = vmatprep.subr.bf16.mxu0 0
    %7301 = vmatpush1.bf16.msra.mxu0 0
    %7302 = vmatprep.subr.bf16.mxu0 0
    %7303 = vmatpush1.bf16.msra.mxu0 0
    %7304 = vmatprep.mubr.bf16.mxu0 0
    %7305 = vmatmul.mubr.bf16.gmra.mrb[0].mxu0 %v6634
    %v7306 = vpop.f32.mrb[0].mxu0
    %v7307 = vadd.f32 %v7114, %v7306
    %v7308 = vpop.f32.mrb[0].mxu0
    %v7309 = vpop.f32.mrb[0].mxu0
    %v7310 = vadd.f32 %v7117, %v7309
    %v7311 = vpop.f32.mrb[0].mxu0
    %7312 = vmatprep.mubr.bf16.mxu0 0
    %7313 = vmatmul.mubr.bf16.gmra.mrb[0].mxu0 %v6637
    %v7314 = vpop.f32.mrb[0].mxu0
    %v7315 = vadd.f32 %v7122, %v7314
    %v7316 = vpop.f32.mrb[0].mxu0
    %v7317 = vpop.f32.mrb[0].mxu0
    %v7318 = vadd.f32 %v7125, %v7317
    %v7319 = vpop.f32.mrb[0].mxu0
    %7320 = vmatprep.mubr.bf16.mxu0 0
    %7321 = vmatmul.mubr.bf16.gmra.mrb[0].mxu0 %v6640
    %v7322 = vpop.f32.mrb[0].mxu0
    %v7323 = vadd.f32 %v7130, %v7322
    %v7324 = vpop.f32.mrb[0].mxu0
    %v7325 = vpop.f32.mrb[0].mxu0
    %v7326 = vadd.f32 %v7133, %v7325
    %v7327 = vpop.f32.mrb[0].mxu0
    %7328 = vmatprep.mubr.bf16.mxu0 0
    %7329 = vmatmul.mubr.bf16.gmra.mrb[0].mxu0 %v6643
    %v7330 = vpop.f32.mrb[0].mxu0
    %v7331 = vadd.f32 %v7138, %v7330
    %v7332 = vpop.f32.mrb[0].mxu0
    %v7333 = vpop.f32.mrb[0].mxu0
    %v7334 = vadd.f32 %v7141, %v7333
    %v7335 = vpop.f32.mrb[0].mxu0
    %7336 = vmatprep.mubr.bf16.mxu0 0
    %7337 = vmatmul.mubr.bf16.gmra.mrb[0].mxu0 %v6646
    %v7338 = vpop.f32.mrb[0].mxu0
    %v7339 = vadd.f32 %v7146, %v7338
    %v7340 = vpop.f32.mrb[0].mxu0
    %v7341 = vpop.f32.mrb[0].mxu0
    %v7342 = vadd.f32 %v7149, %v7341
    %v7343 = vpop.f32.mrb[0].mxu0
    %7344 = vmatprep.mubr.bf16.mxu0 0
    %7345 = vmatmul.mubr.bf16.gmra.mrb[0].mxu0 %v6649
    %v7346 = vpop.f32.mrb[0].mxu0
    %v7347 = vadd.f32 %v7154, %v7346
    %v7348 = vpop.f32.mrb[0].mxu0
    %v7349 = vpop.f32.mrb[0].mxu0
    %v7350 = vadd.f32 %v7157, %v7349
    %v7351 = vpop.f32.mrb[0].mxu0
    %7352 = vmatprep.mubr.bf16.mxu0 0
    %7353 = vmatmul.mubr.bf16.gmra.mrb[0].mxu0 %v6652
    %v7354 = vpop.f32.mrb[0].mxu0
    %v7355 = vadd.f32 %v7162, %v7354
    %v7356 = vpop.f32.mrb[0].mxu0
    %v7357 = vpop.f32.mrb[0].mxu0
    %v7358 = vadd.f32 %v7165, %v7357
    %v7359 = vpop.f32.mrb[0].mxu0
    %7360 = vmatprep.mubr.bf16.mxu0 0
    %7361 = vmatmul.mubr.bf16.gmra.mrb[0].mxu0 %v6655
    %v7362 = vpop.f32.mrb[0].mxu0
    %v7363 = vadd.f32 %v7170, %v7362
    %v7364 = vpop.f32.mrb[0].mxu0
    %v7365 = vpop.f32.mrb[0].mxu0
    %v7366 = vadd.f32 %v7173, %v7365
    %v7367 = vpop.f32.mrb[0].mxu0
    %7368 = vmatprep.mubr.bf16.mxu0 0
    %7369 = vmatmul.mubr.bf16.gmra.mrb[0].mxu0 %v6658
    %v7370 = vpop.f32.mrb[0].mxu0
    %v7371 = vadd.f32 %v7178, %v7370
    %v7372 = vpop.f32.mrb[0].mxu0
    %v7373 = vpop.f32.mrb[0].mxu0
    %v7374 = vadd.f32 %v7181, %v7373
    %v7375 = vpop.f32.mrb[0].mxu0
    %7376 = vmatprep.mubr.bf16.mxu0 0
    %7377 = vmatmul.mubr.bf16.gmra.mrb[0].mxu0 %v6661
    %v7378 = vpop.f32.mrb[0].mxu0
    %v7379 = vadd.f32 %v7186, %v7378
    %v7380 = vpop.f32.mrb[0].mxu0
    %v7381 = vpop.f32.mrb[0].mxu0
    %v7382 = vadd.f32 %v7189, %v7381
    %v7383 = vpop.f32.mrb[0].mxu0
    %7384 = vmatprep.mubr.bf16.mxu0 0
    %7385 = vmatmul.mubr.bf16.gmra.mrb[0].mxu0 %v6664
    %v7386 = vpop.f32.mrb[0].mxu0
    %v7387 = vadd.f32 %v7194, %v7386
    %v7388 = vpop.f32.mrb[0].mxu0
    %v7389 = vpop.f32.mrb[0].mxu0
    %v7390 = vadd.f32 %v7197, %v7389
    %v7391 = vpop.f32.mrb[0].mxu0
    %7392 = vmatprep.mubr.bf16.mxu0 0
    %7393 = vmatmul.mubr.bf16.gmra.mrb[0].mxu0 %v6667
    %v7394 = vpop.f32.mrb[0].mxu0
    %v7395 = vadd.f32 %v7202, %v7394
    %v7396 = vpop.f32.mrb[0].mxu0
    %v7397 = vpop.f32.mrb[0].mxu0
    %v7398 = vadd.f32 %v7205, %v7397
    %v7399 = vpop.f32.mrb[0].mxu0
    %7400 = vmatprep.mubr.bf16.mxu0 0
    %7401 = vmatmul.mubr.bf16.gmra.mrb[0].mxu0 %v6670
    %v7402 = vpop.f32.mrb[0].mxu0
    %v7403 = vadd.f32 %v7210, %v7402
    %v7404 = vpop.f32.mrb[0].mxu0
    %v7405 = vpop.f32.mrb[0].mxu0
    %v7406 = vadd.f32 %v7213, %v7405
    %v7407 = vpop.f32.mrb[0].mxu0
    %7408 = vmatprep.mubr.bf16.mxu0 0
    %7409 = vmatmul.mubr.bf16.gmra.mrb[0].mxu0 %v6673
    %v7410 = vpop.f32.mrb[0].mxu0
    %v7411 = vadd.f32 %v7218, %v7410
    %v7412 = vpop.f32.mrb[0].mxu0
    %v7413 = vpop.f32.mrb[0].mxu0
    %v7414 = vadd.f32 %v7221, %v7413
    %v7415 = vpop.f32.mrb[0].mxu0
    %7416 = vmatprep.mubr.bf16.mxu0 0
    %7417 = vmatmul.mubr.bf16.gmra.mrb[0].mxu0 %v6676
    %v7418 = vpop.f32.mrb[0].mxu0
    %v7419 = vadd.f32 %v7226, %v7418
    %v7420 = vpop.f32.mrb[0].mxu0
    %v7421 = vpop.f32.mrb[0].mxu0
    %v7422 = vadd.f32 %v7229, %v7421
    %v7423 = vpop.f32.mrb[0].mxu0
    %7424 = vmatprep.mubr.bf16.mxu0 0
    %7425 = vmatmul.mubr.bf16.gmra.mrb[0].mxu0 %v6679
    %v7426 = vpop.f32.mrb[0].mxu0
    %v7427 = vadd.f32 %v7234, %v7426
    %v7428 = vpop.f32.mrb[0].mxu0
    %v7429 = vpop.f32.mrb[0].mxu0
    %v7430 = vadd.f32 %v7237, %v7429
    %v7431 = vpop.f32.mrb[0].mxu0
    %7432 = vmatprep.mubr.bf16.mxu0 0
    %7433 = vmatmul.mubr.bf16.gmra.mrb[0].mxu0 %v6682
    %v7434 = vpop.f32.mrb[0].mxu0
    %v7435 = vadd.f32 %v7242, %v7434
    %v7436 = vpop.f32.mrb[0].mxu0
    %v7437 = vpop.f32.mrb[0].mxu0
    %v7438 = vadd.f32 %v7245, %v7437
    %v7439 = vpop.f32.mrb[0].mxu0
    %7440 = vmatprep.mubr.bf16.mxu0 0
    %7441 = vmatmul.mubr.bf16.gmra.mrb[0].mxu0 %v6685
    %v7442 = vpop.f32.mrb[0].mxu0
    %v7443 = vadd.f32 %v7250, %v7442
    %v7444 = vpop.f32.mrb[0].mxu0
    %v7445 = vpop.f32.mrb[0].mxu0
    %v7446 = vadd.f32 %v7253, %v7445
    %v7447 = vpop.f32.mrb[0].mxu0
    %7448 = vmatprep.mubr.bf16.mxu0 0
    %7449 = vmatmul.mubr.bf16.gmra.mrb[0].mxu0 %v6688
    %v7450 = vpop.f32.mrb[0].mxu0
    %v7451 = vadd.f32 %v7258, %v7450
    %v7452 = vpop.f32.mrb[0].mxu0
    %v7453 = vpop.f32.mrb[0].mxu0
    %v7454 = vadd.f32 %v7261, %v7453
    %v7455 = vpop.f32.mrb[0].mxu0
    %7456 = vmatprep.mubr.bf16.mxu0 0
    %7457 = vmatmul.mubr.bf16.gmra.mrb[0].mxu0 %v6691
    %v7458 = vpop.f32.mrb[0].mxu0
    %v7459 = vadd.f32 %v7266, %v7458
    %v7460 = vpop.f32.mrb[0].mxu0
    %v7461 = vpop.f32.mrb[0].mxu0
    %v7462 = vadd.f32 %v7269, %v7461
    %v7463 = vpop.f32.mrb[0].mxu0
    %7464 = vdwg.mxu0
    %v7465 = vmax.f32 %v7307, 0.0
    %v7466 = vmax.f32 %v7310, 0.0
    %v7467 = vmax.f32 %v7315, 0.0
    %v7468 = vmax.f32 %v7318, 0.0
    %v7469 = vmax.f32 %v7323, 0.0
    %v7470 = vmax.f32 %v7326, 0.0
    %v7471 = vmax.f32 %v7331, 0.0
    %v7472 = vmax.f32 %v7334, 0.0
    %v7473 = vmax.f32 %v7339, 0.0
    %v7474 = vmax.f32 %v7342, 0.0
    %v7475 = vmax.f32 %v7347, 0.0
    %v7476 = vmax.f32 %v7350, 0.0
    %v7477 = vmax.f32 %v7355, 0.0
    %v7478 = vmax.f32 %v7358, 0.0
    %v7479 = vmax.f32 %v7363, 0.0
    %v7480 = vmax.f32 %v7366, 0.0
    %v7481 = vmax.f32 %v7371, 0.0
    %v7482 = vmax.f32 %v7374, 0.0
    %v7483 = vmax.f32 %v7379, 0.0
    %v7484 = vmax.f32 %v7382, 0.0
    %v7485 = vmax.f32 %v7387, 0.0
    %v7486 = vmax.f32 %v7390, 0.0
    %v7487 = vmax.f32 %v7395, 0.0
    %v7488 = vmax.f32 %v7398, 0.0
    %v7489 = vmax.f32 %v7403, 0.0
    %v7490 = vmax.f32 %v7406, 0.0
    %v7491 = vmax.f32 %v7411, 0.0
    %v7492 = vmax.f32 %v7414, 0.0
    %v7493 = vmax.f32 %v7419, 0.0
    %v7494 = vmax.f32 %v7422, 0.0
    %v7495 = vmax.f32 %v7427, 0.0
    %v7496 = vmax.f32 %v7430, 0.0
    %v7497 = vmax.f32 %v7435, 0.0
    %v7498 = vmax.f32 %v7438, 0.0
    %v7499 = vmax.f32 %v7443, 0.0
    %v7500 = vmax.f32 %v7446, 0.0
    %v7501 = vmax.f32 %v7451, 0.0
    %v7502 = vmax.f32 %v7454, 0.0
    %v7503 = vmax.f32 %v7459, 0.0
    %v7504 = vmax.f32 %v7462, 0.0
    %v7505 = vmax.f32 %v7465, %v7467
    %v7506 = vmax.f32 %v7466, %v7468
    %v7507 = vmax.f32 %v7469, %v7471
    %v7508 = vmax.f32 %v7470, %v7472
    %v7509 = vmax.f32 %v7473, %v7475
    %v7510 = vmax.f32 %v7474, %v7476
    %v7511 = vmax.f32 %v7477, %v7479
    %v7512 = vmax.f32 %v7478, %v7480
    %v7513 = vmax.f32 %v7481, %v7483
    %v7514 = vmax.f32 %v7482, %v7484
    %v7515 = vmax.f32 %v7485, %v7487
    %v7516 = vmax.f32 %v7486, %v7488
    %v7517 = vmax.f32 %v7489, %v7491
    %v7518 = vmax.f32 %v7490, %v7492
    %v7519 = vmax.f32 %v7493, %v7495
    %v7520 = vmax.f32 %v7494, %v7496
    %v7521 = vmax.f32 %v7497, %v7499
    %v7522 = vmax.f32 %v7498, %v7500
    %v7523 = vmax.f32 %v7501, %v7503
    %v7524 = vmax.f32 %v7502, %v7504
    %v7535 = vrot.slane %v7505, 1
    %v7536 = vrot.slane %v7507, 1
    %v7537 = vrot.slane %v7509, 1
    %v7538 = vrot.slane %v7511, 1
    %v7539 = vrot.slane %v7513, 1
    %v7540 = vrot.slane %v7515, 1
    %v7541 = vrot.slane %v7517, 1
    %v7542 = vrot.slane %v7519, 1
    %v7543 = vrot.slane %v7521, 1
    %v7544 = vrot.slane %v7523, 1
    %v7555 = vmax.f32 %v7505, %v7535
    %v7556 = vmax.f32 %v7507, %v7536
    %v7557 = vmax.f32 %v7509, %v7537
    %v7558 = vmax.f32 %v7511, %v7538
    %v7559 = vmax.f32 %v7513, %v7539
    %v7560 = vmax.f32 %v7515, %v7540
    %v7561 = vmax.f32 %v7517, %v7541
    %v7562 = vmax.f32 %v7519, %v7542
    %v7563 = vmax.f32 %v7521, %v7543
    %v7564 = vmax.f32 %v7523, %v7544
    %v7575 = vrot.slane %v7506, 1
    %v7576 = vrot.slane %v7508, 1
    %v7577 = vrot.slane %v7510, 1
    %v7578 = vrot.slane %v7512, 1
    %v7579 = vrot.slane %v7514, 1
    %v7580 = vrot.slane %v7516, 1
    %v7581 = vrot.slane %v7518, 1
    %v7582 = vrot.slane %v7520, 1
    %v7583 = vrot.slane %v7522, 1
    %v7584 = vrot.slane %v7524, 1
    %v7595 = vmax.f32 %v7506, %v7575
    %v7596 = vmax.f32 %v7508, %v7576
    %v7597 = vmax.f32 %v7510, %v7577
    %v7598 = vmax.f32 %v7512, %v7578
    %v7599 = vmax.f32 %v7514, %v7579
    %v7600 = vmax.f32 %v7516, %v7580
    %v7601 = vmax.f32 %v7518, %v7581
    %v7602 = vmax.f32 %v7520, %v7582
    %v7603 = vmax.f32 %v7522, %v7583
    %v7604 = vmax.f32 %v7524, %v7584
    %v7615 = vrot.slane %v7555, 1
    %v7616 = vrot.slane %v7556, 1
    %v7617 = vrot.slane %v7557, 1
    %v7618 = vrot.slane %v7558, 1
    %v7619 = vrot.slane %v7559, 1
    %v7620 = vrot.slane %v7560, 1
    %v7621 = vrot.slane %v7561, 1
    %v7622 = vrot.slane %v7562, 1
    %v7623 = vrot.slane %v7563, 1
    %v7624 = vrot.slane %v7564, 1
    %v7635 = vrot.slane %v7555, 2
    %v7636 = vrot.slane %v7556, 2
    %v7637 = vrot.slane %v7557, 2
    %v7638 = vrot.slane %v7558, 2
    %v7639 = vrot.slane %v7559, 2
    %v7640 = vrot.slane %v7560, 2
    %v7641 = vrot.slane %v7561, 2
    %v7642 = vrot.slane %v7562, 2
    %v7643 = vrot.slane %v7563, 2
    %v7644 = vrot.slane %v7564, 2
    %v7655 = vrot.slane %v7555, 3
    %v7656 = vrot.slane %v7556, 3
    %v7657 = vrot.slane %v7557, 3
    %v7658 = vrot.slane %v7558, 3
    %v7659 = vrot.slane %v7559, 3
    %v7660 = vrot.slane %v7560, 3
    %v7661 = vrot.slane %v7561, 3
    %v7662 = vrot.slane %v7562, 3
    %v7663 = vrot.slane %v7563, 3
    %v7664 = vrot.slane %v7564, 3
    %v7685 = vrot.slane %v7595, 4
    %v7686 = vrot.slane %v7596, 4
    %v7687 = vrot.slane %v7597, 4
    %v7688 = vrot.slane %v7598, 4
    %v7689 = vrot.slane %v7599, 4
    %v7690 = vrot.slane %v7600, 4
    %v7691 = vrot.slane %v7601, 4
    %v7692 = vrot.slane %v7602, 4
    %v7693 = vrot.slane %v7603, 4
    %v7694 = vrot.slane %v7604, 4
    %vm7705 = vcmask 1040384
    %v7706 = vsel %vm7705, %v7555, %v7615
    %v7707 = vsel %vm7705, %v7556, %v7616
    %v7708 = vsel %vm7705, %v7557, %v7617
    %v7709 = vsel %vm7705, %v7558, %v7618
    %v7710 = vsel %vm7705, %v7559, %v7619
    %v7711 = vsel %vm7705, %v7560, %v7620
    %v7712 = vsel %vm7705, %v7561, %v7621
    %v7713 = vsel %vm7705, %v7562, %v7622
    %v7714 = vsel %vm7705, %v7563, %v7623
    %v7715 = vsel %vm7705, %v7564, %v7624
    %vm7716 = vcmask 1041408
    %v7717 = vsel %vm7716, %v7706, %v7635
    %v7718 = vsel %vm7716, %v7707, %v7636
    %v7719 = vsel %vm7716, %v7708, %v7637
    %v7720 = vsel %vm7716, %v7709, %v7638
    %v7721 = vsel %vm7716, %v7710, %v7639
    %v7722 = vsel %vm7716, %v7711, %v7640
    %v7723 = vsel %vm7716, %v7712, %v7641
    %v7724 = vsel %vm7716, %v7713, %v7642
    %v7725 = vsel %vm7716, %v7714, %v7643
    %v7726 = vsel %vm7716, %v7715, %v7644
    %vm7727 = vcmask 1042432
    %v7728 = vsel %vm7727, %v7717, %v7655
    %v7729 = vsel %vm7727, %v7718, %v7656
    %v7730 = vsel %vm7727, %v7719, %v7657
    %v7731 = vsel %vm7727, %v7720, %v7658
    %v7732 = vsel %vm7727, %v7721, %v7659
    %v7733 = vsel %vm7727, %v7722, %v7660
    %v7734 = vsel %vm7727, %v7723, %v7661
    %v7735 = vsel %vm7727, %v7724, %v7662
    %v7736 = vsel %vm7727, %v7725, %v7663
    %v7737 = vsel %vm7727, %v7726, %v7664
    %v7738 = vsel %vm2978, %v7728, %v7685
    %v7739 = vsel %vm2978, %v7729, %v7686
    %v7740 = vsel %vm2978, %v7730, %v7687
    %v7741 = vsel %vm2978, %v7731, %v7688
    %v7742 = vsel %vm2978, %v7732, %v7689
    %v7743 = vsel %vm2978, %v7733, %v7690
    %v7744 = vsel %vm2978, %v7734, %v7691
    %v7745 = vsel %vm2978, %v7735, %v7692
    %v7746 = vsel %vm2978, %v7736, %v7693
    %v7747 = vsel %vm2978, %v7737, %v7694
    %7748 = vst [vmem:[#allocation11] sm:$0x1f] %v7738
    %7749 = vst [vmem:[#allocation11 + $0x8] sm:$0x1f] %v7739
    %7750 = vst [vmem:[#allocation11 + $0x10] sm:$0x1f] %v7740
    %7751 = vst [vmem:[#allocation11 + $0x18] sm:$0x1f] %v7741
    %7752 = vst [vmem:[#allocation11 + $0x20] sm:$0x1f] %v7742
    %7753 = vst [vmem:[#allocation11 + $0x28] sm:$0x1f] %v7743
    %7754 = vst [vmem:[#allocation11 + $0x30] sm:$0x1f] %v7744
    %7755 = vst [vmem:[#allocation11 + $0x38] sm:$0x1f] %v7745
    %7756 = vst [vmem:[#allocation11 + $0x40] sm:$0x1f] %v7746
    %7757 = vst [vmem:[#allocation11 + $0x48] sm:$0x1f] %v7747
    // Predicated region
    $region42: #{lenet5v5_forward.2} parent=1 // pred_check
      _
    $region43: #{lenet5v5_forward.2} parent=1 // pred_check_branch
      %7759 = sbr.rel (0) target = $region45
    $region44: #{lenet5v5_forward.2} parent=1 // pred_region
      %s7761 = ssub.s32 1280, 1280
      %7762 = vsyncadd [#allocation4], %s7761
      %s7763 = sshll.u32 [#allocation11], 4
      %s7764 = int_to_ptr.vmem [resolvable:$true] %s7763
      %7769 = dma.vmem_to_hbm [thread:$0]  %s7764, 1280, %s5, [#allocation4], 128, 128, 8
    $region45: #{lenet5v5_forward.2} parent=1 // pred_fallthru
      _
    // Predicated region
    $region46: #{lenet5v5_forward.2} parent=1 // pred_check
      _
    $region47: #{lenet5v5_forward.2} parent=1 // pred_check_branch
      %7771 = sbr.rel (0) target = $region49
    $region48: #{lenet5v5_forward.2} parent=1 // pred_region
      %7772 = dma.done [#allocation4], 1280
    $region49: #{lenet5v5_forward.2} parent=1 // pred_fallthru
      _
    %7773 = vsyncpa [#allocation3], 1
    %7774 = vsyncpa [#allocation6], 1
    %7775 = vsyncpa [#allocation9], 1
    %7776 = vsyncpa [#allocation4], 1

</llo_original>
